<compile_context>
chip_gen: v6e
topology: v6e:2x2x1
jax: 0.10.0
libtpu: 0.0.40
codegen_flags: <defaults>
</compile_context>

<pallas_src>
import functools

import jax
import jax.numpy as jnp
from jax.experimental import pallas as pl
from jax.experimental.pallas import tpu as pltpu

HIDDEN = 512    # hardcoded in the module: self.hidden_size = 512
LANE = 128      # TPU lane width
SUBLANE = 8     # f32 sublane count


def _round_up(x, m):
    return ((x + m - 1) // m) * m


def _gru_linear_kernel(x_ref, wih_ref, whh_ref, bg_ref, bhn_ref,
                       wlin_ref, blin_ref, pred_ref, gi_ref,
                       *, seq_len, batch_pad):
    """Whole GRU + Linear + Sigmoid forward in a single invocation.

    x_ref   : (T*Bp, L)    time-major latents (batch padded to Bp)        bf16
    wih_ref : (L, 3H)      input->gates weights  (gate order r, z, n)     bf16
    whh_ref : (H, 3H)      hidden->gates weights (gate order r, z, n)     bf16
    bg_ref  : (1, 3H)      b_ih + [b_hr, b_hz, 0]  (pre-folded)            f32
    bhn_ref : (1, H)       b_hn (must stay inside the r*(...) term)        f32
    wlin_ref: (H, Cp)      final linear, out dim padded to mult. of 128   bf16
    blin_ref: (1, Cp)                                                      f32
    pred_ref: (Bp, Cp)     sigmoid(linear(h_T)); padded rows/lanes sliced outside
    gi_ref  : (T, Bp, 3H)  VMEM scratch holding the precomputed input proj f32
    """
    T, Bp, H = seq_len, batch_pad, HIDDEN

    # ---- 1) All non-recurrent input projections in ONE MXU matmul, with
    #         b_ih + b_hr + b_hz already folded into bg. ----
    gi2d = jnp.dot(x_ref[...], wih_ref[...],
                   preferred_element_type=jnp.float32) + bg_ref[...]
    # (T*Bp, 3H) -> (T, Bp, 3H): Bp is a multiple of 8, so this is a pure
    # relabeling of sublane tiles (no data movement); per-step access then uses
    # free leading-dim indexing instead of unaligned pl.ds slices.
    gi_ref[...] = gi2d.reshape(T, Bp, 3 * H)

    bhn = bhn_ref[...]                                   # (1, H)

    # ---- 2) Serial recurrence: exactly one (Bp,H)x(H,3H) MXU matmul per step. ----
    def step(t, h):
        gi_t = gi_ref[t]                                 # (Bp, 3H) f32, aligned
        gh = jnp.dot(h.astype(jnp.bfloat16), whh_ref[...],
                     preferred_element_type=jnp.float32)  # (Bp, 3H) f32
        r = jax.nn.sigmoid(gi_t[:, 0:H] + gh[:, 0:H])
        z = jax.nn.sigmoid(gi_t[:, H:2 * H] + gh[:, H:2 * H])
        n = jnp.tanh(gi_t[:, 2 * H:] + r * (gh[:, 2 * H:] + bhn))
        return (1.0 - z) * n + z * h

    h = jnp.zeros((Bp, H), jnp.float32)                  # nn.GRU default h0 = 0
    if T <= 16:
        # Short sequences: fully visible straight-line loop for the scheduler.
        for t in range(T):
            h = step(t, h)
    else:
        # Long sequences: bound live ranges / code size, keep modest unroll.
        h = jax.lax.fori_loop(0, T, step, h, unroll=2)

    # ---- 3) Final Linear + Sigmoid on the last hidden state (lane-dense). ----
    logits = jnp.dot(h.astype(jnp.bfloat16), wlin_ref[...],
                     preferred_element_type=jnp.float32) + blin_ref[...]
    pred_ref[...] = jax.nn.sigmoid(logits)


def downstream_linear_net_forward(stacked_latents, params, cpc_hidden):
    """Pallas forward of the finished=True, y=None, latents-only path.

    stacked_latents: (T, B, L) -- equivalent of torch.cat(cpc_latents, dim=0).
    Returns (pred, cpc_hidden), matching the PyTorch module's return.
    """
    T, B, L = stacked_latents.shape
    H = HIDDEN
    C = params["w_lin"].shape[1]
    Cp = _round_up(C, LANE)        # lane-dense output slab
    Bp = _round_up(B, SUBLANE)     # sublane-aligned batch

    # Pad batch to a full sublane group (padded rows are zeros; they evolve
    # independently in the GRU and are sliced away at the end).
    x = stacked_latents
    if Bp != B:
        x = jnp.pad(x, ((0, 0), (0, Bp - B), (0, 0)))
    x2d = x.reshape(T * Bp, L).astype(jnp.bfloat16)      # cast once, in XLA

    w_lin = jnp.pad(params["w_lin"], ((0, 0), (0, Cp - C)))
    b_lin = jnp.pad(params["b_lin"], ((0, 0), (0, Cp - C)))

    # Fold b_ih + b_hr + b_hz into the precomputed input projection; keep b_hn
    # separate (it must stay inside the r*(W_hn h + b_hn) term).
    b_hh = params["b_hh"]
    b_gates = params["b_ih"] + jnp.concatenate(
        [b_hh[:, :2 * H], jnp.zeros((1, H), b_hh.dtype)], axis=1)   # (1, 3H)
    b_hn = b_hh[:, 2 * H:]                                          # (1, H)

    cost = pl.CostEstimate(
        flops=(2 * T * Bp * L * 3 * H            # input projection
               + 2 * T * Bp * H * 3 * H          # recurrence
               + 2 * Bp * H * Cp),               # final linear
        transcendentals=T * Bp * 3 * H + Bp * Cp,
        bytes_accessed=(x2d.size * 2
                        + params["w_ih"].size * 2
                        + params["w_hh"].size * 2
                        + w_lin.size * 2
                        + (b_gates.size + b_hn.size + b_lin.size) * 4
                        + Bp * Cp * 4),
    )

    kernel = functools.partial(_gru_linear_kernel, seq_len=T, batch_pad=Bp)
    vmem = pltpu.MemorySpace.VMEM

    pred_pad = pl.pallas_call(
        kernel,
        out_shape=jax.ShapeDtypeStruct((Bp, Cp), jnp.float32),
        in_specs=[pl.BlockSpec(memory_space=vmem)] * 7,   # everything resident
        out_specs=pl.BlockSpec(memory_space=vmem),
        scratch_shapes=[pltpu.VMEM((T, Bp, 3 * H), jnp.float32)],
        compiler_params=pltpu.CompilerParams(vmem_limit_bytes=32 * 1024 * 1024),
        cost_estimate=cost,
    )(x2d, params["w_ih"], params["w_hh"], b_gates, b_hn, w_lin, b_lin)

    return pred_pad[:B, :C], cpc_hidden


def _reference_forward(stacked_latents, params):
    """Pure-JAX reference using the same bf16-weight / f32-accumulation recipe."""
    T, B, L = stacked_latents.shape
    H = HIDDEN

    def dot32(a, w):
        return jnp.dot(a.astype(jnp.bfloat16), w, preferred_element_type=jnp.float32)

    def step(h, x):
        gi = dot32(x, params["w_ih"]) + params["b_ih"]
        gh = dot32(h, params["w_hh"]) + params["b_hh"]
        r = jax.nn.sigmoid(gi[:, 0:H] + gh[:, 0:H])
        z = jax.nn.sigmoid(gi[:, H:2 * H] + gh[:, H:2 * H])
        n = jnp.tanh(gi[:, 2 * H:] + r * gh[:, 2 * H:])
        return (1.0 - z) * n + z * h, None

    h0 = jnp.zeros((B, H), jnp.float32)
    h_last, _ = jax.lax.scan(step, h0, stacked_latents)
    return jax.nn.sigmoid(dot32(h_last, params["w_lin"]) + params["b_lin"])


def init_params(key, latent_size, out_classes):
    """Deterministic init matching nn.GRU(latent, 512) + nn.Linear(512, C) shapes.

    Matmul weights are stored pre-transposed (in, out) with gate order [r, z, n]
    along the out axis, and in bfloat16 (MXU-native); biases stay float32.
    """
    ks = jax.random.split(key, 6)
    s = 1.0 / jnp.sqrt(HIDDEN)
    u = lambda k, shape: jax.random.uniform(k, shape, jnp.float32, -s, s)
    return {
        "w_ih": u(ks[0], (latent_size, 3 * HIDDEN)).astype(jnp.bfloat16),
        "w_hh": u(ks[1], (HIDDEN, 3 * HIDDEN)).astype(jnp.bfloat16),
        "b_ih": u(ks[2], (1, 3 * HIDDEN)),
        "b_hh": u(ks[3], (1, 3 * HIDDEN)),
        "w_lin": u(ks[4], (HIDDEN, out_classes)).astype(jnp.bfloat16),
        "b_lin": u(ks[5], (1, out_classes)),
    }


if __name__ == "__main__":
    key = jax.random.PRNGKey(0)
    T, B, L, C = 8, 2, 32, 4  # seq, batch, latent_size, out_classes

    k_x, k_p, k_h = jax.random.split(key, 3)
    # Equivalent of torch.cat(cpc_latents, dim=0): (T, B, latent_size)
    stacked_latents = jax.random.normal(k_x, (T, B, L), jnp.float32)
    params = init_params(k_p, L, C)
    # cpc_hidden is passed through untouched by this branch of forward().
    cpc_hidden = jax.random.normal(k_h, (1, B, HIDDEN), jnp.float32)

    pred, hidden_out = downstream_linear_net_forward(stacked_latents, params, cpc_hidden)
    pred = jax.block_until_ready(pred)

    ref = _reference_forward(stacked_latents, params)
    assert pred.shape == (B, C)
    # bf16 matmul inputs => tolerance loosened accordingly (reference uses the
    # same bf16 quantization, so the remaining delta is reduction order +
    # transcendental approximation differences).
    assert jnp.allclose(pred, ref, atol=2e-2, rtol=2e-2), \
        f"max abs diff = {jnp.max(jnp.abs(pred - ref))}"
    assert jnp.allclose(hidden_out, cpc_hidden)

    print("KERNEL_OK")
</pallas_src>

<mosaic_0001>
module attributes {stable_mosaic.version = 11 : i64} {
  func.func @_gru_linear_kernel(%arg0: memref<64x32xbf16, #tpu.memory_space<vmem>>, %arg1: memref<32x1536xbf16, #tpu.memory_space<vmem>>, %arg2: memref<512x1536xbf16, #tpu.memory_space<vmem>>, %arg3: memref<1x1536xf32, #tpu.memory_space<vmem>>, %arg4: memref<1x512xf32, #tpu.memory_space<vmem>>, %arg5: memref<512x128xbf16, #tpu.memory_space<vmem>>, %arg6: memref<1x128xf32, #tpu.memory_space<vmem>>, %arg7: memref<8x128xf32, #tpu.memory_space<vmem>>, %arg8: memref<8x8x1536xf32, #tpu.memory_space<vmem>>) attributes {dimension_semantics = [], scalar_prefetch = 0 : i64, scratch_operands = 1 : i64, tpu.core_type = #tpu.core_type<tc>} {
    %c0 = arith.constant 0 : index
    %c0_0 = arith.constant 0 : index
    %0 = vector.load %arg0[%c0, %c0_0] : memref<64x32xbf16, #tpu.memory_space<vmem>>, vector<64x32xbf16>
    %c0_1 = arith.constant 0 : index
    %c0_2 = arith.constant 0 : index
    %1 = vector.load %arg1[%c0_1, %c0_2] : memref<32x1536xbf16, #tpu.memory_space<vmem>>, vector<32x1536xbf16>
    %cst = arith.constant dense<0.000000e+00> : vector<64x1536xf32>
    %2 = tpu.matmul %0, %1, %cst {dimension_numbers = #tpu.dot_dimension_numbers<[1], [0], [0], [1], [0, 0, 1, 1], [], []>} : vector<64x32xbf16>, vector<32x1536xbf16>, vector<64x1536xf32> -> vector<64x1536xf32>
    %c0_3 = arith.constant 0 : index
    %c0_4 = arith.constant 0 : index
    %3 = vector.load %arg3[%c0_3, %c0_4] : memref<1x1536xf32, #tpu.memory_space<vmem>>, vector<1x1536xf32>
    %4 = vector.broadcast %3 : vector<1x1536xf32> to vector<64x1536xf32>
    %5 = arith.addf %2, %4 : vector<64x1536xf32>
    %6 = vector.shape_cast %5 : vector<64x1536xf32> to vector<8x8x1536xf32>
    %c0_5 = arith.constant 0 : index
    %c0_6 = arith.constant 0 : index
    %c0_7 = arith.constant 0 : index
    %7 = vector.load %arg8[%c0_5, %c0_6, %c0_7] : memref<8x8x1536xf32, #tpu.memory_space<vmem>>, vector<8x8x1536xf32>
    tpu.vector_store %arg8[%c0_5, %c0_6, %c0_7], %6 {strides = array<i32>} : memref<8x8x1536xf32, #tpu.memory_space<vmem>>, vector<8x8x1536xf32>,
    %c0_8 = arith.constant 0 : index
    %c0_9 = arith.constant 0 : index
    %8 = vector.load %arg4[%c0_8, %c0_9] : memref<1x512xf32, #tpu.memory_space<vmem>>, vector<1x512xf32>
    %cst_10 = arith.constant 0.000000e+00 : f32
    %9 = vector.broadcast %cst_10 : f32 to vector<8x512xf32>
    %c0_11 = arith.constant 0 : index
    %c0_12 = arith.constant 0 : index
    %c0_13 = arith.constant 0 : index
    %10 = vector.load %arg8[%c0_11, %c0_12, %c0_13] : memref<8x8x1536xf32, #tpu.memory_space<vmem>>, vector<1x8x1536xf32>
    %11 = vector.shape_cast %10 : vector<1x8x1536xf32> to vector<8x1536xf32>
    %12 = arith.truncf %9 : vector<8x512xf32> to vector<8x512xbf16>
    %c0_14 = arith.constant 0 : index
    %c0_15 = arith.constant 0 : index
    %13 = vector.load %arg2[%c0_14, %c0_15] : memref<512x1536xbf16, #tpu.memory_space<vmem>>, vector<512x1536xbf16>
    %cst_16 = arith.constant dense<0.000000e+00> : vector<8x1536xf32>
    %14 = tpu.matmul %12, %13, %cst_16 {dimension_numbers = #tpu.dot_dimension_numbers<[1], [0], [0], [1], [0, 0, 1, 1], [], []>} : vector<8x512xbf16>, vector<512x1536xbf16>, vector<8x1536xf32> -> vector<8x1536xf32>
    %15 = vector.extract_strided_slice %11 {offsets = [0, 0], sizes = [8, 512], strides = [1, 1]} : vector<8x1536xf32> to vector<8x512xf32>
    %16 = vector.extract_strided_slice %14 {offsets = [0, 0], sizes = [8, 512], strides = [1, 1]} : vector<8x1536xf32> to vector<8x512xf32>
    %17 = arith.addf %15, %16 : vector<8x512xf32>
    %18 = arith.negf %17 : vector<8x512xf32>
    %19 = math.exp %18 : vector<8x512xf32>
    %cst_17 = arith.constant 1.000000e+00 : f32
    %20 = vector.broadcast %cst_17 : f32 to vector<8x512xf32>
    %21 = arith.addf %20, %19 : vector<8x512xf32>
    %22 = arith.divf %20, %21 : vector<8x512xf32>
    %23 = vector.extract_strided_slice %11 {offsets = [0, 512], sizes = [8, 512], strides = [1, 1]} : vector<8x1536xf32> to vector<8x512xf32>
    %24 = vector.extract_strided_slice %14 {offsets = [0, 512], sizes = [8, 512], strides = [1, 1]} : vector<8x1536xf32> to vector<8x512xf32>
    %25 = arith.addf %23, %24 : vector<8x512xf32>
    %26 = arith.negf %25 : vector<8x512xf32>
    %27 = math.exp %26 : vector<8x512xf32>
    %cst_18 = arith.constant 1.000000e+00 : f32
    %28 = vector.broadcast %cst_18 : f32 to vector<8x512xf32>
    %29 = arith.addf %28, %27 : vector<8x512xf32>
    %30 = arith.divf %28, %29 : vector<8x512xf32>
    %31 = vector.extract_strided_slice %11 {offsets = [0, 1024], sizes = [8, 512], strides = [1, 1]} : vector<8x1536xf32> to vector<8x512xf32>
    %32 = vector.extract_strided_slice %14 {offsets = [0, 1024], sizes = [8, 512], strides = [1, 1]} : vector<8x1536xf32> to vector<8x512xf32>
    %33 = vector.broadcast %8 : vector<1x512xf32> to vector<8x512xf32>
    %34 = arith.addf %32, %33 : vector<8x512xf32>
    %35 = arith.mulf %22, %34 : vector<8x512xf32>
    %36 = arith.addf %31, %35 : vector<8x512xf32>
    %37 = math.tanh %36 : vector<8x512xf32>
    %cst_19 = arith.constant 1.000000e+00 : f32
    %38 = vector.broadcast %cst_19 : f32 to vector<8x512xf32>
    %39 = arith.subf %38, %30 : vector<8x512xf32>
    %40 = arith.mulf %39, %37 : vector<8x512xf32>
    %41 = arith.mulf %30, %9 : vector<8x512xf32>
    %42 = arith.addf %40, %41 : vector<8x512xf32>
    %c1 = arith.constant 1 : index
    %c0_20 = arith.constant 0 : index
    %c0_21 = arith.constant 0 : index
    %43 = vector.load %arg8[%c1, %c0_20, %c0_21] : memref<8x8x1536xf32, #tpu.memory_space<vmem>>, vector<1x8x1536xf32>
    %44 = vector.shape_cast %43 : vector<1x8x1536xf32> to vector<8x1536xf32>
    %45 = arith.truncf %42 : vector<8x512xf32> to vector<8x512xbf16>
    %c0_22 = arith.constant 0 : index
    %c0_23 = arith.constant 0 : index
    %46 = vector.load %arg2[%c0_22, %c0_23] : memref<512x1536xbf16, #tpu.memory_space<vmem>>, vector<512x1536xbf16>
    %cst_24 = arith.constant dense<0.000000e+00> : vector<8x1536xf32>
    %47 = tpu.matmul %45, %46, %cst_24 {dimension_numbers = #tpu.dot_dimension_numbers<[1], [0], [0], [1], [0, 0, 1, 1], [], []>} : vector<8x512xbf16>, vector<512x1536xbf16>, vector<8x1536xf32> -> vector<8x1536xf32>
    %48 = vector.extract_strided_slice %44 {offsets = [0, 0], sizes = [8, 512], strides = [1, 1]} : vector<8x1536xf32> to vector<8x512xf32>
    %49 = vector.extract_strided_slice %47 {offsets = [0, 0], sizes = [8, 512], strides = [1, 1]} : vector<8x1536xf32> to vector<8x512xf32>
    %50 = arith.addf %48, %49 : vector<8x512xf32>
    %51 = arith.negf %50 : vector<8x512xf32>
    %52 = math.exp %51 : vector<8x512xf32>
    %cst_25 = arith.constant 1.000000e+00 : f32
    %53 = vector.broadcast %cst_25 : f32 to vector<8x512xf32>
    %54 = arith.addf %53, %52 : vector<8x512xf32>
    %55 = arith.divf %53, %54 : vector<8x512xf32>
    %56 = vector.extract_strided_slice %44 {offsets = [0, 512], sizes = [8, 512], strides = [1, 1]} : vector<8x1536xf32> to vector<8x512xf32>
    %57 = vector.extract_strided_slice %47 {offsets = [0, 512], sizes = [8, 512], strides = [1, 1]} : vector<8x1536xf32> to vector<8x512xf32>
    %58 = arith.addf %56, %57 : vector<8x512xf32>
    %59 = arith.negf %58 : vector<8x512xf32>
    %60 = math.exp %59 : vector<8x512xf32>
    %cst_26 = arith.constant 1.000000e+00 : f32
    %61 = vector.broadcast %cst_26 : f32 to vector<8x512xf32>
    %62 = arith.addf %61, %60 : vector<8x512xf32>
    %63 = arith.divf %61, %62 : vector<8x512xf32>
    %64 = vector.extract_strided_slice %44 {offsets = [0, 1024], sizes = [8, 512], strides = [1, 1]} : vector<8x1536xf32> to vector<8x512xf32>
    %65 = vector.extract_strided_slice %47 {offsets = [0, 1024], sizes = [8, 512], strides = [1, 1]} : vector<8x1536xf32> to vector<8x512xf32>
    %66 = vector.broadcast %8 : vector<1x512xf32> to vector<8x512xf32>
    %67 = arith.addf %65, %66 : vector<8x512xf32>
    %68 = arith.mulf %55, %67 : vector<8x512xf32>
    %69 = arith.addf %64, %68 : vector<8x512xf32>
    %70 = math.tanh %69 : vector<8x512xf32>
    %cst_27 = arith.constant 1.000000e+00 : f32
    %71 = vector.broadcast %cst_27 : f32 to vector<8x512xf32>
    %72 = arith.subf %71, %63 : vector<8x512xf32>
    %73 = arith.mulf %72, %70 : vector<8x512xf32>
    %74 = arith.mulf %63, %42 : vector<8x512xf32>
    %75 = arith.addf %73, %74 : vector<8x512xf32>
    %c2 = arith.constant 2 : index
    %c0_28 = arith.constant 0 : index
    %c0_29 = arith.constant 0 : index
    %76 = vector.load %arg8[%c2, %c0_28, %c0_29] : memref<8x8x1536xf32, #tpu.memory_space<vmem>>, vector<1x8x1536xf32>
    %77 = vector.shape_cast %76 : vector<1x8x1536xf32> to vector<8x1536xf32>
    %78 = arith.truncf %75 : vector<8x512xf32> to vector<8x512xbf16>
    %c0_30 = arith.constant 0 : index
    %c0_31 = arith.constant 0 : index
    %79 = vector.load %arg2[%c0_30, %c0_31] : memref<512x1536xbf16, #tpu.memory_space<vmem>>, vector<512x1536xbf16>
    %cst_32 = arith.constant dense<0.000000e+00> : vector<8x1536xf32>
    %80 = tpu.matmul %78, %79, %cst_32 {dimension_numbers = #tpu.dot_dimension_numbers<[1], [0], [0], [1], [0, 0, 1, 1], [], []>} : vector<8x512xbf16>, vector<512x1536xbf16>, vector<8x1536xf32> -> vector<8x1536xf32>
    %81 = vector.extract_strided_slice %77 {offsets = [0, 0], sizes = [8, 512], strides = [1, 1]} : vector<8x1536xf32> to vector<8x512xf32>
    %82 = vector.extract_strided_slice %80 {offsets = [0, 0], sizes = [8, 512], strides = [1, 1]} : vector<8x1536xf32> to vector<8x512xf32>
    %83 = arith.addf %81, %82 : vector<8x512xf32>
    %84 = arith.negf %83 : vector<8x512xf32>
    %85 = math.exp %84 : vector<8x512xf32>
    %cst_33 = arith.constant 1.000000e+00 : f32
    %86 = vector.broadcast %cst_33 : f32 to vector<8x512xf32>
    %87 = arith.addf %86, %85 : vector<8x512xf32>
    %88 = arith.divf %86, %87 : vector<8x512xf32>
    %89 = vector.extract_strided_slice %77 {offsets = [0, 512], sizes = [8, 512], strides = [1, 1]} : vector<8x1536xf32> to vector<8x512xf32>
    %90 = vector.extract_strided_slice %80 {offsets = [0, 512], sizes = [8, 512], strides = [1, 1]} : vector<8x1536xf32> to vector<8x512xf32>
    %91 = arith.addf %89, %90 : vector<8x512xf32>
    %92 = arith.negf %91 : vector<8x512xf32>
    %93 = math.exp %92 : vector<8x512xf32>
    %cst_34 = arith.constant 1.000000e+00 : f32
    %94 = vector.broadcast %cst_34 : f32 to vector<8x512xf32>
    %95 = arith.addf %94, %93 : vector<8x512xf32>
    %96 = arith.divf %94, %95 : vector<8x512xf32>
    %97 = vector.extract_strided_slice %77 {offsets = [0, 1024], sizes = [8, 512], strides = [1, 1]} : vector<8x1536xf32> to vector<8x512xf32>
    %98 = vector.extract_strided_slice %80 {offsets = [0, 1024], sizes = [8, 512], strides = [1, 1]} : vector<8x1536xf32> to vector<8x512xf32>
    %99 = vector.broadcast %8 : vector<1x512xf32> to vector<8x512xf32>
    %100 = arith.addf %98, %99 : vector<8x512xf32>
    %101 = arith.mulf %88, %100 : vector<8x512xf32>
    %102 = arith.addf %97, %101 : vector<8x512xf32>
    %103 = math.tanh %102 : vector<8x512xf32>
    %cst_35 = arith.constant 1.000000e+00 : f32
    %104 = vector.broadcast %cst_35 : f32 to vector<8x512xf32>
    %105 = arith.subf %104, %96 : vector<8x512xf32>
    %106 = arith.mulf %105, %103 : vector<8x512xf32>
    %107 = arith.mulf %96, %75 : vector<8x512xf32>
    %108 = arith.addf %106, %107 : vector<8x512xf32>
    %c3 = arith.constant 3 : index
    %c0_36 = arith.constant 0 : index
    %c0_37 = arith.constant 0 : index
    %109 = vector.load %arg8[%c3, %c0_36, %c0_37] : memref<8x8x1536xf32, #tpu.memory_space<vmem>>, vector<1x8x1536xf32>
    %110 = vector.shape_cast %109 : vector<1x8x1536xf32> to vector<8x1536xf32>
    %111 = arith.truncf %108 : vector<8x512xf32> to vector<8x512xbf16>
    %c0_38 = arith.constant 0 : index
    %c0_39 = arith.constant 0 : index
    %112 = vector.load %arg2[%c0_38, %c0_39] : memref<512x1536xbf16, #tpu.memory_space<vmem>>, vector<512x1536xbf16>
    %cst_40 = arith.constant dense<0.000000e+00> : vector<8x1536xf32>
    %113 = tpu.matmul %111, %112, %cst_40 {dimension_numbers = #tpu.dot_dimension_numbers<[1], [0], [0], [1], [0, 0, 1, 1], [], []>} : vector<8x512xbf16>, vector<512x1536xbf16>, vector<8x1536xf32> -> vector<8x1536xf32>
    %114 = vector.extract_strided_slice %110 {offsets = [0, 0], sizes = [8, 512], strides = [1, 1]} : vector<8x1536xf32> to vector<8x512xf32>
    %115 = vector.extract_strided_slice %113 {offsets = [0, 0], sizes = [8, 512], strides = [1, 1]} : vector<8x1536xf32> to vector<8x512xf32>
    %116 = arith.addf %114, %115 : vector<8x512xf32>
    %117 = arith.negf %116 : vector<8x512xf32>
    %118 = math.exp %117 : vector<8x512xf32>
    %cst_41 = arith.constant 1.000000e+00 : f32
    %119 = vector.broadcast %cst_41 : f32 to vector<8x512xf32>
    %120 = arith.addf %119, %118 : vector<8x512xf32>
    %121 = arith.divf %119, %120 : vector<8x512xf32>
    %122 = vector.extract_strided_slice %110 {offsets = [0, 512], sizes = [8, 512], strides = [1, 1]} : vector<8x1536xf32> to vector<8x512xf32>
    %123 = vector.extract_strided_slice %113 {offsets = [0, 512], sizes = [8, 512], strides = [1, 1]} : vector<8x1536xf32> to vector<8x512xf32>
    %124 = arith.addf %122, %123 : vector<8x512xf32>
    %125 = arith.negf %124 : vector<8x512xf32>
    %126 = math.exp %125 : vector<8x512xf32>
    %cst_42 = arith.constant 1.000000e+00 : f32
    %127 = vector.broadcast %cst_42 : f32 to vector<8x512xf32>
    %128 = arith.addf %127, %126 : vector<8x512xf32>
    %129 = arith.divf %127, %128 : vector<8x512xf32>
    %130 = vector.extract_strided_slice %110 {offsets = [0, 1024], sizes = [8, 512], strides = [1, 1]} : vector<8x1536xf32> to vector<8x512xf32>
    %131 = vector.extract_strided_slice %113 {offsets = [0, 1024], sizes = [8, 512], strides = [1, 1]} : vector<8x1536xf32> to vector<8x512xf32>
    %132 = vector.broadcast %8 : vector<1x512xf32> to vector<8x512xf32>
    %133 = arith.addf %131, %132 : vector<8x512xf32>
    %134 = arith.mulf %121, %133 : vector<8x512xf32>
    %135 = arith.addf %130, %134 : vector<8x512xf32>
    %136 = math.tanh %135 : vector<8x512xf32>
    %cst_43 = arith.constant 1.000000e+00 : f32
    %137 = vector.broadcast %cst_43 : f32 to vector<8x512xf32>
    %138 = arith.subf %137, %129 : vector<8x512xf32>
    %139 = arith.mulf %138, %136 : vector<8x512xf32>
    %140 = arith.mulf %129, %108 : vector<8x512xf32>
    %141 = arith.addf %139, %140 : vector<8x512xf32>
    %c4 = arith.constant 4 : index
    %c0_44 = arith.constant 0 : index
    %c0_45 = arith.constant 0 : index
    %142 = vector.load %arg8[%c4, %c0_44, %c0_45] : memref<8x8x1536xf32, #tpu.memory_space<vmem>>, vector<1x8x1536xf32>
    %143 = vector.shape_cast %142 : vector<1x8x1536xf32> to vector<8x1536xf32>
    %144 = arith.truncf %141 : vector<8x512xf32> to vector<8x512xbf16>
    %c0_46 = arith.constant 0 : index
    %c0_47 = arith.constant 0 : index
    %145 = vector.load %arg2[%c0_46, %c0_47] : memref<512x1536xbf16, #tpu.memory_space<vmem>>, vector<512x1536xbf16>
    %cst_48 = arith.constant dense<0.000000e+00> : vector<8x1536xf32>
    %146 = tpu.matmul %144, %145, %cst_48 {dimension_numbers = #tpu.dot_dimension_numbers<[1], [0], [0], [1], [0, 0, 1, 1], [], []>} : vector<8x512xbf16>, vector<512x1536xbf16>, vector<8x1536xf32> -> vector<8x1536xf32>
    %147 = vector.extract_strided_slice %143 {offsets = [0, 0], sizes = [8, 512], strides = [1, 1]} : vector<8x1536xf32> to vector<8x512xf32>
    %148 = vector.extract_strided_slice %146 {offsets = [0, 0], sizes = [8, 512], strides = [1, 1]} : vector<8x1536xf32> to vector<8x512xf32>
    %149 = arith.addf %147, %148 : vector<8x512xf32>
    %150 = arith.negf %149 : vector<8x512xf32>
    %151 = math.exp %150 : vector<8x512xf32>
    %cst_49 = arith.constant 1.000000e+00 : f32
    %152 = vector.broadcast %cst_49 : f32 to vector<8x512xf32>
    %153 = arith.addf %152, %151 : vector<8x512xf32>
    %154 = arith.divf %152, %153 : vector<8x512xf32>
    %155 = vector.extract_strided_slice %143 {offsets = [0, 512], sizes = [8, 512], strides = [1, 1]} : vector<8x1536xf32> to vector<8x512xf32>
    %156 = vector.extract_strided_slice %146 {offsets = [0, 512], sizes = [8, 512], strides = [1, 1]} : vector<8x1536xf32> to vector<8x512xf32>
    %157 = arith.addf %155, %156 : vector<8x512xf32>
    %158 = arith.negf %157 : vector<8x512xf32>
    %159 = math.exp %158 : vector<8x512xf32>
    %cst_50 = arith.constant 1.000000e+00 : f32
    %160 = vector.broadcast %cst_50 : f32 to vector<8x512xf32>
    %161 = arith.addf %160, %159 : vector<8x512xf32>
    %162 = arith.divf %160, %161 : vector<8x512xf32>
    %163 = vector.extract_strided_slice %143 {offsets = [0, 1024], sizes = [8, 512], strides = [1, 1]} : vector<8x1536xf32> to vector<8x512xf32>
    %164 = vector.extract_strided_slice %146 {offsets = [0, 1024], sizes = [8, 512], strides = [1, 1]} : vector<8x1536xf32> to vector<8x512xf32>
    %165 = vector.broadcast %8 : vector<1x512xf32> to vector<8x512xf32>
    %166 = arith.addf %164, %165 : vector<8x512xf32>
    %167 = arith.mulf %154, %166 : vector<8x512xf32>
    %168 = arith.addf %163, %167 : vector<8x512xf32>
    %169 = math.tanh %168 : vector<8x512xf32>
    %cst_51 = arith.constant 1.000000e+00 : f32
    %170 = vector.broadcast %cst_51 : f32 to vector<8x512xf32>
    %171 = arith.subf %170, %162 : vector<8x512xf32>
    %172 = arith.mulf %171, %169 : vector<8x512xf32>
    %173 = arith.mulf %162, %141 : vector<8x512xf32>
    %174 = arith.addf %172, %173 : vector<8x512xf32>
    %c5 = arith.constant 5 : index
    %c0_52 = arith.constant 0 : index
    %c0_53 = arith.constant 0 : index
    %175 = vector.load %arg8[%c5, %c0_52, %c0_53] : memref<8x8x1536xf32, #tpu.memory_space<vmem>>, vector<1x8x1536xf32>
    %176 = vector.shape_cast %175 : vector<1x8x1536xf32> to vector<8x1536xf32>
    %177 = arith.truncf %174 : vector<8x512xf32> to vector<8x512xbf16>
    %c0_54 = arith.constant 0 : index
    %c0_55 = arith.constant 0 : index
    %178 = vector.load %arg2[%c0_54, %c0_55] : memref<512x1536xbf16, #tpu.memory_space<vmem>>, vector<512x1536xbf16>
    %cst_56 = arith.constant dense<0.000000e+00> : vector<8x1536xf32>
    %179 = tpu.matmul %177, %178, %cst_56 {dimension_numbers = #tpu.dot_dimension_numbers<[1], [0], [0], [1], [0, 0, 1, 1], [], []>} : vector<8x512xbf16>, vector<512x1536xbf16>, vector<8x1536xf32> -> vector<8x1536xf32>
    %180 = vector.extract_strided_slice %176 {offsets = [0, 0], sizes = [8, 512], strides = [1, 1]} : vector<8x1536xf32> to vector<8x512xf32>
    %181 = vector.extract_strided_slice %179 {offsets = [0, 0], sizes = [8, 512], strides = [1, 1]} : vector<8x1536xf32> to vector<8x512xf32>
    %182 = arith.addf %180, %181 : vector<8x512xf32>
    %183 = arith.negf %182 : vector<8x512xf32>
    %184 = math.exp %183 : vector<8x512xf32>
    %cst_57 = arith.constant 1.000000e+00 : f32
    %185 = vector.broadcast %cst_57 : f32 to vector<8x512xf32>
    %186 = arith.addf %185, %184 : vector<8x512xf32>
    %187 = arith.divf %185, %186 : vector<8x512xf32>
    %188 = vector.extract_strided_slice %176 {offsets = [0, 512], sizes = [8, 512], strides = [1, 1]} : vector<8x1536xf32> to vector<8x512xf32>
    %189 = vector.extract_strided_slice %179 {offsets = [0, 512], sizes = [8, 512], strides = [1, 1]} : vector<8x1536xf32> to vector<8x512xf32>
    %190 = arith.addf %188, %189 : vector<8x512xf32>
    %191 = arith.negf %190 : vector<8x512xf32>
    %192 = math.exp %191 : vector<8x512xf32>
    %cst_58 = arith.constant 1.000000e+00 : f32
    %193 = vector.broadcast %cst_58 : f32 to vector<8x512xf32>
    %194 = arith.addf %193, %192 : vector<8x512xf32>
    %195 = arith.divf %193, %194 : vector<8x512xf32>
    %196 = vector.extract_strided_slice %176 {offsets = [0, 1024], sizes = [8, 512], strides = [1, 1]} : vector<8x1536xf32> to vector<8x512xf32>
    %197 = vector.extract_strided_slice %179 {offsets = [0, 1024], sizes = [8, 512], strides = [1, 1]} : vector<8x1536xf32> to vector<8x512xf32>
    %198 = vector.broadcast %8 : vector<1x512xf32> to vector<8x512xf32>
    %199 = arith.addf %197, %198 : vector<8x512xf32>
    %200 = arith.mulf %187, %199 : vector<8x512xf32>
    %201 = arith.addf %196, %200 : vector<8x512xf32>
    %202 = math.tanh %201 : vector<8x512xf32>
    %cst_59 = arith.constant 1.000000e+00 : f32
    %203 = vector.broadcast %cst_59 : f32 to vector<8x512xf32>
    %204 = arith.subf %203, %195 : vector<8x512xf32>
    %205 = arith.mulf %204, %202 : vector<8x512xf32>
    %206 = arith.mulf %195, %174 : vector<8x512xf32>
    %207 = arith.addf %205, %206 : vector<8x512xf32>
    %c6 = arith.constant 6 : index
    %c0_60 = arith.constant 0 : index
    %c0_61 = arith.constant 0 : index
    %208 = vector.load %arg8[%c6, %c0_60, %c0_61] : memref<8x8x1536xf32, #tpu.memory_space<vmem>>, vector<1x8x1536xf32>
    %209 = vector.shape_cast %208 : vector<1x8x1536xf32> to vector<8x1536xf32>
    %210 = arith.truncf %207 : vector<8x512xf32> to vector<8x512xbf16>
    %c0_62 = arith.constant 0 : index
    %c0_63 = arith.constant 0 : index
    %211 = vector.load %arg2[%c0_62, %c0_63] : memref<512x1536xbf16, #tpu.memory_space<vmem>>, vector<512x1536xbf16>
    %cst_64 = arith.constant dense<0.000000e+00> : vector<8x1536xf32>
    %212 = tpu.matmul %210, %211, %cst_64 {dimension_numbers = #tpu.dot_dimension_numbers<[1], [0], [0], [1], [0, 0, 1, 1], [], []>} : vector<8x512xbf16>, vector<512x1536xbf16>, vector<8x1536xf32> -> vector<8x1536xf32>
    %213 = vector.extract_strided_slice %209 {offsets = [0, 0], sizes = [8, 512], strides = [1, 1]} : vector<8x1536xf32> to vector<8x512xf32>
    %214 = vector.extract_strided_slice %212 {offsets = [0, 0], sizes = [8, 512], strides = [1, 1]} : vector<8x1536xf32> to vector<8x512xf32>
    %215 = arith.addf %213, %214 : vector<8x512xf32>
    %216 = arith.negf %215 : vector<8x512xf32>
    %217 = math.exp %216 : vector<8x512xf32>
    %cst_65 = arith.constant 1.000000e+00 : f32
    %218 = vector.broadcast %cst_65 : f32 to vector<8x512xf32>
    %219 = arith.addf %218, %217 : vector<8x512xf32>
    %220 = arith.divf %218, %219 : vector<8x512xf32>
    %221 = vector.extract_strided_slice %209 {offsets = [0, 512], sizes = [8, 512], strides = [1, 1]} : vector<8x1536xf32> to vector<8x512xf32>
    %222 = vector.extract_strided_slice %212 {offsets = [0, 512], sizes = [8, 512], strides = [1, 1]} : vector<8x1536xf32> to vector<8x512xf32>
    %223 = arith.addf %221, %222 : vector<8x512xf32>
    %224 = arith.negf %223 : vector<8x512xf32>
    %225 = math.exp %224 : vector<8x512xf32>
    %cst_66 = arith.constant 1.000000e+00 : f32
    %226 = vector.broadcast %cst_66 : f32 to vector<8x512xf32>
    %227 = arith.addf %226, %225 : vector<8x512xf32>
    %228 = arith.divf %226, %227 : vector<8x512xf32>
    %229 = vector.extract_strided_slice %209 {offsets = [0, 1024], sizes = [8, 512], strides = [1, 1]} : vector<8x1536xf32> to vector<8x512xf32>
    %230 = vector.extract_strided_slice %212 {offsets = [0, 1024], sizes = [8, 512], strides = [1, 1]} : vector<8x1536xf32> to vector<8x512xf32>
    %231 = vector.broadcast %8 : vector<1x512xf32> to vector<8x512xf32>
    %232 = arith.addf %230, %231 : vector<8x512xf32>
    %233 = arith.mulf %220, %232 : vector<8x512xf32>
    %234 = arith.addf %229, %233 : vector<8x512xf32>
    %235 = math.tanh %234 : vector<8x512xf32>
    %cst_67 = arith.constant 1.000000e+00 : f32
    %236 = vector.broadcast %cst_67 : f32 to vector<8x512xf32>
    %237 = arith.subf %236, %228 : vector<8x512xf32>
    %238 = arith.mulf %237, %235 : vector<8x512xf32>
    %239 = arith.mulf %228, %207 : vector<8x512xf32>
    %240 = arith.addf %238, %239 : vector<8x512xf32>
    %c7 = arith.constant 7 : index
    %c0_68 = arith.constant 0 : index
    %c0_69 = arith.constant 0 : index
    %241 = vector.load %arg8[%c7, %c0_68, %c0_69] : memref<8x8x1536xf32, #tpu.memory_space<vmem>>, vector<1x8x1536xf32>
    %242 = vector.shape_cast %241 : vector<1x8x1536xf32> to vector<8x1536xf32>
    %243 = arith.truncf %240 : vector<8x512xf32> to vector<8x512xbf16>
    %c0_70 = arith.constant 0 : index
    %c0_71 = arith.constant 0 : index
    %244 = vector.load %arg2[%c0_70, %c0_71] : memref<512x1536xbf16, #tpu.memory_space<vmem>>, vector<512x1536xbf16>
    %cst_72 = arith.constant dense<0.000000e+00> : vector<8x1536xf32>
    %245 = tpu.matmul %243, %244, %cst_72 {dimension_numbers = #tpu.dot_dimension_numbers<[1], [0], [0], [1], [0, 0, 1, 1], [], []>} : vector<8x512xbf16>, vector<512x1536xbf16>, vector<8x1536xf32> -> vector<8x1536xf32>
    %246 = vector.extract_strided_slice %242 {offsets = [0, 0], sizes = [8, 512], strides = [1, 1]} : vector<8x1536xf32> to vector<8x512xf32>
    %247 = vector.extract_strided_slice %245 {offsets = [0, 0], sizes = [8, 512], strides = [1, 1]} : vector<8x1536xf32> to vector<8x512xf32>
    %248 = arith.addf %246, %247 : vector<8x512xf32>
    %249 = arith.negf %248 : vector<8x512xf32>
    %250 = math.exp %249 : vector<8x512xf32>
    %cst_73 = arith.constant 1.000000e+00 : f32
    %251 = vector.broadcast %cst_73 : f32 to vector<8x512xf32>
    %252 = arith.addf %251, %250 : vector<8x512xf32>
    %253 = arith.divf %251, %252 : vector<8x512xf32>
    %254 = vector.extract_strided_slice %242 {offsets = [0, 512], sizes = [8, 512], strides = [1, 1]} : vector<8x1536xf32> to vector<8x512xf32>
    %255 = vector.extract_strided_slice %245 {offsets = [0, 512], sizes = [8, 512], strides = [1, 1]} : vector<8x1536xf32> to vector<8x512xf32>
    %256 = arith.addf %254, %255 : vector<8x512xf32>
    %257 = arith.negf %256 : vector<8x512xf32>
    %258 = math.exp %257 : vector<8x512xf32>
    %cst_74 = arith.constant 1.000000e+00 : f32
    %259 = vector.broadcast %cst_74 : f32 to vector<8x512xf32>
    %260 = arith.addf %259, %258 : vector<8x512xf32>
    %261 = arith.divf %259, %260 : vector<8x512xf32>
    %262 = vector.extract_strided_slice %242 {offsets = [0, 1024], sizes = [8, 512], strides = [1, 1]} : vector<8x1536xf32> to vector<8x512xf32>
    %263 = vector.extract_strided_slice %245 {offsets = [0, 1024], sizes = [8, 512], strides = [1, 1]} : vector<8x1536xf32> to vector<8x512xf32>
    %264 = vector.broadcast %8 : vector<1x512xf32> to vector<8x512xf32>
    %265 = arith.addf %263, %264 : vector<8x512xf32>
    %266 = arith.mulf %253, %265 : vector<8x512xf32>
    %267 = arith.addf %262, %266 : vector<8x512xf32>
    %268 = math.tanh %267 : vector<8x512xf32>
    %cst_75 = arith.constant 1.000000e+00 : f32
    %269 = vector.broadcast %cst_75 : f32 to vector<8x512xf32>
    %270 = arith.subf %269, %261 : vector<8x512xf32>
    %271 = arith.mulf %270, %268 : vector<8x512xf32>
    %272 = arith.mulf %261, %240 : vector<8x512xf32>
    %273 = arith.addf %271, %272 : vector<8x512xf32>
    %274 = arith.truncf %273 : vector<8x512xf32> to vector<8x512xbf16>
    %c0_76 = arith.constant 0 : index
    %c0_77 = arith.constant 0 : index
    %275 = vector.load %arg5[%c0_76, %c0_77] : memref<512x128xbf16, #tpu.memory_space<vmem>>, vector<512x128xbf16>
    %cst_78 = arith.constant dense<0.000000e+00> : vector<8x128xf32>
    %276 = tpu.matmul %274, %275, %cst_78 {dimension_numbers = #tpu.dot_dimension_numbers<[1], [0], [0], [1], [0, 0, 1, 1], [], []>} : vector<8x512xbf16>, vector<512x128xbf16>, vector<8x128xf32> -> vector<8x128xf32>
    %c0_79 = arith.constant 0 : index
    %c0_80 = arith.constant 0 : index
    %277 = vector.load %arg6[%c0_79, %c0_80] : memref<1x128xf32, #tpu.memory_space<vmem>>, vector<1x128xf32>
    %278 = vector.broadcast %277 : vector<1x128xf32> to vector<8x128xf32>
    %279 = arith.addf %276, %278 : vector<8x128xf32>
    %280 = arith.negf %279 : vector<8x128xf32>
    %281 = math.exp %280 : vector<8x128xf32>
    %cst_81 = arith.constant 1.000000e+00 : f32
    %282 = vector.broadcast %cst_81 : f32 to vector<8x128xf32>
    %283 = arith.addf %282, %281 : vector<8x128xf32>
    %284 = arith.divf %282, %283 : vector<8x128xf32>
    %c0_82 = arith.constant 0 : index
    %c0_83 = arith.constant 0 : index
    %285 = vector.load %arg7[%c0_82, %c0_83] : memref<8x128xf32, #tpu.memory_space<vmem>>, vector<8x128xf32>
    tpu.vector_store %arg7[%c0_82, %c0_83], %284 {strides = array<i32>} : memref<8x128xf32, #tpu.memory_space<vmem>>, vector<8x128xf32>,
    return
  }
}

</mosaic_0001>

<llo_original>
// kernel: tpu_custom_call.1
$region0: #{tpu_custom_call.1}
  #allocation0 [shape = 'u32[]', space=smem, size = 0x4, offset = 0x4, fixed_abs, tag = 'smem constant byte address 0x4 - core index']
  #allocation1 [shape = 'u32[144,128]{1,0:T(1,128)}', space=vmem, size = 0x12000, scoped, tag = 'internal scratch']
  #allocation2 [shape = 'f32[8,8,1536]{2,1,0:T(8,128)}', space=vmem, size = 0x60000, scoped, tag = 'scratch operand']
  %s0 = inlined_call_operand.vmem [shape: bf16[64,32], index: 0, kind: input, shape index: {}]
  %s1 = inlined_call_operand.hbm [shape: bf16[32,1536], index: 1, kind: input, shape index: {}]
  %s2 = inlined_call_operand.hbm [shape: bf16[512,1536], index: 2, kind: input, shape index: {}]
  %s3 = inlined_call_operand.hbm [shape: f32[1,1536], index: 3, kind: input, shape index: {}]
  %s4 = inlined_call_operand.hbm [shape: f32[1,512], index: 4, kind: input, shape index: {}]
  %s5 = inlined_call_operand.hbm [shape: bf16[512,128], index: 5, kind: input, shape index: {}]
  %s6 = inlined_call_operand.hbm [shape: f32[1,128], index: 6, kind: input, shape index: {}]
  %s7 = inlined_call_operand.hbm [shape: f32[8,128], index: 7, kind: output, shape index: {}]
  %s8 = sld [smem:[#allocation0]]
  $region62: #{tpu_custom_call.1} parent=0
    _
  %s10 = ssub.s32 1, %s8
  %s11 = scalar_select 0, %s10, %s8
  $region1: #{tpu_custom_call.1} parent=0
    #allocation3 [shape = 'u8[98304]{0}', space=vmem, size = 0x18000, scoped, tag = 'input window, operand 1, single buffered']
    #allocation4 [shape = 's32[1]{0}', space=sflag, size = 0x4, scoped, tag = 'scoped memory for tpu_custom_call.1']
    #allocation5 [shape = 's32[1]{0}', space=sflag, size = 0x4, scoped, tag = 'scoped memory for tpu_custom_call.1']
    #allocation6 [shape = 'u8[1572864]{0}', space=vmem, size = 0x180000, scoped, tag = 'input window, operand 2, single buffered']
    #allocation7 [shape = 's32[1]{0}', space=sflag, size = 0x4, scoped, tag = 'scoped memory for tpu_custom_call.1']
    #allocation8 [shape = 'u8[6144]{0}', space=vmem, size = 0x1800, scoped, tag = 'input window, operand 3, single buffered']
    #allocation9 [shape = 'u8[2048]{0}', space=vmem, size = 0x800, scoped, tag = 'input window, operand 4, single buffered']
    #allocation10 [shape = 's32[1]{0}', space=sflag, size = 0x4, scoped, tag = 'scoped memory for tpu_custom_call.1']
    #allocation11 [shape = 'u8[131072]{0}', space=vmem, size = 0x20000, scoped, tag = 'input window, operand 5, single buffered']
    #allocation12 [shape = 'u8[512]{0}', space=vmem, size = 0x400, scoped, tag = 'input window, operand 6, single buffered']
    #allocation13 [shape = 's32[1]{0}', space=sflag, size = 0x4, scoped, tag = 'scoped memory for tpu_custom_call.1']
    #allocation14 [shape = 'u8[4096]{0}', space=vmem, size = 0x1000, scoped, tag = 'output window, operand 0, single buffered']
    %12 = vsyncpa [#allocation4], 0
    %13 = vsyncpa [#allocation7], 0
    %14 = vsyncpa [#allocation10], 0
    %15 = vsyncpa [#allocation13], 0
    %16 = vsyncpa [#allocation5], 0
    // Predicated region
    $region2: #{tpu_custom_call.1} parent=1 // pred_check
      _
    $region3: #{tpu_custom_call.1} parent=1 // pred_check_branch
      %18 = sbr.rel (0) target = $region5
    $region4: #{tpu_custom_call.1} parent=1 // pred_region
      _
    $region5: #{tpu_custom_call.1} parent=1 // pred_fallthru
      _
    // Predicated region
    $region6: #{tpu_custom_call.1} parent=1 // pred_check
      _
    $region7: #{tpu_custom_call.1} parent=1 // pred_check_branch
      %20 = sbr.rel (0) target = $region9
    $region8: #{tpu_custom_call.1} parent=1 // pred_region
      %s22 = ssub.s32 3072, 3072
      %23 = vsyncadd [#allocation4], %s22
      %s24 = sshll.u32 [#allocation3], 4
      %s25 = int_to_ptr.vmem [resolvable:$true] %s24
      %30 = dma.hbm_to_vmem [thread:$0]  %s1, 3072, %s25, [#allocation4], 768, 768, 48
    $region9: #{tpu_custom_call.1} parent=1 // pred_fallthru
      _
    // Predicated region
    $region10: #{tpu_custom_call.1} parent=1 // pred_check
      _
    $region11: #{tpu_custom_call.1} parent=1 // pred_check_branch
      %32 = sbr.rel (0) target = $region13
    $region12: #{tpu_custom_call.1} parent=1 // pred_region
      %s34 = ssub.s32 49152, 49152
      %35 = vsyncadd [#allocation7], %s34
      %s36 = sshll.u32 [#allocation6], 4
      %s37 = int_to_ptr.vmem [resolvable:$true] %s36
      %42 = dma.hbm_to_vmem [thread:$0]  %s2, 49152, %s37, [#allocation7], 768, 768, 48
    $region13: #{tpu_custom_call.1} parent=1 // pred_fallthru
      _
    // Predicated region
    $region14: #{tpu_custom_call.1} parent=1 // pred_check
      _
    $region15: #{tpu_custom_call.1} parent=1 // pred_check_branch
      %44 = sbr.rel (0) target = $region17
    $region16: #{tpu_custom_call.1} parent=1 // pred_region
      %s46 = ssub.s32 192, 192
      %47 = vsyncadd [#allocation7], %s46
      %s49 = sshll.u32 [#allocation8], 4
      %s50 = int_to_ptr.vmem [resolvable:$true] %s49
      %52 = dma.hbm_to_vmem [thread:$0]  %s3, 192, %s50, [#allocation7]
    $region17: #{tpu_custom_call.1} parent=1 // pred_fallthru
      _
    // Predicated region
    $region18: #{tpu_custom_call.1} parent=1 // pred_check
      _
    $region19: #{tpu_custom_call.1} parent=1 // pred_check_branch
      %54 = sbr.rel (0) target = $region21
    $region20: #{tpu_custom_call.1} parent=1 // pred_region
      %s56 = ssub.s32 64, 64
      %57 = vsyncadd [#allocation10], %s56
      %s59 = sshll.u32 [#allocation9], 4
      %s60 = int_to_ptr.vmem [resolvable:$true] %s59
      %62 = dma.hbm_to_vmem [thread:$0]  %s4, 64, %s60, [#allocation10]
    $region21: #{tpu_custom_call.1} parent=1 // pred_fallthru
      _
    // Predicated region
    $region22: #{tpu_custom_call.1} parent=1 // pred_check
      _
    $region23: #{tpu_custom_call.1} parent=1 // pred_check_branch
      %64 = sbr.rel (0) target = $region25
    $region24: #{tpu_custom_call.1} parent=1 // pred_region
      %s66 = ssub.s32 4096, 4096
      %67 = vsyncadd [#allocation10], %s66
      %s68 = sshll.u32 [#allocation11], 4
      %s69 = int_to_ptr.vmem [resolvable:$true] %s68
      %74 = dma.hbm_to_vmem [thread:$0]  %s5, 4096, %s69, [#allocation10], 64, 64, 4
    $region25: #{tpu_custom_call.1} parent=1 // pred_fallthru
      _
    // Predicated region
    $region26: #{tpu_custom_call.1} parent=1 // pred_check
      _
    $region27: #{tpu_custom_call.1} parent=1 // pred_check_branch
      %76 = sbr.rel (0) target = $region29
    $region28: #{tpu_custom_call.1} parent=1 // pred_region
      %s78 = ssub.s32 16, 16
      %79 = vsyncadd [#allocation13], %s78
      %s81 = sshll.u32 [#allocation12], 4
      %s82 = int_to_ptr.vmem [resolvable:$true] %s81
      %84 = dma.hbm_to_vmem [thread:$0]  %s6, 16, %s82, [#allocation13]
    $region29: #{tpu_custom_call.1} parent=1 // pred_fallthru
      _
    // Predicated region
    $region30: #{tpu_custom_call.1} parent=1 // pred_check
      _
    $region31: #{tpu_custom_call.1} parent=1 // pred_check_branch
      %86 = sbr.rel (0) target = $region33
    $region32: #{tpu_custom_call.1} parent=1 // pred_region
      %87 = dma.done [#allocation4], 3072
    $region33: #{tpu_custom_call.1} parent=1 // pred_fallthru
      _
    // Predicated region
    $region34: #{tpu_custom_call.1} parent=1 // pred_check
      _
    $region35: #{tpu_custom_call.1} parent=1 // pred_check_branch
      %89 = sbr.rel (0) target = $region37
    $region36: #{tpu_custom_call.1} parent=1 // pred_region
      %90 = dma.done [#allocation7], 49152
    $region37: #{tpu_custom_call.1} parent=1 // pred_fallthru
      _
    // Predicated region
    $region38: #{tpu_custom_call.1} parent=1 // pred_check
      _
    $region39: #{tpu_custom_call.1} parent=1 // pred_check_branch
      %92 = sbr.rel (0) target = $region41
    $region40: #{tpu_custom_call.1} parent=1 // pred_region
      %93 = dma.done [#allocation7], 192
    $region41: #{tpu_custom_call.1} parent=1 // pred_fallthru
      _
    // Predicated region
    $region42: #{tpu_custom_call.1} parent=1 // pred_check
      _
    $region43: #{tpu_custom_call.1} parent=1 // pred_check_branch
      %95 = sbr.rel (0) target = $region45
    $region44: #{tpu_custom_call.1} parent=1 // pred_region
      %96 = dma.done [#allocation10], 64
    $region45: #{tpu_custom_call.1} parent=1 // pred_fallthru
      _
    // Predicated region
    $region46: #{tpu_custom_call.1} parent=1 // pred_check
      _
    $region47: #{tpu_custom_call.1} parent=1 // pred_check_branch
      %98 = sbr.rel (0) target = $region49
    $region48: #{tpu_custom_call.1} parent=1 // pred_region
      %99 = dma.done [#allocation10], 4096
    $region49: #{tpu_custom_call.1} parent=1 // pred_fallthru
      _
    // Predicated region
    $region50: #{tpu_custom_call.1} parent=1 // pred_check
      _
    $region51: #{tpu_custom_call.1} parent=1 // pred_check_branch
      %101 = sbr.rel (0) target = $region53
    $region52: #{tpu_custom_call.1} parent=1 // pred_region
      %102 = dma.done [#allocation13], 16
    $region53: #{tpu_custom_call.1} parent=1 // pred_fallthru
      _
    %v104 = vld [vmem:[%s0] sm:$0xf]
    %v105 = vld [vmem:[%s0 + $0x4] sm:$0xf]
    %v106 = vld [vmem:[%s0 + $0x8] sm:$0xf]
    %v107 = vld [vmem:[%s0 + $0xc] sm:$0xf]
    %v108 = vld [vmem:[%s0 + $0x10] sm:$0xf]
    %v109 = vld [vmem:[%s0 + $0x14] sm:$0xf]
    %v110 = vld [vmem:[%s0 + $0x18] sm:$0xf]
    %v111 = vld [vmem:[%s0 + $0x1c] sm:$0xf]
    %v112 = vld [vmem:[#allocation3] sm:$0xff]
    %v113 = vld [vmem:[#allocation3 + $0x8] sm:$0xff]
    %v114 = vld [vmem:[#allocation3 + $0x10] sm:$0xff]
    %v115 = vld [vmem:[#allocation3 + $0x18] sm:$0xff]
    %v116 = vld [vmem:[#allocation3 + $0x20] sm:$0xff]
    %v117 = vld [vmem:[#allocation3 + $0x28] sm:$0xff]
    %v118 = vld [vmem:[#allocation3 + $0x30] sm:$0xff]
    %v119 = vld [vmem:[#allocation3 + $0x38] sm:$0xff]
    %v120 = vld [vmem:[#allocation3 + $0x40] sm:$0xff]
    %v121 = vld [vmem:[#allocation3 + $0x48] sm:$0xff]
    %v122 = vld [vmem:[#allocation3 + $0x50] sm:$0xff]
    %v123 = vld [vmem:[#allocation3 + $0x58] sm:$0xff]
    %v124 = vld [vmem:[#allocation3 + $0x60] sm:$0xff]
    %v125 = vld [vmem:[#allocation3 + $0x68] sm:$0xff]
    %v126 = vld [vmem:[#allocation3 + $0x70] sm:$0xff]
    %v127 = vld [vmem:[#allocation3 + $0x78] sm:$0xff]
    %v128 = vld [vmem:[#allocation3 + $0x80] sm:$0xff]
    %v129 = vld [vmem:[#allocation3 + $0x88] sm:$0xff]
    %v130 = vld [vmem:[#allocation3 + $0x90] sm:$0xff]
    %v131 = vld [vmem:[#allocation3 + $0x98] sm:$0xff]
    %v132 = vld [vmem:[#allocation3 + $0xa0] sm:$0xff]
    %v133 = vld [vmem:[#allocation3 + $0xa8] sm:$0xff]
    %v134 = vld [vmem:[#allocation3 + $0xb0] sm:$0xff]
    %v135 = vld [vmem:[#allocation3 + $0xb8] sm:$0xff]
    %v136 = vld [vmem:[#allocation8] sm:$0xff]
    %v137 = vld [vmem:[#allocation8 + $0x8] sm:$0xf]
    %v140 = vlaneseq
    %v141 = vshrl.u32 %v140, 7
    %v142 = vsub.s32 0, %v141
    %v143 = vrot.slane %v136, %v142
    %v144 = vlaneseq
    %v145 = vshrl.u32 %v144, 7
    %v146 = vsub.s32 1, %v145
    %v147 = vrot.slane %v136, %v146
    %v148 = vlaneseq
    %v149 = vshrl.u32 %v148, 7
    %v150 = vsub.s32 2, %v149
    %v151 = vrot.slane %v136, %v150
    %v152 = vlaneseq
    %v153 = vshrl.u32 %v152, 7
    %v154 = vsub.s32 3, %v153
    %v155 = vrot.slane %v136, %v154
    %v156 = vlaneseq
    %v157 = vshrl.u32 %v156, 7
    %v158 = vsub.s32 4, %v157
    %v159 = vrot.slane %v136, %v158
    %v160 = vlaneseq
    %v161 = vshrl.u32 %v160, 7
    %v162 = vsub.s32 5, %v161
    %v163 = vrot.slane %v136, %v162
    %v164 = vlaneseq
    %v165 = vshrl.u32 %v164, 7
    %v166 = vsub.s32 6, %v165
    %v167 = vrot.slane %v136, %v166
    %v168 = vlaneseq
    %v169 = vshrl.u32 %v168, 7
    %v170 = vsub.s32 7, %v169
    %v171 = vrot.slane %v136, %v170
    %v172 = vlaneseq
    %v173 = vshrl.u32 %v172, 7
    %v174 = vsub.s32 0, %v173
    %v175 = vrot.slane %v137, %v174
    %v176 = vlaneseq
    %v177 = vshrl.u32 %v176, 7
    %v178 = vsub.s32 1, %v177
    %v179 = vrot.slane %v137, %v178
    %v180 = vlaneseq
    %v181 = vshrl.u32 %v180, 7
    %v182 = vsub.s32 2, %v181
    %v183 = vrot.slane %v137, %v182
    %v184 = vlaneseq
    %v185 = vshrl.u32 %v184, 7
    %v186 = vsub.s32 3, %v185
    %v187 = vrot.slane %v137, %v186
    %v208 = vunpack.c.l.b16 %v104
    %v209 = vunpack.c.l.b16 %v105
    %v210 = vunpack.c.l.b16 %v106
    %v211 = vunpack.c.l.b16 %v107
    %v212 = vunpack.c.l.b16 %v108
    %v213 = vunpack.c.l.b16 %v109
    %v214 = vunpack.c.l.b16 %v110
    %v215 = vunpack.c.l.b16 %v111
    %v216 = vpack.c.b16 %v209, %v208
    %v217 = vpack.c.b16 %v211, %v210
    %v218 = vpack.c.b16 %v213, %v212
    %v219 = vpack.c.b16 %v215, %v214
    %v244 = vunpack.c.l.b16 %v112
    %v245 = vunpack.c.h.b16 %v112
    %v246 = vunpack.c.l.b16 %v113
    %v247 = vunpack.c.h.b16 %v113
    %v248 = vunpack.c.l.b16 %v114
    %v249 = vunpack.c.h.b16 %v114
    %v250 = vunpack.c.l.b16 %v115
    %v251 = vunpack.c.h.b16 %v115
    %v252 = vunpack.c.l.b16 %v116
    %v253 = vunpack.c.h.b16 %v116
    %v254 = vunpack.c.l.b16 %v117
    %v255 = vunpack.c.h.b16 %v117
    %v256 = vunpack.c.l.b16 %v118
    %v257 = vunpack.c.h.b16 %v118
    %v258 = vunpack.c.l.b16 %v119
    %v259 = vunpack.c.h.b16 %v119
    %v260 = vunpack.c.l.b16 %v120
    %v261 = vunpack.c.h.b16 %v120
    %v262 = vunpack.c.l.b16 %v121
    %v263 = vunpack.c.h.b16 %v121
    %v264 = vunpack.c.l.b16 %v122
    %v265 = vunpack.c.h.b16 %v122
    %v266 = vunpack.c.l.b16 %v123
    %v267 = vunpack.c.h.b16 %v123
    %v268 = vunpack.c.l.b16 %v124
    %v269 = vunpack.c.h.b16 %v124
    %v270 = vunpack.c.l.b16 %v125
    %v271 = vunpack.c.h.b16 %v125
    %v272 = vunpack.c.l.b16 %v126
    %v273 = vunpack.c.h.b16 %v126
    %v274 = vunpack.c.l.b16 %v127
    %v275 = vunpack.c.h.b16 %v127
    %v276 = vunpack.c.l.b16 %v128
    %v277 = vunpack.c.h.b16 %v128
    %v278 = vunpack.c.l.b16 %v129
    %v279 = vunpack.c.h.b16 %v129
    %v280 = vunpack.c.l.b16 %v130
    %v281 = vunpack.c.h.b16 %v130
    %v282 = vunpack.c.l.b16 %v131
    %v283 = vunpack.c.h.b16 %v131
    %v284 = vunpack.c.l.b16 %v132
    %v285 = vunpack.c.h.b16 %v132
    %v286 = vunpack.c.l.b16 %v133
    %v287 = vunpack.c.h.b16 %v133
    %v288 = vunpack.c.l.b16 %v134
    %v289 = vunpack.c.h.b16 %v134
    %v290 = vunpack.c.l.b16 %v135
    %v291 = vunpack.c.h.b16 %v135
    %v292 = vpack.c.b16 %v256, %v244
    %v293 = vpack.c.b16 %v257, %v245
    %v294 = vpack.c.b16 %v258, %v246
    %v295 = vpack.c.b16 %v259, %v247
    %v296 = vpack.c.b16 %v260, %v248
    %v297 = vpack.c.b16 %v261, %v249
    %v298 = vpack.c.b16 %v262, %v250
    %v299 = vpack.c.b16 %v263, %v251
    %v300 = vpack.c.b16 %v264, %v252
    %v301 = vpack.c.b16 %v265, %v253
    %v302 = vpack.c.b16 %v266, %v254
    %v303 = vpack.c.b16 %v267, %v255
    %v304 = vpack.c.b16 %v280, %v268
    %v305 = vpack.c.b16 %v281, %v269
    %v306 = vpack.c.b16 %v282, %v270
    %v307 = vpack.c.b16 %v283, %v271
    %v308 = vpack.c.b16 %v284, %v272
    %v309 = vpack.c.b16 %v285, %v273
    %v310 = vpack.c.b16 %v286, %v274
    %v311 = vpack.c.b16 %v287, %v275
    %v312 = vpack.c.b16 %v288, %v276
    %v313 = vpack.c.b16 %v289, %v277
    %v314 = vpack.c.b16 %v290, %v278
    %v315 = vpack.c.b16 %v291, %v279
    %vm340 = vcmask 261120
    %v342 = vsel %vm340, %v216, 0
    %v345 = vsel %vm340, %v217, 0
    %v348 = vsel %vm340, %v218, 0
    %v351 = vsel %vm340, %v219, 0
    %353 = vmatprep.subr.bf16.mxu0 0
    %354 = vmatpush1.bf16.msra.mxu0 0
    %355 = vmatprep.subr.bf16.mxu0 0
    %356 = vmatpush1.bf16.msra.mxu0 0
    %357 = vmatprep.subr.bf16.mxu0 0
    %358 = vmatpush1.bf16.msra.mxu0 0
    %359 = vmatprep.subr.bf16.mxu0 0
    %360 = vmatpush1.bf16.msra.mxu0 0
    %361 = vmatprep.subr.bf16.mxu0 0
    %362 = vmatpush1.bf16.msra.mxu0 0
    %363 = vmatprep.subr.bf16.mxu0 0
    %364 = vmatpush1.bf16.msra.mxu0 0
    %365 = vmatprep.subr.bf16.mxu0 %v305
    %366 = vmatpush1.bf16.msra.mxu0 %v304
    %367 = vmatprep.subr.bf16.mxu0 %v293
    %368 = vmatpush1.bf16.msra.mxu0 %v292
    %369 = vmatprep.subr.bf16.mxu0 0
    %370 = vmatpush2.bf16.msra.mxu0 0
    %371 = vmatprep.subr.bf16.mxu0 0
    %372 = vmatpush2.bf16.msra.mxu0 0
    %373 = vmatprep.subr.bf16.mxu0 0
    %374 = vmatpush2.bf16.msra.mxu0 0
    %375 = vmatprep.subr.bf16.mxu0 0
    %376 = vmatpush2.bf16.msra.mxu0 0
    %377 = vmatprep.subr.bf16.mxu0 0
    %378 = vmatpush2.bf16.msra.mxu0 0
    %379 = vmatprep.subr.bf16.mxu0 0
    %380 = vmatpush2.bf16.msra.mxu0 0
    %381 = vmatprep.subr.bf16.mxu0 0
    %382 = vmatpush2.bf16.msra.mxu0 0
    %383 = vmatprep.subr.bf16.mxu0 0
    %384 = vmatpush2.bf16.msra.mxu0 0
    %385 = vmatprep.mubr.bf16.mxu0 0
    %386 = vmatmul.mubr.bf16.gmra.mxu0 %v342
    %v387 = vpop.f32.mrf.mxu0
    %v388 = vadd.f32 %v143, %v387
    %v389 = vpop.f32.mrf.mxu0
    %v390 = vadd.f32 %v147, %v389
    %v391 = vpop.f32.mrf.mxu0
    %v392 = vadd.f32 %v143, %v391
    %v393 = vpop.f32.mrf.mxu0
    %v394 = vadd.f32 %v147, %v393
    %395 = vmatprep.mubr.bf16.mxu0 0
    %396 = vmatmul.mubr.bf16.gmra.mxu0 %v345
    %v397 = vpop.f32.mrf.mxu0
    %v398 = vadd.f32 %v143, %v397
    %v399 = vpop.f32.mrf.mxu0
    %v400 = vadd.f32 %v147, %v399
    %v401 = vpop.f32.mrf.mxu0
    %v402 = vadd.f32 %v143, %v401
    %v403 = vpop.f32.mrf.mxu0
    %v404 = vadd.f32 %v147, %v403
    %405 = vmatprep.mubr.bf16.mxu0 0
    %406 = vmatmul.mubr.bf16.gmra.mxu0 %v348
    %v407 = vpop.f32.mrf.mxu0
    %v408 = vadd.f32 %v143, %v407
    %v409 = vpop.f32.mrf.mxu0
    %v410 = vadd.f32 %v147, %v409
    %v411 = vpop.f32.mrf.mxu0
    %v412 = vadd.f32 %v143, %v411
    %v413 = vpop.f32.mrf.mxu0
    %v414 = vadd.f32 %v147, %v413
    %415 = vmatprep.mubr.bf16.mxu0 0
    %416 = vmatmul.mubr.bf16.gmra.mxu0 %v351
    %v417 = vpop.f32.mrf.mxu0
    %v418 = vadd.f32 %v143, %v417
    %v419 = vpop.f32.mrf.mxu0
    %v420 = vadd.f32 %v147, %v419
    %v421 = vpop.f32.mrf.mxu0
    %v422 = vadd.f32 %v143, %v421
    %v423 = vpop.f32.mrf.mxu0
    %v424 = vadd.f32 %v147, %v423
    %425 = vdwg.mxu0
    %426 = vmatprep.subr.bf16.mxu0 0
    %427 = vmatpush1.bf16.msra.mxu0 0
    %428 = vmatprep.subr.bf16.mxu0 0
    %429 = vmatpush1.bf16.msra.mxu0 0
    %430 = vmatprep.subr.bf16.mxu0 0
    %431 = vmatpush1.bf16.msra.mxu0 0
    %432 = vmatprep.subr.bf16.mxu0 0
    %433 = vmatpush1.bf16.msra.mxu0 0
    %434 = vmatprep.subr.bf16.mxu0 0
    %435 = vmatpush1.bf16.msra.mxu0 0
    %436 = vmatprep.subr.bf16.mxu0 0
    %437 = vmatpush1.bf16.msra.mxu0 0
    %438 = vmatprep.subr.bf16.mxu0 %v307
    %439 = vmatpush1.bf16.msra.mxu0 %v306
    %440 = vmatprep.subr.bf16.mxu0 %v295
    %441 = vmatpush1.bf16.msra.mxu0 %v294
    %442 = vmatprep.subr.bf16.mxu0 0
    %443 = vmatpush2.bf16.msra.mxu0 0
    %444 = vmatprep.subr.bf16.mxu0 0
    %445 = vmatpush2.bf16.msra.mxu0 0
    %446 = vmatprep.subr.bf16.mxu0 0
    %447 = vmatpush2.bf16.msra.mxu0 0
    %448 = vmatprep.subr.bf16.mxu0 0
    %449 = vmatpush2.bf16.msra.mxu0 0
    %450 = vmatprep.subr.bf16.mxu0 0
    %451 = vmatpush2.bf16.msra.mxu0 0
    %452 = vmatprep.subr.bf16.mxu0 0
    %453 = vmatpush2.bf16.msra.mxu0 0
    %454 = vmatprep.subr.bf16.mxu0 0
    %455 = vmatpush2.bf16.msra.mxu0 0
    %456 = vmatprep.subr.bf16.mxu0 0
    %457 = vmatpush2.bf16.msra.mxu0 0
    %458 = vmatprep.mubr.bf16.mxu0 0
    %459 = vmatmul.mubr.bf16.gmra.mxu0 %v342
    %v460 = vpop.f32.mrf.mxu0
    %v461 = vadd.f32 %v151, %v460
    %v462 = vpop.f32.mrf.mxu0
    %v463 = vadd.f32 %v155, %v462
    %v464 = vpop.f32.mrf.mxu0
    %v465 = vadd.f32 %v151, %v464
    %v466 = vpop.f32.mrf.mxu0
    %v467 = vadd.f32 %v155, %v466
    %468 = vmatprep.mubr.bf16.mxu0 0
    %469 = vmatmul.mubr.bf16.gmra.mxu0 %v345
    %v470 = vpop.f32.mrf.mxu0
    %v471 = vadd.f32 %v151, %v470
    %v472 = vpop.f32.mrf.mxu0
    %v473 = vadd.f32 %v155, %v472
    %v474 = vpop.f32.mrf.mxu0
    %v475 = vadd.f32 %v151, %v474
    %v476 = vpop.f32.mrf.mxu0
    %v477 = vadd.f32 %v155, %v476
    %478 = vmatprep.mubr.bf16.mxu0 0
    %479 = vmatmul.mubr.bf16.gmra.mxu0 %v348
    %v480 = vpop.f32.mrf.mxu0
    %v481 = vadd.f32 %v151, %v480
    %v482 = vpop.f32.mrf.mxu0
    %v483 = vadd.f32 %v155, %v482
    %v484 = vpop.f32.mrf.mxu0
    %v485 = vadd.f32 %v151, %v484
    %v486 = vpop.f32.mrf.mxu0
    %v487 = vadd.f32 %v155, %v486
    %488 = vmatprep.mubr.bf16.mxu0 0
    %489 = vmatmul.mubr.bf16.gmra.mxu0 %v351
    %v490 = vpop.f32.mrf.mxu0
    %v491 = vadd.f32 %v151, %v490
    %v492 = vpop.f32.mrf.mxu0
    %v493 = vadd.f32 %v155, %v492
    %v494 = vpop.f32.mrf.mxu0
    %v495 = vadd.f32 %v151, %v494
    %v496 = vpop.f32.mrf.mxu0
    %v497 = vadd.f32 %v155, %v496
    %498 = vdwg.mxu0
    %499 = vmatprep.subr.bf16.mxu0 0
    %500 = vmatpush1.bf16.msra.mxu0 0
    %501 = vmatprep.subr.bf16.mxu0 0
    %502 = vmatpush1.bf16.msra.mxu0 0
    %503 = vmatprep.subr.bf16.mxu0 0
    %504 = vmatpush1.bf16.msra.mxu0 0
    %505 = vmatprep.subr.bf16.mxu0 0
    %506 = vmatpush1.bf16.msra.mxu0 0
    %507 = vmatprep.subr.bf16.mxu0 0
    %508 = vmatpush1.bf16.msra.mxu0 0
    %509 = vmatprep.subr.bf16.mxu0 0
    %510 = vmatpush1.bf16.msra.mxu0 0
    %511 = vmatprep.subr.bf16.mxu0 %v309
    %512 = vmatpush1.bf16.msra.mxu0 %v308
    %513 = vmatprep.subr.bf16.mxu0 %v297
    %514 = vmatpush1.bf16.msra.mxu0 %v296
    %515 = vmatprep.subr.bf16.mxu0 0
    %516 = vmatpush2.bf16.msra.mxu0 0
    %517 = vmatprep.subr.bf16.mxu0 0
    %518 = vmatpush2.bf16.msra.mxu0 0
    %519 = vmatprep.subr.bf16.mxu0 0
    %520 = vmatpush2.bf16.msra.mxu0 0
    %521 = vmatprep.subr.bf16.mxu0 0
    %522 = vmatpush2.bf16.msra.mxu0 0
    %523 = vmatprep.subr.bf16.mxu0 0
    %524 = vmatpush2.bf16.msra.mxu0 0
    %525 = vmatprep.subr.bf16.mxu0 0
    %526 = vmatpush2.bf16.msra.mxu0 0
    %527 = vmatprep.subr.bf16.mxu0 0
    %528 = vmatpush2.bf16.msra.mxu0 0
    %529 = vmatprep.subr.bf16.mxu0 0
    %530 = vmatpush2.bf16.msra.mxu0 0
    %531 = vmatprep.mubr.bf16.mxu0 0
    %532 = vmatmul.mubr.bf16.gmra.mxu0 %v342
    %v533 = vpop.f32.mrf.mxu0
    %v534 = vadd.f32 %v159, %v533
    %v535 = vpop.f32.mrf.mxu0
    %v536 = vadd.f32 %v163, %v535
    %v537 = vpop.f32.mrf.mxu0
    %v538 = vadd.f32 %v159, %v537
    %v539 = vpop.f32.mrf.mxu0
    %v540 = vadd.f32 %v163, %v539
    %541 = vmatprep.mubr.bf16.mxu0 0
    %542 = vmatmul.mubr.bf16.gmra.mxu0 %v345
    %v543 = vpop.f32.mrf.mxu0
    %v544 = vadd.f32 %v159, %v543
    %v545 = vpop.f32.mrf.mxu0
    %v546 = vadd.f32 %v163, %v545
    %v547 = vpop.f32.mrf.mxu0
    %v548 = vadd.f32 %v159, %v547
    %v549 = vpop.f32.mrf.mxu0
    %v550 = vadd.f32 %v163, %v549
    %551 = vmatprep.mubr.bf16.mxu0 0
    %552 = vmatmul.mubr.bf16.gmra.mxu0 %v348
    %v553 = vpop.f32.mrf.mxu0
    %v554 = vadd.f32 %v159, %v553
    %v555 = vpop.f32.mrf.mxu0
    %v556 = vadd.f32 %v163, %v555
    %v557 = vpop.f32.mrf.mxu0
    %v558 = vadd.f32 %v159, %v557
    %v559 = vpop.f32.mrf.mxu0
    %v560 = vadd.f32 %v163, %v559
    %561 = vmatprep.mubr.bf16.mxu0 0
    %562 = vmatmul.mubr.bf16.gmra.mxu0 %v351
    %v563 = vpop.f32.mrf.mxu0
    %v564 = vadd.f32 %v159, %v563
    %v565 = vpop.f32.mrf.mxu0
    %v566 = vadd.f32 %v163, %v565
    %v567 = vpop.f32.mrf.mxu0
    %v568 = vadd.f32 %v159, %v567
    %v569 = vpop.f32.mrf.mxu0
    %v570 = vadd.f32 %v163, %v569
    %571 = vdwg.mxu0
    %572 = vmatprep.subr.bf16.mxu0 0
    %573 = vmatpush1.bf16.msra.mxu0 0
    %574 = vmatprep.subr.bf16.mxu0 0
    %575 = vmatpush1.bf16.msra.mxu0 0
    %576 = vmatprep.subr.bf16.mxu0 0
    %577 = vmatpush1.bf16.msra.mxu0 0
    %578 = vmatprep.subr.bf16.mxu0 0
    %579 = vmatpush1.bf16.msra.mxu0 0
    %580 = vmatprep.subr.bf16.mxu0 0
    %581 = vmatpush1.bf16.msra.mxu0 0
    %582 = vmatprep.subr.bf16.mxu0 0
    %583 = vmatpush1.bf16.msra.mxu0 0
    %584 = vmatprep.subr.bf16.mxu0 %v311
    %585 = vmatpush1.bf16.msra.mxu0 %v310
    %586 = vmatprep.subr.bf16.mxu0 %v299
    %587 = vmatpush1.bf16.msra.mxu0 %v298
    %588 = vmatprep.subr.bf16.mxu0 0
    %589 = vmatpush2.bf16.msra.mxu0 0
    %590 = vmatprep.subr.bf16.mxu0 0
    %591 = vmatpush2.bf16.msra.mxu0 0
    %592 = vmatprep.subr.bf16.mxu0 0
    %593 = vmatpush2.bf16.msra.mxu0 0
    %594 = vmatprep.subr.bf16.mxu0 0
    %595 = vmatpush2.bf16.msra.mxu0 0
    %596 = vmatprep.subr.bf16.mxu0 0
    %597 = vmatpush2.bf16.msra.mxu0 0
    %598 = vmatprep.subr.bf16.mxu0 0
    %599 = vmatpush2.bf16.msra.mxu0 0
    %600 = vmatprep.subr.bf16.mxu0 0
    %601 = vmatpush2.bf16.msra.mxu0 0
    %602 = vmatprep.subr.bf16.mxu0 0
    %603 = vmatpush2.bf16.msra.mxu0 0
    %604 = vmatprep.mubr.bf16.mxu0 0
    %605 = vmatmul.mubr.bf16.gmra.mxu0 %v342
    %v606 = vpop.f32.mrf.mxu0
    %v607 = vadd.f32 %v167, %v606
    %v608 = vpop.f32.mrf.mxu0
    %v609 = vadd.f32 %v171, %v608
    %v610 = vpop.f32.mrf.mxu0
    %v611 = vadd.f32 %v167, %v610
    %v612 = vpop.f32.mrf.mxu0
    %v613 = vadd.f32 %v171, %v612
    %614 = vmatprep.mubr.bf16.mxu0 0
    %615 = vmatmul.mubr.bf16.gmra.mxu0 %v345
    %v616 = vpop.f32.mrf.mxu0
    %v617 = vadd.f32 %v167, %v616
    %v618 = vpop.f32.mrf.mxu0
    %v619 = vadd.f32 %v171, %v618
    %v620 = vpop.f32.mrf.mxu0
    %v621 = vadd.f32 %v167, %v620
    %v622 = vpop.f32.mrf.mxu0
    %v623 = vadd.f32 %v171, %v622
    %624 = vmatprep.mubr.bf16.mxu0 0
    %625 = vmatmul.mubr.bf16.gmra.mxu0 %v348
    %v626 = vpop.f32.mrf.mxu0
    %v627 = vadd.f32 %v167, %v626
    %v628 = vpop.f32.mrf.mxu0
    %v629 = vadd.f32 %v171, %v628
    %v630 = vpop.f32.mrf.mxu0
    %v631 = vadd.f32 %v167, %v630
    %v632 = vpop.f32.mrf.mxu0
    %v633 = vadd.f32 %v171, %v632
    %634 = vmatprep.mubr.bf16.mxu0 0
    %635 = vmatmul.mubr.bf16.gmra.mxu0 %v351
    %v636 = vpop.f32.mrf.mxu0
    %v637 = vadd.f32 %v167, %v636
    %v638 = vpop.f32.mrf.mxu0
    %v639 = vadd.f32 %v171, %v638
    %v640 = vpop.f32.mrf.mxu0
    %v641 = vadd.f32 %v167, %v640
    %v642 = vpop.f32.mrf.mxu0
    %v643 = vadd.f32 %v171, %v642
    %644 = vdwg.mxu0
    %645 = vmatprep.subr.bf16.mxu0 0
    %646 = vmatpush1.bf16.msra.mxu0 0
    %647 = vmatprep.subr.bf16.mxu0 0
    %648 = vmatpush1.bf16.msra.mxu0 0
    %649 = vmatprep.subr.bf16.mxu0 0
    %650 = vmatpush1.bf16.msra.mxu0 0
    %651 = vmatprep.subr.bf16.mxu0 0
    %652 = vmatpush1.bf16.msra.mxu0 0
    %653 = vmatprep.subr.bf16.mxu0 0
    %654 = vmatpush1.bf16.msra.mxu0 0
    %655 = vmatprep.subr.bf16.mxu0 0
    %656 = vmatpush1.bf16.msra.mxu0 0
    %657 = vmatprep.subr.bf16.mxu0 %v313
    %658 = vmatpush1.bf16.msra.mxu0 %v312
    %659 = vmatprep.subr.bf16.mxu0 %v301
    %660 = vmatpush1.bf16.msra.mxu0 %v300
    %661 = vmatprep.subr.bf16.mxu0 0
    %662 = vmatpush2.bf16.msra.mxu0 0
    %663 = vmatprep.subr.bf16.mxu0 0
    %664 = vmatpush2.bf16.msra.mxu0 0
    %665 = vmatprep.subr.bf16.mxu0 0
    %666 = vmatpush2.bf16.msra.mxu0 0
    %667 = vmatprep.subr.bf16.mxu0 0
    %668 = vmatpush2.bf16.msra.mxu0 0
    %669 = vmatprep.subr.bf16.mxu0 0
    %670 = vmatpush2.bf16.msra.mxu0 0
    %671 = vmatprep.subr.bf16.mxu0 0
    %672 = vmatpush2.bf16.msra.mxu0 0
    %673 = vmatprep.subr.bf16.mxu0 0
    %674 = vmatpush2.bf16.msra.mxu0 0
    %675 = vmatprep.subr.bf16.mxu0 0
    %676 = vmatpush2.bf16.msra.mxu0 0
    %677 = vmatprep.mubr.bf16.mxu0 0
    %678 = vmatmul.mubr.bf16.gmra.mxu0 %v342
    %v679 = vpop.f32.mrf.mxu0
    %v680 = vadd.f32 %v175, %v679
    %v681 = vpop.f32.mrf.mxu0
    %v682 = vadd.f32 %v179, %v681
    %v683 = vpop.f32.mrf.mxu0
    %v684 = vadd.f32 %v175, %v683
    %v685 = vpop.f32.mrf.mxu0
    %v686 = vadd.f32 %v179, %v685
    %687 = vmatprep.mubr.bf16.mxu0 0
    %688 = vmatmul.mubr.bf16.gmra.mxu0 %v345
    %v689 = vpop.f32.mrf.mxu0
    %v690 = vadd.f32 %v175, %v689
    %v691 = vpop.f32.mrf.mxu0
    %v692 = vadd.f32 %v179, %v691
    %v693 = vpop.f32.mrf.mxu0
    %v694 = vadd.f32 %v175, %v693
    %v695 = vpop.f32.mrf.mxu0
    %v696 = vadd.f32 %v179, %v695
    %697 = vmatprep.mubr.bf16.mxu0 0
    %698 = vmatmul.mubr.bf16.gmra.mxu0 %v348
    %v699 = vpop.f32.mrf.mxu0
    %v700 = vadd.f32 %v175, %v699
    %v701 = vpop.f32.mrf.mxu0
    %v702 = vadd.f32 %v179, %v701
    %v703 = vpop.f32.mrf.mxu0
    %v704 = vadd.f32 %v175, %v703
    %v705 = vpop.f32.mrf.mxu0
    %v706 = vadd.f32 %v179, %v705
    %707 = vmatprep.mubr.bf16.mxu0 0
    %708 = vmatmul.mubr.bf16.gmra.mxu0 %v351
    %v709 = vpop.f32.mrf.mxu0
    %v710 = vadd.f32 %v175, %v709
    %v711 = vpop.f32.mrf.mxu0
    %v712 = vadd.f32 %v179, %v711
    %v713 = vpop.f32.mrf.mxu0
    %v714 = vadd.f32 %v175, %v713
    %v715 = vpop.f32.mrf.mxu0
    %v716 = vadd.f32 %v179, %v715
    %717 = vdwg.mxu0
    %718 = vmatprep.subr.bf16.mxu0 0
    %719 = vmatpush1.bf16.msra.mxu0 0
    %720 = vmatprep.subr.bf16.mxu0 0
    %721 = vmatpush1.bf16.msra.mxu0 0
    %722 = vmatprep.subr.bf16.mxu0 0
    %723 = vmatpush1.bf16.msra.mxu0 0
    %724 = vmatprep.subr.bf16.mxu0 0
    %725 = vmatpush1.bf16.msra.mxu0 0
    %726 = vmatprep.subr.bf16.mxu0 0
    %727 = vmatpush1.bf16.msra.mxu0 0
    %728 = vmatprep.subr.bf16.mxu0 0
    %729 = vmatpush1.bf16.msra.mxu0 0
    %730 = vmatprep.subr.bf16.mxu0 %v315
    %731 = vmatpush1.bf16.msra.mxu0 %v314
    %732 = vmatprep.subr.bf16.mxu0 %v303
    %733 = vmatpush1.bf16.msra.mxu0 %v302
    %734 = vmatprep.subr.bf16.mxu0 0
    %735 = vmatpush2.bf16.msra.mxu0 0
    %736 = vmatprep.subr.bf16.mxu0 0
    %737 = vmatpush2.bf16.msra.mxu0 0
    %738 = vmatprep.subr.bf16.mxu0 0
    %739 = vmatpush2.bf16.msra.mxu0 0
    %740 = vmatprep.subr.bf16.mxu0 0
    %741 = vmatpush2.bf16.msra.mxu0 0
    %742 = vmatprep.subr.bf16.mxu0 0
    %743 = vmatpush2.bf16.msra.mxu0 0
    %744 = vmatprep.subr.bf16.mxu0 0
    %745 = vmatpush2.bf16.msra.mxu0 0
    %746 = vmatprep.subr.bf16.mxu0 0
    %747 = vmatpush2.bf16.msra.mxu0 0
    %748 = vmatprep.subr.bf16.mxu0 0
    %749 = vmatpush2.bf16.msra.mxu0 0
    %750 = vmatprep.mubr.bf16.mxu0 0
    %751 = vmatmul.mubr.bf16.gmra.mxu0 %v342
    %v752 = vpop.f32.mrf.mxu0
    %v753 = vadd.f32 %v183, %v752
    %v754 = vpop.f32.mrf.mxu0
    %v755 = vadd.f32 %v187, %v754
    %v756 = vpop.f32.mrf.mxu0
    %v757 = vadd.f32 %v183, %v756
    %v758 = vpop.f32.mrf.mxu0
    %v759 = vadd.f32 %v187, %v758
    %760 = vmatprep.mubr.bf16.mxu0 0
    %761 = vmatmul.mubr.bf16.gmra.mxu0 %v345
    %v762 = vpop.f32.mrf.mxu0
    %v763 = vadd.f32 %v183, %v762
    %v764 = vpop.f32.mrf.mxu0
    %v765 = vadd.f32 %v187, %v764
    %v766 = vpop.f32.mrf.mxu0
    %v767 = vadd.f32 %v183, %v766
    %v768 = vpop.f32.mrf.mxu0
    %v769 = vadd.f32 %v187, %v768
    %770 = vmatprep.mubr.bf16.mxu0 0
    %771 = vmatmul.mubr.bf16.gmra.mxu0 %v348
    %v772 = vpop.f32.mrf.mxu0
    %v773 = vadd.f32 %v183, %v772
    %v774 = vpop.f32.mrf.mxu0
    %v775 = vadd.f32 %v187, %v774
    %v776 = vpop.f32.mrf.mxu0
    %v777 = vadd.f32 %v183, %v776
    %v778 = vpop.f32.mrf.mxu0
    %v779 = vadd.f32 %v187, %v778
    %780 = vmatprep.mubr.bf16.mxu0 0
    %781 = vmatmul.mubr.bf16.gmra.mxu0 %v351
    %v782 = vpop.f32.mrf.mxu0
    %v783 = vadd.f32 %v183, %v782
    %v784 = vpop.f32.mrf.mxu0
    %v785 = vadd.f32 %v187, %v784
    %v786 = vpop.f32.mrf.mxu0
    %v787 = vadd.f32 %v183, %v786
    %v788 = vpop.f32.mrf.mxu0
    %v789 = vadd.f32 %v187, %v788
    %790 = vdwg.mxu0
    %791 = vst [vmem:[#allocation2] sm:$0xff] %v388
    %792 = vst [vmem:[#allocation2 + $0x8] sm:$0xff] %v390
    %793 = vst [vmem:[#allocation2 + $0x10] sm:$0xff] %v461
    %794 = vst [vmem:[#allocation2 + $0x18] sm:$0xff] %v463
    %795 = vst [vmem:[#allocation2 + $0x20] sm:$0xff] %v534
    %796 = vst [vmem:[#allocation2 + $0x28] sm:$0xff] %v536
    %797 = vst [vmem:[#allocation2 + $0x30] sm:$0xff] %v607
    %798 = vst [vmem:[#allocation2 + $0x38] sm:$0xff] %v609
    %799 = vst [vmem:[#allocation2 + $0x40] sm:$0xff] %v680
    %800 = vst [vmem:[#allocation2 + $0x48] sm:$0xff] %v682
    %801 = vst [vmem:[#allocation2 + $0x50] sm:$0xff] %v753
    %802 = vst [vmem:[#allocation2 + $0x58] sm:$0xff] %v755
    %803 = vst [vmem:[#allocation2 + $0x60] sm:$0xff] %v392
    %804 = vst [vmem:[#allocation2 + $0x68] sm:$0xff] %v394
    %805 = vst [vmem:[#allocation2 + $0x70] sm:$0xff] %v465
    %806 = vst [vmem:[#allocation2 + $0x78] sm:$0xff] %v467
    %807 = vst [vmem:[#allocation2 + $0x80] sm:$0xff] %v538
    %808 = vst [vmem:[#allocation2 + $0x88] sm:$0xff] %v540
    %809 = vst [vmem:[#allocation2 + $0x90] sm:$0xff] %v611
    %810 = vst [vmem:[#allocation2 + $0x98] sm:$0xff] %v613
    %811 = vst [vmem:[#allocation2 + $0xa0] sm:$0xff] %v684
    %812 = vst [vmem:[#allocation2 + $0xa8] sm:$0xff] %v686
    %813 = vst [vmem:[#allocation2 + $0xb0] sm:$0xff] %v757
    %814 = vst [vmem:[#allocation2 + $0xb8] sm:$0xff] %v759
    %815 = vst [vmem:[#allocation2 + $0xc0] sm:$0xff] %v398
    %816 = vst [vmem:[#allocation2 + $0xc8] sm:$0xff] %v400
    %817 = vst [vmem:[#allocation2 + $0xd0] sm:$0xff] %v471
    %818 = vst [vmem:[#allocation2 + $0xd8] sm:$0xff] %v473
    %819 = vst [vmem:[#allocation2 + $0xe0] sm:$0xff] %v544
    %820 = vst [vmem:[#allocation2 + $0xe8] sm:$0xff] %v546
    %821 = vst [vmem:[#allocation2 + $0xf0] sm:$0xff] %v617
    %822 = vst [vmem:[#allocation2 + $0xf8] sm:$0xff] %v619
    %823 = vst [vmem:[#allocation2 + $0x100] sm:$0xff] %v690
    %824 = vst [vmem:[#allocation2 + $0x108] sm:$0xff] %v692
    %825 = vst [vmem:[#allocation2 + $0x110] sm:$0xff] %v763
    %826 = vst [vmem:[#allocation2 + $0x118] sm:$0xff] %v765
    %827 = vst [vmem:[#allocation2 + $0x120] sm:$0xff] %v402
    %828 = vst [vmem:[#allocation2 + $0x128] sm:$0xff] %v404
    %829 = vst [vmem:[#allocation2 + $0x130] sm:$0xff] %v475
    %830 = vst [vmem:[#allocation2 + $0x138] sm:$0xff] %v477
    %831 = vst [vmem:[#allocation2 + $0x140] sm:$0xff] %v548
    %832 = vst [vmem:[#allocation2 + $0x148] sm:$0xff] %v550
    %833 = vst [vmem:[#allocation2 + $0x150] sm:$0xff] %v621
    %834 = vst [vmem:[#allocation2 + $0x158] sm:$0xff] %v623
    %835 = vst [vmem:[#allocation2 + $0x160] sm:$0xff] %v694
    %836 = vst [vmem:[#allocation2 + $0x168] sm:$0xff] %v696
    %837 = vst [vmem:[#allocation2 + $0x170] sm:$0xff] %v767
    %838 = vst [vmem:[#allocation2 + $0x178] sm:$0xff] %v769
    %839 = vst [vmem:[#allocation2 + $0x180] sm:$0xff] %v408
    %840 = vst [vmem:[#allocation2 + $0x188] sm:$0xff] %v410
    %841 = vst [vmem:[#allocation2 + $0x190] sm:$0xff] %v481
    %842 = vst [vmem:[#allocation2 + $0x198] sm:$0xff] %v483
    %843 = vst [vmem:[#allocation2 + $0x1a0] sm:$0xff] %v554
    %844 = vst [vmem:[#allocation2 + $0x1a8] sm:$0xff] %v556
    %845 = vst [vmem:[#allocation2 + $0x1b0] sm:$0xff] %v627
    %846 = vst [vmem:[#allocation2 + $0x1b8] sm:$0xff] %v629
    %847 = vst [vmem:[#allocation2 + $0x1c0] sm:$0xff] %v700
    %848 = vst [vmem:[#allocation2 + $0x1c8] sm:$0xff] %v702
    %849 = vst [vmem:[#allocation2 + $0x1d0] sm:$0xff] %v773
    %850 = vst [vmem:[#allocation2 + $0x1d8] sm:$0xff] %v775
    %851 = vst [vmem:[#allocation2 + $0x1e0] sm:$0xff] %v412
    %852 = vst [vmem:[#allocation2 + $0x1e8] sm:$0xff] %v414
    %853 = vst [vmem:[#allocation2 + $0x1f0] sm:$0xff] %v485
    %854 = vst [vmem:[#allocation2 + $0x1f8] sm:$0xff] %v487
    %855 = vst [vmem:[#allocation2 + $0x200] sm:$0xff] %v558
    %856 = vst [vmem:[#allocation2 + $0x208] sm:$0xff] %v560
    %857 = vst [vmem:[#allocation2 + $0x210] sm:$0xff] %v631
    %858 = vst [vmem:[#allocation2 + $0x218] sm:$0xff] %v633
    %859 = vst [vmem:[#allocation2 + $0x220] sm:$0xff] %v704
    %860 = vst [vmem:[#allocation2 + $0x228] sm:$0xff] %v706
    %861 = vst [vmem:[#allocation2 + $0x230] sm:$0xff] %v777
    %862 = vst [vmem:[#allocation2 + $0x238] sm:$0xff] %v779
    %863 = vst [vmem:[#allocation2 + $0x240] sm:$0xff] %v418
    %864 = vst [vmem:[#allocation2 + $0x248] sm:$0xff] %v420
    %865 = vst [vmem:[#allocation2 + $0x250] sm:$0xff] %v491
    %866 = vst [vmem:[#allocation2 + $0x258] sm:$0xff] %v493
    %867 = vst [vmem:[#allocation2 + $0x260] sm:$0xff] %v564
    %868 = vst [vmem:[#allocation2 + $0x268] sm:$0xff] %v566
    %869 = vst [vmem:[#allocation2 + $0x270] sm:$0xff] %v637
    %870 = vst [vmem:[#allocation2 + $0x278] sm:$0xff] %v639
    %871 = vst [vmem:[#allocation2 + $0x280] sm:$0xff] %v710
    %872 = vst [vmem:[#allocation2 + $0x288] sm:$0xff] %v712
    %873 = vst [vmem:[#allocation2 + $0x290] sm:$0xff] %v783
    %874 = vst [vmem:[#allocation2 + $0x298] sm:$0xff] %v785
    %875 = vst [vmem:[#allocation2 + $0x2a0] sm:$0xff] %v422
    %876 = vst [vmem:[#allocation2 + $0x2a8] sm:$0xff] %v424
    %877 = vst [vmem:[#allocation2 + $0x2b0] sm:$0xff] %v495
    %878 = vst [vmem:[#allocation2 + $0x2b8] sm:$0xff] %v497
    %879 = vst [vmem:[#allocation2 + $0x2c0] sm:$0xff] %v568
    %880 = vst [vmem:[#allocation2 + $0x2c8] sm:$0xff] %v570
    %881 = vst [vmem:[#allocation2 + $0x2d0] sm:$0xff] %v641
    %882 = vst [vmem:[#allocation2 + $0x2d8] sm:$0xff] %v643
    %883 = vst [vmem:[#allocation2 + $0x2e0] sm:$0xff] %v714
    %884 = vst [vmem:[#allocation2 + $0x2e8] sm:$0xff] %v716
    %885 = vst [vmem:[#allocation2 + $0x2f0] sm:$0xff] %v787
    %886 = vst [vmem:[#allocation2 + $0x2f8] sm:$0xff] %v789
    %v887 = vld [vmem:[#allocation9] sm:$0xf]
    %v888 = vld [vmem:[#allocation2] sm:$0xff]
    %v889 = vld [vmem:[#allocation2 + $0x8] sm:$0xff]
    %v890 = vld [vmem:[#allocation2 + $0x10] sm:$0xff]
    %v891 = vld [vmem:[#allocation2 + $0x18] sm:$0xff]
    %v892 = vld [vmem:[#allocation2 + $0x20] sm:$0xff]
    %v893 = vld [vmem:[#allocation2 + $0x28] sm:$0xff]
    %v894 = vld [vmem:[#allocation2 + $0x30] sm:$0xff]
    %v895 = vld [vmem:[#allocation2 + $0x38] sm:$0xff]
    %v896 = vld [vmem:[#allocation2 + $0x40] sm:$0xff]
    %v897 = vld [vmem:[#allocation2 + $0x48] sm:$0xff]
    %v898 = vld [vmem:[#allocation2 + $0x50] sm:$0xff]
    %v899 = vld [vmem:[#allocation2 + $0x58] sm:$0xff]
    %v900 = vld [vmem:[#allocation6] sm:$0xff]
    %v901 = vld [vmem:[#allocation6 + $0x8] sm:$0xff]
    %v902 = vld [vmem:[#allocation6 + $0x10] sm:$0xff]
    %v903 = vld [vmem:[#allocation6 + $0x18] sm:$0xff]
    %v904 = vld [vmem:[#allocation6 + $0x20] sm:$0xff]
    %v905 = vld [vmem:[#allocation6 + $0x28] sm:$0xff]
    %v906 = vld [vmem:[#allocation6 + $0x30] sm:$0xff]
    %v907 = vld [vmem:[#allocation6 + $0x38] sm:$0xff]
    %v908 = vld [vmem:[#allocation6 + $0x40] sm:$0xff]
    %v909 = vld [vmem:[#allocation6 + $0x48] sm:$0xff]
    %v910 = vld [vmem:[#allocation6 + $0x50] sm:$0xff]
    %v911 = vld [vmem:[#allocation6 + $0x58] sm:$0xff]
    %v912 = vld [vmem:[#allocation6 + $0x60] sm:$0xff]
    %v913 = vld [vmem:[#allocation6 + $0x68] sm:$0xff]
    %v914 = vld [vmem:[#allocation6 + $0x70] sm:$0xff]
    %v915 = vld [vmem:[#allocation6 + $0x78] sm:$0xff]
    %v916 = vld [vmem:[#allocation6 + $0x80] sm:$0xff]
    %v917 = vld [vmem:[#allocation6 + $0x88] sm:$0xff]
    %v918 = vld [vmem:[#allocation6 + $0x90] sm:$0xff]
    %v919 = vld [vmem:[#allocation6 + $0x98] sm:$0xff]
    %v920 = vld [vmem:[#allocation6 + $0xa0] sm:$0xff]
    %v921 = vld [vmem:[#allocation6 + $0xa8] sm:$0xff]
    %v922 = vld [vmem:[#allocation6 + $0xb0] sm:$0xff]
    %v923 = vld [vmem:[#allocation6 + $0xb8] sm:$0xff]
    %v924 = vld [vmem:[#allocation6 + $0xc0] sm:$0xff]
    %v925 = vld [vmem:[#allocation6 + $0xc8] sm:$0xff]
    %v926 = vld [vmem:[#allocation6 + $0xd0] sm:$0xff]
    %v927 = vld [vmem:[#allocation6 + $0xd8] sm:$0xff]
    %v928 = vld [vmem:[#allocation6 + $0xe0] sm:$0xff]
    %v929 = vld [vmem:[#allocation6 + $0xe8] sm:$0xff]
    %v930 = vld [vmem:[#allocation6 + $0xf0] sm:$0xff]
    %v931 = vld [vmem:[#allocation6 + $0xf8] sm:$0xff]
    %v932 = vld [vmem:[#allocation6 + $0x100] sm:$0xff]
    %v933 = vld [vmem:[#allocation6 + $0x108] sm:$0xff]
    %v934 = vld [vmem:[#allocation6 + $0x110] sm:$0xff]
    %v935 = vld [vmem:[#allocation6 + $0x118] sm:$0xff]
    %v936 = vld [vmem:[#allocation6 + $0x120] sm:$0xff]
    %v937 = vld [vmem:[#allocation6 + $0x128] sm:$0xff]
    %v938 = vld [vmem:[#allocation6 + $0x130] sm:$0xff]
    %v939 = vld [vmem:[#allocation6 + $0x138] sm:$0xff]
    %v940 = vld [vmem:[#allocation6 + $0x140] sm:$0xff]
    %v941 = vld [vmem:[#allocation6 + $0x148] sm:$0xff]
    %v942 = vld [vmem:[#allocation6 + $0x150] sm:$0xff]
    %v943 = vld [vmem:[#allocation6 + $0x158] sm:$0xff]
    %v944 = vld [vmem:[#allocation6 + $0x160] sm:$0xff]
    %v945 = vld [vmem:[#allocation6 + $0x168] sm:$0xff]
    %v946 = vld [vmem:[#allocation6 + $0x170] sm:$0xff]
    %v947 = vld [vmem:[#allocation6 + $0x178] sm:$0xff]
    %v948 = vld [vmem:[#allocation6 + $0x180] sm:$0xff]
    %v949 = vld [vmem:[#allocation6 + $0x188] sm:$0xff]
    %v950 = vld [vmem:[#allocation6 + $0x190] sm:$0xff]
    %v951 = vld [vmem:[#allocation6 + $0x198] sm:$0xff]
    %v952 = vld [vmem:[#allocation6 + $0x1a0] sm:$0xff]
    %v953 = vld [vmem:[#allocation6 + $0x1a8] sm:$0xff]
    %v954 = vld [vmem:[#allocation6 + $0x1b0] sm:$0xff]
    %v955 = vld [vmem:[#allocation6 + $0x1b8] sm:$0xff]
    %v956 = vld [vmem:[#allocation6 + $0x1c0] sm:$0xff]
    %v957 = vld [vmem:[#allocation6 + $0x1c8] sm:$0xff]
    %v958 = vld [vmem:[#allocation6 + $0x1d0] sm:$0xff]
    %v959 = vld [vmem:[#allocation6 + $0x1d8] sm:$0xff]
    %v960 = vld [vmem:[#allocation6 + $0x1e0] sm:$0xff]
    %v961 = vld [vmem:[#allocation6 + $0x1e8] sm:$0xff]
    %v962 = vld [vmem:[#allocation6 + $0x1f0] sm:$0xff]
    %v963 = vld [vmem:[#allocation6 + $0x1f8] sm:$0xff]
    %v964 = vld [vmem:[#allocation6 + $0x200] sm:$0xff]
    %v965 = vld [vmem:[#allocation6 + $0x208] sm:$0xff]
    %v966 = vld [vmem:[#allocation6 + $0x210] sm:$0xff]
    %v967 = vld [vmem:[#allocation6 + $0x218] sm:$0xff]
    %v968 = vld [vmem:[#allocation6 + $0x220] sm:$0xff]
    %v969 = vld [vmem:[#allocation6 + $0x228] sm:$0xff]
    %v970 = vld [vmem:[#allocation6 + $0x230] sm:$0xff]
    %v971 = vld [vmem:[#allocation6 + $0x238] sm:$0xff]
    %v972 = vld [vmem:[#allocation6 + $0x240] sm:$0xff]
    %v973 = vld [vmem:[#allocation6 + $0x248] sm:$0xff]
    %v974 = vld [vmem:[#allocation6 + $0x250] sm:$0xff]
    %v975 = vld [vmem:[#allocation6 + $0x258] sm:$0xff]
    %v976 = vld [vmem:[#allocation6 + $0x260] sm:$0xff]
    %v977 = vld [vmem:[#allocation6 + $0x268] sm:$0xff]
    %v978 = vld [vmem:[#allocation6 + $0x270] sm:$0xff]
    %v979 = vld [vmem:[#allocation6 + $0x278] sm:$0xff]
    %v980 = vld [vmem:[#allocation6 + $0x280] sm:$0xff]
    %v981 = vld [vmem:[#allocation6 + $0x288] sm:$0xff]
    %v982 = vld [vmem:[#allocation6 + $0x290] sm:$0xff]
    %v983 = vld [vmem:[#allocation6 + $0x298] sm:$0xff]
    %v984 = vld [vmem:[#allocation6 + $0x2a0] sm:$0xff]
    %v985 = vld [vmem:[#allocation6 + $0x2a8] sm:$0xff]
    %v986 = vld [vmem:[#allocation6 + $0x2b0] sm:$0xff]
    %v987 = vld [vmem:[#allocation6 + $0x2b8] sm:$0xff]
    %v988 = vld [vmem:[#allocation6 + $0x2c0] sm:$0xff]
    %v989 = vld [vmem:[#allocation6 + $0x2c8] sm:$0xff]
    %v990 = vld [vmem:[#allocation6 + $0x2d0] sm:$0xff]
    %v991 = vld [vmem:[#allocation6 + $0x2d8] sm:$0xff]
    %v992 = vld [vmem:[#allocation6 + $0x2e0] sm:$0xff]
    %v993 = vld [vmem:[#allocation6 + $0x2e8] sm:$0xff]
    %v994 = vld [vmem:[#allocation6 + $0x2f0] sm:$0xff]
    %v995 = vld [vmem:[#allocation6 + $0x2f8] sm:$0xff]
    %v996 = vld [vmem:[#allocation6 + $0x300] sm:$0xff]
    %v997 = vld [vmem:[#allocation6 + $0x308] sm:$0xff]
    %v998 = vld [vmem:[#allocation6 + $0x310] sm:$0xff]
    %v999 = vld [vmem:[#allocation6 + $0x318] sm:$0xff]
    %v1000 = vld [vmem:[#allocation6 + $0x320] sm:$0xff]
    %v1001 = vld [vmem:[#allocation6 + $0x328] sm:$0xff]
    %v1002 = vld [vmem:[#allocation6 + $0x330] sm:$0xff]
    %v1003 = vld [vmem:[#allocation6 + $0x338] sm:$0xff]
    %v1004 = vld [vmem:[#allocation6 + $0x340] sm:$0xff]
    %v1005 = vld [vmem:[#allocation6 + $0x348] sm:$0xff]
    %v1006 = vld [vmem:[#allocation6 + $0x350] sm:$0xff]
    %v1007 = vld [vmem:[#allocation6 + $0x358] sm:$0xff]
    %v1008 = vld [vmem:[#allocation6 + $0x360] sm:$0xff]
    %v1009 = vld [vmem:[#allocation6 + $0x368] sm:$0xff]
    %v1010 = vld [vmem:[#allocation6 + $0x370] sm:$0xff]
    %v1011 = vld [vmem:[#allocation6 + $0x378] sm:$0xff]
    %v1012 = vld [vmem:[#allocation6 + $0x380] sm:$0xff]
    %v1013 = vld [vmem:[#allocation6 + $0x388] sm:$0xff]
    %v1014 = vld [vmem:[#allocation6 + $0x390] sm:$0xff]
    %v1015 = vld [vmem:[#allocation6 + $0x398] sm:$0xff]
    %v1016 = vld [vmem:[#allocation6 + $0x3a0] sm:$0xff]
    %v1017 = vld [vmem:[#allocation6 + $0x3a8] sm:$0xff]
    %v1018 = vld [vmem:[#allocation6 + $0x3b0] sm:$0xff]
    %v1019 = vld [vmem:[#allocation6 + $0x3b8] sm:$0xff]
    %v1020 = vld [vmem:[#allocation6 + $0x3c0] sm:$0xff]
    %v1021 = vld [vmem:[#allocation6 + $0x3c8] sm:$0xff]
    %v1022 = vld [vmem:[#allocation6 + $0x3d0] sm:$0xff]
    %v1023 = vld [vmem:[#allocation6 + $0x3d8] sm:$0xff]
    %v1024 = vld [vmem:[#allocation6 + $0x3e0] sm:$0xff]
    %v1025 = vld [vmem:[#allocation6 + $0x3e8] sm:$0xff]
    %v1026 = vld [vmem:[#allocation6 + $0x3f0] sm:$0xff]
    %v1027 = vld [vmem:[#allocation6 + $0x3f8] sm:$0xff]
    %v1028 = vld [vmem:[#allocation6 + $0x400] sm:$0xff]
    %v1029 = vld [vmem:[#allocation6 + $0x408] sm:$0xff]
    %v1030 = vld [vmem:[#allocation6 + $0x410] sm:$0xff]
    %v1031 = vld [vmem:[#allocation6 + $0x418] sm:$0xff]
    %v1032 = vld [vmem:[#allocation6 + $0x420] sm:$0xff]
    %v1033 = vld [vmem:[#allocation6 + $0x428] sm:$0xff]
    %v1034 = vld [vmem:[#allocation6 + $0x430] sm:$0xff]
    %v1035 = vld [vmem:[#allocation6 + $0x438] sm:$0xff]
    %v1036 = vld [vmem:[#allocation6 + $0x440] sm:$0xff]
    %v1037 = vld [vmem:[#allocation6 + $0x448] sm:$0xff]
    %v1038 = vld [vmem:[#allocation6 + $0x450] sm:$0xff]
    %v1039 = vld [vmem:[#allocation6 + $0x458] sm:$0xff]
    %v1040 = vld [vmem:[#allocation6 + $0x460] sm:$0xff]
    %v1041 = vld [vmem:[#allocation6 + $0x468] sm:$0xff]
    %v1042 = vld [vmem:[#allocation6 + $0x470] sm:$0xff]
    %v1043 = vld [vmem:[#allocation6 + $0x478] sm:$0xff]
    %v1044 = vld [vmem:[#allocation6 + $0x480] sm:$0xff]
    %v1045 = vld [vmem:[#allocation6 + $0x488] sm:$0xff]
    %v1046 = vld [vmem:[#allocation6 + $0x490] sm:$0xff]
    %v1047 = vld [vmem:[#allocation6 + $0x498] sm:$0xff]
    %v1048 = vld [vmem:[#allocation6 + $0x4a0] sm:$0xff]
    %v1049 = vld [vmem:[#allocation6 + $0x4a8] sm:$0xff]
    %v1050 = vld [vmem:[#allocation6 + $0x4b0] sm:$0xff]
    %v1051 = vld [vmem:[#allocation6 + $0x4b8] sm:$0xff]
    %v1052 = vld [vmem:[#allocation6 + $0x4c0] sm:$0xff]
    %v1053 = vld [vmem:[#allocation6 + $0x4c8] sm:$0xff]
    %v1054 = vld [vmem:[#allocation6 + $0x4d0] sm:$0xff]
    %v1055 = vld [vmem:[#allocation6 + $0x4d8] sm:$0xff]
    %v1056 = vld [vmem:[#allocation6 + $0x4e0] sm:$0xff]
    %v1057 = vld [vmem:[#allocation6 + $0x4e8] sm:$0xff]
    %v1058 = vld [vmem:[#allocation6 + $0x4f0] sm:$0xff]
    %v1059 = vld [vmem:[#allocation6 + $0x4f8] sm:$0xff]
    %v1060 = vld [vmem:[#allocation6 + $0x500] sm:$0xff]
    %v1061 = vld [vmem:[#allocation6 + $0x508] sm:$0xff]
    %v1062 = vld [vmem:[#allocation6 + $0x510] sm:$0xff]
    %v1063 = vld [vmem:[#allocation6 + $0x518] sm:$0xff]
    %v1064 = vld [vmem:[#allocation6 + $0x520] sm:$0xff]
    %v1065 = vld [vmem:[#allocation6 + $0x528] sm:$0xff]
    %v1066 = vld [vmem:[#allocation6 + $0x530] sm:$0xff]
    %v1067 = vld [vmem:[#allocation6 + $0x538] sm:$0xff]
    %v1068 = vld [vmem:[#allocation6 + $0x540] sm:$0xff]
    %v1069 = vld [vmem:[#allocation6 + $0x548] sm:$0xff]
    %v1070 = vld [vmem:[#allocation6 + $0x550] sm:$0xff]
    %v1071 = vld [vmem:[#allocation6 + $0x558] sm:$0xff]
    %v1072 = vld [vmem:[#allocation6 + $0x560] sm:$0xff]
    %v1073 = vld [vmem:[#allocation6 + $0x568] sm:$0xff]
    %v1074 = vld [vmem:[#allocation6 + $0x570] sm:$0xff]
    %v1075 = vld [vmem:[#allocation6 + $0x578] sm:$0xff]
    %v1076 = vld [vmem:[#allocation6 + $0x580] sm:$0xff]
    %v1077 = vld [vmem:[#allocation6 + $0x588] sm:$0xff]
    %v1078 = vld [vmem:[#allocation6 + $0x590] sm:$0xff]
    %v1079 = vld [vmem:[#allocation6 + $0x598] sm:$0xff]
    %v1080 = vld [vmem:[#allocation6 + $0x5a0] sm:$0xff]
    %v1081 = vld [vmem:[#allocation6 + $0x5a8] sm:$0xff]
    %v1082 = vld [vmem:[#allocation6 + $0x5b0] sm:$0xff]
    %v1083 = vld [vmem:[#allocation6 + $0x5b8] sm:$0xff]
    %v1084 = vld [vmem:[#allocation6 + $0x5c0] sm:$0xff]
    %v1085 = vld [vmem:[#allocation6 + $0x5c8] sm:$0xff]
    %v1086 = vld [vmem:[#allocation6 + $0x5d0] sm:$0xff]
    %v1087 = vld [vmem:[#allocation6 + $0x5d8] sm:$0xff]
    %v1088 = vld [vmem:[#allocation6 + $0x5e0] sm:$0xff]
    %v1089 = vld [vmem:[#allocation6 + $0x5e8] sm:$0xff]
    %v1090 = vld [vmem:[#allocation6 + $0x5f0] sm:$0xff]
    %v1091 = vld [vmem:[#allocation6 + $0x5f8] sm:$0xff]
    %v1092 = vld [vmem:[#allocation6 + $0x600] sm:$0xff]
    %v1093 = vld [vmem:[#allocation6 + $0x608] sm:$0xff]
    %v1094 = vld [vmem:[#allocation6 + $0x610] sm:$0xff]
    %v1095 = vld [vmem:[#allocation6 + $0x618] sm:$0xff]
    %v1096 = vld [vmem:[#allocation6 + $0x620] sm:$0xff]
    %v1097 = vld [vmem:[#allocation6 + $0x628] sm:$0xff]
    %v1098 = vld [vmem:[#allocation6 + $0x630] sm:$0xff]
    %v1099 = vld [vmem:[#allocation6 + $0x638] sm:$0xff]
    %v1100 = vld [vmem:[#allocation6 + $0x640] sm:$0xff]
    %v1101 = vld [vmem:[#allocation6 + $0x648] sm:$0xff]
    %v1102 = vld [vmem:[#allocation6 + $0x650] sm:$0xff]
    %v1103 = vld [vmem:[#allocation6 + $0x658] sm:$0xff]
    %v1104 = vld [vmem:[#allocation6 + $0x660] sm:$0xff]
    %v1105 = vld [vmem:[#allocation6 + $0x668] sm:$0xff]
    %v1106 = vld [vmem:[#allocation6 + $0x670] sm:$0xff]
    %v1107 = vld [vmem:[#allocation6 + $0x678] sm:$0xff]
    %v1108 = vld [vmem:[#allocation6 + $0x680] sm:$0xff]
    %v1109 = vld [vmem:[#allocation6 + $0x688] sm:$0xff]
    %v1110 = vld [vmem:[#allocation6 + $0x690] sm:$0xff]
    %v1111 = vld [vmem:[#allocation6 + $0x698] sm:$0xff]
    %v1112 = vld [vmem:[#allocation6 + $0x6a0] sm:$0xff]
    %v1113 = vld [vmem:[#allocation6 + $0x6a8] sm:$0xff]
    %v1114 = vld [vmem:[#allocation6 + $0x6b0] sm:$0xff]
    %v1115 = vld [vmem:[#allocation6 + $0x6b8] sm:$0xff]
    %v1116 = vld [vmem:[#allocation6 + $0x6c0] sm:$0xff]
    %v1117 = vld [vmem:[#allocation6 + $0x6c8] sm:$0xff]
    %v1118 = vld [vmem:[#allocation6 + $0x6d0] sm:$0xff]
    %v1119 = vld [vmem:[#allocation6 + $0x6d8] sm:$0xff]
    %v1120 = vld [vmem:[#allocation6 + $0x6e0] sm:$0xff]
    %v1121 = vld [vmem:[#allocation6 + $0x6e8] sm:$0xff]
    %v1122 = vld [vmem:[#allocation6 + $0x6f0] sm:$0xff]
    %v1123 = vld [vmem:[#allocation6 + $0x6f8] sm:$0xff]
    %v1124 = vld [vmem:[#allocation6 + $0x700] sm:$0xff]
    %v1125 = vld [vmem:[#allocation6 + $0x708] sm:$0xff]
    %v1126 = vld [vmem:[#allocation6 + $0x710] sm:$0xff]
    %v1127 = vld [vmem:[#allocation6 + $0x718] sm:$0xff]
    %v1128 = vld [vmem:[#allocation6 + $0x720] sm:$0xff]
    %v1129 = vld [vmem:[#allocation6 + $0x728] sm:$0xff]
    %v1130 = vld [vmem:[#allocation6 + $0x730] sm:$0xff]
    %v1131 = vld [vmem:[#allocation6 + $0x738] sm:$0xff]
    %v1132 = vld [vmem:[#allocation6 + $0x740] sm:$0xff]
    %v1133 = vld [vmem:[#allocation6 + $0x748] sm:$0xff]
    %v1134 = vld [vmem:[#allocation6 + $0x750] sm:$0xff]
    %v1135 = vld [vmem:[#allocation6 + $0x758] sm:$0xff]
    %v1136 = vld [vmem:[#allocation6 + $0x760] sm:$0xff]
    %v1137 = vld [vmem:[#allocation6 + $0x768] sm:$0xff]
    %v1138 = vld [vmem:[#allocation6 + $0x770] sm:$0xff]
    %v1139 = vld [vmem:[#allocation6 + $0x778] sm:$0xff]
    %v1140 = vld [vmem:[#allocation6 + $0x780] sm:$0xff]
    %v1141 = vld [vmem:[#allocation6 + $0x788] sm:$0xff]
    %v1142 = vld [vmem:[#allocation6 + $0x790] sm:$0xff]
    %v1143 = vld [vmem:[#allocation6 + $0x798] sm:$0xff]
    %v1144 = vld [vmem:[#allocation6 + $0x7a0] sm:$0xff]
    %v1145 = vld [vmem:[#allocation6 + $0x7a8] sm:$0xff]
    %v1146 = vld [vmem:[#allocation6 + $0x7b0] sm:$0xff]
    %v1147 = vld [vmem:[#allocation6 + $0x7b8] sm:$0xff]
    %v1148 = vld [vmem:[#allocation6 + $0x7c0] sm:$0xff]
    %v1149 = vld [vmem:[#allocation6 + $0x7c8] sm:$0xff]
    %v1150 = vld [vmem:[#allocation6 + $0x7d0] sm:$0xff]
    %v1151 = vld [vmem:[#allocation6 + $0x7d8] sm:$0xff]
    %v1152 = vld [vmem:[#allocation6 + $0x7e0] sm:$0xff]
    %v1153 = vld [vmem:[#allocation6 + $0x7e8] sm:$0xff]
    %v1154 = vld [vmem:[#allocation6 + $0x7f0] sm:$0xff]
    %v1155 = vld [vmem:[#allocation6 + $0x7f8] sm:$0xff]
    %v1156 = vld [vmem:[#allocation6 + $0x800] sm:$0xff]
    %v1157 = vld [vmem:[#allocation6 + $0x808] sm:$0xff]
    %v1158 = vld [vmem:[#allocation6 + $0x810] sm:$0xff]
    %v1159 = vld [vmem:[#allocation6 + $0x818] sm:$0xff]
    %v1160 = vld [vmem:[#allocation6 + $0x820] sm:$0xff]
    %v1161 = vld [vmem:[#allocation6 + $0x828] sm:$0xff]
    %v1162 = vld [vmem:[#allocation6 + $0x830] sm:$0xff]
    %v1163 = vld [vmem:[#allocation6 + $0x838] sm:$0xff]
    %v1164 = vld [vmem:[#allocation6 + $0x840] sm:$0xff]
    %v1165 = vld [vmem:[#allocation6 + $0x848] sm:$0xff]
    %v1166 = vld [vmem:[#allocation6 + $0x850] sm:$0xff]
    %v1167 = vld [vmem:[#allocation6 + $0x858] sm:$0xff]
    %v1168 = vld [vmem:[#allocation6 + $0x860] sm:$0xff]
    %v1169 = vld [vmem:[#allocation6 + $0x868] sm:$0xff]
    %v1170 = vld [vmem:[#allocation6 + $0x870] sm:$0xff]
    %v1171 = vld [vmem:[#allocation6 + $0x878] sm:$0xff]
    %v1172 = vld [vmem:[#allocation6 + $0x880] sm:$0xff]
    %v1173 = vld [vmem:[#allocation6 + $0x888] sm:$0xff]
    %v1174 = vld [vmem:[#allocation6 + $0x890] sm:$0xff]
    %v1175 = vld [vmem:[#allocation6 + $0x898] sm:$0xff]
    %v1176 = vld [vmem:[#allocation6 + $0x8a0] sm:$0xff]
    %v1177 = vld [vmem:[#allocation6 + $0x8a8] sm:$0xff]
    %v1178 = vld [vmem:[#allocation6 + $0x8b0] sm:$0xff]
    %v1179 = vld [vmem:[#allocation6 + $0x8b8] sm:$0xff]
    %v1180 = vld [vmem:[#allocation6 + $0x8c0] sm:$0xff]
    %v1181 = vld [vmem:[#allocation6 + $0x8c8] sm:$0xff]
    %v1182 = vld [vmem:[#allocation6 + $0x8d0] sm:$0xff]
    %v1183 = vld [vmem:[#allocation6 + $0x8d8] sm:$0xff]
    %v1184 = vld [vmem:[#allocation6 + $0x8e0] sm:$0xff]
    %v1185 = vld [vmem:[#allocation6 + $0x8e8] sm:$0xff]
    %v1186 = vld [vmem:[#allocation6 + $0x8f0] sm:$0xff]
    %v1187 = vld [vmem:[#allocation6 + $0x8f8] sm:$0xff]
    %v1188 = vld [vmem:[#allocation6 + $0x900] sm:$0xff]
    %v1189 = vld [vmem:[#allocation6 + $0x908] sm:$0xff]
    %v1190 = vld [vmem:[#allocation6 + $0x910] sm:$0xff]
    %v1191 = vld [vmem:[#allocation6 + $0x918] sm:$0xff]
    %v1192 = vld [vmem:[#allocation6 + $0x920] sm:$0xff]
    %v1193 = vld [vmem:[#allocation6 + $0x928] sm:$0xff]
    %v1194 = vld [vmem:[#allocation6 + $0x930] sm:$0xff]
    %v1195 = vld [vmem:[#allocation6 + $0x938] sm:$0xff]
    %v1196 = vld [vmem:[#allocation6 + $0x940] sm:$0xff]
    %v1197 = vld [vmem:[#allocation6 + $0x948] sm:$0xff]
    %v1198 = vld [vmem:[#allocation6 + $0x950] sm:$0xff]
    %v1199 = vld [vmem:[#allocation6 + $0x958] sm:$0xff]
    %v1200 = vld [vmem:[#allocation6 + $0x960] sm:$0xff]
    %v1201 = vld [vmem:[#allocation6 + $0x968] sm:$0xff]
    %v1202 = vld [vmem:[#allocation6 + $0x970] sm:$0xff]
    %v1203 = vld [vmem:[#allocation6 + $0x978] sm:$0xff]
    %v1204 = vld [vmem:[#allocation6 + $0x980] sm:$0xff]
    %v1205 = vld [vmem:[#allocation6 + $0x988] sm:$0xff]
    %v1206 = vld [vmem:[#allocation6 + $0x990] sm:$0xff]
    %v1207 = vld [vmem:[#allocation6 + $0x998] sm:$0xff]
    %v1208 = vld [vmem:[#allocation6 + $0x9a0] sm:$0xff]
    %v1209 = vld [vmem:[#allocation6 + $0x9a8] sm:$0xff]
    %v1210 = vld [vmem:[#allocation6 + $0x9b0] sm:$0xff]
    %v1211 = vld [vmem:[#allocation6 + $0x9b8] sm:$0xff]
    %v1212 = vld [vmem:[#allocation6 + $0x9c0] sm:$0xff]
    %v1213 = vld [vmem:[#allocation6 + $0x9c8] sm:$0xff]
    %v1214 = vld [vmem:[#allocation6 + $0x9d0] sm:$0xff]
    %v1215 = vld [vmem:[#allocation6 + $0x9d8] sm:$0xff]
    %v1216 = vld [vmem:[#allocation6 + $0x9e0] sm:$0xff]
    %v1217 = vld [vmem:[#allocation6 + $0x9e8] sm:$0xff]
    %v1218 = vld [vmem:[#allocation6 + $0x9f0] sm:$0xff]
    %v1219 = vld [vmem:[#allocation6 + $0x9f8] sm:$0xff]
    %v1220 = vld [vmem:[#allocation6 + $0xa00] sm:$0xff]
    %v1221 = vld [vmem:[#allocation6 + $0xa08] sm:$0xff]
    %v1222 = vld [vmem:[#allocation6 + $0xa10] sm:$0xff]
    %v1223 = vld [vmem:[#allocation6 + $0xa18] sm:$0xff]
    %v1224 = vld [vmem:[#allocation6 + $0xa20] sm:$0xff]
    %v1225 = vld [vmem:[#allocation6 + $0xa28] sm:$0xff]
    %v1226 = vld [vmem:[#allocation6 + $0xa30] sm:$0xff]
    %v1227 = vld [vmem:[#allocation6 + $0xa38] sm:$0xff]
    %v1228 = vld [vmem:[#allocation6 + $0xa40] sm:$0xff]
    %v1229 = vld [vmem:[#allocation6 + $0xa48] sm:$0xff]
    %v1230 = vld [vmem:[#allocation6 + $0xa50] sm:$0xff]
    %v1231 = vld [vmem:[#allocation6 + $0xa58] sm:$0xff]
    %v1232 = vld [vmem:[#allocation6 + $0xa60] sm:$0xff]
    %v1233 = vld [vmem:[#allocation6 + $0xa68] sm:$0xff]
    %v1234 = vld [vmem:[#allocation6 + $0xa70] sm:$0xff]
    %v1235 = vld [vmem:[#allocation6 + $0xa78] sm:$0xff]
    %v1236 = vld [vmem:[#allocation6 + $0xa80] sm:$0xff]
    %v1237 = vld [vmem:[#allocation6 + $0xa88] sm:$0xff]
    %v1238 = vld [vmem:[#allocation6 + $0xa90] sm:$0xff]
    %v1239 = vld [vmem:[#allocation6 + $0xa98] sm:$0xff]
    %v1240 = vld [vmem:[#allocation6 + $0xaa0] sm:$0xff]
    %v1241 = vld [vmem:[#allocation6 + $0xaa8] sm:$0xff]
    %v1242 = vld [vmem:[#allocation6 + $0xab0] sm:$0xff]
    %v1243 = vld [vmem:[#allocation6 + $0xab8] sm:$0xff]
    %v1244 = vld [vmem:[#allocation6 + $0xac0] sm:$0xff]
    %v1245 = vld [vmem:[#allocation6 + $0xac8] sm:$0xff]
    %v1246 = vld [vmem:[#allocation6 + $0xad0] sm:$0xff]
    %v1247 = vld [vmem:[#allocation6 + $0xad8] sm:$0xff]
    %v1248 = vld [vmem:[#allocation6 + $0xae0] sm:$0xff]
    %v1249 = vld [vmem:[#allocation6 + $0xae8] sm:$0xff]
    %v1250 = vld [vmem:[#allocation6 + $0xaf0] sm:$0xff]
    %v1251 = vld [vmem:[#allocation6 + $0xaf8] sm:$0xff]
    %v1252 = vld [vmem:[#allocation6 + $0xb00] sm:$0xff]
    %v1253 = vld [vmem:[#allocation6 + $0xb08] sm:$0xff]
    %v1254 = vld [vmem:[#allocation6 + $0xb10] sm:$0xff]
    %v1255 = vld [vmem:[#allocation6 + $0xb18] sm:$0xff]
    %v1256 = vld [vmem:[#allocation6 + $0xb20] sm:$0xff]
    %v1257 = vld [vmem:[#allocation6 + $0xb28] sm:$0xff]
    %v1258 = vld [vmem:[#allocation6 + $0xb30] sm:$0xff]
    %v1259 = vld [vmem:[#allocation6 + $0xb38] sm:$0xff]
    %v1260 = vld [vmem:[#allocation6 + $0xb40] sm:$0xff]
    %v1261 = vld [vmem:[#allocation6 + $0xb48] sm:$0xff]
    %v1262 = vld [vmem:[#allocation6 + $0xb50] sm:$0xff]
    %v1263 = vld [vmem:[#allocation6 + $0xb58] sm:$0xff]
    %v1264 = vld [vmem:[#allocation6 + $0xb60] sm:$0xff]
    %v1265 = vld [vmem:[#allocation6 + $0xb68] sm:$0xff]
    %v1266 = vld [vmem:[#allocation6 + $0xb70] sm:$0xff]
    %v1267 = vld [vmem:[#allocation6 + $0xb78] sm:$0xff]
    %v1268 = vld [vmem:[#allocation6 + $0xb80] sm:$0xff]
    %v1269 = vld [vmem:[#allocation6 + $0xb88] sm:$0xff]
    %v1270 = vld [vmem:[#allocation6 + $0xb90] sm:$0xff]
    %v1271 = vld [vmem:[#allocation6 + $0xb98] sm:$0xff]
    %v1272 = vld [vmem:[#allocation6 + $0xba0] sm:$0xff]
    %v1273 = vld [vmem:[#allocation6 + $0xba8] sm:$0xff]
    %v1274 = vld [vmem:[#allocation6 + $0xbb0] sm:$0xff]
    %v1275 = vld [vmem:[#allocation6 + $0xbb8] sm:$0xff]
    %v1276 = vld [vmem:[#allocation6 + $0xbc0] sm:$0xff]
    %v1277 = vld [vmem:[#allocation6 + $0xbc8] sm:$0xff]
    %v1278 = vld [vmem:[#allocation6 + $0xbd0] sm:$0xff]
    %v1279 = vld [vmem:[#allocation6 + $0xbd8] sm:$0xff]
    %v1280 = vld [vmem:[#allocation6 + $0xbe0] sm:$0xff]
    %v1281 = vld [vmem:[#allocation6 + $0xbe8] sm:$0xff]
    %v1282 = vld [vmem:[#allocation6 + $0xbf0] sm:$0xff]
    %v1283 = vld [vmem:[#allocation6 + $0xbf8] sm:$0xff]
    %v1668 = vunpack.c.l.b16 %v900
    %v1669 = vunpack.c.h.b16 %v900
    %v1670 = vunpack.c.l.b16 %v901
    %v1671 = vunpack.c.h.b16 %v901
    %v1672 = vunpack.c.l.b16 %v902
    %v1673 = vunpack.c.h.b16 %v902
    %v1674 = vunpack.c.l.b16 %v903
    %v1675 = vunpack.c.h.b16 %v903
    %v1676 = vunpack.c.l.b16 %v904
    %v1677 = vunpack.c.h.b16 %v904
    %v1678 = vunpack.c.l.b16 %v905
    %v1679 = vunpack.c.h.b16 %v905
    %v1680 = vunpack.c.l.b16 %v906
    %v1681 = vunpack.c.h.b16 %v906
    %v1682 = vunpack.c.l.b16 %v907
    %v1683 = vunpack.c.h.b16 %v907
    %v1684 = vunpack.c.l.b16 %v908
    %v1685 = vunpack.c.h.b16 %v908
    %v1686 = vunpack.c.l.b16 %v909
    %v1687 = vunpack.c.h.b16 %v909
    %v1688 = vunpack.c.l.b16 %v910
    %v1689 = vunpack.c.h.b16 %v910
    %v1690 = vunpack.c.l.b16 %v911
    %v1691 = vunpack.c.h.b16 %v911
    %v1692 = vunpack.c.l.b16 %v912
    %v1693 = vunpack.c.h.b16 %v912
    %v1694 = vunpack.c.l.b16 %v913
    %v1695 = vunpack.c.h.b16 %v913
    %v1696 = vunpack.c.l.b16 %v914
    %v1697 = vunpack.c.h.b16 %v914
    %v1698 = vunpack.c.l.b16 %v915
    %v1699 = vunpack.c.h.b16 %v915
    %v1700 = vunpack.c.l.b16 %v916
    %v1701 = vunpack.c.h.b16 %v916
    %v1702 = vunpack.c.l.b16 %v917
    %v1703 = vunpack.c.h.b16 %v917
    %v1704 = vunpack.c.l.b16 %v918
    %v1705 = vunpack.c.h.b16 %v918
    %v1706 = vunpack.c.l.b16 %v919
    %v1707 = vunpack.c.h.b16 %v919
    %v1708 = vunpack.c.l.b16 %v920
    %v1709 = vunpack.c.h.b16 %v920
    %v1710 = vunpack.c.l.b16 %v921
    %v1711 = vunpack.c.h.b16 %v921
    %v1712 = vunpack.c.l.b16 %v922
    %v1713 = vunpack.c.h.b16 %v922
    %v1714 = vunpack.c.l.b16 %v923
    %v1715 = vunpack.c.h.b16 %v923
    %v1716 = vunpack.c.l.b16 %v924
    %v1717 = vunpack.c.h.b16 %v924
    %v1718 = vunpack.c.l.b16 %v925
    %v1719 = vunpack.c.h.b16 %v925
    %v1720 = vunpack.c.l.b16 %v926
    %v1721 = vunpack.c.h.b16 %v926
    %v1722 = vunpack.c.l.b16 %v927
    %v1723 = vunpack.c.h.b16 %v927
    %v1724 = vunpack.c.l.b16 %v928
    %v1725 = vunpack.c.h.b16 %v928
    %v1726 = vunpack.c.l.b16 %v929
    %v1727 = vunpack.c.h.b16 %v929
    %v1728 = vunpack.c.l.b16 %v930
    %v1729 = vunpack.c.h.b16 %v930
    %v1730 = vunpack.c.l.b16 %v931
    %v1731 = vunpack.c.h.b16 %v931
    %v1732 = vunpack.c.l.b16 %v932
    %v1733 = vunpack.c.h.b16 %v932
    %v1734 = vunpack.c.l.b16 %v933
    %v1735 = vunpack.c.h.b16 %v933
    %v1736 = vunpack.c.l.b16 %v934
    %v1737 = vunpack.c.h.b16 %v934
    %v1738 = vunpack.c.l.b16 %v935
    %v1739 = vunpack.c.h.b16 %v935
    %v1740 = vunpack.c.l.b16 %v936
    %v1741 = vunpack.c.h.b16 %v936
    %v1742 = vunpack.c.l.b16 %v937
    %v1743 = vunpack.c.h.b16 %v937
    %v1744 = vunpack.c.l.b16 %v938
    %v1745 = vunpack.c.h.b16 %v938
    %v1746 = vunpack.c.l.b16 %v939
    %v1747 = vunpack.c.h.b16 %v939
    %v1748 = vunpack.c.l.b16 %v940
    %v1749 = vunpack.c.h.b16 %v940
    %v1750 = vunpack.c.l.b16 %v941
    %v1751 = vunpack.c.h.b16 %v941
    %v1752 = vunpack.c.l.b16 %v942
    %v1753 = vunpack.c.h.b16 %v942
    %v1754 = vunpack.c.l.b16 %v943
    %v1755 = vunpack.c.h.b16 %v943
    %v1756 = vunpack.c.l.b16 %v944
    %v1757 = vunpack.c.h.b16 %v944
    %v1758 = vunpack.c.l.b16 %v945
    %v1759 = vunpack.c.h.b16 %v945
    %v1760 = vunpack.c.l.b16 %v946
    %v1761 = vunpack.c.h.b16 %v946
    %v1762 = vunpack.c.l.b16 %v947
    %v1763 = vunpack.c.h.b16 %v947
    %v1764 = vunpack.c.l.b16 %v948
    %v1765 = vunpack.c.h.b16 %v948
    %v1766 = vunpack.c.l.b16 %v949
    %v1767 = vunpack.c.h.b16 %v949
    %v1768 = vunpack.c.l.b16 %v950
    %v1769 = vunpack.c.h.b16 %v950
    %v1770 = vunpack.c.l.b16 %v951
    %v1771 = vunpack.c.h.b16 %v951
    %v1772 = vunpack.c.l.b16 %v952
    %v1773 = vunpack.c.h.b16 %v952
    %v1774 = vunpack.c.l.b16 %v953
    %v1775 = vunpack.c.h.b16 %v953
    %v1776 = vunpack.c.l.b16 %v954
    %v1777 = vunpack.c.h.b16 %v954
    %v1778 = vunpack.c.l.b16 %v955
    %v1779 = vunpack.c.h.b16 %v955
    %v1780 = vunpack.c.l.b16 %v956
    %v1781 = vunpack.c.h.b16 %v956
    %v1782 = vunpack.c.l.b16 %v957
    %v1783 = vunpack.c.h.b16 %v957
    %v1784 = vunpack.c.l.b16 %v958
    %v1785 = vunpack.c.h.b16 %v958
    %v1786 = vunpack.c.l.b16 %v959
    %v1787 = vunpack.c.h.b16 %v959
    %v1788 = vunpack.c.l.b16 %v960
    %v1789 = vunpack.c.h.b16 %v960
    %v1790 = vunpack.c.l.b16 %v961
    %v1791 = vunpack.c.h.b16 %v961
    %v1792 = vunpack.c.l.b16 %v962
    %v1793 = vunpack.c.h.b16 %v962
    %v1794 = vunpack.c.l.b16 %v963
    %v1795 = vunpack.c.h.b16 %v963
    %v1796 = vunpack.c.l.b16 %v964
    %v1797 = vunpack.c.h.b16 %v964
    %v1798 = vunpack.c.l.b16 %v965
    %v1799 = vunpack.c.h.b16 %v965
    %v1800 = vunpack.c.l.b16 %v966
    %v1801 = vunpack.c.h.b16 %v966
    %v1802 = vunpack.c.l.b16 %v967
    %v1803 = vunpack.c.h.b16 %v967
    %v1804 = vunpack.c.l.b16 %v968
    %v1805 = vunpack.c.h.b16 %v968
    %v1806 = vunpack.c.l.b16 %v969
    %v1807 = vunpack.c.h.b16 %v969
    %v1808 = vunpack.c.l.b16 %v970
    %v1809 = vunpack.c.h.b16 %v970
    %v1810 = vunpack.c.l.b16 %v971
    %v1811 = vunpack.c.h.b16 %v971
    %v1812 = vunpack.c.l.b16 %v972
    %v1813 = vunpack.c.h.b16 %v972
    %v1814 = vunpack.c.l.b16 %v973
    %v1815 = vunpack.c.h.b16 %v973
    %v1816 = vunpack.c.l.b16 %v974
    %v1817 = vunpack.c.h.b16 %v974
    %v1818 = vunpack.c.l.b16 %v975
    %v1819 = vunpack.c.h.b16 %v975
    %v1820 = vunpack.c.l.b16 %v976
    %v1821 = vunpack.c.h.b16 %v976
    %v1822 = vunpack.c.l.b16 %v977
    %v1823 = vunpack.c.h.b16 %v977
    %v1824 = vunpack.c.l.b16 %v978
    %v1825 = vunpack.c.h.b16 %v978
    %v1826 = vunpack.c.l.b16 %v979
    %v1827 = vunpack.c.h.b16 %v979
    %v1828 = vunpack.c.l.b16 %v980
    %v1829 = vunpack.c.h.b16 %v980
    %v1830 = vunpack.c.l.b16 %v981
    %v1831 = vunpack.c.h.b16 %v981
    %v1832 = vunpack.c.l.b16 %v982
    %v1833 = vunpack.c.h.b16 %v982
    %v1834 = vunpack.c.l.b16 %v983
    %v1835 = vunpack.c.h.b16 %v983
    %v1836 = vunpack.c.l.b16 %v984
    %v1837 = vunpack.c.h.b16 %v984
    %v1838 = vunpack.c.l.b16 %v985
    %v1839 = vunpack.c.h.b16 %v985
    %v1840 = vunpack.c.l.b16 %v986
    %v1841 = vunpack.c.h.b16 %v986
    %v1842 = vunpack.c.l.b16 %v987
    %v1843 = vunpack.c.h.b16 %v987
    %v1844 = vunpack.c.l.b16 %v988
    %v1845 = vunpack.c.h.b16 %v988
    %v1846 = vunpack.c.l.b16 %v989
    %v1847 = vunpack.c.h.b16 %v989
    %v1848 = vunpack.c.l.b16 %v990
    %v1849 = vunpack.c.h.b16 %v990
    %v1850 = vunpack.c.l.b16 %v991
    %v1851 = vunpack.c.h.b16 %v991
    %v1852 = vunpack.c.l.b16 %v992
    %v1853 = vunpack.c.h.b16 %v992
    %v1854 = vunpack.c.l.b16 %v993
    %v1855 = vunpack.c.h.b16 %v993
    %v1856 = vunpack.c.l.b16 %v994
    %v1857 = vunpack.c.h.b16 %v994
    %v1858 = vunpack.c.l.b16 %v995
    %v1859 = vunpack.c.h.b16 %v995
    %v1860 = vunpack.c.l.b16 %v996
    %v1861 = vunpack.c.h.b16 %v996
    %v1862 = vunpack.c.l.b16 %v997
    %v1863 = vunpack.c.h.b16 %v997
    %v1864 = vunpack.c.l.b16 %v998
    %v1865 = vunpack.c.h.b16 %v998
    %v1866 = vunpack.c.l.b16 %v999
    %v1867 = vunpack.c.h.b16 %v999
    %v1868 = vunpack.c.l.b16 %v1000
    %v1869 = vunpack.c.h.b16 %v1000
    %v1870 = vunpack.c.l.b16 %v1001
    %v1871 = vunpack.c.h.b16 %v1001
    %v1872 = vunpack.c.l.b16 %v1002
    %v1873 = vunpack.c.h.b16 %v1002
    %v1874 = vunpack.c.l.b16 %v1003
    %v1875 = vunpack.c.h.b16 %v1003
    %v1876 = vunpack.c.l.b16 %v1004
    %v1877 = vunpack.c.h.b16 %v1004
    %v1878 = vunpack.c.l.b16 %v1005
    %v1879 = vunpack.c.h.b16 %v1005
    %v1880 = vunpack.c.l.b16 %v1006
    %v1881 = vunpack.c.h.b16 %v1006
    %v1882 = vunpack.c.l.b16 %v1007
    %v1883 = vunpack.c.h.b16 %v1007
    %v1884 = vunpack.c.l.b16 %v1008
    %v1885 = vunpack.c.h.b16 %v1008
    %v1886 = vunpack.c.l.b16 %v1009
    %v1887 = vunpack.c.h.b16 %v1009
    %v1888 = vunpack.c.l.b16 %v1010
    %v1889 = vunpack.c.h.b16 %v1010
    %v1890 = vunpack.c.l.b16 %v1011
    %v1891 = vunpack.c.h.b16 %v1011
    %v1892 = vunpack.c.l.b16 %v1012
    %v1893 = vunpack.c.h.b16 %v1012
    %v1894 = vunpack.c.l.b16 %v1013
    %v1895 = vunpack.c.h.b16 %v1013
    %v1896 = vunpack.c.l.b16 %v1014
    %v1897 = vunpack.c.h.b16 %v1014
    %v1898 = vunpack.c.l.b16 %v1015
    %v1899 = vunpack.c.h.b16 %v1015
    %v1900 = vunpack.c.l.b16 %v1016
    %v1901 = vunpack.c.h.b16 %v1016
    %v1902 = vunpack.c.l.b16 %v1017
    %v1903 = vunpack.c.h.b16 %v1017
    %v1904 = vunpack.c.l.b16 %v1018
    %v1905 = vunpack.c.h.b16 %v1018
    %v1906 = vunpack.c.l.b16 %v1019
    %v1907 = vunpack.c.h.b16 %v1019
    %v1908 = vunpack.c.l.b16 %v1020
    %v1909 = vunpack.c.h.b16 %v1020
    %v1910 = vunpack.c.l.b16 %v1021
    %v1911 = vunpack.c.h.b16 %v1021
    %v1912 = vunpack.c.l.b16 %v1022
    %v1913 = vunpack.c.h.b16 %v1022
    %v1914 = vunpack.c.l.b16 %v1023
    %v1915 = vunpack.c.h.b16 %v1023
    %v1916 = vunpack.c.l.b16 %v1024
    %v1917 = vunpack.c.h.b16 %v1024
    %v1918 = vunpack.c.l.b16 %v1025
    %v1919 = vunpack.c.h.b16 %v1025
    %v1920 = vunpack.c.l.b16 %v1026
    %v1921 = vunpack.c.h.b16 %v1026
    %v1922 = vunpack.c.l.b16 %v1027
    %v1923 = vunpack.c.h.b16 %v1027
    %v1924 = vunpack.c.l.b16 %v1028
    %v1925 = vunpack.c.h.b16 %v1028
    %v1926 = vunpack.c.l.b16 %v1029
    %v1927 = vunpack.c.h.b16 %v1029
    %v1928 = vunpack.c.l.b16 %v1030
    %v1929 = vunpack.c.h.b16 %v1030
    %v1930 = vunpack.c.l.b16 %v1031
    %v1931 = vunpack.c.h.b16 %v1031
    %v1932 = vunpack.c.l.b16 %v1032
    %v1933 = vunpack.c.h.b16 %v1032
    %v1934 = vunpack.c.l.b16 %v1033
    %v1935 = vunpack.c.h.b16 %v1033
    %v1936 = vunpack.c.l.b16 %v1034
    %v1937 = vunpack.c.h.b16 %v1034
    %v1938 = vunpack.c.l.b16 %v1035
    %v1939 = vunpack.c.h.b16 %v1035
    %v1940 = vunpack.c.l.b16 %v1036
    %v1941 = vunpack.c.h.b16 %v1036
    %v1942 = vunpack.c.l.b16 %v1037
    %v1943 = vunpack.c.h.b16 %v1037
    %v1944 = vunpack.c.l.b16 %v1038
    %v1945 = vunpack.c.h.b16 %v1038
    %v1946 = vunpack.c.l.b16 %v1039
    %v1947 = vunpack.c.h.b16 %v1039
    %v1948 = vunpack.c.l.b16 %v1040
    %v1949 = vunpack.c.h.b16 %v1040
    %v1950 = vunpack.c.l.b16 %v1041
    %v1951 = vunpack.c.h.b16 %v1041
    %v1952 = vunpack.c.l.b16 %v1042
    %v1953 = vunpack.c.h.b16 %v1042
    %v1954 = vunpack.c.l.b16 %v1043
    %v1955 = vunpack.c.h.b16 %v1043
    %v1956 = vunpack.c.l.b16 %v1044
    %v1957 = vunpack.c.h.b16 %v1044
    %v1958 = vunpack.c.l.b16 %v1045
    %v1959 = vunpack.c.h.b16 %v1045
    %v1960 = vunpack.c.l.b16 %v1046
    %v1961 = vunpack.c.h.b16 %v1046
    %v1962 = vunpack.c.l.b16 %v1047
    %v1963 = vunpack.c.h.b16 %v1047
    %v1964 = vunpack.c.l.b16 %v1048
    %v1965 = vunpack.c.h.b16 %v1048
    %v1966 = vunpack.c.l.b16 %v1049
    %v1967 = vunpack.c.h.b16 %v1049
    %v1968 = vunpack.c.l.b16 %v1050
    %v1969 = vunpack.c.h.b16 %v1050
    %v1970 = vunpack.c.l.b16 %v1051
    %v1971 = vunpack.c.h.b16 %v1051
    %v1972 = vunpack.c.l.b16 %v1052
    %v1973 = vunpack.c.h.b16 %v1052
    %v1974 = vunpack.c.l.b16 %v1053
    %v1975 = vunpack.c.h.b16 %v1053
    %v1976 = vunpack.c.l.b16 %v1054
    %v1977 = vunpack.c.h.b16 %v1054
    %v1978 = vunpack.c.l.b16 %v1055
    %v1979 = vunpack.c.h.b16 %v1055
    %v1980 = vunpack.c.l.b16 %v1056
    %v1981 = vunpack.c.h.b16 %v1056
    %v1982 = vunpack.c.l.b16 %v1057
    %v1983 = vunpack.c.h.b16 %v1057
    %v1984 = vunpack.c.l.b16 %v1058
    %v1985 = vunpack.c.h.b16 %v1058
    %v1986 = vunpack.c.l.b16 %v1059
    %v1987 = vunpack.c.h.b16 %v1059
    %v1988 = vunpack.c.l.b16 %v1060
    %v1989 = vunpack.c.h.b16 %v1060
    %v1990 = vunpack.c.l.b16 %v1061
    %v1991 = vunpack.c.h.b16 %v1061
    %v1992 = vunpack.c.l.b16 %v1062
    %v1993 = vunpack.c.h.b16 %v1062
    %v1994 = vunpack.c.l.b16 %v1063
    %v1995 = vunpack.c.h.b16 %v1063
    %v1996 = vunpack.c.l.b16 %v1064
    %v1997 = vunpack.c.h.b16 %v1064
    %v1998 = vunpack.c.l.b16 %v1065
    %v1999 = vunpack.c.h.b16 %v1065
    %v2000 = vunpack.c.l.b16 %v1066
    %v2001 = vunpack.c.h.b16 %v1066
    %v2002 = vunpack.c.l.b16 %v1067
    %v2003 = vunpack.c.h.b16 %v1067
    %v2004 = vunpack.c.l.b16 %v1068
    %v2005 = vunpack.c.h.b16 %v1068
    %v2006 = vunpack.c.l.b16 %v1069
    %v2007 = vunpack.c.h.b16 %v1069
    %v2008 = vunpack.c.l.b16 %v1070
    %v2009 = vunpack.c.h.b16 %v1070
    %v2010 = vunpack.c.l.b16 %v1071
    %v2011 = vunpack.c.h.b16 %v1071
    %v2012 = vunpack.c.l.b16 %v1072
    %v2013 = vunpack.c.h.b16 %v1072
    %v2014 = vunpack.c.l.b16 %v1073
    %v2015 = vunpack.c.h.b16 %v1073
    %v2016 = vunpack.c.l.b16 %v1074
    %v2017 = vunpack.c.h.b16 %v1074
    %v2018 = vunpack.c.l.b16 %v1075
    %v2019 = vunpack.c.h.b16 %v1075
    %v2020 = vunpack.c.l.b16 %v1076
    %v2021 = vunpack.c.h.b16 %v1076
    %v2022 = vunpack.c.l.b16 %v1077
    %v2023 = vunpack.c.h.b16 %v1077
    %v2024 = vunpack.c.l.b16 %v1078
    %v2025 = vunpack.c.h.b16 %v1078
    %v2026 = vunpack.c.l.b16 %v1079
    %v2027 = vunpack.c.h.b16 %v1079
    %v2028 = vunpack.c.l.b16 %v1080
    %v2029 = vunpack.c.h.b16 %v1080
    %v2030 = vunpack.c.l.b16 %v1081
    %v2031 = vunpack.c.h.b16 %v1081
    %v2032 = vunpack.c.l.b16 %v1082
    %v2033 = vunpack.c.h.b16 %v1082
    %v2034 = vunpack.c.l.b16 %v1083
    %v2035 = vunpack.c.h.b16 %v1083
    %v2036 = vunpack.c.l.b16 %v1084
    %v2037 = vunpack.c.h.b16 %v1084
    %v2038 = vunpack.c.l.b16 %v1085
    %v2039 = vunpack.c.h.b16 %v1085
    %v2040 = vunpack.c.l.b16 %v1086
    %v2041 = vunpack.c.h.b16 %v1086
    %v2042 = vunpack.c.l.b16 %v1087
    %v2043 = vunpack.c.h.b16 %v1087
    %v2044 = vunpack.c.l.b16 %v1088
    %v2045 = vunpack.c.h.b16 %v1088
    %v2046 = vunpack.c.l.b16 %v1089
    %v2047 = vunpack.c.h.b16 %v1089
    %v2048 = vunpack.c.l.b16 %v1090
    %v2049 = vunpack.c.h.b16 %v1090
    %v2050 = vunpack.c.l.b16 %v1091
    %v2051 = vunpack.c.h.b16 %v1091
    %v2052 = vunpack.c.l.b16 %v1092
    %v2053 = vunpack.c.h.b16 %v1092
    %v2054 = vunpack.c.l.b16 %v1093
    %v2055 = vunpack.c.h.b16 %v1093
    %v2056 = vunpack.c.l.b16 %v1094
    %v2057 = vunpack.c.h.b16 %v1094
    %v2058 = vunpack.c.l.b16 %v1095
    %v2059 = vunpack.c.h.b16 %v1095
    %v2060 = vunpack.c.l.b16 %v1096
    %v2061 = vunpack.c.h.b16 %v1096
    %v2062 = vunpack.c.l.b16 %v1097
    %v2063 = vunpack.c.h.b16 %v1097
    %v2064 = vunpack.c.l.b16 %v1098
    %v2065 = vunpack.c.h.b16 %v1098
    %v2066 = vunpack.c.l.b16 %v1099
    %v2067 = vunpack.c.h.b16 %v1099
    %v2068 = vunpack.c.l.b16 %v1100
    %v2069 = vunpack.c.h.b16 %v1100
    %v2070 = vunpack.c.l.b16 %v1101
    %v2071 = vunpack.c.h.b16 %v1101
    %v2072 = vunpack.c.l.b16 %v1102
    %v2073 = vunpack.c.h.b16 %v1102
    %v2074 = vunpack.c.l.b16 %v1103
    %v2075 = vunpack.c.h.b16 %v1103
    %v2076 = vunpack.c.l.b16 %v1104
    %v2077 = vunpack.c.h.b16 %v1104
    %v2078 = vunpack.c.l.b16 %v1105
    %v2079 = vunpack.c.h.b16 %v1105
    %v2080 = vunpack.c.l.b16 %v1106
    %v2081 = vunpack.c.h.b16 %v1106
    %v2082 = vunpack.c.l.b16 %v1107
    %v2083 = vunpack.c.h.b16 %v1107
    %v2084 = vunpack.c.l.b16 %v1108
    %v2085 = vunpack.c.h.b16 %v1108
    %v2086 = vunpack.c.l.b16 %v1109
    %v2087 = vunpack.c.h.b16 %v1109
    %v2088 = vunpack.c.l.b16 %v1110
    %v2089 = vunpack.c.h.b16 %v1110
    %v2090 = vunpack.c.l.b16 %v1111
    %v2091 = vunpack.c.h.b16 %v1111
    %v2092 = vunpack.c.l.b16 %v1112
    %v2093 = vunpack.c.h.b16 %v1112
    %v2094 = vunpack.c.l.b16 %v1113
    %v2095 = vunpack.c.h.b16 %v1113
    %v2096 = vunpack.c.l.b16 %v1114
    %v2097 = vunpack.c.h.b16 %v1114
    %v2098 = vunpack.c.l.b16 %v1115
    %v2099 = vunpack.c.h.b16 %v1115
    %v2100 = vunpack.c.l.b16 %v1116
    %v2101 = vunpack.c.h.b16 %v1116
    %v2102 = vunpack.c.l.b16 %v1117
    %v2103 = vunpack.c.h.b16 %v1117
    %v2104 = vunpack.c.l.b16 %v1118
    %v2105 = vunpack.c.h.b16 %v1118
    %v2106 = vunpack.c.l.b16 %v1119
    %v2107 = vunpack.c.h.b16 %v1119
    %v2108 = vunpack.c.l.b16 %v1120
    %v2109 = vunpack.c.h.b16 %v1120
    %v2110 = vunpack.c.l.b16 %v1121
    %v2111 = vunpack.c.h.b16 %v1121
    %v2112 = vunpack.c.l.b16 %v1122
    %v2113 = vunpack.c.h.b16 %v1122
    %v2114 = vunpack.c.l.b16 %v1123
    %v2115 = vunpack.c.h.b16 %v1123
    %v2116 = vunpack.c.l.b16 %v1124
    %v2117 = vunpack.c.h.b16 %v1124
    %v2118 = vunpack.c.l.b16 %v1125
    %v2119 = vunpack.c.h.b16 %v1125
    %v2120 = vunpack.c.l.b16 %v1126
    %v2121 = vunpack.c.h.b16 %v1126
    %v2122 = vunpack.c.l.b16 %v1127
    %v2123 = vunpack.c.h.b16 %v1127
    %v2124 = vunpack.c.l.b16 %v1128
    %v2125 = vunpack.c.h.b16 %v1128
    %v2126 = vunpack.c.l.b16 %v1129
    %v2127 = vunpack.c.h.b16 %v1129
    %v2128 = vunpack.c.l.b16 %v1130
    %v2129 = vunpack.c.h.b16 %v1130
    %v2130 = vunpack.c.l.b16 %v1131
    %v2131 = vunpack.c.h.b16 %v1131
    %v2132 = vunpack.c.l.b16 %v1132
    %v2133 = vunpack.c.h.b16 %v1132
    %v2134 = vunpack.c.l.b16 %v1133
    %v2135 = vunpack.c.h.b16 %v1133
    %v2136 = vunpack.c.l.b16 %v1134
    %v2137 = vunpack.c.h.b16 %v1134
    %v2138 = vunpack.c.l.b16 %v1135
    %v2139 = vunpack.c.h.b16 %v1135
    %v2140 = vunpack.c.l.b16 %v1136
    %v2141 = vunpack.c.h.b16 %v1136
    %v2142 = vunpack.c.l.b16 %v1137
    %v2143 = vunpack.c.h.b16 %v1137
    %v2144 = vunpack.c.l.b16 %v1138
    %v2145 = vunpack.c.h.b16 %v1138
    %v2146 = vunpack.c.l.b16 %v1139
    %v2147 = vunpack.c.h.b16 %v1139
    %v2148 = vunpack.c.l.b16 %v1140
    %v2149 = vunpack.c.h.b16 %v1140
    %v2150 = vunpack.c.l.b16 %v1141
    %v2151 = vunpack.c.h.b16 %v1141
    %v2152 = vunpack.c.l.b16 %v1142
    %v2153 = vunpack.c.h.b16 %v1142
    %v2154 = vunpack.c.l.b16 %v1143
    %v2155 = vunpack.c.h.b16 %v1143
    %v2156 = vunpack.c.l.b16 %v1144
    %v2157 = vunpack.c.h.b16 %v1144
    %v2158 = vunpack.c.l.b16 %v1145
    %v2159 = vunpack.c.h.b16 %v1145
    %v2160 = vunpack.c.l.b16 %v1146
    %v2161 = vunpack.c.h.b16 %v1146
    %v2162 = vunpack.c.l.b16 %v1147
    %v2163 = vunpack.c.h.b16 %v1147
    %v2164 = vunpack.c.l.b16 %v1148
    %v2165 = vunpack.c.h.b16 %v1148
    %v2166 = vunpack.c.l.b16 %v1149
    %v2167 = vunpack.c.h.b16 %v1149
    %v2168 = vunpack.c.l.b16 %v1150
    %v2169 = vunpack.c.h.b16 %v1150
    %v2170 = vunpack.c.l.b16 %v1151
    %v2171 = vunpack.c.h.b16 %v1151
    %v2172 = vunpack.c.l.b16 %v1152
    %v2173 = vunpack.c.h.b16 %v1152
    %v2174 = vunpack.c.l.b16 %v1153
    %v2175 = vunpack.c.h.b16 %v1153
    %v2176 = vunpack.c.l.b16 %v1154
    %v2177 = vunpack.c.h.b16 %v1154
    %v2178 = vunpack.c.l.b16 %v1155
    %v2179 = vunpack.c.h.b16 %v1155
    %v2180 = vunpack.c.l.b16 %v1156
    %v2181 = vunpack.c.h.b16 %v1156
    %v2182 = vunpack.c.l.b16 %v1157
    %v2183 = vunpack.c.h.b16 %v1157
    %v2184 = vunpack.c.l.b16 %v1158
    %v2185 = vunpack.c.h.b16 %v1158
    %v2186 = vunpack.c.l.b16 %v1159
    %v2187 = vunpack.c.h.b16 %v1159
    %v2188 = vunpack.c.l.b16 %v1160
    %v2189 = vunpack.c.h.b16 %v1160
    %v2190 = vunpack.c.l.b16 %v1161
    %v2191 = vunpack.c.h.b16 %v1161
    %v2192 = vunpack.c.l.b16 %v1162
    %v2193 = vunpack.c.h.b16 %v1162
    %v2194 = vunpack.c.l.b16 %v1163
    %v2195 = vunpack.c.h.b16 %v1163
    %v2196 = vunpack.c.l.b16 %v1164
    %v2197 = vunpack.c.h.b16 %v1164
    %v2198 = vunpack.c.l.b16 %v1165
    %v2199 = vunpack.c.h.b16 %v1165
    %v2200 = vunpack.c.l.b16 %v1166
    %v2201 = vunpack.c.h.b16 %v1166
    %v2202 = vunpack.c.l.b16 %v1167
    %v2203 = vunpack.c.h.b16 %v1167
    %v2204 = vunpack.c.l.b16 %v1168
    %v2205 = vunpack.c.h.b16 %v1168
    %v2206 = vunpack.c.l.b16 %v1169
    %v2207 = vunpack.c.h.b16 %v1169
    %v2208 = vunpack.c.l.b16 %v1170
    %v2209 = vunpack.c.h.b16 %v1170
    %v2210 = vunpack.c.l.b16 %v1171
    %v2211 = vunpack.c.h.b16 %v1171
    %v2212 = vunpack.c.l.b16 %v1172
    %v2213 = vunpack.c.h.b16 %v1172
    %v2214 = vunpack.c.l.b16 %v1173
    %v2215 = vunpack.c.h.b16 %v1173
    %v2216 = vunpack.c.l.b16 %v1174
    %v2217 = vunpack.c.h.b16 %v1174
    %v2218 = vunpack.c.l.b16 %v1175
    %v2219 = vunpack.c.h.b16 %v1175
    %v2220 = vunpack.c.l.b16 %v1176
    %v2221 = vunpack.c.h.b16 %v1176
    %v2222 = vunpack.c.l.b16 %v1177
    %v2223 = vunpack.c.h.b16 %v1177
    %v2224 = vunpack.c.l.b16 %v1178
    %v2225 = vunpack.c.h.b16 %v1178
    %v2226 = vunpack.c.l.b16 %v1179
    %v2227 = vunpack.c.h.b16 %v1179
    %v2228 = vunpack.c.l.b16 %v1180
    %v2229 = vunpack.c.h.b16 %v1180
    %v2230 = vunpack.c.l.b16 %v1181
    %v2231 = vunpack.c.h.b16 %v1181
    %v2232 = vunpack.c.l.b16 %v1182
    %v2233 = vunpack.c.h.b16 %v1182
    %v2234 = vunpack.c.l.b16 %v1183
    %v2235 = vunpack.c.h.b16 %v1183
    %v2236 = vunpack.c.l.b16 %v1184
    %v2237 = vunpack.c.h.b16 %v1184
    %v2238 = vunpack.c.l.b16 %v1185
    %v2239 = vunpack.c.h.b16 %v1185
    %v2240 = vunpack.c.l.b16 %v1186
    %v2241 = vunpack.c.h.b16 %v1186
    %v2242 = vunpack.c.l.b16 %v1187
    %v2243 = vunpack.c.h.b16 %v1187
    %v2244 = vunpack.c.l.b16 %v1188
    %v2245 = vunpack.c.h.b16 %v1188
    %v2246 = vunpack.c.l.b16 %v1189
    %v2247 = vunpack.c.h.b16 %v1189
    %v2248 = vunpack.c.l.b16 %v1190
    %v2249 = vunpack.c.h.b16 %v1190
    %v2250 = vunpack.c.l.b16 %v1191
    %v2251 = vunpack.c.h.b16 %v1191
    %v2252 = vunpack.c.l.b16 %v1192
    %v2253 = vunpack.c.h.b16 %v1192
    %v2254 = vunpack.c.l.b16 %v1193
    %v2255 = vunpack.c.h.b16 %v1193
    %v2256 = vunpack.c.l.b16 %v1194
    %v2257 = vunpack.c.h.b16 %v1194
    %v2258 = vunpack.c.l.b16 %v1195
    %v2259 = vunpack.c.h.b16 %v1195
    %v2260 = vunpack.c.l.b16 %v1196
    %v2261 = vunpack.c.h.b16 %v1196
    %v2262 = vunpack.c.l.b16 %v1197
    %v2263 = vunpack.c.h.b16 %v1197
    %v2264 = vunpack.c.l.b16 %v1198
    %v2265 = vunpack.c.h.b16 %v1198
    %v2266 = vunpack.c.l.b16 %v1199
    %v2267 = vunpack.c.h.b16 %v1199
    %v2268 = vunpack.c.l.b16 %v1200
    %v2269 = vunpack.c.h.b16 %v1200
    %v2270 = vunpack.c.l.b16 %v1201
    %v2271 = vunpack.c.h.b16 %v1201
    %v2272 = vunpack.c.l.b16 %v1202
    %v2273 = vunpack.c.h.b16 %v1202
    %v2274 = vunpack.c.l.b16 %v1203
    %v2275 = vunpack.c.h.b16 %v1203
    %v2276 = vunpack.c.l.b16 %v1204
    %v2277 = vunpack.c.h.b16 %v1204
    %v2278 = vunpack.c.l.b16 %v1205
    %v2279 = vunpack.c.h.b16 %v1205
    %v2280 = vunpack.c.l.b16 %v1206
    %v2281 = vunpack.c.h.b16 %v1206
    %v2282 = vunpack.c.l.b16 %v1207
    %v2283 = vunpack.c.h.b16 %v1207
    %v2284 = vunpack.c.l.b16 %v1208
    %v2285 = vunpack.c.h.b16 %v1208
    %v2286 = vunpack.c.l.b16 %v1209
    %v2287 = vunpack.c.h.b16 %v1209
    %v2288 = vunpack.c.l.b16 %v1210
    %v2289 = vunpack.c.h.b16 %v1210
    %v2290 = vunpack.c.l.b16 %v1211
    %v2291 = vunpack.c.h.b16 %v1211
    %v2292 = vunpack.c.l.b16 %v1212
    %v2293 = vunpack.c.h.b16 %v1212
    %v2294 = vunpack.c.l.b16 %v1213
    %v2295 = vunpack.c.h.b16 %v1213
    %v2296 = vunpack.c.l.b16 %v1214
    %v2297 = vunpack.c.h.b16 %v1214
    %v2298 = vunpack.c.l.b16 %v1215
    %v2299 = vunpack.c.h.b16 %v1215
    %v2300 = vunpack.c.l.b16 %v1216
    %v2301 = vunpack.c.h.b16 %v1216
    %v2302 = vunpack.c.l.b16 %v1217
    %v2303 = vunpack.c.h.b16 %v1217
    %v2304 = vunpack.c.l.b16 %v1218
    %v2305 = vunpack.c.h.b16 %v1218
    %v2306 = vunpack.c.l.b16 %v1219
    %v2307 = vunpack.c.h.b16 %v1219
    %v2308 = vunpack.c.l.b16 %v1220
    %v2309 = vunpack.c.h.b16 %v1220
    %v2310 = vunpack.c.l.b16 %v1221
    %v2311 = vunpack.c.h.b16 %v1221
    %v2312 = vunpack.c.l.b16 %v1222
    %v2313 = vunpack.c.h.b16 %v1222
    %v2314 = vunpack.c.l.b16 %v1223
    %v2315 = vunpack.c.h.b16 %v1223
    %v2316 = vunpack.c.l.b16 %v1224
    %v2317 = vunpack.c.h.b16 %v1224
    %v2318 = vunpack.c.l.b16 %v1225
    %v2319 = vunpack.c.h.b16 %v1225
    %v2320 = vunpack.c.l.b16 %v1226
    %v2321 = vunpack.c.h.b16 %v1226
    %v2322 = vunpack.c.l.b16 %v1227
    %v2323 = vunpack.c.h.b16 %v1227
    %v2324 = vunpack.c.l.b16 %v1228
    %v2325 = vunpack.c.h.b16 %v1228
    %v2326 = vunpack.c.l.b16 %v1229
    %v2327 = vunpack.c.h.b16 %v1229
    %v2328 = vunpack.c.l.b16 %v1230
    %v2329 = vunpack.c.h.b16 %v1230
    %v2330 = vunpack.c.l.b16 %v1231
    %v2331 = vunpack.c.h.b16 %v1231
    %v2332 = vunpack.c.l.b16 %v1232
    %v2333 = vunpack.c.h.b16 %v1232
    %v2334 = vunpack.c.l.b16 %v1233
    %v2335 = vunpack.c.h.b16 %v1233
    %v2336 = vunpack.c.l.b16 %v1234
    %v2337 = vunpack.c.h.b16 %v1234
    %v2338 = vunpack.c.l.b16 %v1235
    %v2339 = vunpack.c.h.b16 %v1235
    %v2340 = vunpack.c.l.b16 %v1236
    %v2341 = vunpack.c.h.b16 %v1236
    %v2342 = vunpack.c.l.b16 %v1237
    %v2343 = vunpack.c.h.b16 %v1237
    %v2344 = vunpack.c.l.b16 %v1238
    %v2345 = vunpack.c.h.b16 %v1238
    %v2346 = vunpack.c.l.b16 %v1239
    %v2347 = vunpack.c.h.b16 %v1239
    %v2348 = vunpack.c.l.b16 %v1240
    %v2349 = vunpack.c.h.b16 %v1240
    %v2350 = vunpack.c.l.b16 %v1241
    %v2351 = vunpack.c.h.b16 %v1241
    %v2352 = vunpack.c.l.b16 %v1242
    %v2353 = vunpack.c.h.b16 %v1242
    %v2354 = vunpack.c.l.b16 %v1243
    %v2355 = vunpack.c.h.b16 %v1243
    %v2356 = vunpack.c.l.b16 %v1244
    %v2357 = vunpack.c.h.b16 %v1244
    %v2358 = vunpack.c.l.b16 %v1245
    %v2359 = vunpack.c.h.b16 %v1245
    %v2360 = vunpack.c.l.b16 %v1246
    %v2361 = vunpack.c.h.b16 %v1246
    %v2362 = vunpack.c.l.b16 %v1247
    %v2363 = vunpack.c.h.b16 %v1247
    %v2364 = vunpack.c.l.b16 %v1248
    %v2365 = vunpack.c.h.b16 %v1248
    %v2366 = vunpack.c.l.b16 %v1249
    %v2367 = vunpack.c.h.b16 %v1249
    %v2368 = vunpack.c.l.b16 %v1250
    %v2369 = vunpack.c.h.b16 %v1250
    %v2370 = vunpack.c.l.b16 %v1251
    %v2371 = vunpack.c.h.b16 %v1251
    %v2372 = vunpack.c.l.b16 %v1252
    %v2373 = vunpack.c.h.b16 %v1252
    %v2374 = vunpack.c.l.b16 %v1253
    %v2375 = vunpack.c.h.b16 %v1253
    %v2376 = vunpack.c.l.b16 %v1254
    %v2377 = vunpack.c.h.b16 %v1254
    %v2378 = vunpack.c.l.b16 %v1255
    %v2379 = vunpack.c.h.b16 %v1255
    %v2380 = vunpack.c.l.b16 %v1256
    %v2381 = vunpack.c.h.b16 %v1256
    %v2382 = vunpack.c.l.b16 %v1257
    %v2383 = vunpack.c.h.b16 %v1257
    %v2384 = vunpack.c.l.b16 %v1258
    %v2385 = vunpack.c.h.b16 %v1258
    %v2386 = vunpack.c.l.b16 %v1259
    %v2387 = vunpack.c.h.b16 %v1259
    %v2388 = vunpack.c.l.b16 %v1260
    %v2389 = vunpack.c.h.b16 %v1260
    %v2390 = vunpack.c.l.b16 %v1261
    %v2391 = vunpack.c.h.b16 %v1261
    %v2392 = vunpack.c.l.b16 %v1262
    %v2393 = vunpack.c.h.b16 %v1262
    %v2394 = vunpack.c.l.b16 %v1263
    %v2395 = vunpack.c.h.b16 %v1263
    %v2396 = vunpack.c.l.b16 %v1264
    %v2397 = vunpack.c.h.b16 %v1264
    %v2398 = vunpack.c.l.b16 %v1265
    %v2399 = vunpack.c.h.b16 %v1265
    %v2400 = vunpack.c.l.b16 %v1266
    %v2401 = vunpack.c.h.b16 %v1266
    %v2402 = vunpack.c.l.b16 %v1267
    %v2403 = vunpack.c.h.b16 %v1267
    %v2404 = vunpack.c.l.b16 %v1268
    %v2405 = vunpack.c.h.b16 %v1268
    %v2406 = vunpack.c.l.b16 %v1269
    %v2407 = vunpack.c.h.b16 %v1269
    %v2408 = vunpack.c.l.b16 %v1270
    %v2409 = vunpack.c.h.b16 %v1270
    %v2410 = vunpack.c.l.b16 %v1271
    %v2411 = vunpack.c.h.b16 %v1271
    %v2412 = vunpack.c.l.b16 %v1272
    %v2413 = vunpack.c.h.b16 %v1272
    %v2414 = vunpack.c.l.b16 %v1273
    %v2415 = vunpack.c.h.b16 %v1273
    %v2416 = vunpack.c.l.b16 %v1274
    %v2417 = vunpack.c.h.b16 %v1274
    %v2418 = vunpack.c.l.b16 %v1275
    %v2419 = vunpack.c.h.b16 %v1275
    %v2420 = vunpack.c.l.b16 %v1276
    %v2421 = vunpack.c.h.b16 %v1276
    %v2422 = vunpack.c.l.b16 %v1277
    %v2423 = vunpack.c.h.b16 %v1277
    %v2424 = vunpack.c.l.b16 %v1278
    %v2425 = vunpack.c.h.b16 %v1278
    %v2426 = vunpack.c.l.b16 %v1279
    %v2427 = vunpack.c.h.b16 %v1279
    %v2428 = vunpack.c.l.b16 %v1280
    %v2429 = vunpack.c.h.b16 %v1280
    %v2430 = vunpack.c.l.b16 %v1281
    %v2431 = vunpack.c.h.b16 %v1281
    %v2432 = vunpack.c.l.b16 %v1282
    %v2433 = vunpack.c.h.b16 %v1282
    %v2434 = vunpack.c.l.b16 %v1283
    %v2435 = vunpack.c.h.b16 %v1283
    %v2436 = vpack.c.b16 %v1680, %v1668
    %v2437 = vpack.c.b16 %v1681, %v1669
    %v2438 = vpack.c.b16 %v1682, %v1670
    %v2439 = vpack.c.b16 %v1683, %v1671
    %v2440 = vpack.c.b16 %v1684, %v1672
    %v2441 = vpack.c.b16 %v1685, %v1673
    %v2442 = vpack.c.b16 %v1686, %v1674
    %v2443 = vpack.c.b16 %v1687, %v1675
    %v2444 = vpack.c.b16 %v1688, %v1676
    %v2445 = vpack.c.b16 %v1689, %v1677
    %v2446 = vpack.c.b16 %v1690, %v1678
    %v2447 = vpack.c.b16 %v1691, %v1679
    %v2448 = vpack.c.b16 %v1704, %v1692
    %v2449 = vpack.c.b16 %v1705, %v1693
    %v2450 = vpack.c.b16 %v1706, %v1694
    %v2451 = vpack.c.b16 %v1707, %v1695
    %v2452 = vpack.c.b16 %v1708, %v1696
    %v2453 = vpack.c.b16 %v1709, %v1697
    %v2454 = vpack.c.b16 %v1710, %v1698
    %v2455 = vpack.c.b16 %v1711, %v1699
    %v2456 = vpack.c.b16 %v1712, %v1700
    %v2457 = vpack.c.b16 %v1713, %v1701
    %v2458 = vpack.c.b16 %v1714, %v1702
    %v2459 = vpack.c.b16 %v1715, %v1703
    %v2460 = vpack.c.b16 %v1728, %v1716
    %v2461 = vpack.c.b16 %v1729, %v1717
    %v2462 = vpack.c.b16 %v1730, %v1718
    %v2463 = vpack.c.b16 %v1731, %v1719
    %v2464 = vpack.c.b16 %v1732, %v1720
    %v2465 = vpack.c.b16 %v1733, %v1721
    %v2466 = vpack.c.b16 %v1734, %v1722
    %v2467 = vpack.c.b16 %v1735, %v1723
    %v2468 = vpack.c.b16 %v1736, %v1724
    %v2469 = vpack.c.b16 %v1737, %v1725
    %v2470 = vpack.c.b16 %v1738, %v1726
    %v2471 = vpack.c.b16 %v1739, %v1727
    %v2472 = vpack.c.b16 %v1752, %v1740
    %v2473 = vpack.c.b16 %v1753, %v1741
    %v2474 = vpack.c.b16 %v1754, %v1742
    %v2475 = vpack.c.b16 %v1755, %v1743
    %v2476 = vpack.c.b16 %v1756, %v1744
    %v2477 = vpack.c.b16 %v1757, %v1745
    %v2478 = vpack.c.b16 %v1758, %v1746
    %v2479 = vpack.c.b16 %v1759, %v1747
    %v2480 = vpack.c.b16 %v1760, %v1748
    %v2481 = vpack.c.b16 %v1761, %v1749
    %v2482 = vpack.c.b16 %v1762, %v1750
    %v2483 = vpack.c.b16 %v1763, %v1751
    %v2484 = vpack.c.b16 %v1776, %v1764
    %v2485 = vpack.c.b16 %v1777, %v1765
    %v2486 = vpack.c.b16 %v1778, %v1766
    %v2487 = vpack.c.b16 %v1779, %v1767
    %v2488 = vpack.c.b16 %v1780, %v1768
    %v2489 = vpack.c.b16 %v1781, %v1769
    %v2490 = vpack.c.b16 %v1782, %v1770
    %v2491 = vpack.c.b16 %v1783, %v1771
    %v2492 = vpack.c.b16 %v1784, %v1772
    %v2493 = vpack.c.b16 %v1785, %v1773
    %v2494 = vpack.c.b16 %v1786, %v1774
    %v2495 = vpack.c.b16 %v1787, %v1775
    %v2496 = vpack.c.b16 %v1800, %v1788
    %v2497 = vpack.c.b16 %v1801, %v1789
    %v2498 = vpack.c.b16 %v1802, %v1790
    %v2499 = vpack.c.b16 %v1803, %v1791
    %v2500 = vpack.c.b16 %v1804, %v1792
    %v2501 = vpack.c.b16 %v1805, %v1793
    %v2502 = vpack.c.b16 %v1806, %v1794
    %v2503 = vpack.c.b16 %v1807, %v1795
    %v2504 = vpack.c.b16 %v1808, %v1796
    %v2505 = vpack.c.b16 %v1809, %v1797
    %v2506 = vpack.c.b16 %v1810, %v1798
    %v2507 = vpack.c.b16 %v1811, %v1799
    %v2508 = vpack.c.b16 %v1824, %v1812
    %v2509 = vpack.c.b16 %v1825, %v1813
    %v2510 = vpack.c.b16 %v1826, %v1814
    %v2511 = vpack.c.b16 %v1827, %v1815
    %v2512 = vpack.c.b16 %v1828, %v1816
    %v2513 = vpack.c.b16 %v1829, %v1817
    %v2514 = vpack.c.b16 %v1830, %v1818
    %v2515 = vpack.c.b16 %v1831, %v1819
    %v2516 = vpack.c.b16 %v1832, %v1820
    %v2517 = vpack.c.b16 %v1833, %v1821
    %v2518 = vpack.c.b16 %v1834, %v1822
    %v2519 = vpack.c.b16 %v1835, %v1823
    %v2520 = vpack.c.b16 %v1848, %v1836
    %v2521 = vpack.c.b16 %v1849, %v1837
    %v2522 = vpack.c.b16 %v1850, %v1838
    %v2523 = vpack.c.b16 %v1851, %v1839
    %v2524 = vpack.c.b16 %v1852, %v1840
    %v2525 = vpack.c.b16 %v1853, %v1841
    %v2526 = vpack.c.b16 %v1854, %v1842
    %v2527 = vpack.c.b16 %v1855, %v1843
    %v2528 = vpack.c.b16 %v1856, %v1844
    %v2529 = vpack.c.b16 %v1857, %v1845
    %v2530 = vpack.c.b16 %v1858, %v1846
    %v2531 = vpack.c.b16 %v1859, %v1847
    %v2532 = vpack.c.b16 %v1872, %v1860
    %v2533 = vpack.c.b16 %v1873, %v1861
    %v2534 = vpack.c.b16 %v1874, %v1862
    %v2535 = vpack.c.b16 %v1875, %v1863
    %v2536 = vpack.c.b16 %v1876, %v1864
    %v2537 = vpack.c.b16 %v1877, %v1865
    %v2538 = vpack.c.b16 %v1878, %v1866
    %v2539 = vpack.c.b16 %v1879, %v1867
    %v2540 = vpack.c.b16 %v1880, %v1868
    %v2541 = vpack.c.b16 %v1881, %v1869
    %v2542 = vpack.c.b16 %v1882, %v1870
    %v2543 = vpack.c.b16 %v1883, %v1871
    %v2544 = vpack.c.b16 %v1896, %v1884
    %v2545 = vpack.c.b16 %v1897, %v1885
    %v2546 = vpack.c.b16 %v1898, %v1886
    %v2547 = vpack.c.b16 %v1899, %v1887
    %v2548 = vpack.c.b16 %v1900, %v1888
    %v2549 = vpack.c.b16 %v1901, %v1889
    %v2550 = vpack.c.b16 %v1902, %v1890
    %v2551 = vpack.c.b16 %v1903, %v1891
    %v2552 = vpack.c.b16 %v1904, %v1892
    %v2553 = vpack.c.b16 %v1905, %v1893
    %v2554 = vpack.c.b16 %v1906, %v1894
    %v2555 = vpack.c.b16 %v1907, %v1895
    %v2556 = vpack.c.b16 %v1920, %v1908
    %v2557 = vpack.c.b16 %v1921, %v1909
    %v2558 = vpack.c.b16 %v1922, %v1910
    %v2559 = vpack.c.b16 %v1923, %v1911
    %v2560 = vpack.c.b16 %v1924, %v1912
    %v2561 = vpack.c.b16 %v1925, %v1913
    %v2562 = vpack.c.b16 %v1926, %v1914
    %v2563 = vpack.c.b16 %v1927, %v1915
    %v2564 = vpack.c.b16 %v1928, %v1916
    %v2565 = vpack.c.b16 %v1929, %v1917
    %v2566 = vpack.c.b16 %v1930, %v1918
    %v2567 = vpack.c.b16 %v1931, %v1919
    %v2568 = vpack.c.b16 %v1944, %v1932
    %v2569 = vpack.c.b16 %v1945, %v1933
    %v2570 = vpack.c.b16 %v1946, %v1934
    %v2571 = vpack.c.b16 %v1947, %v1935
    %v2572 = vpack.c.b16 %v1948, %v1936
    %v2573 = vpack.c.b16 %v1949, %v1937
    %v2574 = vpack.c.b16 %v1950, %v1938
    %v2575 = vpack.c.b16 %v1951, %v1939
    %v2576 = vpack.c.b16 %v1952, %v1940
    %v2577 = vpack.c.b16 %v1953, %v1941
    %v2578 = vpack.c.b16 %v1954, %v1942
    %v2579 = vpack.c.b16 %v1955, %v1943
    %v2580 = vpack.c.b16 %v1968, %v1956
    %v2581 = vpack.c.b16 %v1969, %v1957
    %v2582 = vpack.c.b16 %v1970, %v1958
    %v2583 = vpack.c.b16 %v1971, %v1959
    %v2584 = vpack.c.b16 %v1972, %v1960
    %v2585 = vpack.c.b16 %v1973, %v1961
    %v2586 = vpack.c.b16 %v1974, %v1962
    %v2587 = vpack.c.b16 %v1975, %v1963
    %v2588 = vpack.c.b16 %v1976, %v1964
    %v2589 = vpack.c.b16 %v1977, %v1965
    %v2590 = vpack.c.b16 %v1978, %v1966
    %v2591 = vpack.c.b16 %v1979, %v1967
    %v2592 = vpack.c.b16 %v1992, %v1980
    %v2593 = vpack.c.b16 %v1993, %v1981
    %v2594 = vpack.c.b16 %v1994, %v1982
    %v2595 = vpack.c.b16 %v1995, %v1983
    %v2596 = vpack.c.b16 %v1996, %v1984
    %v2597 = vpack.c.b16 %v1997, %v1985
    %v2598 = vpack.c.b16 %v1998, %v1986
    %v2599 = vpack.c.b16 %v1999, %v1987
    %v2600 = vpack.c.b16 %v2000, %v1988
    %v2601 = vpack.c.b16 %v2001, %v1989
    %v2602 = vpack.c.b16 %v2002, %v1990
    %v2603 = vpack.c.b16 %v2003, %v1991
    %v2604 = vpack.c.b16 %v2016, %v2004
    %v2605 = vpack.c.b16 %v2017, %v2005
    %v2606 = vpack.c.b16 %v2018, %v2006
    %v2607 = vpack.c.b16 %v2019, %v2007
    %v2608 = vpack.c.b16 %v2020, %v2008
    %v2609 = vpack.c.b16 %v2021, %v2009
    %v2610 = vpack.c.b16 %v2022, %v2010
    %v2611 = vpack.c.b16 %v2023, %v2011
    %v2612 = vpack.c.b16 %v2024, %v2012
    %v2613 = vpack.c.b16 %v2025, %v2013
    %v2614 = vpack.c.b16 %v2026, %v2014
    %v2615 = vpack.c.b16 %v2027, %v2015
    %v2616 = vpack.c.b16 %v2040, %v2028
    %v2617 = vpack.c.b16 %v2041, %v2029
    %v2618 = vpack.c.b16 %v2042, %v2030
    %v2619 = vpack.c.b16 %v2043, %v2031
    %v2620 = vpack.c.b16 %v2044, %v2032
    %v2621 = vpack.c.b16 %v2045, %v2033
    %v2622 = vpack.c.b16 %v2046, %v2034
    %v2623 = vpack.c.b16 %v2047, %v2035
    %v2624 = vpack.c.b16 %v2048, %v2036
    %v2625 = vpack.c.b16 %v2049, %v2037
    %v2626 = vpack.c.b16 %v2050, %v2038
    %v2627 = vpack.c.b16 %v2051, %v2039
    %v2628 = vpack.c.b16 %v2064, %v2052
    %v2629 = vpack.c.b16 %v2065, %v2053
    %v2630 = vpack.c.b16 %v2066, %v2054
    %v2631 = vpack.c.b16 %v2067, %v2055
    %v2632 = vpack.c.b16 %v2068, %v2056
    %v2633 = vpack.c.b16 %v2069, %v2057
    %v2634 = vpack.c.b16 %v2070, %v2058
    %v2635 = vpack.c.b16 %v2071, %v2059
    %v2636 = vpack.c.b16 %v2072, %v2060
    %v2637 = vpack.c.b16 %v2073, %v2061
    %v2638 = vpack.c.b16 %v2074, %v2062
    %v2639 = vpack.c.b16 %v2075, %v2063
    %v2640 = vpack.c.b16 %v2088, %v2076
    %v2641 = vpack.c.b16 %v2089, %v2077
    %v2642 = vpack.c.b16 %v2090, %v2078
    %v2643 = vpack.c.b16 %v2091, %v2079
    %v2644 = vpack.c.b16 %v2092, %v2080
    %v2645 = vpack.c.b16 %v2093, %v2081
    %v2646 = vpack.c.b16 %v2094, %v2082
    %v2647 = vpack.c.b16 %v2095, %v2083
    %v2648 = vpack.c.b16 %v2096, %v2084
    %v2649 = vpack.c.b16 %v2097, %v2085
    %v2650 = vpack.c.b16 %v2098, %v2086
    %v2651 = vpack.c.b16 %v2099, %v2087
    %v2652 = vpack.c.b16 %v2112, %v2100
    %v2653 = vpack.c.b16 %v2113, %v2101
    %v2654 = vpack.c.b16 %v2114, %v2102
    %v2655 = vpack.c.b16 %v2115, %v2103
    %v2656 = vpack.c.b16 %v2116, %v2104
    %v2657 = vpack.c.b16 %v2117, %v2105
    %v2658 = vpack.c.b16 %v2118, %v2106
    %v2659 = vpack.c.b16 %v2119, %v2107
    %v2660 = vpack.c.b16 %v2120, %v2108
    %v2661 = vpack.c.b16 %v2121, %v2109
    %v2662 = vpack.c.b16 %v2122, %v2110
    %v2663 = vpack.c.b16 %v2123, %v2111
    %v2664 = vpack.c.b16 %v2136, %v2124
    %v2665 = vpack.c.b16 %v2137, %v2125
    %v2666 = vpack.c.b16 %v2138, %v2126
    %v2667 = vpack.c.b16 %v2139, %v2127
    %v2668 = vpack.c.b16 %v2140, %v2128
    %v2669 = vpack.c.b16 %v2141, %v2129
    %v2670 = vpack.c.b16 %v2142, %v2130
    %v2671 = vpack.c.b16 %v2143, %v2131
    %v2672 = vpack.c.b16 %v2144, %v2132
    %v2673 = vpack.c.b16 %v2145, %v2133
    %v2674 = vpack.c.b16 %v2146, %v2134
    %v2675 = vpack.c.b16 %v2147, %v2135
    %v2676 = vpack.c.b16 %v2160, %v2148
    %v2677 = vpack.c.b16 %v2161, %v2149
    %v2678 = vpack.c.b16 %v2162, %v2150
    %v2679 = vpack.c.b16 %v2163, %v2151
    %v2680 = vpack.c.b16 %v2164, %v2152
    %v2681 = vpack.c.b16 %v2165, %v2153
    %v2682 = vpack.c.b16 %v2166, %v2154
    %v2683 = vpack.c.b16 %v2167, %v2155
    %v2684 = vpack.c.b16 %v2168, %v2156
    %v2685 = vpack.c.b16 %v2169, %v2157
    %v2686 = vpack.c.b16 %v2170, %v2158
    %v2687 = vpack.c.b16 %v2171, %v2159
    %v2688 = vpack.c.b16 %v2184, %v2172
    %v2689 = vpack.c.b16 %v2185, %v2173
    %v2690 = vpack.c.b16 %v2186, %v2174
    %v2691 = vpack.c.b16 %v2187, %v2175
    %v2692 = vpack.c.b16 %v2188, %v2176
    %v2693 = vpack.c.b16 %v2189, %v2177
    %v2694 = vpack.c.b16 %v2190, %v2178
    %v2695 = vpack.c.b16 %v2191, %v2179
    %v2696 = vpack.c.b16 %v2192, %v2180
    %v2697 = vpack.c.b16 %v2193, %v2181
    %v2698 = vpack.c.b16 %v2194, %v2182
    %v2699 = vpack.c.b16 %v2195, %v2183
    %v2700 = vpack.c.b16 %v2208, %v2196
    %v2701 = vpack.c.b16 %v2209, %v2197
    %v2702 = vpack.c.b16 %v2210, %v2198
    %v2703 = vpack.c.b16 %v2211, %v2199
    %v2704 = vpack.c.b16 %v2212, %v2200
    %v2705 = vpack.c.b16 %v2213, %v2201
    %v2706 = vpack.c.b16 %v2214, %v2202
    %v2707 = vpack.c.b16 %v2215, %v2203
    %v2708 = vpack.c.b16 %v2216, %v2204
    %v2709 = vpack.c.b16 %v2217, %v2205
    %v2710 = vpack.c.b16 %v2218, %v2206
    %v2711 = vpack.c.b16 %v2219, %v2207
    %v2712 = vpack.c.b16 %v2232, %v2220
    %v2713 = vpack.c.b16 %v2233, %v2221
    %v2714 = vpack.c.b16 %v2234, %v2222
    %v2715 = vpack.c.b16 %v2235, %v2223
    %v2716 = vpack.c.b16 %v2236, %v2224
    %v2717 = vpack.c.b16 %v2237, %v2225
    %v2718 = vpack.c.b16 %v2238, %v2226
    %v2719 = vpack.c.b16 %v2239, %v2227
    %v2720 = vpack.c.b16 %v2240, %v2228
    %v2721 = vpack.c.b16 %v2241, %v2229
    %v2722 = vpack.c.b16 %v2242, %v2230
    %v2723 = vpack.c.b16 %v2243, %v2231
    %v2724 = vpack.c.b16 %v2256, %v2244
    %v2725 = vpack.c.b16 %v2257, %v2245
    %v2726 = vpack.c.b16 %v2258, %v2246
    %v2727 = vpack.c.b16 %v2259, %v2247
    %v2728 = vpack.c.b16 %v2260, %v2248
    %v2729 = vpack.c.b16 %v2261, %v2249
    %v2730 = vpack.c.b16 %v2262, %v2250
    %v2731 = vpack.c.b16 %v2263, %v2251
    %v2732 = vpack.c.b16 %v2264, %v2252
    %v2733 = vpack.c.b16 %v2265, %v2253
    %v2734 = vpack.c.b16 %v2266, %v2254
    %v2735 = vpack.c.b16 %v2267, %v2255
    %v2736 = vpack.c.b16 %v2280, %v2268
    %v2737 = vpack.c.b16 %v2281, %v2269
    %v2738 = vpack.c.b16 %v2282, %v2270
    %v2739 = vpack.c.b16 %v2283, %v2271
    %v2740 = vpack.c.b16 %v2284, %v2272
    %v2741 = vpack.c.b16 %v2285, %v2273
    %v2742 = vpack.c.b16 %v2286, %v2274
    %v2743 = vpack.c.b16 %v2287, %v2275
    %v2744 = vpack.c.b16 %v2288, %v2276
    %v2745 = vpack.c.b16 %v2289, %v2277
    %v2746 = vpack.c.b16 %v2290, %v2278
    %v2747 = vpack.c.b16 %v2291, %v2279
    %v2748 = vpack.c.b16 %v2304, %v2292
    %v2749 = vpack.c.b16 %v2305, %v2293
    %v2750 = vpack.c.b16 %v2306, %v2294
    %v2751 = vpack.c.b16 %v2307, %v2295
    %v2752 = vpack.c.b16 %v2308, %v2296
    %v2753 = vpack.c.b16 %v2309, %v2297
    %v2754 = vpack.c.b16 %v2310, %v2298
    %v2755 = vpack.c.b16 %v2311, %v2299
    %v2756 = vpack.c.b16 %v2312, %v2300
    %v2757 = vpack.c.b16 %v2313, %v2301
    %v2758 = vpack.c.b16 %v2314, %v2302
    %v2759 = vpack.c.b16 %v2315, %v2303
    %v2760 = vpack.c.b16 %v2328, %v2316
    %v2761 = vpack.c.b16 %v2329, %v2317
    %v2762 = vpack.c.b16 %v2330, %v2318
    %v2763 = vpack.c.b16 %v2331, %v2319
    %v2764 = vpack.c.b16 %v2332, %v2320
    %v2765 = vpack.c.b16 %v2333, %v2321
    %v2766 = vpack.c.b16 %v2334, %v2322
    %v2767 = vpack.c.b16 %v2335, %v2323
    %v2768 = vpack.c.b16 %v2336, %v2324
    %v2769 = vpack.c.b16 %v2337, %v2325
    %v2770 = vpack.c.b16 %v2338, %v2326
    %v2771 = vpack.c.b16 %v2339, %v2327
    %v2772 = vpack.c.b16 %v2352, %v2340
    %v2773 = vpack.c.b16 %v2353, %v2341
    %v2774 = vpack.c.b16 %v2354, %v2342
    %v2775 = vpack.c.b16 %v2355, %v2343
    %v2776 = vpack.c.b16 %v2356, %v2344
    %v2777 = vpack.c.b16 %v2357, %v2345
    %v2778 = vpack.c.b16 %v2358, %v2346
    %v2779 = vpack.c.b16 %v2359, %v2347
    %v2780 = vpack.c.b16 %v2360, %v2348
    %v2781 = vpack.c.b16 %v2361, %v2349
    %v2782 = vpack.c.b16 %v2362, %v2350
    %v2783 = vpack.c.b16 %v2363, %v2351
    %v2784 = vpack.c.b16 %v2376, %v2364
    %v2785 = vpack.c.b16 %v2377, %v2365
    %v2786 = vpack.c.b16 %v2378, %v2366
    %v2787 = vpack.c.b16 %v2379, %v2367
    %v2788 = vpack.c.b16 %v2380, %v2368
    %v2789 = vpack.c.b16 %v2381, %v2369
    %v2790 = vpack.c.b16 %v2382, %v2370
    %v2791 = vpack.c.b16 %v2383, %v2371
    %v2792 = vpack.c.b16 %v2384, %v2372
    %v2793 = vpack.c.b16 %v2385, %v2373
    %v2794 = vpack.c.b16 %v2386, %v2374
    %v2795 = vpack.c.b16 %v2387, %v2375
    %v2796 = vpack.c.b16 %v2400, %v2388
    %v2797 = vpack.c.b16 %v2401, %v2389
    %v2798 = vpack.c.b16 %v2402, %v2390
    %v2799 = vpack.c.b16 %v2403, %v2391
    %v2800 = vpack.c.b16 %v2404, %v2392
    %v2801 = vpack.c.b16 %v2405, %v2393
    %v2802 = vpack.c.b16 %v2406, %v2394
    %v2803 = vpack.c.b16 %v2407, %v2395
    %v2804 = vpack.c.b16 %v2408, %v2396
    %v2805 = vpack.c.b16 %v2409, %v2397
    %v2806 = vpack.c.b16 %v2410, %v2398
    %v2807 = vpack.c.b16 %v2411, %v2399
    %v2808 = vpack.c.b16 %v2424, %v2412
    %v2809 = vpack.c.b16 %v2425, %v2413
    %v2810 = vpack.c.b16 %v2426, %v2414
    %v2811 = vpack.c.b16 %v2427, %v2415
    %v2812 = vpack.c.b16 %v2428, %v2416
    %v2813 = vpack.c.b16 %v2429, %v2417
    %v2814 = vpack.c.b16 %v2430, %v2418
    %v2815 = vpack.c.b16 %v2431, %v2419
    %v2816 = vpack.c.b16 %v2432, %v2420
    %v2817 = vpack.c.b16 %v2433, %v2421
    %v2818 = vpack.c.b16 %v2434, %v2422
    %v2819 = vpack.c.b16 %v2435, %v2423
    %3204 = vmatprep.subr.bf16.mxu0 %v2521
    %3205 = vmatpush1.bf16.msra.mxu0 %v2520
    %3206 = vmatprep.subr.bf16.mxu0 %v2509
    %3207 = vmatpush1.bf16.msra.mxu0 %v2508
    %3208 = vmatprep.subr.bf16.mxu0 %v2497
    %3209 = vmatpush1.bf16.msra.mxu0 %v2496
    %3210 = vmatprep.subr.bf16.mxu0 %v2485
    %3211 = vmatpush1.bf16.msra.mxu0 %v2484
    %3212 = vmatprep.subr.bf16.mxu0 %v2473
    %3213 = vmatpush1.bf16.msra.mxu0 %v2472
    %3214 = vmatprep.subr.bf16.mxu0 %v2461
    %3215 = vmatpush1.bf16.msra.mxu0 %v2460
    %3216 = vmatprep.subr.bf16.mxu0 %v2449
    %3217 = vmatpush1.bf16.msra.mxu0 %v2448
    %3218 = vmatprep.subr.bf16.mxu0 %v2437
    %3219 = vmatpush1.bf16.msra.mxu0 %v2436
    %3220 = vmatprep.subr.bf16.mxu0 %v2617
    %3221 = vmatpush2.bf16.msra.mxu0 %v2616
    %3222 = vmatprep.subr.bf16.mxu0 %v2605
    %3223 = vmatpush2.bf16.msra.mxu0 %v2604
    %3224 = vmatprep.subr.bf16.mxu0 %v2593
    %3225 = vmatpush2.bf16.msra.mxu0 %v2592
    %3226 = vmatprep.subr.bf16.mxu0 %v2581
    %3227 = vmatpush2.bf16.msra.mxu0 %v2580
    %3228 = vmatprep.subr.bf16.mxu0 %v2569
    %3229 = vmatpush2.bf16.msra.mxu0 %v2568
    %3230 = vmatprep.subr.bf16.mxu0 %v2557
    %3231 = vmatpush2.bf16.msra.mxu0 %v2556
    %3232 = vmatprep.subr.bf16.mxu0 %v2545
    %3233 = vmatpush2.bf16.msra.mxu0 %v2544
    %3234 = vmatprep.subr.bf16.mxu0 %v2533
    %3235 = vmatpush2.bf16.msra.mxu0 %v2532
    %3236 = vmatprep.mubr.bf16.mxu0 0
    %3237 = vmatmul.mubr.bf16.gmra.mxu0 0
    %v3238 = vpop.f32.mrf.mxu0
    %v3239 = vadd.f32 0.0, %v3238
    %v3240 = vpop.f32.mrf.mxu0
    %v3241 = vadd.f32 0.0, %v3240
    %v3242 = vpop.f32.mrf.mxu0
    %v3243 = vpop.f32.mrf.mxu0
    %3244 = vdwg.mxu0
    %3245 = vmatprep.subr.bf16.mxu0 %v2713
    %3246 = vmatpush1.bf16.msra.mxu0 %v2712
    %3247 = vmatprep.subr.bf16.mxu0 %v2701
    %3248 = vmatpush1.bf16.msra.mxu0 %v2700
    %3249 = vmatprep.subr.bf16.mxu0 %v2689
    %3250 = vmatpush1.bf16.msra.mxu0 %v2688
    %3251 = vmatprep.subr.bf16.mxu0 %v2677
    %3252 = vmatpush1.bf16.msra.mxu0 %v2676
    %3253 = vmatprep.subr.bf16.mxu0 %v2665
    %3254 = vmatpush1.bf16.msra.mxu0 %v2664
    %3255 = vmatprep.subr.bf16.mxu0 %v2653
    %3256 = vmatpush1.bf16.msra.mxu0 %v2652
    %3257 = vmatprep.subr.bf16.mxu0 %v2641
    %3258 = vmatpush1.bf16.msra.mxu0 %v2640
    %3259 = vmatprep.subr.bf16.mxu0 %v2629
    %3260 = vmatpush1.bf16.msra.mxu0 %v2628
    %3261 = vmatprep.subr.bf16.mxu0 %v2809
    %3262 = vmatpush2.bf16.msra.mxu0 %v2808
    %3263 = vmatprep.subr.bf16.mxu0 %v2797
    %3264 = vmatpush2.bf16.msra.mxu0 %v2796
    %3265 = vmatprep.subr.bf16.mxu0 %v2785
    %3266 = vmatpush2.bf16.msra.mxu0 %v2784
    %3267 = vmatprep.subr.bf16.mxu0 %v2773
    %3268 = vmatpush2.bf16.msra.mxu0 %v2772
    %3269 = vmatprep.subr.bf16.mxu0 %v2761
    %3270 = vmatpush2.bf16.msra.mxu0 %v2760
    %3271 = vmatprep.subr.bf16.mxu0 %v2749
    %3272 = vmatpush2.bf16.msra.mxu0 %v2748
    %3273 = vmatprep.subr.bf16.mxu0 %v2737
    %3274 = vmatpush2.bf16.msra.mxu0 %v2736
    %3275 = vmatprep.subr.bf16.mxu0 %v2725
    %3276 = vmatpush2.bf16.msra.mxu0 %v2724
    %3277 = vmatprep.mubr.bf16.mxu0 0
    %3278 = vmatmul.mubr.bf16.gmra.mxu0 0
    %v3279 = vpop.f32.mrf.mxu0
    %v3280 = vadd.f32 %v3239, %v3279
    %v3281 = vpop.f32.mrf.mxu0
    %v3282 = vadd.f32 %v3241, %v3281
    %v3283 = vpop.f32.mrf.mxu0
    %v3284 = vpop.f32.mrf.mxu0
    %3285 = vdwg.mxu0
    %3286 = vmatprep.subr.bf16.mxu0 %v2523
    %3287 = vmatpush1.bf16.msra.mxu0 %v2522
    %3288 = vmatprep.subr.bf16.mxu0 %v2511
    %3289 = vmatpush1.bf16.msra.mxu0 %v2510
    %3290 = vmatprep.subr.bf16.mxu0 %v2499
    %3291 = vmatpush1.bf16.msra.mxu0 %v2498
    %3292 = vmatprep.subr.bf16.mxu0 %v2487
    %3293 = vmatpush1.bf16.msra.mxu0 %v2486
    %3294 = vmatprep.subr.bf16.mxu0 %v2475
    %3295 = vmatpush1.bf16.msra.mxu0 %v2474
    %3296 = vmatprep.subr.bf16.mxu0 %v2463
    %3297 = vmatpush1.bf16.msra.mxu0 %v2462
    %3298 = vmatprep.subr.bf16.mxu0 %v2451
    %3299 = vmatpush1.bf16.msra.mxu0 %v2450
    %3300 = vmatprep.subr.bf16.mxu0 %v2439
    %3301 = vmatpush1.bf16.msra.mxu0 %v2438
    %3302 = vmatprep.subr.bf16.mxu0 %v2619
    %3303 = vmatpush2.bf16.msra.mxu0 %v2618
    %3304 = vmatprep.subr.bf16.mxu0 %v2607
    %3305 = vmatpush2.bf16.msra.mxu0 %v2606
    %3306 = vmatprep.subr.bf16.mxu0 %v2595
    %3307 = vmatpush2.bf16.msra.mxu0 %v2594
    %3308 = vmatprep.subr.bf16.mxu0 %v2583
    %3309 = vmatpush2.bf16.msra.mxu0 %v2582
    %3310 = vmatprep.subr.bf16.mxu0 %v2571
    %3311 = vmatpush2.bf16.msra.mxu0 %v2570
    %3312 = vmatprep.subr.bf16.mxu0 %v2559
    %3313 = vmatpush2.bf16.msra.mxu0 %v2558
    %3314 = vmatprep.subr.bf16.mxu0 %v2547
    %3315 = vmatpush2.bf16.msra.mxu0 %v2546
    %3316 = vmatprep.subr.bf16.mxu0 %v2535
    %3317 = vmatpush2.bf16.msra.mxu0 %v2534
    %3318 = vmatprep.mubr.bf16.mxu0 0
    %3319 = vmatmul.mubr.bf16.gmra.mxu0 0
    %v3320 = vpop.f32.mrf.mxu0
    %v3321 = vadd.f32 0.0, %v3320
    %v3322 = vpop.f32.mrf.mxu0
    %v3323 = vadd.f32 0.0, %v3322
    %v3324 = vpop.f32.mrf.mxu0
    %v3325 = vpop.f32.mrf.mxu0
    %3326 = vdwg.mxu0
    %3327 = vmatprep.subr.bf16.mxu0 %v2715
    %3328 = vmatpush1.bf16.msra.mxu0 %v2714
    %3329 = vmatprep.subr.bf16.mxu0 %v2703
    %3330 = vmatpush1.bf16.msra.mxu0 %v2702
    %3331 = vmatprep.subr.bf16.mxu0 %v2691
    %3332 = vmatpush1.bf16.msra.mxu0 %v2690
    %3333 = vmatprep.subr.bf16.mxu0 %v2679
    %3334 = vmatpush1.bf16.msra.mxu0 %v2678
    %3335 = vmatprep.subr.bf16.mxu0 %v2667
    %3336 = vmatpush1.bf16.msra.mxu0 %v2666
    %3337 = vmatprep.subr.bf16.mxu0 %v2655
    %3338 = vmatpush1.bf16.msra.mxu0 %v2654
    %3339 = vmatprep.subr.bf16.mxu0 %v2643
    %3340 = vmatpush1.bf16.msra.mxu0 %v2642
    %3341 = vmatprep.subr.bf16.mxu0 %v2631
    %3342 = vmatpush1.bf16.msra.mxu0 %v2630
    %3343 = vmatprep.subr.bf16.mxu0 %v2811
    %3344 = vmatpush2.bf16.msra.mxu0 %v2810
    %3345 = vmatprep.subr.bf16.mxu0 %v2799
    %3346 = vmatpush2.bf16.msra.mxu0 %v2798
    %3347 = vmatprep.subr.bf16.mxu0 %v2787
    %3348 = vmatpush2.bf16.msra.mxu0 %v2786
    %3349 = vmatprep.subr.bf16.mxu0 %v2775
    %3350 = vmatpush2.bf16.msra.mxu0 %v2774
    %3351 = vmatprep.subr.bf16.mxu0 %v2763
    %3352 = vmatpush2.bf16.msra.mxu0 %v2762
    %3353 = vmatprep.subr.bf16.mxu0 %v2751
    %3354 = vmatpush2.bf16.msra.mxu0 %v2750
    %3355 = vmatprep.subr.bf16.mxu0 %v2739
    %3356 = vmatpush2.bf16.msra.mxu0 %v2738
    %3357 = vmatprep.subr.bf16.mxu0 %v2727
    %3358 = vmatpush2.bf16.msra.mxu0 %v2726
    %3359 = vmatprep.mubr.bf16.mxu0 0
    %3360 = vmatmul.mubr.bf16.gmra.mxu0 0
    %v3361 = vpop.f32.mrf.mxu0
    %v3362 = vadd.f32 %v3321, %v3361
    %v3363 = vpop.f32.mrf.mxu0
    %v3364 = vadd.f32 %v3323, %v3363
    %v3365 = vpop.f32.mrf.mxu0
    %v3366 = vpop.f32.mrf.mxu0
    %3367 = vdwg.mxu0
    %3368 = vmatprep.subr.bf16.mxu0 %v2525
    %3369 = vmatpush1.bf16.msra.mxu0 %v2524
    %3370 = vmatprep.subr.bf16.mxu0 %v2513
    %3371 = vmatpush1.bf16.msra.mxu0 %v2512
    %3372 = vmatprep.subr.bf16.mxu0 %v2501
    %3373 = vmatpush1.bf16.msra.mxu0 %v2500
    %3374 = vmatprep.subr.bf16.mxu0 %v2489
    %3375 = vmatpush1.bf16.msra.mxu0 %v2488
    %3376 = vmatprep.subr.bf16.mxu0 %v2477
    %3377 = vmatpush1.bf16.msra.mxu0 %v2476
    %3378 = vmatprep.subr.bf16.mxu0 %v2465
    %3379 = vmatpush1.bf16.msra.mxu0 %v2464
    %3380 = vmatprep.subr.bf16.mxu0 %v2453
    %3381 = vmatpush1.bf16.msra.mxu0 %v2452
    %3382 = vmatprep.subr.bf16.mxu0 %v2441
    %3383 = vmatpush1.bf16.msra.mxu0 %v2440
    %3384 = vmatprep.subr.bf16.mxu0 %v2621
    %3385 = vmatpush2.bf16.msra.mxu0 %v2620
    %3386 = vmatprep.subr.bf16.mxu0 %v2609
    %3387 = vmatpush2.bf16.msra.mxu0 %v2608
    %3388 = vmatprep.subr.bf16.mxu0 %v2597
    %3389 = vmatpush2.bf16.msra.mxu0 %v2596
    %3390 = vmatprep.subr.bf16.mxu0 %v2585
    %3391 = vmatpush2.bf16.msra.mxu0 %v2584
    %3392 = vmatprep.subr.bf16.mxu0 %v2573
    %3393 = vmatpush2.bf16.msra.mxu0 %v2572
    %3394 = vmatprep.subr.bf16.mxu0 %v2561
    %3395 = vmatpush2.bf16.msra.mxu0 %v2560
    %3396 = vmatprep.subr.bf16.mxu0 %v2549
    %3397 = vmatpush2.bf16.msra.mxu0 %v2548
    %3398 = vmatprep.subr.bf16.mxu0 %v2537
    %3399 = vmatpush2.bf16.msra.mxu0 %v2536
    %3400 = vmatprep.mubr.bf16.mxu0 0
    %3401 = vmatmul.mubr.bf16.gmra.mxu0 0
    %v3402 = vpop.f32.mrf.mxu0
    %v3403 = vadd.f32 0.0, %v3402
    %v3404 = vpop.f32.mrf.mxu0
    %v3405 = vadd.f32 0.0, %v3404
    %v3406 = vpop.f32.mrf.mxu0
    %v3407 = vpop.f32.mrf.mxu0
    %3408 = vdwg.mxu0
    %3409 = vmatprep.subr.bf16.mxu0 %v2717
    %3410 = vmatpush1.bf16.msra.mxu0 %v2716
    %3411 = vmatprep.subr.bf16.mxu0 %v2705
    %3412 = vmatpush1.bf16.msra.mxu0 %v2704
    %3413 = vmatprep.subr.bf16.mxu0 %v2693
    %3414 = vmatpush1.bf16.msra.mxu0 %v2692
    %3415 = vmatprep.subr.bf16.mxu0 %v2681
    %3416 = vmatpush1.bf16.msra.mxu0 %v2680
    %3417 = vmatprep.subr.bf16.mxu0 %v2669
    %3418 = vmatpush1.bf16.msra.mxu0 %v2668
    %3419 = vmatprep.subr.bf16.mxu0 %v2657
    %3420 = vmatpush1.bf16.msra.mxu0 %v2656
    %3421 = vmatprep.subr.bf16.mxu0 %v2645
    %3422 = vmatpush1.bf16.msra.mxu0 %v2644
    %3423 = vmatprep.subr.bf16.mxu0 %v2633
    %3424 = vmatpush1.bf16.msra.mxu0 %v2632
    %3425 = vmatprep.subr.bf16.mxu0 %v2813
    %3426 = vmatpush2.bf16.msra.mxu0 %v2812
    %3427 = vmatprep.subr.bf16.mxu0 %v2801
    %3428 = vmatpush2.bf16.msra.mxu0 %v2800
    %3429 = vmatprep.subr.bf16.mxu0 %v2789
    %3430 = vmatpush2.bf16.msra.mxu0 %v2788
    %3431 = vmatprep.subr.bf16.mxu0 %v2777
    %3432 = vmatpush2.bf16.msra.mxu0 %v2776
    %3433 = vmatprep.subr.bf16.mxu0 %v2765
    %3434 = vmatpush2.bf16.msra.mxu0 %v2764
    %3435 = vmatprep.subr.bf16.mxu0 %v2753
    %3436 = vmatpush2.bf16.msra.mxu0 %v2752
    %3437 = vmatprep.subr.bf16.mxu0 %v2741
    %3438 = vmatpush2.bf16.msra.mxu0 %v2740
    %3439 = vmatprep.subr.bf16.mxu0 %v2729
    %3440 = vmatpush2.bf16.msra.mxu0 %v2728
    %3441 = vmatprep.mubr.bf16.mxu0 0
    %3442 = vmatmul.mubr.bf16.gmra.mxu0 0
    %v3443 = vpop.f32.mrf.mxu0
    %v3444 = vadd.f32 %v3403, %v3443
    %v3445 = vpop.f32.mrf.mxu0
    %v3446 = vadd.f32 %v3405, %v3445
    %v3447 = vpop.f32.mrf.mxu0
    %v3448 = vpop.f32.mrf.mxu0
    %3449 = vdwg.mxu0
    %3450 = vmatprep.subr.bf16.mxu0 %v2527
    %3451 = vmatpush1.bf16.msra.mxu0 %v2526
    %3452 = vmatprep.subr.bf16.mxu0 %v2515
    %3453 = vmatpush1.bf16.msra.mxu0 %v2514
    %3454 = vmatprep.subr.bf16.mxu0 %v2503
    %3455 = vmatpush1.bf16.msra.mxu0 %v2502
    %3456 = vmatprep.subr.bf16.mxu0 %v2491
    %3457 = vmatpush1.bf16.msra.mxu0 %v2490
    %3458 = vmatprep.subr.bf16.mxu0 %v2479
    %3459 = vmatpush1.bf16.msra.mxu0 %v2478
    %3460 = vmatprep.subr.bf16.mxu0 %v2467
    %3461 = vmatpush1.bf16.msra.mxu0 %v2466
    %3462 = vmatprep.subr.bf16.mxu0 %v2455
    %3463 = vmatpush1.bf16.msra.mxu0 %v2454
    %3464 = vmatprep.subr.bf16.mxu0 %v2443
    %3465 = vmatpush1.bf16.msra.mxu0 %v2442
    %3466 = vmatprep.subr.bf16.mxu0 %v2623
    %3467 = vmatpush2.bf16.msra.mxu0 %v2622
    %3468 = vmatprep.subr.bf16.mxu0 %v2611
    %3469 = vmatpush2.bf16.msra.mxu0 %v2610
    %3470 = vmatprep.subr.bf16.mxu0 %v2599
    %3471 = vmatpush2.bf16.msra.mxu0 %v2598
    %3472 = vmatprep.subr.bf16.mxu0 %v2587
    %3473 = vmatpush2.bf16.msra.mxu0 %v2586
    %3474 = vmatprep.subr.bf16.mxu0 %v2575
    %3475 = vmatpush2.bf16.msra.mxu0 %v2574
    %3476 = vmatprep.subr.bf16.mxu0 %v2563
    %3477 = vmatpush2.bf16.msra.mxu0 %v2562
    %3478 = vmatprep.subr.bf16.mxu0 %v2551
    %3479 = vmatpush2.bf16.msra.mxu0 %v2550
    %3480 = vmatprep.subr.bf16.mxu0 %v2539
    %3481 = vmatpush2.bf16.msra.mxu0 %v2538
    %3482 = vmatprep.mubr.bf16.mxu0 0
    %3483 = vmatmul.mubr.bf16.gmra.mxu0 0
    %v3484 = vpop.f32.mrf.mxu0
    %v3485 = vadd.f32 0.0, %v3484
    %v3486 = vpop.f32.mrf.mxu0
    %v3487 = vadd.f32 0.0, %v3486
    %v3488 = vpop.f32.mrf.mxu0
    %v3489 = vpop.f32.mrf.mxu0
    %3490 = vdwg.mxu0
    %3491 = vmatprep.subr.bf16.mxu0 %v2719
    %3492 = vmatpush1.bf16.msra.mxu0 %v2718
    %3493 = vmatprep.subr.bf16.mxu0 %v2707
    %3494 = vmatpush1.bf16.msra.mxu0 %v2706
    %3495 = vmatprep.subr.bf16.mxu0 %v2695
    %3496 = vmatpush1.bf16.msra.mxu0 %v2694
    %3497 = vmatprep.subr.bf16.mxu0 %v2683
    %3498 = vmatpush1.bf16.msra.mxu0 %v2682
    %3499 = vmatprep.subr.bf16.mxu0 %v2671
    %3500 = vmatpush1.bf16.msra.mxu0 %v2670
    %3501 = vmatprep.subr.bf16.mxu0 %v2659
    %3502 = vmatpush1.bf16.msra.mxu0 %v2658
    %3503 = vmatprep.subr.bf16.mxu0 %v2647
    %3504 = vmatpush1.bf16.msra.mxu0 %v2646
    %3505 = vmatprep.subr.bf16.mxu0 %v2635
    %3506 = vmatpush1.bf16.msra.mxu0 %v2634
    %3507 = vmatprep.subr.bf16.mxu0 %v2815
    %3508 = vmatpush2.bf16.msra.mxu0 %v2814
    %3509 = vmatprep.subr.bf16.mxu0 %v2803
    %3510 = vmatpush2.bf16.msra.mxu0 %v2802
    %3511 = vmatprep.subr.bf16.mxu0 %v2791
    %3512 = vmatpush2.bf16.msra.mxu0 %v2790
    %3513 = vmatprep.subr.bf16.mxu0 %v2779
    %3514 = vmatpush2.bf16.msra.mxu0 %v2778
    %3515 = vmatprep.subr.bf16.mxu0 %v2767
    %3516 = vmatpush2.bf16.msra.mxu0 %v2766
    %3517 = vmatprep.subr.bf16.mxu0 %v2755
    %3518 = vmatpush2.bf16.msra.mxu0 %v2754
    %3519 = vmatprep.subr.bf16.mxu0 %v2743
    %3520 = vmatpush2.bf16.msra.mxu0 %v2742
    %3521 = vmatprep.subr.bf16.mxu0 %v2731
    %3522 = vmatpush2.bf16.msra.mxu0 %v2730
    %3523 = vmatprep.mubr.bf16.mxu0 0
    %3524 = vmatmul.mubr.bf16.gmra.mxu0 0
    %v3525 = vpop.f32.mrf.mxu0
    %v3526 = vadd.f32 %v3485, %v3525
    %v3527 = vpop.f32.mrf.mxu0
    %v3528 = vadd.f32 %v3487, %v3527
    %v3529 = vpop.f32.mrf.mxu0
    %v3530 = vpop.f32.mrf.mxu0
    %3531 = vdwg.mxu0
    %3532 = vmatprep.subr.bf16.mxu0 %v2529
    %3533 = vmatpush1.bf16.msra.mxu0 %v2528
    %3534 = vmatprep.subr.bf16.mxu0 %v2517
    %3535 = vmatpush1.bf16.msra.mxu0 %v2516
    %3536 = vmatprep.subr.bf16.mxu0 %v2505
    %3537 = vmatpush1.bf16.msra.mxu0 %v2504
    %3538 = vmatprep.subr.bf16.mxu0 %v2493
    %3539 = vmatpush1.bf16.msra.mxu0 %v2492
    %3540 = vmatprep.subr.bf16.mxu0 %v2481
    %3541 = vmatpush1.bf16.msra.mxu0 %v2480
    %3542 = vmatprep.subr.bf16.mxu0 %v2469
    %3543 = vmatpush1.bf16.msra.mxu0 %v2468
    %3544 = vmatprep.subr.bf16.mxu0 %v2457
    %3545 = vmatpush1.bf16.msra.mxu0 %v2456
    %3546 = vmatprep.subr.bf16.mxu0 %v2445
    %3547 = vmatpush1.bf16.msra.mxu0 %v2444
    %3548 = vmatprep.subr.bf16.mxu0 %v2625
    %3549 = vmatpush2.bf16.msra.mxu0 %v2624
    %3550 = vmatprep.subr.bf16.mxu0 %v2613
    %3551 = vmatpush2.bf16.msra.mxu0 %v2612
    %3552 = vmatprep.subr.bf16.mxu0 %v2601
    %3553 = vmatpush2.bf16.msra.mxu0 %v2600
    %3554 = vmatprep.subr.bf16.mxu0 %v2589
    %3555 = vmatpush2.bf16.msra.mxu0 %v2588
    %3556 = vmatprep.subr.bf16.mxu0 %v2577
    %3557 = vmatpush2.bf16.msra.mxu0 %v2576
    %3558 = vmatprep.subr.bf16.mxu0 %v2565
    %3559 = vmatpush2.bf16.msra.mxu0 %v2564
    %3560 = vmatprep.subr.bf16.mxu0 %v2553
    %3561 = vmatpush2.bf16.msra.mxu0 %v2552
    %3562 = vmatprep.subr.bf16.mxu0 %v2541
    %3563 = vmatpush2.bf16.msra.mxu0 %v2540
    %3564 = vmatprep.mubr.bf16.mxu0 0
    %3565 = vmatmul.mubr.bf16.gmra.mxu0 0
    %v3566 = vpop.f32.mrf.mxu0
    %v3567 = vadd.f32 0.0, %v3566
    %v3568 = vpop.f32.mrf.mxu0
    %v3569 = vadd.f32 0.0, %v3568
    %v3570 = vpop.f32.mrf.mxu0
    %v3571 = vpop.f32.mrf.mxu0
    %3572 = vdwg.mxu0
    %3573 = vmatprep.subr.bf16.mxu0 %v2721
    %3574 = vmatpush1.bf16.msra.mxu0 %v2720
    %3575 = vmatprep.subr.bf16.mxu0 %v2709
    %3576 = vmatpush1.bf16.msra.mxu0 %v2708
    %3577 = vmatprep.subr.bf16.mxu0 %v2697
    %3578 = vmatpush1.bf16.msra.mxu0 %v2696
    %3579 = vmatprep.subr.bf16.mxu0 %v2685
    %3580 = vmatpush1.bf16.msra.mxu0 %v2684
    %3581 = vmatprep.subr.bf16.mxu0 %v2673
    %3582 = vmatpush1.bf16.msra.mxu0 %v2672
    %3583 = vmatprep.subr.bf16.mxu0 %v2661
    %3584 = vmatpush1.bf16.msra.mxu0 %v2660
    %3585 = vmatprep.subr.bf16.mxu0 %v2649
    %3586 = vmatpush1.bf16.msra.mxu0 %v2648
    %3587 = vmatprep.subr.bf16.mxu0 %v2637
    %3588 = vmatpush1.bf16.msra.mxu0 %v2636
    %3589 = vmatprep.subr.bf16.mxu0 %v2817
    %3590 = vmatpush2.bf16.msra.mxu0 %v2816
    %3591 = vmatprep.subr.bf16.mxu0 %v2805
    %3592 = vmatpush2.bf16.msra.mxu0 %v2804
    %3593 = vmatprep.subr.bf16.mxu0 %v2793
    %3594 = vmatpush2.bf16.msra.mxu0 %v2792
    %3595 = vmatprep.subr.bf16.mxu0 %v2781
    %3596 = vmatpush2.bf16.msra.mxu0 %v2780
    %3597 = vmatprep.subr.bf16.mxu0 %v2769
    %3598 = vmatpush2.bf16.msra.mxu0 %v2768
    %3599 = vmatprep.subr.bf16.mxu0 %v2757
    %3600 = vmatpush2.bf16.msra.mxu0 %v2756
    %3601 = vmatprep.subr.bf16.mxu0 %v2745
    %3602 = vmatpush2.bf16.msra.mxu0 %v2744
    %3603 = vmatprep.subr.bf16.mxu0 %v2733
    %3604 = vmatpush2.bf16.msra.mxu0 %v2732
    %3605 = vmatprep.mubr.bf16.mxu0 0
    %3606 = vmatmul.mubr.bf16.gmra.mxu0 0
    %v3607 = vpop.f32.mrf.mxu0
    %v3608 = vadd.f32 %v3567, %v3607
    %v3609 = vpop.f32.mrf.mxu0
    %v3610 = vadd.f32 %v3569, %v3609
    %v3611 = vpop.f32.mrf.mxu0
    %v3612 = vpop.f32.mrf.mxu0
    %3613 = vdwg.mxu0
    %3614 = vmatprep.subr.bf16.mxu0 %v2531
    %3615 = vmatpush1.bf16.msra.mxu0 %v2530
    %3616 = vmatprep.subr.bf16.mxu0 %v2519
    %3617 = vmatpush1.bf16.msra.mxu0 %v2518
    %3618 = vmatprep.subr.bf16.mxu0 %v2507
    %3619 = vmatpush1.bf16.msra.mxu0 %v2506
    %3620 = vmatprep.subr.bf16.mxu0 %v2495
    %3621 = vmatpush1.bf16.msra.mxu0 %v2494
    %3622 = vmatprep.subr.bf16.mxu0 %v2483
    %3623 = vmatpush1.bf16.msra.mxu0 %v2482
    %3624 = vmatprep.subr.bf16.mxu0 %v2471
    %3625 = vmatpush1.bf16.msra.mxu0 %v2470
    %3626 = vmatprep.subr.bf16.mxu0 %v2459
    %3627 = vmatpush1.bf16.msra.mxu0 %v2458
    %3628 = vmatprep.subr.bf16.mxu0 %v2447
    %3629 = vmatpush1.bf16.msra.mxu0 %v2446
    %3630 = vmatprep.subr.bf16.mxu0 %v2627
    %3631 = vmatpush2.bf16.msra.mxu0 %v2626
    %3632 = vmatprep.subr.bf16.mxu0 %v2615
    %3633 = vmatpush2.bf16.msra.mxu0 %v2614
    %3634 = vmatprep.subr.bf16.mxu0 %v2603
    %3635 = vmatpush2.bf16.msra.mxu0 %v2602
    %3636 = vmatprep.subr.bf16.mxu0 %v2591
    %3637 = vmatpush2.bf16.msra.mxu0 %v2590
    %3638 = vmatprep.subr.bf16.mxu0 %v2579
    %3639 = vmatpush2.bf16.msra.mxu0 %v2578
    %3640 = vmatprep.subr.bf16.mxu0 %v2567
    %3641 = vmatpush2.bf16.msra.mxu0 %v2566
    %3642 = vmatprep.subr.bf16.mxu0 %v2555
    %3643 = vmatpush2.bf16.msra.mxu0 %v2554
    %3644 = vmatprep.subr.bf16.mxu0 %v2543
    %3645 = vmatpush2.bf16.msra.mxu0 %v2542
    %3646 = vmatprep.mubr.bf16.mxu0 0
    %3647 = vmatmul.mubr.bf16.gmra.mxu0 0
    %v3648 = vpop.f32.mrf.mxu0
    %v3649 = vadd.f32 0.0, %v3648
    %v3650 = vpop.f32.mrf.mxu0
    %v3651 = vadd.f32 0.0, %v3650
    %v3652 = vpop.f32.mrf.mxu0
    %v3653 = vpop.f32.mrf.mxu0
    %3654 = vdwg.mxu0
    %3655 = vmatprep.subr.bf16.mxu0 %v2723
    %3656 = vmatpush1.bf16.msra.mxu0 %v2722
    %3657 = vmatprep.subr.bf16.mxu0 %v2711
    %3658 = vmatpush1.bf16.msra.mxu0 %v2710
    %3659 = vmatprep.subr.bf16.mxu0 %v2699
    %3660 = vmatpush1.bf16.msra.mxu0 %v2698
    %3661 = vmatprep.subr.bf16.mxu0 %v2687
    %3662 = vmatpush1.bf16.msra.mxu0 %v2686
    %3663 = vmatprep.subr.bf16.mxu0 %v2675
    %3664 = vmatpush1.bf16.msra.mxu0 %v2674
    %3665 = vmatprep.subr.bf16.mxu0 %v2663
    %3666 = vmatpush1.bf16.msra.mxu0 %v2662
    %3667 = vmatprep.subr.bf16.mxu0 %v2651
    %3668 = vmatpush1.bf16.msra.mxu0 %v2650
    %3669 = vmatprep.subr.bf16.mxu0 %v2639
    %3670 = vmatpush1.bf16.msra.mxu0 %v2638
    %3671 = vmatprep.subr.bf16.mxu0 %v2819
    %3672 = vmatpush2.bf16.msra.mxu0 %v2818
    %3673 = vmatprep.subr.bf16.mxu0 %v2807
    %3674 = vmatpush2.bf16.msra.mxu0 %v2806
    %3675 = vmatprep.subr.bf16.mxu0 %v2795
    %3676 = vmatpush2.bf16.msra.mxu0 %v2794
    %3677 = vmatprep.subr.bf16.mxu0 %v2783
    %3678 = vmatpush2.bf16.msra.mxu0 %v2782
    %3679 = vmatprep.subr.bf16.mxu0 %v2771
    %3680 = vmatpush2.bf16.msra.mxu0 %v2770
    %3681 = vmatprep.subr.bf16.mxu0 %v2759
    %3682 = vmatpush2.bf16.msra.mxu0 %v2758
    %3683 = vmatprep.subr.bf16.mxu0 %v2747
    %3684 = vmatpush2.bf16.msra.mxu0 %v2746
    %3685 = vmatprep.subr.bf16.mxu0 %v2735
    %3686 = vmatpush2.bf16.msra.mxu0 %v2734
    %3687 = vmatprep.mubr.bf16.mxu0 0
    %3688 = vmatmul.mubr.bf16.gmra.mxu0 0
    %v3689 = vpop.f32.mrf.mxu0
    %v3690 = vadd.f32 %v3649, %v3689
    %v3691 = vpop.f32.mrf.mxu0
    %v3692 = vadd.f32 %v3651, %v3691
    %v3693 = vpop.f32.mrf.mxu0
    %v3694 = vpop.f32.mrf.mxu0
    %3695 = vdwg.mxu0
    %v3696 = vadd.f32 %v888, %v3280
    %v3697 = vadd.f32 %v889, %v3282
    %v3698 = vadd.f32 %v890, %v3362
    %v3699 = vadd.f32 %v891, %v3364
    %v3700 = vxor.u32 %v3696, 2147483648
    %v3701 = vxor.u32 %v3697, 2147483648
    %v3702 = vxor.u32 %v3698, 2147483648
    %v3703 = vxor.u32 %v3699, 2147483648
    %v3704 = vmul.f32 %v3700, 1.442695
    %v3705 = vpow.pop %v3704
    %v3706 = vmul.f32 %v3701, 1.442695
    %v3707 = vpow.pop %v3706
    %v3708 = vmul.f32 %v3702, 1.442695
    %v3709 = vpow.pop %v3708
    %v3710 = vmul.f32 %v3703, 1.442695
    %v3711 = vpow.pop %v3710
    %v3712 = vadd.f32 %v3705, 1.0
    %v3713 = vadd.f32 %v3707, 1.0
    %v3714 = vadd.f32 %v3709, 1.0
    %v3715 = vadd.f32 %v3711, 1.0
    %v3716 = vrcp.pop %v3712
    %v3717 = vmul.f32 1.0, %v3716
    %v3718 = vrcp.pop %v3713
    %v3719 = vmul.f32 1.0, %v3718
    %v3720 = vrcp.pop %v3714
    %v3721 = vmul.f32 1.0, %v3720
    %v3722 = vrcp.pop %v3715
    %v3723 = vmul.f32 1.0, %v3722
    %v3724 = vadd.f32 %v892, %v3444
    %v3725 = vadd.f32 %v893, %v3446
    %v3726 = vadd.f32 %v894, %v3526
    %v3727 = vadd.f32 %v895, %v3528
    %v3728 = vxor.u32 %v3724, 2147483648
    %v3729 = vxor.u32 %v3725, 2147483648
    %v3730 = vxor.u32 %v3726, 2147483648
    %v3731 = vxor.u32 %v3727, 2147483648
    %v3732 = vmul.f32 %v3728, 1.442695
    %v3733 = vpow.pop %v3732
    %v3734 = vmul.f32 %v3729, 1.442695
    %v3735 = vpow.pop %v3734
    %v3736 = vmul.f32 %v3730, 1.442695
    %v3737 = vpow.pop %v3736
    %v3738 = vmul.f32 %v3731, 1.442695
    %v3739 = vpow.pop %v3738
    %v3740 = vadd.f32 %v3733, 1.0
    %v3741 = vadd.f32 %v3735, 1.0
    %v3742 = vadd.f32 %v3737, 1.0
    %v3743 = vadd.f32 %v3739, 1.0
    %v3744 = vrcp.pop %v3740
    %v3745 = vmul.f32 1.0, %v3744
    %v3746 = vrcp.pop %v3741
    %v3747 = vmul.f32 1.0, %v3746
    %v3748 = vrcp.pop %v3742
    %v3749 = vmul.f32 1.0, %v3748
    %v3750 = vrcp.pop %v3743
    %v3751 = vmul.f32 1.0, %v3750
    %v3753 = vlaneseq
    %v3754 = vshrl.u32 %v3753, 7
    %v3755 = vsub.s32 0, %v3754
    %v3756 = vrot.slane %v887, %v3755
    %v3757 = vlaneseq
    %v3758 = vshrl.u32 %v3757, 7
    %v3759 = vsub.s32 1, %v3758
    %v3760 = vrot.slane %v887, %v3759
    %v3761 = vlaneseq
    %v3762 = vshrl.u32 %v3761, 7
    %v3763 = vsub.s32 2, %v3762
    %v3764 = vrot.slane %v887, %v3763
    %v3765 = vlaneseq
    %v3766 = vshrl.u32 %v3765, 7
    %v3767 = vsub.s32 3, %v3766
    %v3768 = vrot.slane %v887, %v3767
    %v3773 = vadd.f32 %v3608, %v3756
    %v3774 = vadd.f32 %v3610, %v3760
    %v3775 = vadd.f32 %v3690, %v3764
    %v3776 = vadd.f32 %v3692, %v3768
    %v3777 = vmul.f32 %v3717, %v3773
    %v3778 = vmul.f32 %v3719, %v3774
    %v3779 = vmul.f32 %v3721, %v3775
    %v3780 = vmul.f32 %v3723, %v3776
    %v3781 = vadd.f32 %v896, %v3777
    %v3782 = vadd.f32 %v897, %v3778
    %v3783 = vadd.f32 %v898, %v3779
    %v3784 = vadd.f32 %v899, %v3780
    %v3785 = vtanh.pop %v3781
    %v3786 = vtanh.pop %v3782
    %v3787 = vtanh.pop %v3783
    %v3788 = vtanh.pop %v3784
    %v3789 = vsub.f32 1.0, %v3745
    %v3790 = vsub.f32 1.0, %v3747
    %v3791 = vsub.f32 1.0, %v3749
    %v3792 = vsub.f32 1.0, %v3751
    %v3793 = vmul.f32 %v3789, %v3785
    %v3794 = vmul.f32 %v3790, %v3786
    %v3795 = vmul.f32 %v3791, %v3787
    %v3796 = vmul.f32 %v3792, %v3788
    %v3797 = vmul.f32 %v3745, 0.0
    %v3798 = vmul.f32 %v3747, 0.0
    %v3799 = vmul.f32 %v3749, 0.0
    %v3800 = vmul.f32 %v3751, 0.0
    %v3801 = vadd.f32 %v3793, %v3797
    %v3802 = vadd.f32 %v3794, %v3798
    %v3803 = vadd.f32 %v3795, %v3799
    %v3804 = vadd.f32 %v3796, %v3800
    %s3805 = scalar_lea.vmem [#allocation2], 96
    %v3806 = vld [vmem:[%s3805] sm:$0xff]
    %v3807 = vld [vmem:[%s3805 + $0x8] sm:$0xff]
    %v3808 = vld [vmem:[%s3805 + $0x10] sm:$0xff]
    %v3809 = vld [vmem:[%s3805 + $0x18] sm:$0xff]
    %v3810 = vld [vmem:[%s3805 + $0x20] sm:$0xff]
    %v3811 = vld [vmem:[%s3805 + $0x28] sm:$0xff]
    %v3812 = vld [vmem:[%s3805 + $0x30] sm:$0xff]
    %v3813 = vld [vmem:[%s3805 + $0x38] sm:$0xff]
    %v3814 = vld [vmem:[%s3805 + $0x40] sm:$0xff]
    %v3815 = vld [vmem:[%s3805 + $0x48] sm:$0xff]
    %v3816 = vld [vmem:[%s3805 + $0x50] sm:$0xff]
    %v3817 = vld [vmem:[%s3805 + $0x58] sm:$0xff]
    %v3818 = vpack.c.bf16 %v3801, %v3801
    %v3819 = vpack.c.bf16 %v3802, %v3802
    %v3820 = vpack.c.bf16 %v3803, %v3803
    %v3821 = vpack.c.bf16 %v3804, %v3804
    %3822 = vmatprep.subr.bf16.mxu0 %v2521
    %3823 = vmatpush1.bf16.msra.mxu0 %v2520
    %3824 = vmatprep.subr.bf16.mxu0 %v2509
    %3825 = vmatpush1.bf16.msra.mxu0 %v2508
    %3826 = vmatprep.subr.bf16.mxu0 %v2497
    %3827 = vmatpush1.bf16.msra.mxu0 %v2496
    %3828 = vmatprep.subr.bf16.mxu0 %v2485
    %3829 = vmatpush1.bf16.msra.mxu0 %v2484
    %3830 = vmatprep.subr.bf16.mxu0 %v2473
    %3831 = vmatpush1.bf16.msra.mxu0 %v2472
    %3832 = vmatprep.subr.bf16.mxu0 %v2461
    %3833 = vmatpush1.bf16.msra.mxu0 %v2460
    %3834 = vmatprep.subr.bf16.mxu0 %v2449
    %3835 = vmatpush1.bf16.msra.mxu0 %v2448
    %3836 = vmatprep.subr.bf16.mxu0 %v2437
    %3837 = vmatpush1.bf16.msra.mxu0 %v2436
    %3838 = vmatprep.subr.bf16.mxu0 %v2617
    %3839 = vmatpush2.bf16.msra.mxu0 %v2616
    %3840 = vmatprep.subr.bf16.mxu0 %v2605
    %3841 = vmatpush2.bf16.msra.mxu0 %v2604
    %3842 = vmatprep.subr.bf16.mxu0 %v2593
    %3843 = vmatpush2.bf16.msra.mxu0 %v2592
    %3844 = vmatprep.subr.bf16.mxu0 %v2581
    %3845 = vmatpush2.bf16.msra.mxu0 %v2580
    %3846 = vmatprep.subr.bf16.mxu0 %v2569
    %3847 = vmatpush2.bf16.msra.mxu0 %v2568
    %3848 = vmatprep.subr.bf16.mxu0 %v2557
    %3849 = vmatpush2.bf16.msra.mxu0 %v2556
    %3850 = vmatprep.subr.bf16.mxu0 %v2545
    %3851 = vmatpush2.bf16.msra.mxu0 %v2544
    %3852 = vmatprep.subr.bf16.mxu0 %v2533
    %3853 = vmatpush2.bf16.msra.mxu0 %v2532
    %3854 = vmatprep.mubr.bf16.mxu0 %v3819
    %3855 = vmatmul.mubr.bf16.gmra.mxu0 %v3818
    %v3856 = vpop.f32.mrf.mxu0
    %v3857 = vadd.f32 0.0, %v3856
    %v3858 = vpop.f32.mrf.mxu0
    %v3859 = vadd.f32 0.0, %v3858
    %v3860 = vpop.f32.mrf.mxu0
    %v3861 = vpop.f32.mrf.mxu0
    %3862 = vdwg.mxu0
    %3863 = vmatprep.subr.bf16.mxu0 %v2713
    %3864 = vmatpush1.bf16.msra.mxu0 %v2712
    %3865 = vmatprep.subr.bf16.mxu0 %v2701
    %3866 = vmatpush1.bf16.msra.mxu0 %v2700
    %3867 = vmatprep.subr.bf16.mxu0 %v2689
    %3868 = vmatpush1.bf16.msra.mxu0 %v2688
    %3869 = vmatprep.subr.bf16.mxu0 %v2677
    %3870 = vmatpush1.bf16.msra.mxu0 %v2676
    %3871 = vmatprep.subr.bf16.mxu0 %v2665
    %3872 = vmatpush1.bf16.msra.mxu0 %v2664
    %3873 = vmatprep.subr.bf16.mxu0 %v2653
    %3874 = vmatpush1.bf16.msra.mxu0 %v2652
    %3875 = vmatprep.subr.bf16.mxu0 %v2641
    %3876 = vmatpush1.bf16.msra.mxu0 %v2640
    %3877 = vmatprep.subr.bf16.mxu0 %v2629
    %3878 = vmatpush1.bf16.msra.mxu0 %v2628
    %3879 = vmatprep.subr.bf16.mxu0 %v2809
    %3880 = vmatpush2.bf16.msra.mxu0 %v2808
    %3881 = vmatprep.subr.bf16.mxu0 %v2797
    %3882 = vmatpush2.bf16.msra.mxu0 %v2796
    %3883 = vmatprep.subr.bf16.mxu0 %v2785
    %3884 = vmatpush2.bf16.msra.mxu0 %v2784
    %3885 = vmatprep.subr.bf16.mxu0 %v2773
    %3886 = vmatpush2.bf16.msra.mxu0 %v2772
    %3887 = vmatprep.subr.bf16.mxu0 %v2761
    %3888 = vmatpush2.bf16.msra.mxu0 %v2760
    %3889 = vmatprep.subr.bf16.mxu0 %v2749
    %3890 = vmatpush2.bf16.msra.mxu0 %v2748
    %3891 = vmatprep.subr.bf16.mxu0 %v2737
    %3892 = vmatpush2.bf16.msra.mxu0 %v2736
    %3893 = vmatprep.subr.bf16.mxu0 %v2725
    %3894 = vmatpush2.bf16.msra.mxu0 %v2724
    %3895 = vmatprep.mubr.bf16.mxu0 %v3821
    %3896 = vmatmul.mubr.bf16.gmra.mxu0 %v3820
    %v3897 = vpop.f32.mrf.mxu0
    %v3898 = vadd.f32 %v3857, %v3897
    %v3899 = vpop.f32.mrf.mxu0
    %v3900 = vadd.f32 %v3859, %v3899
    %v3901 = vpop.f32.mrf.mxu0
    %v3902 = vpop.f32.mrf.mxu0
    %3903 = vdwg.mxu0
    %3904 = vmatprep.subr.bf16.mxu0 %v2523
    %3905 = vmatpush1.bf16.msra.mxu0 %v2522
    %3906 = vmatprep.subr.bf16.mxu0 %v2511
    %3907 = vmatpush1.bf16.msra.mxu0 %v2510
    %3908 = vmatprep.subr.bf16.mxu0 %v2499
    %3909 = vmatpush1.bf16.msra.mxu0 %v2498
    %3910 = vmatprep.subr.bf16.mxu0 %v2487
    %3911 = vmatpush1.bf16.msra.mxu0 %v2486
    %3912 = vmatprep.subr.bf16.mxu0 %v2475
    %3913 = vmatpush1.bf16.msra.mxu0 %v2474
    %3914 = vmatprep.subr.bf16.mxu0 %v2463
    %3915 = vmatpush1.bf16.msra.mxu0 %v2462
    %3916 = vmatprep.subr.bf16.mxu0 %v2451
    %3917 = vmatpush1.bf16.msra.mxu0 %v2450
    %3918 = vmatprep.subr.bf16.mxu0 %v2439
    %3919 = vmatpush1.bf16.msra.mxu0 %v2438
    %3920 = vmatprep.subr.bf16.mxu0 %v2619
    %3921 = vmatpush2.bf16.msra.mxu0 %v2618
    %3922 = vmatprep.subr.bf16.mxu0 %v2607
    %3923 = vmatpush2.bf16.msra.mxu0 %v2606
    %3924 = vmatprep.subr.bf16.mxu0 %v2595
    %3925 = vmatpush2.bf16.msra.mxu0 %v2594
    %3926 = vmatprep.subr.bf16.mxu0 %v2583
    %3927 = vmatpush2.bf16.msra.mxu0 %v2582
    %3928 = vmatprep.subr.bf16.mxu0 %v2571
    %3929 = vmatpush2.bf16.msra.mxu0 %v2570
    %3930 = vmatprep.subr.bf16.mxu0 %v2559
    %3931 = vmatpush2.bf16.msra.mxu0 %v2558
    %3932 = vmatprep.subr.bf16.mxu0 %v2547
    %3933 = vmatpush2.bf16.msra.mxu0 %v2546
    %3934 = vmatprep.subr.bf16.mxu0 %v2535
    %3935 = vmatpush2.bf16.msra.mxu0 %v2534
    %3936 = vmatprep.mubr.bf16.mxu0 %v3819
    %3937 = vmatmul.mubr.bf16.gmra.mxu0 %v3818
    %v3938 = vpop.f32.mrf.mxu0
    %v3939 = vadd.f32 0.0, %v3938
    %v3940 = vpop.f32.mrf.mxu0
    %v3941 = vadd.f32 0.0, %v3940
    %v3942 = vpop.f32.mrf.mxu0
    %v3943 = vpop.f32.mrf.mxu0
    %3944 = vdwg.mxu0
    %3945 = vmatprep.subr.bf16.mxu0 %v2715
    %3946 = vmatpush1.bf16.msra.mxu0 %v2714
    %3947 = vmatprep.subr.bf16.mxu0 %v2703
    %3948 = vmatpush1.bf16.msra.mxu0 %v2702
    %3949 = vmatprep.subr.bf16.mxu0 %v2691
    %3950 = vmatpush1.bf16.msra.mxu0 %v2690
    %3951 = vmatprep.subr.bf16.mxu0 %v2679
    %3952 = vmatpush1.bf16.msra.mxu0 %v2678
    %3953 = vmatprep.subr.bf16.mxu0 %v2667
    %3954 = vmatpush1.bf16.msra.mxu0 %v2666
    %3955 = vmatprep.subr.bf16.mxu0 %v2655
    %3956 = vmatpush1.bf16.msra.mxu0 %v2654
    %3957 = vmatprep.subr.bf16.mxu0 %v2643
    %3958 = vmatpush1.bf16.msra.mxu0 %v2642
    %3959 = vmatprep.subr.bf16.mxu0 %v2631
    %3960 = vmatpush1.bf16.msra.mxu0 %v2630
    %3961 = vmatprep.subr.bf16.mxu0 %v2811
    %3962 = vmatpush2.bf16.msra.mxu0 %v2810
    %3963 = vmatprep.subr.bf16.mxu0 %v2799
    %3964 = vmatpush2.bf16.msra.mxu0 %v2798
    %3965 = vmatprep.subr.bf16.mxu0 %v2787
    %3966 = vmatpush2.bf16.msra.mxu0 %v2786
    %3967 = vmatprep.subr.bf16.mxu0 %v2775
    %3968 = vmatpush2.bf16.msra.mxu0 %v2774
    %3969 = vmatprep.subr.bf16.mxu0 %v2763
    %3970 = vmatpush2.bf16.msra.mxu0 %v2762
    %3971 = vmatprep.subr.bf16.mxu0 %v2751
    %3972 = vmatpush2.bf16.msra.mxu0 %v2750
    %3973 = vmatprep.subr.bf16.mxu0 %v2739
    %3974 = vmatpush2.bf16.msra.mxu0 %v2738
    %3975 = vmatprep.subr.bf16.mxu0 %v2727
    %3976 = vmatpush2.bf16.msra.mxu0 %v2726
    %3977 = vmatprep.mubr.bf16.mxu0 %v3821
    %3978 = vmatmul.mubr.bf16.gmra.mxu0 %v3820
    %v3979 = vpop.f32.mrf.mxu0
    %v3980 = vadd.f32 %v3939, %v3979
    %v3981 = vpop.f32.mrf.mxu0
    %v3982 = vadd.f32 %v3941, %v3981
    %v3983 = vpop.f32.mrf.mxu0
    %v3984 = vpop.f32.mrf.mxu0
    %3985 = vdwg.mxu0
    %3986 = vmatprep.subr.bf16.mxu0 %v2525
    %3987 = vmatpush1.bf16.msra.mxu0 %v2524
    %3988 = vmatprep.subr.bf16.mxu0 %v2513
    %3989 = vmatpush1.bf16.msra.mxu0 %v2512
    %3990 = vmatprep.subr.bf16.mxu0 %v2501
    %3991 = vmatpush1.bf16.msra.mxu0 %v2500
    %3992 = vmatprep.subr.bf16.mxu0 %v2489
    %3993 = vmatpush1.bf16.msra.mxu0 %v2488
    %3994 = vmatprep.subr.bf16.mxu0 %v2477
    %3995 = vmatpush1.bf16.msra.mxu0 %v2476
    %3996 = vmatprep.subr.bf16.mxu0 %v2465
    %3997 = vmatpush1.bf16.msra.mxu0 %v2464
    %3998 = vmatprep.subr.bf16.mxu0 %v2453
    %3999 = vmatpush1.bf16.msra.mxu0 %v2452
    %4000 = vmatprep.subr.bf16.mxu0 %v2441
    %4001 = vmatpush1.bf16.msra.mxu0 %v2440
    %4002 = vmatprep.subr.bf16.mxu0 %v2621
    %4003 = vmatpush2.bf16.msra.mxu0 %v2620
    %4004 = vmatprep.subr.bf16.mxu0 %v2609
    %4005 = vmatpush2.bf16.msra.mxu0 %v2608
    %4006 = vmatprep.subr.bf16.mxu0 %v2597
    %4007 = vmatpush2.bf16.msra.mxu0 %v2596
    %4008 = vmatprep.subr.bf16.mxu0 %v2585
    %4009 = vmatpush2.bf16.msra.mxu0 %v2584
    %4010 = vmatprep.subr.bf16.mxu0 %v2573
    %4011 = vmatpush2.bf16.msra.mxu0 %v2572
    %4012 = vmatprep.subr.bf16.mxu0 %v2561
    %4013 = vmatpush2.bf16.msra.mxu0 %v2560
    %4014 = vmatprep.subr.bf16.mxu0 %v2549
    %4015 = vmatpush2.bf16.msra.mxu0 %v2548
    %4016 = vmatprep.subr.bf16.mxu0 %v2537
    %4017 = vmatpush2.bf16.msra.mxu0 %v2536
    %4018 = vmatprep.mubr.bf16.mxu0 %v3819
    %4019 = vmatmul.mubr.bf16.gmra.mxu0 %v3818
    %v4020 = vpop.f32.mrf.mxu0
    %v4021 = vadd.f32 0.0, %v4020
    %v4022 = vpop.f32.mrf.mxu0
    %v4023 = vadd.f32 0.0, %v4022
    %v4024 = vpop.f32.mrf.mxu0
    %v4025 = vpop.f32.mrf.mxu0
    %4026 = vdwg.mxu0
    %4027 = vmatprep.subr.bf16.mxu0 %v2717
    %4028 = vmatpush1.bf16.msra.mxu0 %v2716
    %4029 = vmatprep.subr.bf16.mxu0 %v2705
    %4030 = vmatpush1.bf16.msra.mxu0 %v2704
    %4031 = vmatprep.subr.bf16.mxu0 %v2693
    %4032 = vmatpush1.bf16.msra.mxu0 %v2692
    %4033 = vmatprep.subr.bf16.mxu0 %v2681
    %4034 = vmatpush1.bf16.msra.mxu0 %v2680
    %4035 = vmatprep.subr.bf16.mxu0 %v2669
    %4036 = vmatpush1.bf16.msra.mxu0 %v2668
    %4037 = vmatprep.subr.bf16.mxu0 %v2657
    %4038 = vmatpush1.bf16.msra.mxu0 %v2656
    %4039 = vmatprep.subr.bf16.mxu0 %v2645
    %4040 = vmatpush1.bf16.msra.mxu0 %v2644
    %4041 = vmatprep.subr.bf16.mxu0 %v2633
    %4042 = vmatpush1.bf16.msra.mxu0 %v2632
    %4043 = vmatprep.subr.bf16.mxu0 %v2813
    %4044 = vmatpush2.bf16.msra.mxu0 %v2812
    %4045 = vmatprep.subr.bf16.mxu0 %v2801
    %4046 = vmatpush2.bf16.msra.mxu0 %v2800
    %4047 = vmatprep.subr.bf16.mxu0 %v2789
    %4048 = vmatpush2.bf16.msra.mxu0 %v2788
    %4049 = vmatprep.subr.bf16.mxu0 %v2777
    %4050 = vmatpush2.bf16.msra.mxu0 %v2776
    %4051 = vmatprep.subr.bf16.mxu0 %v2765
    %4052 = vmatpush2.bf16.msra.mxu0 %v2764
    %4053 = vmatprep.subr.bf16.mxu0 %v2753
    %4054 = vmatpush2.bf16.msra.mxu0 %v2752
    %4055 = vmatprep.subr.bf16.mxu0 %v2741
    %4056 = vmatpush2.bf16.msra.mxu0 %v2740
    %4057 = vmatprep.subr.bf16.mxu0 %v2729
    %4058 = vmatpush2.bf16.msra.mxu0 %v2728
    %4059 = vmatprep.mubr.bf16.mxu0 %v3821
    %4060 = vmatmul.mubr.bf16.gmra.mxu0 %v3820
    %v4061 = vpop.f32.mrf.mxu0
    %v4062 = vadd.f32 %v4021, %v4061
    %v4063 = vpop.f32.mrf.mxu0
    %v4064 = vadd.f32 %v4023, %v4063
    %v4065 = vpop.f32.mrf.mxu0
    %v4066 = vpop.f32.mrf.mxu0
    %4067 = vdwg.mxu0
    %4068 = vmatprep.subr.bf16.mxu0 %v2527
    %4069 = vmatpush1.bf16.msra.mxu0 %v2526
    %4070 = vmatprep.subr.bf16.mxu0 %v2515
    %4071 = vmatpush1.bf16.msra.mxu0 %v2514
    %4072 = vmatprep.subr.bf16.mxu0 %v2503
    %4073 = vmatpush1.bf16.msra.mxu0 %v2502
    %4074 = vmatprep.subr.bf16.mxu0 %v2491
    %4075 = vmatpush1.bf16.msra.mxu0 %v2490
    %4076 = vmatprep.subr.bf16.mxu0 %v2479
    %4077 = vmatpush1.bf16.msra.mxu0 %v2478
    %4078 = vmatprep.subr.bf16.mxu0 %v2467
    %4079 = vmatpush1.bf16.msra.mxu0 %v2466
    %4080 = vmatprep.subr.bf16.mxu0 %v2455
    %4081 = vmatpush1.bf16.msra.mxu0 %v2454
    %4082 = vmatprep.subr.bf16.mxu0 %v2443
    %4083 = vmatpush1.bf16.msra.mxu0 %v2442
    %4084 = vmatprep.subr.bf16.mxu0 %v2623
    %4085 = vmatpush2.bf16.msra.mxu0 %v2622
    %4086 = vmatprep.subr.bf16.mxu0 %v2611
    %4087 = vmatpush2.bf16.msra.mxu0 %v2610
    %4088 = vmatprep.subr.bf16.mxu0 %v2599
    %4089 = vmatpush2.bf16.msra.mxu0 %v2598
    %4090 = vmatprep.subr.bf16.mxu0 %v2587
    %4091 = vmatpush2.bf16.msra.mxu0 %v2586
    %4092 = vmatprep.subr.bf16.mxu0 %v2575
    %4093 = vmatpush2.bf16.msra.mxu0 %v2574
    %4094 = vmatprep.subr.bf16.mxu0 %v2563
    %4095 = vmatpush2.bf16.msra.mxu0 %v2562
    %4096 = vmatprep.subr.bf16.mxu0 %v2551
    %4097 = vmatpush2.bf16.msra.mxu0 %v2550
    %4098 = vmatprep.subr.bf16.mxu0 %v2539
    %4099 = vmatpush2.bf16.msra.mxu0 %v2538
    %4100 = vmatprep.mubr.bf16.mxu0 %v3819
    %4101 = vmatmul.mubr.bf16.gmra.mxu0 %v3818
    %v4102 = vpop.f32.mrf.mxu0
    %v4103 = vadd.f32 0.0, %v4102
    %v4104 = vpop.f32.mrf.mxu0
    %v4105 = vadd.f32 0.0, %v4104
    %v4106 = vpop.f32.mrf.mxu0
    %v4107 = vpop.f32.mrf.mxu0
    %4108 = vdwg.mxu0
    %4109 = vmatprep.subr.bf16.mxu0 %v2719
    %4110 = vmatpush1.bf16.msra.mxu0 %v2718
    %4111 = vmatprep.subr.bf16.mxu0 %v2707
    %4112 = vmatpush1.bf16.msra.mxu0 %v2706
    %4113 = vmatprep.subr.bf16.mxu0 %v2695
    %4114 = vmatpush1.bf16.msra.mxu0 %v2694
    %4115 = vmatprep.subr.bf16.mxu0 %v2683
    %4116 = vmatpush1.bf16.msra.mxu0 %v2682
    %4117 = vmatprep.subr.bf16.mxu0 %v2671
    %4118 = vmatpush1.bf16.msra.mxu0 %v2670
    %4119 = vmatprep.subr.bf16.mxu0 %v2659
    %4120 = vmatpush1.bf16.msra.mxu0 %v2658
    %4121 = vmatprep.subr.bf16.mxu0 %v2647
    %4122 = vmatpush1.bf16.msra.mxu0 %v2646
    %4123 = vmatprep.subr.bf16.mxu0 %v2635
    %4124 = vmatpush1.bf16.msra.mxu0 %v2634
    %4125 = vmatprep.subr.bf16.mxu0 %v2815
    %4126 = vmatpush2.bf16.msra.mxu0 %v2814
    %4127 = vmatprep.subr.bf16.mxu0 %v2803
    %4128 = vmatpush2.bf16.msra.mxu0 %v2802
    %4129 = vmatprep.subr.bf16.mxu0 %v2791
    %4130 = vmatpush2.bf16.msra.mxu0 %v2790
    %4131 = vmatprep.subr.bf16.mxu0 %v2779
    %4132 = vmatpush2.bf16.msra.mxu0 %v2778
    %4133 = vmatprep.subr.bf16.mxu0 %v2767
    %4134 = vmatpush2.bf16.msra.mxu0 %v2766
    %4135 = vmatprep.subr.bf16.mxu0 %v2755
    %4136 = vmatpush2.bf16.msra.mxu0 %v2754
    %4137 = vmatprep.subr.bf16.mxu0 %v2743
    %4138 = vmatpush2.bf16.msra.mxu0 %v2742
    %4139 = vmatprep.subr.bf16.mxu0 %v2731
    %4140 = vmatpush2.bf16.msra.mxu0 %v2730
    %4141 = vmatprep.mubr.bf16.mxu0 %v3821
    %4142 = vmatmul.mubr.bf16.gmra.mxu0 %v3820
    %v4143 = vpop.f32.mrf.mxu0
    %v4144 = vadd.f32 %v4103, %v4143
    %v4145 = vpop.f32.mrf.mxu0
    %v4146 = vadd.f32 %v4105, %v4145
    %v4147 = vpop.f32.mrf.mxu0
    %v4148 = vpop.f32.mrf.mxu0
    %4149 = vdwg.mxu0
    %4150 = vmatprep.subr.bf16.mxu0 %v2529
    %4151 = vmatpush1.bf16.msra.mxu0 %v2528
    %4152 = vmatprep.subr.bf16.mxu0 %v2517
    %4153 = vmatpush1.bf16.msra.mxu0 %v2516
    %4154 = vmatprep.subr.bf16.mxu0 %v2505
    %4155 = vmatpush1.bf16.msra.mxu0 %v2504
    %4156 = vmatprep.subr.bf16.mxu0 %v2493
    %4157 = vmatpush1.bf16.msra.mxu0 %v2492
    %4158 = vmatprep.subr.bf16.mxu0 %v2481
    %4159 = vmatpush1.bf16.msra.mxu0 %v2480
    %4160 = vmatprep.subr.bf16.mxu0 %v2469
    %4161 = vmatpush1.bf16.msra.mxu0 %v2468
    %4162 = vmatprep.subr.bf16.mxu0 %v2457
    %4163 = vmatpush1.bf16.msra.mxu0 %v2456
    %4164 = vmatprep.subr.bf16.mxu0 %v2445
    %4165 = vmatpush1.bf16.msra.mxu0 %v2444
    %4166 = vmatprep.subr.bf16.mxu0 %v2625
    %4167 = vmatpush2.bf16.msra.mxu0 %v2624
    %4168 = vmatprep.subr.bf16.mxu0 %v2613
    %4169 = vmatpush2.bf16.msra.mxu0 %v2612
    %4170 = vmatprep.subr.bf16.mxu0 %v2601
    %4171 = vmatpush2.bf16.msra.mxu0 %v2600
    %4172 = vmatprep.subr.bf16.mxu0 %v2589
    %4173 = vmatpush2.bf16.msra.mxu0 %v2588
    %4174 = vmatprep.subr.bf16.mxu0 %v2577
    %4175 = vmatpush2.bf16.msra.mxu0 %v2576
    %4176 = vmatprep.subr.bf16.mxu0 %v2565
    %4177 = vmatpush2.bf16.msra.mxu0 %v2564
    %4178 = vmatprep.subr.bf16.mxu0 %v2553
    %4179 = vmatpush2.bf16.msra.mxu0 %v2552
    %4180 = vmatprep.subr.bf16.mxu0 %v2541
    %4181 = vmatpush2.bf16.msra.mxu0 %v2540
    %4182 = vmatprep.mubr.bf16.mxu0 %v3819
    %4183 = vmatmul.mubr.bf16.gmra.mxu0 %v3818
    %v4184 = vpop.f32.mrf.mxu0
    %v4185 = vadd.f32 0.0, %v4184
    %v4186 = vpop.f32.mrf.mxu0
    %v4187 = vadd.f32 0.0, %v4186
    %v4188 = vpop.f32.mrf.mxu0
    %v4189 = vpop.f32.mrf.mxu0
    %4190 = vdwg.mxu0
    %4191 = vmatprep.subr.bf16.mxu0 %v2721
    %4192 = vmatpush1.bf16.msra.mxu0 %v2720
    %4193 = vmatprep.subr.bf16.mxu0 %v2709
    %4194 = vmatpush1.bf16.msra.mxu0 %v2708
    %4195 = vmatprep.subr.bf16.mxu0 %v2697
    %4196 = vmatpush1.bf16.msra.mxu0 %v2696
    %4197 = vmatprep.subr.bf16.mxu0 %v2685
    %4198 = vmatpush1.bf16.msra.mxu0 %v2684
    %4199 = vmatprep.subr.bf16.mxu0 %v2673
    %4200 = vmatpush1.bf16.msra.mxu0 %v2672
    %4201 = vmatprep.subr.bf16.mxu0 %v2661
    %4202 = vmatpush1.bf16.msra.mxu0 %v2660
    %4203 = vmatprep.subr.bf16.mxu0 %v2649
    %4204 = vmatpush1.bf16.msra.mxu0 %v2648
    %4205 = vmatprep.subr.bf16.mxu0 %v2637
    %4206 = vmatpush1.bf16.msra.mxu0 %v2636
    %4207 = vmatprep.subr.bf16.mxu0 %v2817
    %4208 = vmatpush2.bf16.msra.mxu0 %v2816
    %4209 = vmatprep.subr.bf16.mxu0 %v2805
    %4210 = vmatpush2.bf16.msra.mxu0 %v2804
    %4211 = vmatprep.subr.bf16.mxu0 %v2793
    %4212 = vmatpush2.bf16.msra.mxu0 %v2792
    %4213 = vmatprep.subr.bf16.mxu0 %v2781
    %4214 = vmatpush2.bf16.msra.mxu0 %v2780
    %4215 = vmatprep.subr.bf16.mxu0 %v2769
    %4216 = vmatpush2.bf16.msra.mxu0 %v2768
    %4217 = vmatprep.subr.bf16.mxu0 %v2757
    %4218 = vmatpush2.bf16.msra.mxu0 %v2756
    %4219 = vmatprep.subr.bf16.mxu0 %v2745
    %4220 = vmatpush2.bf16.msra.mxu0 %v2744
    %4221 = vmatprep.subr.bf16.mxu0 %v2733
    %4222 = vmatpush2.bf16.msra.mxu0 %v2732
    %4223 = vmatprep.mubr.bf16.mxu0 %v3821
    %4224 = vmatmul.mubr.bf16.gmra.mxu0 %v3820
    %v4225 = vpop.f32.mrf.mxu0
    %v4226 = vadd.f32 %v4185, %v4225
    %v4227 = vpop.f32.mrf.mxu0
    %v4228 = vadd.f32 %v4187, %v4227
    %v4229 = vpop.f32.mrf.mxu0
    %v4230 = vpop.f32.mrf.mxu0
    %4231 = vdwg.mxu0
    %4232 = vmatprep.subr.bf16.mxu0 %v2531
    %4233 = vmatpush1.bf16.msra.mxu0 %v2530
    %4234 = vmatprep.subr.bf16.mxu0 %v2519
    %4235 = vmatpush1.bf16.msra.mxu0 %v2518
    %4236 = vmatprep.subr.bf16.mxu0 %v2507
    %4237 = vmatpush1.bf16.msra.mxu0 %v2506
    %4238 = vmatprep.subr.bf16.mxu0 %v2495
    %4239 = vmatpush1.bf16.msra.mxu0 %v2494
    %4240 = vmatprep.subr.bf16.mxu0 %v2483
    %4241 = vmatpush1.bf16.msra.mxu0 %v2482
    %4242 = vmatprep.subr.bf16.mxu0 %v2471
    %4243 = vmatpush1.bf16.msra.mxu0 %v2470
    %4244 = vmatprep.subr.bf16.mxu0 %v2459
    %4245 = vmatpush1.bf16.msra.mxu0 %v2458
    %4246 = vmatprep.subr.bf16.mxu0 %v2447
    %4247 = vmatpush1.bf16.msra.mxu0 %v2446
    %4248 = vmatprep.subr.bf16.mxu0 %v2627
    %4249 = vmatpush2.bf16.msra.mxu0 %v2626
    %4250 = vmatprep.subr.bf16.mxu0 %v2615
    %4251 = vmatpush2.bf16.msra.mxu0 %v2614
    %4252 = vmatprep.subr.bf16.mxu0 %v2603
    %4253 = vmatpush2.bf16.msra.mxu0 %v2602
    %4254 = vmatprep.subr.bf16.mxu0 %v2591
    %4255 = vmatpush2.bf16.msra.mxu0 %v2590
    %4256 = vmatprep.subr.bf16.mxu0 %v2579
    %4257 = vmatpush2.bf16.msra.mxu0 %v2578
    %4258 = vmatprep.subr.bf16.mxu0 %v2567
    %4259 = vmatpush2.bf16.msra.mxu0 %v2566
    %4260 = vmatprep.subr.bf16.mxu0 %v2555
    %4261 = vmatpush2.bf16.msra.mxu0 %v2554
    %4262 = vmatprep.subr.bf16.mxu0 %v2543
    %4263 = vmatpush2.bf16.msra.mxu0 %v2542
    %4264 = vmatprep.mubr.bf16.mxu0 %v3819
    %4265 = vmatmul.mubr.bf16.gmra.mxu0 %v3818
    %v4266 = vpop.f32.mrf.mxu0
    %v4267 = vadd.f32 0.0, %v4266
    %v4268 = vpop.f32.mrf.mxu0
    %v4269 = vadd.f32 0.0, %v4268
    %v4270 = vpop.f32.mrf.mxu0
    %v4271 = vpop.f32.mrf.mxu0
    %4272 = vdwg.mxu0
    %4273 = vmatprep.subr.bf16.mxu0 %v2723
    %4274 = vmatpush1.bf16.msra.mxu0 %v2722
    %4275 = vmatprep.subr.bf16.mxu0 %v2711
    %4276 = vmatpush1.bf16.msra.mxu0 %v2710
    %4277 = vmatprep.subr.bf16.mxu0 %v2699
    %4278 = vmatpush1.bf16.msra.mxu0 %v2698
    %4279 = vmatprep.subr.bf16.mxu0 %v2687
    %4280 = vmatpush1.bf16.msra.mxu0 %v2686
    %4281 = vmatprep.subr.bf16.mxu0 %v2675
    %4282 = vmatpush1.bf16.msra.mxu0 %v2674
    %4283 = vmatprep.subr.bf16.mxu0 %v2663
    %4284 = vmatpush1.bf16.msra.mxu0 %v2662
    %4285 = vmatprep.subr.bf16.mxu0 %v2651
    %4286 = vmatpush1.bf16.msra.mxu0 %v2650
    %4287 = vmatprep.subr.bf16.mxu0 %v2639
    %4288 = vmatpush1.bf16.msra.mxu0 %v2638
    %4289 = vmatprep.subr.bf16.mxu0 %v2819
    %4290 = vmatpush2.bf16.msra.mxu0 %v2818
    %4291 = vmatprep.subr.bf16.mxu0 %v2807
    %4292 = vmatpush2.bf16.msra.mxu0 %v2806
    %4293 = vmatprep.subr.bf16.mxu0 %v2795
    %4294 = vmatpush2.bf16.msra.mxu0 %v2794
    %4295 = vmatprep.subr.bf16.mxu0 %v2783
    %4296 = vmatpush2.bf16.msra.mxu0 %v2782
    %4297 = vmatprep.subr.bf16.mxu0 %v2771
    %4298 = vmatpush2.bf16.msra.mxu0 %v2770
    %4299 = vmatprep.subr.bf16.mxu0 %v2759
    %4300 = vmatpush2.bf16.msra.mxu0 %v2758
    %4301 = vmatprep.subr.bf16.mxu0 %v2747
    %4302 = vmatpush2.bf16.msra.mxu0 %v2746
    %4303 = vmatprep.subr.bf16.mxu0 %v2735
    %4304 = vmatpush2.bf16.msra.mxu0 %v2734
    %4305 = vmatprep.mubr.bf16.mxu0 %v3821
    %4306 = vmatmul.mubr.bf16.gmra.mxu0 %v3820
    %v4307 = vpop.f32.mrf.mxu0
    %v4308 = vadd.f32 %v4267, %v4307
    %v4309 = vpop.f32.mrf.mxu0
    %v4310 = vadd.f32 %v4269, %v4309
    %v4311 = vpop.f32.mrf.mxu0
    %v4312 = vpop.f32.mrf.mxu0
    %4313 = vdwg.mxu0
    %v4314 = vadd.f32 %v3806, %v3898
    %v4315 = vadd.f32 %v3807, %v3900
    %v4316 = vadd.f32 %v3808, %v3980
    %v4317 = vadd.f32 %v3809, %v3982
    %v4318 = vxor.u32 %v4314, 2147483648
    %v4319 = vxor.u32 %v4315, 2147483648
    %v4320 = vxor.u32 %v4316, 2147483648
    %v4321 = vxor.u32 %v4317, 2147483648
    %v4322 = vmul.f32 %v4318, 1.442695
    %v4323 = vpow.pop %v4322
    %v4324 = vmul.f32 %v4319, 1.442695
    %v4325 = vpow.pop %v4324
    %v4326 = vmul.f32 %v4320, 1.442695
    %v4327 = vpow.pop %v4326
    %v4328 = vmul.f32 %v4321, 1.442695
    %v4329 = vpow.pop %v4328
    %v4330 = vadd.f32 %v4323, 1.0
    %v4331 = vadd.f32 %v4325, 1.0
    %v4332 = vadd.f32 %v4327, 1.0
    %v4333 = vadd.f32 %v4329, 1.0
    %v4334 = vrcp.pop %v4330
    %v4335 = vmul.f32 1.0, %v4334
    %v4336 = vrcp.pop %v4331
    %v4337 = vmul.f32 1.0, %v4336
    %v4338 = vrcp.pop %v4332
    %v4339 = vmul.f32 1.0, %v4338
    %v4340 = vrcp.pop %v4333
    %v4341 = vmul.f32 1.0, %v4340
    %v4342 = vadd.f32 %v3810, %v4062
    %v4343 = vadd.f32 %v3811, %v4064
    %v4344 = vadd.f32 %v3812, %v4144
    %v4345 = vadd.f32 %v3813, %v4146
    %v4346 = vxor.u32 %v4342, 2147483648
    %v4347 = vxor.u32 %v4343, 2147483648
    %v4348 = vxor.u32 %v4344, 2147483648
    %v4349 = vxor.u32 %v4345, 2147483648
    %v4350 = vmul.f32 %v4346, 1.442695
    %v4351 = vpow.pop %v4350
    %v4352 = vmul.f32 %v4347, 1.442695
    %v4353 = vpow.pop %v4352
    %v4354 = vmul.f32 %v4348, 1.442695
    %v4355 = vpow.pop %v4354
    %v4356 = vmul.f32 %v4349, 1.442695
    %v4357 = vpow.pop %v4356
    %v4358 = vadd.f32 %v4351, 1.0
    %v4359 = vadd.f32 %v4353, 1.0
    %v4360 = vadd.f32 %v4355, 1.0
    %v4361 = vadd.f32 %v4357, 1.0
    %v4362 = vrcp.pop %v4358
    %v4363 = vmul.f32 1.0, %v4362
    %v4364 = vrcp.pop %v4359
    %v4365 = vmul.f32 1.0, %v4364
    %v4366 = vrcp.pop %v4360
    %v4367 = vmul.f32 1.0, %v4366
    %v4368 = vrcp.pop %v4361
    %v4369 = vmul.f32 1.0, %v4368
    %v4370 = vadd.f32 %v4226, %v3756
    %v4371 = vadd.f32 %v4228, %v3760
    %v4372 = vadd.f32 %v4308, %v3764
    %v4373 = vadd.f32 %v4310, %v3768
    %v4374 = vmul.f32 %v4335, %v4370
    %v4375 = vmul.f32 %v4337, %v4371
    %v4376 = vmul.f32 %v4339, %v4372
    %v4377 = vmul.f32 %v4341, %v4373
    %v4378 = vadd.f32 %v3814, %v4374
    %v4379 = vadd.f32 %v3815, %v4375
    %v4380 = vadd.f32 %v3816, %v4376
    %v4381 = vadd.f32 %v3817, %v4377
    %v4382 = vtanh.pop %v4378
    %v4383 = vtanh.pop %v4379
    %v4384 = vtanh.pop %v4380
    %v4385 = vtanh.pop %v4381
    %v4386 = vsub.f32 1.0, %v4363
    %v4387 = vsub.f32 1.0, %v4365
    %v4388 = vsub.f32 1.0, %v4367
    %v4389 = vsub.f32 1.0, %v4369
    %v4390 = vmul.f32 %v4386, %v4382
    %v4391 = vmul.f32 %v4387, %v4383
    %v4392 = vmul.f32 %v4388, %v4384
    %v4393 = vmul.f32 %v4389, %v4385
    %v4394 = vmul.f32 %v4363, %v3801
    %v4395 = vmul.f32 %v4365, %v3802
    %v4396 = vmul.f32 %v4367, %v3803
    %v4397 = vmul.f32 %v4369, %v3804
    %v4398 = vadd.f32 %v4390, %v4394
    %v4399 = vadd.f32 %v4391, %v4395
    %v4400 = vadd.f32 %v4392, %v4396
    %v4401 = vadd.f32 %v4393, %v4397
    %s4402 = scalar_lea.vmem [#allocation2], 192
    %v4403 = vld [vmem:[%s4402] sm:$0xff]
    %v4404 = vld [vmem:[%s4402 + $0x8] sm:$0xff]
    %v4405 = vld [vmem:[%s4402 + $0x10] sm:$0xff]
    %v4406 = vld [vmem:[%s4402 + $0x18] sm:$0xff]
    %v4407 = vld [vmem:[%s4402 + $0x20] sm:$0xff]
    %v4408 = vld [vmem:[%s4402 + $0x28] sm:$0xff]
    %v4409 = vld [vmem:[%s4402 + $0x30] sm:$0xff]
    %v4410 = vld [vmem:[%s4402 + $0x38] sm:$0xff]
    %v4411 = vld [vmem:[%s4402 + $0x40] sm:$0xff]
    %v4412 = vld [vmem:[%s4402 + $0x48] sm:$0xff]
    %v4413 = vld [vmem:[%s4402 + $0x50] sm:$0xff]
    %v4414 = vld [vmem:[%s4402 + $0x58] sm:$0xff]
    %v4415 = vpack.c.bf16 %v4398, %v4398
    %v4416 = vpack.c.bf16 %v4399, %v4399
    %v4417 = vpack.c.bf16 %v4400, %v4400
    %v4418 = vpack.c.bf16 %v4401, %v4401
    %4419 = vmatprep.subr.bf16.mxu0 %v2521
    %4420 = vmatpush1.bf16.msra.mxu0 %v2520
    %4421 = vmatprep.subr.bf16.mxu0 %v2509
    %4422 = vmatpush1.bf16.msra.mxu0 %v2508
    %4423 = vmatprep.subr.bf16.mxu0 %v2497
    %4424 = vmatpush1.bf16.msra.mxu0 %v2496
    %4425 = vmatprep.subr.bf16.mxu0 %v2485
    %4426 = vmatpush1.bf16.msra.mxu0 %v2484
    %4427 = vmatprep.subr.bf16.mxu0 %v2473
    %4428 = vmatpush1.bf16.msra.mxu0 %v2472
    %4429 = vmatprep.subr.bf16.mxu0 %v2461
    %4430 = vmatpush1.bf16.msra.mxu0 %v2460
    %4431 = vmatprep.subr.bf16.mxu0 %v2449
    %4432 = vmatpush1.bf16.msra.mxu0 %v2448
    %4433 = vmatprep.subr.bf16.mxu0 %v2437
    %4434 = vmatpush1.bf16.msra.mxu0 %v2436
    %4435 = vmatprep.subr.bf16.mxu0 %v2617
    %4436 = vmatpush2.bf16.msra.mxu0 %v2616
    %4437 = vmatprep.subr.bf16.mxu0 %v2605
    %4438 = vmatpush2.bf16.msra.mxu0 %v2604
    %4439 = vmatprep.subr.bf16.mxu0 %v2593
    %4440 = vmatpush2.bf16.msra.mxu0 %v2592
    %4441 = vmatprep.subr.bf16.mxu0 %v2581
    %4442 = vmatpush2.bf16.msra.mxu0 %v2580
    %4443 = vmatprep.subr.bf16.mxu0 %v2569
    %4444 = vmatpush2.bf16.msra.mxu0 %v2568
    %4445 = vmatprep.subr.bf16.mxu0 %v2557
    %4446 = vmatpush2.bf16.msra.mxu0 %v2556
    %4447 = vmatprep.subr.bf16.mxu0 %v2545
    %4448 = vmatpush2.bf16.msra.mxu0 %v2544
    %4449 = vmatprep.subr.bf16.mxu0 %v2533
    %4450 = vmatpush2.bf16.msra.mxu0 %v2532
    %4451 = vmatprep.mubr.bf16.mxu0 %v4416
    %4452 = vmatmul.mubr.bf16.gmra.mxu0 %v4415
    %v4453 = vpop.f32.mrf.mxu0
    %v4454 = vadd.f32 0.0, %v4453
    %v4455 = vpop.f32.mrf.mxu0
    %v4456 = vadd.f32 0.0, %v4455
    %v4457 = vpop.f32.mrf.mxu0
    %v4458 = vpop.f32.mrf.mxu0
    %4459 = vdwg.mxu0
    %4460 = vmatprep.subr.bf16.mxu0 %v2713
    %4461 = vmatpush1.bf16.msra.mxu0 %v2712
    %4462 = vmatprep.subr.bf16.mxu0 %v2701
    %4463 = vmatpush1.bf16.msra.mxu0 %v2700
    %4464 = vmatprep.subr.bf16.mxu0 %v2689
    %4465 = vmatpush1.bf16.msra.mxu0 %v2688
    %4466 = vmatprep.subr.bf16.mxu0 %v2677
    %4467 = vmatpush1.bf16.msra.mxu0 %v2676
    %4468 = vmatprep.subr.bf16.mxu0 %v2665
    %4469 = vmatpush1.bf16.msra.mxu0 %v2664
    %4470 = vmatprep.subr.bf16.mxu0 %v2653
    %4471 = vmatpush1.bf16.msra.mxu0 %v2652
    %4472 = vmatprep.subr.bf16.mxu0 %v2641
    %4473 = vmatpush1.bf16.msra.mxu0 %v2640
    %4474 = vmatprep.subr.bf16.mxu0 %v2629
    %4475 = vmatpush1.bf16.msra.mxu0 %v2628
    %4476 = vmatprep.subr.bf16.mxu0 %v2809
    %4477 = vmatpush2.bf16.msra.mxu0 %v2808
    %4478 = vmatprep.subr.bf16.mxu0 %v2797
    %4479 = vmatpush2.bf16.msra.mxu0 %v2796
    %4480 = vmatprep.subr.bf16.mxu0 %v2785
    %4481 = vmatpush2.bf16.msra.mxu0 %v2784
    %4482 = vmatprep.subr.bf16.mxu0 %v2773
    %4483 = vmatpush2.bf16.msra.mxu0 %v2772
    %4484 = vmatprep.subr.bf16.mxu0 %v2761
    %4485 = vmatpush2.bf16.msra.mxu0 %v2760
    %4486 = vmatprep.subr.bf16.mxu0 %v2749
    %4487 = vmatpush2.bf16.msra.mxu0 %v2748
    %4488 = vmatprep.subr.bf16.mxu0 %v2737
    %4489 = vmatpush2.bf16.msra.mxu0 %v2736
    %4490 = vmatprep.subr.bf16.mxu0 %v2725
    %4491 = vmatpush2.bf16.msra.mxu0 %v2724
    %4492 = vmatprep.mubr.bf16.mxu0 %v4418
    %4493 = vmatmul.mubr.bf16.gmra.mxu0 %v4417
    %v4494 = vpop.f32.mrf.mxu0
    %v4495 = vadd.f32 %v4454, %v4494
    %v4496 = vpop.f32.mrf.mxu0
    %v4497 = vadd.f32 %v4456, %v4496
    %v4498 = vpop.f32.mrf.mxu0
    %v4499 = vpop.f32.mrf.mxu0
    %4500 = vdwg.mxu0
    %4501 = vmatprep.subr.bf16.mxu0 %v2523
    %4502 = vmatpush1.bf16.msra.mxu0 %v2522
    %4503 = vmatprep.subr.bf16.mxu0 %v2511
    %4504 = vmatpush1.bf16.msra.mxu0 %v2510
    %4505 = vmatprep.subr.bf16.mxu0 %v2499
    %4506 = vmatpush1.bf16.msra.mxu0 %v2498
    %4507 = vmatprep.subr.bf16.mxu0 %v2487
    %4508 = vmatpush1.bf16.msra.mxu0 %v2486
    %4509 = vmatprep.subr.bf16.mxu0 %v2475
    %4510 = vmatpush1.bf16.msra.mxu0 %v2474
    %4511 = vmatprep.subr.bf16.mxu0 %v2463
    %4512 = vmatpush1.bf16.msra.mxu0 %v2462
    %4513 = vmatprep.subr.bf16.mxu0 %v2451
    %4514 = vmatpush1.bf16.msra.mxu0 %v2450
    %4515 = vmatprep.subr.bf16.mxu0 %v2439
    %4516 = vmatpush1.bf16.msra.mxu0 %v2438
    %4517 = vmatprep.subr.bf16.mxu0 %v2619
    %4518 = vmatpush2.bf16.msra.mxu0 %v2618
    %4519 = vmatprep.subr.bf16.mxu0 %v2607
    %4520 = vmatpush2.bf16.msra.mxu0 %v2606
    %4521 = vmatprep.subr.bf16.mxu0 %v2595
    %4522 = vmatpush2.bf16.msra.mxu0 %v2594
    %4523 = vmatprep.subr.bf16.mxu0 %v2583
    %4524 = vmatpush2.bf16.msra.mxu0 %v2582
    %4525 = vmatprep.subr.bf16.mxu0 %v2571
    %4526 = vmatpush2.bf16.msra.mxu0 %v2570
    %4527 = vmatprep.subr.bf16.mxu0 %v2559
    %4528 = vmatpush2.bf16.msra.mxu0 %v2558
    %4529 = vmatprep.subr.bf16.mxu0 %v2547
    %4530 = vmatpush2.bf16.msra.mxu0 %v2546
    %4531 = vmatprep.subr.bf16.mxu0 %v2535
    %4532 = vmatpush2.bf16.msra.mxu0 %v2534
    %4533 = vmatprep.mubr.bf16.mxu0 %v4416
    %4534 = vmatmul.mubr.bf16.gmra.mxu0 %v4415
    %v4535 = vpop.f32.mrf.mxu0
    %v4536 = vadd.f32 0.0, %v4535
    %v4537 = vpop.f32.mrf.mxu0
    %v4538 = vadd.f32 0.0, %v4537
    %v4539 = vpop.f32.mrf.mxu0
    %v4540 = vpop.f32.mrf.mxu0
    %4541 = vdwg.mxu0
    %4542 = vmatprep.subr.bf16.mxu0 %v2715
    %4543 = vmatpush1.bf16.msra.mxu0 %v2714
    %4544 = vmatprep.subr.bf16.mxu0 %v2703
    %4545 = vmatpush1.bf16.msra.mxu0 %v2702
    %4546 = vmatprep.subr.bf16.mxu0 %v2691
    %4547 = vmatpush1.bf16.msra.mxu0 %v2690
    %4548 = vmatprep.subr.bf16.mxu0 %v2679
    %4549 = vmatpush1.bf16.msra.mxu0 %v2678
    %4550 = vmatprep.subr.bf16.mxu0 %v2667
    %4551 = vmatpush1.bf16.msra.mxu0 %v2666
    %4552 = vmatprep.subr.bf16.mxu0 %v2655
    %4553 = vmatpush1.bf16.msra.mxu0 %v2654
    %4554 = vmatprep.subr.bf16.mxu0 %v2643
    %4555 = vmatpush1.bf16.msra.mxu0 %v2642
    %4556 = vmatprep.subr.bf16.mxu0 %v2631
    %4557 = vmatpush1.bf16.msra.mxu0 %v2630
    %4558 = vmatprep.subr.bf16.mxu0 %v2811
    %4559 = vmatpush2.bf16.msra.mxu0 %v2810
    %4560 = vmatprep.subr.bf16.mxu0 %v2799
    %4561 = vmatpush2.bf16.msra.mxu0 %v2798
    %4562 = vmatprep.subr.bf16.mxu0 %v2787
    %4563 = vmatpush2.bf16.msra.mxu0 %v2786
    %4564 = vmatprep.subr.bf16.mxu0 %v2775
    %4565 = vmatpush2.bf16.msra.mxu0 %v2774
    %4566 = vmatprep.subr.bf16.mxu0 %v2763
    %4567 = vmatpush2.bf16.msra.mxu0 %v2762
    %4568 = vmatprep.subr.bf16.mxu0 %v2751
    %4569 = vmatpush2.bf16.msra.mxu0 %v2750
    %4570 = vmatprep.subr.bf16.mxu0 %v2739
    %4571 = vmatpush2.bf16.msra.mxu0 %v2738
    %4572 = vmatprep.subr.bf16.mxu0 %v2727
    %4573 = vmatpush2.bf16.msra.mxu0 %v2726
    %4574 = vmatprep.mubr.bf16.mxu0 %v4418
    %4575 = vmatmul.mubr.bf16.gmra.mxu0 %v4417
    %v4576 = vpop.f32.mrf.mxu0
    %v4577 = vadd.f32 %v4536, %v4576
    %v4578 = vpop.f32.mrf.mxu0
    %v4579 = vadd.f32 %v4538, %v4578
    %v4580 = vpop.f32.mrf.mxu0
    %v4581 = vpop.f32.mrf.mxu0
    %4582 = vdwg.mxu0
    %4583 = vmatprep.subr.bf16.mxu0 %v2525
    %4584 = vmatpush1.bf16.msra.mxu0 %v2524
    %4585 = vmatprep.subr.bf16.mxu0 %v2513
    %4586 = vmatpush1.bf16.msra.mxu0 %v2512
    %4587 = vmatprep.subr.bf16.mxu0 %v2501
    %4588 = vmatpush1.bf16.msra.mxu0 %v2500
    %4589 = vmatprep.subr.bf16.mxu0 %v2489
    %4590 = vmatpush1.bf16.msra.mxu0 %v2488
    %4591 = vmatprep.subr.bf16.mxu0 %v2477
    %4592 = vmatpush1.bf16.msra.mxu0 %v2476
    %4593 = vmatprep.subr.bf16.mxu0 %v2465
    %4594 = vmatpush1.bf16.msra.mxu0 %v2464
    %4595 = vmatprep.subr.bf16.mxu0 %v2453
    %4596 = vmatpush1.bf16.msra.mxu0 %v2452
    %4597 = vmatprep.subr.bf16.mxu0 %v2441
    %4598 = vmatpush1.bf16.msra.mxu0 %v2440
    %4599 = vmatprep.subr.bf16.mxu0 %v2621
    %4600 = vmatpush2.bf16.msra.mxu0 %v2620
    %4601 = vmatprep.subr.bf16.mxu0 %v2609
    %4602 = vmatpush2.bf16.msra.mxu0 %v2608
    %4603 = vmatprep.subr.bf16.mxu0 %v2597
    %4604 = vmatpush2.bf16.msra.mxu0 %v2596
    %4605 = vmatprep.subr.bf16.mxu0 %v2585
    %4606 = vmatpush2.bf16.msra.mxu0 %v2584
    %4607 = vmatprep.subr.bf16.mxu0 %v2573
    %4608 = vmatpush2.bf16.msra.mxu0 %v2572
    %4609 = vmatprep.subr.bf16.mxu0 %v2561
    %4610 = vmatpush2.bf16.msra.mxu0 %v2560
    %4611 = vmatprep.subr.bf16.mxu0 %v2549
    %4612 = vmatpush2.bf16.msra.mxu0 %v2548
    %4613 = vmatprep.subr.bf16.mxu0 %v2537
    %4614 = vmatpush2.bf16.msra.mxu0 %v2536
    %4615 = vmatprep.mubr.bf16.mxu0 %v4416
    %4616 = vmatmul.mubr.bf16.gmra.mxu0 %v4415
    %v4617 = vpop.f32.mrf.mxu0
    %v4618 = vadd.f32 0.0, %v4617
    %v4619 = vpop.f32.mrf.mxu0
    %v4620 = vadd.f32 0.0, %v4619
    %v4621 = vpop.f32.mrf.mxu0
    %v4622 = vpop.f32.mrf.mxu0
    %4623 = vdwg.mxu0
    %4624 = vmatprep.subr.bf16.mxu0 %v2717
    %4625 = vmatpush1.bf16.msra.mxu0 %v2716
    %4626 = vmatprep.subr.bf16.mxu0 %v2705
    %4627 = vmatpush1.bf16.msra.mxu0 %v2704
    %4628 = vmatprep.subr.bf16.mxu0 %v2693
    %4629 = vmatpush1.bf16.msra.mxu0 %v2692
    %4630 = vmatprep.subr.bf16.mxu0 %v2681
    %4631 = vmatpush1.bf16.msra.mxu0 %v2680
    %4632 = vmatprep.subr.bf16.mxu0 %v2669
    %4633 = vmatpush1.bf16.msra.mxu0 %v2668
    %4634 = vmatprep.subr.bf16.mxu0 %v2657
    %4635 = vmatpush1.bf16.msra.mxu0 %v2656
    %4636 = vmatprep.subr.bf16.mxu0 %v2645
    %4637 = vmatpush1.bf16.msra.mxu0 %v2644
    %4638 = vmatprep.subr.bf16.mxu0 %v2633
    %4639 = vmatpush1.bf16.msra.mxu0 %v2632
    %4640 = vmatprep.subr.bf16.mxu0 %v2813
    %4641 = vmatpush2.bf16.msra.mxu0 %v2812
    %4642 = vmatprep.subr.bf16.mxu0 %v2801
    %4643 = vmatpush2.bf16.msra.mxu0 %v2800
    %4644 = vmatprep.subr.bf16.mxu0 %v2789
    %4645 = vmatpush2.bf16.msra.mxu0 %v2788
    %4646 = vmatprep.subr.bf16.mxu0 %v2777
    %4647 = vmatpush2.bf16.msra.mxu0 %v2776
    %4648 = vmatprep.subr.bf16.mxu0 %v2765
    %4649 = vmatpush2.bf16.msra.mxu0 %v2764
    %4650 = vmatprep.subr.bf16.mxu0 %v2753
    %4651 = vmatpush2.bf16.msra.mxu0 %v2752
    %4652 = vmatprep.subr.bf16.mxu0 %v2741
    %4653 = vmatpush2.bf16.msra.mxu0 %v2740
    %4654 = vmatprep.subr.bf16.mxu0 %v2729
    %4655 = vmatpush2.bf16.msra.mxu0 %v2728
    %4656 = vmatprep.mubr.bf16.mxu0 %v4418
    %4657 = vmatmul.mubr.bf16.gmra.mxu0 %v4417
    %v4658 = vpop.f32.mrf.mxu0
    %v4659 = vadd.f32 %v4618, %v4658
    %v4660 = vpop.f32.mrf.mxu0
    %v4661 = vadd.f32 %v4620, %v4660
    %v4662 = vpop.f32.mrf.mxu0
    %v4663 = vpop.f32.mrf.mxu0
    %4664 = vdwg.mxu0
    %4665 = vmatprep.subr.bf16.mxu0 %v2527
    %4666 = vmatpush1.bf16.msra.mxu0 %v2526
    %4667 = vmatprep.subr.bf16.mxu0 %v2515
    %4668 = vmatpush1.bf16.msra.mxu0 %v2514
    %4669 = vmatprep.subr.bf16.mxu0 %v2503
    %4670 = vmatpush1.bf16.msra.mxu0 %v2502
    %4671 = vmatprep.subr.bf16.mxu0 %v2491
    %4672 = vmatpush1.bf16.msra.mxu0 %v2490
    %4673 = vmatprep.subr.bf16.mxu0 %v2479
    %4674 = vmatpush1.bf16.msra.mxu0 %v2478
    %4675 = vmatprep.subr.bf16.mxu0 %v2467
    %4676 = vmatpush1.bf16.msra.mxu0 %v2466
    %4677 = vmatprep.subr.bf16.mxu0 %v2455
    %4678 = vmatpush1.bf16.msra.mxu0 %v2454
    %4679 = vmatprep.subr.bf16.mxu0 %v2443
    %4680 = vmatpush1.bf16.msra.mxu0 %v2442
    %4681 = vmatprep.subr.bf16.mxu0 %v2623
    %4682 = vmatpush2.bf16.msra.mxu0 %v2622
    %4683 = vmatprep.subr.bf16.mxu0 %v2611
    %4684 = vmatpush2.bf16.msra.mxu0 %v2610
    %4685 = vmatprep.subr.bf16.mxu0 %v2599
    %4686 = vmatpush2.bf16.msra.mxu0 %v2598
    %4687 = vmatprep.subr.bf16.mxu0 %v2587
    %4688 = vmatpush2.bf16.msra.mxu0 %v2586
    %4689 = vmatprep.subr.bf16.mxu0 %v2575
    %4690 = vmatpush2.bf16.msra.mxu0 %v2574
    %4691 = vmatprep.subr.bf16.mxu0 %v2563
    %4692 = vmatpush2.bf16.msra.mxu0 %v2562
    %4693 = vmatprep.subr.bf16.mxu0 %v2551
    %4694 = vmatpush2.bf16.msra.mxu0 %v2550
    %4695 = vmatprep.subr.bf16.mxu0 %v2539
    %4696 = vmatpush2.bf16.msra.mxu0 %v2538
    %4697 = vmatprep.mubr.bf16.mxu0 %v4416
    %4698 = vmatmul.mubr.bf16.gmra.mxu0 %v4415
    %v4699 = vpop.f32.mrf.mxu0
    %v4700 = vadd.f32 0.0, %v4699
    %v4701 = vpop.f32.mrf.mxu0
    %v4702 = vadd.f32 0.0, %v4701
    %v4703 = vpop.f32.mrf.mxu0
    %v4704 = vpop.f32.mrf.mxu0
    %4705 = vdwg.mxu0
    %4706 = vmatprep.subr.bf16.mxu0 %v2719
    %4707 = vmatpush1.bf16.msra.mxu0 %v2718
    %4708 = vmatprep.subr.bf16.mxu0 %v2707
    %4709 = vmatpush1.bf16.msra.mxu0 %v2706
    %4710 = vmatprep.subr.bf16.mxu0 %v2695
    %4711 = vmatpush1.bf16.msra.mxu0 %v2694
    %4712 = vmatprep.subr.bf16.mxu0 %v2683
    %4713 = vmatpush1.bf16.msra.mxu0 %v2682
    %4714 = vmatprep.subr.bf16.mxu0 %v2671
    %4715 = vmatpush1.bf16.msra.mxu0 %v2670
    %4716 = vmatprep.subr.bf16.mxu0 %v2659
    %4717 = vmatpush1.bf16.msra.mxu0 %v2658
    %4718 = vmatprep.subr.bf16.mxu0 %v2647
    %4719 = vmatpush1.bf16.msra.mxu0 %v2646
    %4720 = vmatprep.subr.bf16.mxu0 %v2635
    %4721 = vmatpush1.bf16.msra.mxu0 %v2634
    %4722 = vmatprep.subr.bf16.mxu0 %v2815
    %4723 = vmatpush2.bf16.msra.mxu0 %v2814
    %4724 = vmatprep.subr.bf16.mxu0 %v2803
    %4725 = vmatpush2.bf16.msra.mxu0 %v2802
    %4726 = vmatprep.subr.bf16.mxu0 %v2791
    %4727 = vmatpush2.bf16.msra.mxu0 %v2790
    %4728 = vmatprep.subr.bf16.mxu0 %v2779
    %4729 = vmatpush2.bf16.msra.mxu0 %v2778
    %4730 = vmatprep.subr.bf16.mxu0 %v2767
    %4731 = vmatpush2.bf16.msra.mxu0 %v2766
    %4732 = vmatprep.subr.bf16.mxu0 %v2755
    %4733 = vmatpush2.bf16.msra.mxu0 %v2754
    %4734 = vmatprep.subr.bf16.mxu0 %v2743
    %4735 = vmatpush2.bf16.msra.mxu0 %v2742
    %4736 = vmatprep.subr.bf16.mxu0 %v2731
    %4737 = vmatpush2.bf16.msra.mxu0 %v2730
    %4738 = vmatprep.mubr.bf16.mxu0 %v4418
    %4739 = vmatmul.mubr.bf16.gmra.mxu0 %v4417
    %v4740 = vpop.f32.mrf.mxu0
    %v4741 = vadd.f32 %v4700, %v4740
    %v4742 = vpop.f32.mrf.mxu0
    %v4743 = vadd.f32 %v4702, %v4742
    %v4744 = vpop.f32.mrf.mxu0
    %v4745 = vpop.f32.mrf.mxu0
    %4746 = vdwg.mxu0
    %4747 = vmatprep.subr.bf16.mxu0 %v2529
    %4748 = vmatpush1.bf16.msra.mxu0 %v2528
    %4749 = vmatprep.subr.bf16.mxu0 %v2517
    %4750 = vmatpush1.bf16.msra.mxu0 %v2516
    %4751 = vmatprep.subr.bf16.mxu0 %v2505
    %4752 = vmatpush1.bf16.msra.mxu0 %v2504
    %4753 = vmatprep.subr.bf16.mxu0 %v2493
    %4754 = vmatpush1.bf16.msra.mxu0 %v2492
    %4755 = vmatprep.subr.bf16.mxu0 %v2481
    %4756 = vmatpush1.bf16.msra.mxu0 %v2480
    %4757 = vmatprep.subr.bf16.mxu0 %v2469
    %4758 = vmatpush1.bf16.msra.mxu0 %v2468
    %4759 = vmatprep.subr.bf16.mxu0 %v2457
    %4760 = vmatpush1.bf16.msra.mxu0 %v2456
    %4761 = vmatprep.subr.bf16.mxu0 %v2445
    %4762 = vmatpush1.bf16.msra.mxu0 %v2444
    %4763 = vmatprep.subr.bf16.mxu0 %v2625
    %4764 = vmatpush2.bf16.msra.mxu0 %v2624
    %4765 = vmatprep.subr.bf16.mxu0 %v2613
    %4766 = vmatpush2.bf16.msra.mxu0 %v2612
    %4767 = vmatprep.subr.bf16.mxu0 %v2601
    %4768 = vmatpush2.bf16.msra.mxu0 %v2600
    %4769 = vmatprep.subr.bf16.mxu0 %v2589
    %4770 = vmatpush2.bf16.msra.mxu0 %v2588
    %4771 = vmatprep.subr.bf16.mxu0 %v2577
    %4772 = vmatpush2.bf16.msra.mxu0 %v2576
    %4773 = vmatprep.subr.bf16.mxu0 %v2565
    %4774 = vmatpush2.bf16.msra.mxu0 %v2564
    %4775 = vmatprep.subr.bf16.mxu0 %v2553
    %4776 = vmatpush2.bf16.msra.mxu0 %v2552
    %4777 = vmatprep.subr.bf16.mxu0 %v2541
    %4778 = vmatpush2.bf16.msra.mxu0 %v2540
    %4779 = vmatprep.mubr.bf16.mxu0 %v4416
    %4780 = vmatmul.mubr.bf16.gmra.mxu0 %v4415
    %v4781 = vpop.f32.mrf.mxu0
    %v4782 = vadd.f32 0.0, %v4781
    %v4783 = vpop.f32.mrf.mxu0
    %v4784 = vadd.f32 0.0, %v4783
    %v4785 = vpop.f32.mrf.mxu0
    %v4786 = vpop.f32.mrf.mxu0
    %4787 = vdwg.mxu0
    %4788 = vmatprep.subr.bf16.mxu0 %v2721
    %4789 = vmatpush1.bf16.msra.mxu0 %v2720
    %4790 = vmatprep.subr.bf16.mxu0 %v2709
    %4791 = vmatpush1.bf16.msra.mxu0 %v2708
    %4792 = vmatprep.subr.bf16.mxu0 %v2697
    %4793 = vmatpush1.bf16.msra.mxu0 %v2696
    %4794 = vmatprep.subr.bf16.mxu0 %v2685
    %4795 = vmatpush1.bf16.msra.mxu0 %v2684
    %4796 = vmatprep.subr.bf16.mxu0 %v2673
    %4797 = vmatpush1.bf16.msra.mxu0 %v2672
    %4798 = vmatprep.subr.bf16.mxu0 %v2661
    %4799 = vmatpush1.bf16.msra.mxu0 %v2660
    %4800 = vmatprep.subr.bf16.mxu0 %v2649
    %4801 = vmatpush1.bf16.msra.mxu0 %v2648
    %4802 = vmatprep.subr.bf16.mxu0 %v2637
    %4803 = vmatpush1.bf16.msra.mxu0 %v2636
    %4804 = vmatprep.subr.bf16.mxu0 %v2817
    %4805 = vmatpush2.bf16.msra.mxu0 %v2816
    %4806 = vmatprep.subr.bf16.mxu0 %v2805
    %4807 = vmatpush2.bf16.msra.mxu0 %v2804
    %4808 = vmatprep.subr.bf16.mxu0 %v2793
    %4809 = vmatpush2.bf16.msra.mxu0 %v2792
    %4810 = vmatprep.subr.bf16.mxu0 %v2781
    %4811 = vmatpush2.bf16.msra.mxu0 %v2780
    %4812 = vmatprep.subr.bf16.mxu0 %v2769
    %4813 = vmatpush2.bf16.msra.mxu0 %v2768
    %4814 = vmatprep.subr.bf16.mxu0 %v2757
    %4815 = vmatpush2.bf16.msra.mxu0 %v2756
    %4816 = vmatprep.subr.bf16.mxu0 %v2745
    %4817 = vmatpush2.bf16.msra.mxu0 %v2744
    %4818 = vmatprep.subr.bf16.mxu0 %v2733
    %4819 = vmatpush2.bf16.msra.mxu0 %v2732
    %4820 = vmatprep.mubr.bf16.mxu0 %v4418
    %4821 = vmatmul.mubr.bf16.gmra.mxu0 %v4417
    %v4822 = vpop.f32.mrf.mxu0
    %v4823 = vadd.f32 %v4782, %v4822
    %v4824 = vpop.f32.mrf.mxu0
    %v4825 = vadd.f32 %v4784, %v4824
    %v4826 = vpop.f32.mrf.mxu0
    %v4827 = vpop.f32.mrf.mxu0
    %4828 = vdwg.mxu0
    %4829 = vmatprep.subr.bf16.mxu0 %v2531
    %4830 = vmatpush1.bf16.msra.mxu0 %v2530
    %4831 = vmatprep.subr.bf16.mxu0 %v2519
    %4832 = vmatpush1.bf16.msra.mxu0 %v2518
    %4833 = vmatprep.subr.bf16.mxu0 %v2507
    %4834 = vmatpush1.bf16.msra.mxu0 %v2506
    %4835 = vmatprep.subr.bf16.mxu0 %v2495
    %4836 = vmatpush1.bf16.msra.mxu0 %v2494
    %4837 = vmatprep.subr.bf16.mxu0 %v2483
    %4838 = vmatpush1.bf16.msra.mxu0 %v2482
    %4839 = vmatprep.subr.bf16.mxu0 %v2471
    %4840 = vmatpush1.bf16.msra.mxu0 %v2470
    %4841 = vmatprep.subr.bf16.mxu0 %v2459
    %4842 = vmatpush1.bf16.msra.mxu0 %v2458
    %4843 = vmatprep.subr.bf16.mxu0 %v2447
    %4844 = vmatpush1.bf16.msra.mxu0 %v2446
    %4845 = vmatprep.subr.bf16.mxu0 %v2627
    %4846 = vmatpush2.bf16.msra.mxu0 %v2626
    %4847 = vmatprep.subr.bf16.mxu0 %v2615
    %4848 = vmatpush2.bf16.msra.mxu0 %v2614
    %4849 = vmatprep.subr.bf16.mxu0 %v2603
    %4850 = vmatpush2.bf16.msra.mxu0 %v2602
    %4851 = vmatprep.subr.bf16.mxu0 %v2591
    %4852 = vmatpush2.bf16.msra.mxu0 %v2590
    %4853 = vmatprep.subr.bf16.mxu0 %v2579
    %4854 = vmatpush2.bf16.msra.mxu0 %v2578
    %4855 = vmatprep.subr.bf16.mxu0 %v2567
    %4856 = vmatpush2.bf16.msra.mxu0 %v2566
    %4857 = vmatprep.subr.bf16.mxu0 %v2555
    %4858 = vmatpush2.bf16.msra.mxu0 %v2554
    %4859 = vmatprep.subr.bf16.mxu0 %v2543
    %4860 = vmatpush2.bf16.msra.mxu0 %v2542
    %4861 = vmatprep.mubr.bf16.mxu0 %v4416
    %4862 = vmatmul.mubr.bf16.gmra.mxu0 %v4415
    %v4863 = vpop.f32.mrf.mxu0
    %v4864 = vadd.f32 0.0, %v4863
    %v4865 = vpop.f32.mrf.mxu0
    %v4866 = vadd.f32 0.0, %v4865
    %v4867 = vpop.f32.mrf.mxu0
    %v4868 = vpop.f32.mrf.mxu0
    %4869 = vdwg.mxu0
    %4870 = vmatprep.subr.bf16.mxu0 %v2723
    %4871 = vmatpush1.bf16.msra.mxu0 %v2722
    %4872 = vmatprep.subr.bf16.mxu0 %v2711
    %4873 = vmatpush1.bf16.msra.mxu0 %v2710
    %4874 = vmatprep.subr.bf16.mxu0 %v2699
    %4875 = vmatpush1.bf16.msra.mxu0 %v2698
    %4876 = vmatprep.subr.bf16.mxu0 %v2687
    %4877 = vmatpush1.bf16.msra.mxu0 %v2686
    %4878 = vmatprep.subr.bf16.mxu0 %v2675
    %4879 = vmatpush1.bf16.msra.mxu0 %v2674
    %4880 = vmatprep.subr.bf16.mxu0 %v2663
    %4881 = vmatpush1.bf16.msra.mxu0 %v2662
    %4882 = vmatprep.subr.bf16.mxu0 %v2651
    %4883 = vmatpush1.bf16.msra.mxu0 %v2650
    %4884 = vmatprep.subr.bf16.mxu0 %v2639
    %4885 = vmatpush1.bf16.msra.mxu0 %v2638
    %4886 = vmatprep.subr.bf16.mxu0 %v2819
    %4887 = vmatpush2.bf16.msra.mxu0 %v2818
    %4888 = vmatprep.subr.bf16.mxu0 %v2807
    %4889 = vmatpush2.bf16.msra.mxu0 %v2806
    %4890 = vmatprep.subr.bf16.mxu0 %v2795
    %4891 = vmatpush2.bf16.msra.mxu0 %v2794
    %4892 = vmatprep.subr.bf16.mxu0 %v2783
    %4893 = vmatpush2.bf16.msra.mxu0 %v2782
    %4894 = vmatprep.subr.bf16.mxu0 %v2771
    %4895 = vmatpush2.bf16.msra.mxu0 %v2770
    %4896 = vmatprep.subr.bf16.mxu0 %v2759
    %4897 = vmatpush2.bf16.msra.mxu0 %v2758
    %4898 = vmatprep.subr.bf16.mxu0 %v2747
    %4899 = vmatpush2.bf16.msra.mxu0 %v2746
    %4900 = vmatprep.subr.bf16.mxu0 %v2735
    %4901 = vmatpush2.bf16.msra.mxu0 %v2734
    %4902 = vmatprep.mubr.bf16.mxu0 %v4418
    %4903 = vmatmul.mubr.bf16.gmra.mxu0 %v4417
    %v4904 = vpop.f32.mrf.mxu0
    %v4905 = vadd.f32 %v4864, %v4904
    %v4906 = vpop.f32.mrf.mxu0
    %v4907 = vadd.f32 %v4866, %v4906
    %v4908 = vpop.f32.mrf.mxu0
    %v4909 = vpop.f32.mrf.mxu0
    %4910 = vdwg.mxu0
    %v4911 = vadd.f32 %v4403, %v4495
    %v4912 = vadd.f32 %v4404, %v4497
    %v4913 = vadd.f32 %v4405, %v4577
    %v4914 = vadd.f32 %v4406, %v4579
    %v4915 = vxor.u32 %v4911, 2147483648
    %v4916 = vxor.u32 %v4912, 2147483648
    %v4917 = vxor.u32 %v4913, 2147483648
    %v4918 = vxor.u32 %v4914, 2147483648
    %v4919 = vmul.f32 %v4915, 1.442695
    %v4920 = vpow.pop %v4919
    %v4921 = vmul.f32 %v4916, 1.442695
    %v4922 = vpow.pop %v4921
    %v4923 = vmul.f32 %v4917, 1.442695
    %v4924 = vpow.pop %v4923
    %v4925 = vmul.f32 %v4918, 1.442695
    %v4926 = vpow.pop %v4925
    %v4927 = vadd.f32 %v4920, 1.0
    %v4928 = vadd.f32 %v4922, 1.0
    %v4929 = vadd.f32 %v4924, 1.0
    %v4930 = vadd.f32 %v4926, 1.0
    %v4931 = vrcp.pop %v4927
    %v4932 = vmul.f32 1.0, %v4931
    %v4933 = vrcp.pop %v4928
    %v4934 = vmul.f32 1.0, %v4933
    %v4935 = vrcp.pop %v4929
    %v4936 = vmul.f32 1.0, %v4935
    %v4937 = vrcp.pop %v4930
    %v4938 = vmul.f32 1.0, %v4937
    %v4939 = vadd.f32 %v4407, %v4659
    %v4940 = vadd.f32 %v4408, %v4661
    %v4941 = vadd.f32 %v4409, %v4741
    %v4942 = vadd.f32 %v4410, %v4743
    %v4943 = vxor.u32 %v4939, 2147483648
    %v4944 = vxor.u32 %v4940, 2147483648
    %v4945 = vxor.u32 %v4941, 2147483648
    %v4946 = vxor.u32 %v4942, 2147483648
    %v4947 = vmul.f32 %v4943, 1.442695
    %v4948 = vpow.pop %v4947
    %v4949 = vmul.f32 %v4944, 1.442695
    %v4950 = vpow.pop %v4949
    %v4951 = vmul.f32 %v4945, 1.442695
    %v4952 = vpow.pop %v4951
    %v4953 = vmul.f32 %v4946, 1.442695
    %v4954 = vpow.pop %v4953
    %v4955 = vadd.f32 %v4948, 1.0
    %v4956 = vadd.f32 %v4950, 1.0
    %v4957 = vadd.f32 %v4952, 1.0
    %v4958 = vadd.f32 %v4954, 1.0
    %v4959 = vrcp.pop %v4955
    %v4960 = vmul.f32 1.0, %v4959
    %v4961 = vrcp.pop %v4956
    %v4962 = vmul.f32 1.0, %v4961
    %v4963 = vrcp.pop %v4957
    %v4964 = vmul.f32 1.0, %v4963
    %v4965 = vrcp.pop %v4958
    %v4966 = vmul.f32 1.0, %v4965
    %v4967 = vadd.f32 %v4823, %v3756
    %v4968 = vadd.f32 %v4825, %v3760
    %v4969 = vadd.f32 %v4905, %v3764
    %v4970 = vadd.f32 %v4907, %v3768
    %v4971 = vmul.f32 %v4932, %v4967
    %v4972 = vmul.f32 %v4934, %v4968
    %v4973 = vmul.f32 %v4936, %v4969
    %v4974 = vmul.f32 %v4938, %v4970
    %v4975 = vadd.f32 %v4411, %v4971
    %v4976 = vadd.f32 %v4412, %v4972
    %v4977 = vadd.f32 %v4413, %v4973
    %v4978 = vadd.f32 %v4414, %v4974
    %v4979 = vtanh.pop %v4975
    %v4980 = vtanh.pop %v4976
    %v4981 = vtanh.pop %v4977
    %v4982 = vtanh.pop %v4978
    %v4983 = vsub.f32 1.0, %v4960
    %v4984 = vsub.f32 1.0, %v4962
    %v4985 = vsub.f32 1.0, %v4964
    %v4986 = vsub.f32 1.0, %v4966
    %v4987 = vmul.f32 %v4983, %v4979
    %v4988 = vmul.f32 %v4984, %v4980
    %v4989 = vmul.f32 %v4985, %v4981
    %v4990 = vmul.f32 %v4986, %v4982
    %v4991 = vmul.f32 %v4960, %v4398
    %v4992 = vmul.f32 %v4962, %v4399
    %v4993 = vmul.f32 %v4964, %v4400
    %v4994 = vmul.f32 %v4966, %v4401
    %v4995 = vadd.f32 %v4987, %v4991
    %v4996 = vadd.f32 %v4988, %v4992
    %v4997 = vadd.f32 %v4989, %v4993
    %v4998 = vadd.f32 %v4990, %v4994
    %s4999 = scalar_lea.vmem [#allocation2], 288
    %v5000 = vld [vmem:[%s4999] sm:$0xff]
    %v5001 = vld [vmem:[%s4999 + $0x8] sm:$0xff]
    %v5002 = vld [vmem:[%s4999 + $0x10] sm:$0xff]
    %v5003 = vld [vmem:[%s4999 + $0x18] sm:$0xff]
    %v5004 = vld [vmem:[%s4999 + $0x20] sm:$0xff]
    %v5005 = vld [vmem:[%s4999 + $0x28] sm:$0xff]
    %v5006 = vld [vmem:[%s4999 + $0x30] sm:$0xff]
    %v5007 = vld [vmem:[%s4999 + $0x38] sm:$0xff]
    %v5008 = vld [vmem:[%s4999 + $0x40] sm:$0xff]
    %v5009 = vld [vmem:[%s4999 + $0x48] sm:$0xff]
    %v5010 = vld [vmem:[%s4999 + $0x50] sm:$0xff]
    %v5011 = vld [vmem:[%s4999 + $0x58] sm:$0xff]
    %v5012 = vpack.c.bf16 %v4995, %v4995
    %v5013 = vpack.c.bf16 %v4996, %v4996
    %v5014 = vpack.c.bf16 %v4997, %v4997
    %v5015 = vpack.c.bf16 %v4998, %v4998
    %5016 = vmatprep.subr.bf16.mxu0 %v2521
    %5017 = vmatpush1.bf16.msra.mxu0 %v2520
    %5018 = vmatprep.subr.bf16.mxu0 %v2509
    %5019 = vmatpush1.bf16.msra.mxu0 %v2508
    %5020 = vmatprep.subr.bf16.mxu0 %v2497
    %5021 = vmatpush1.bf16.msra.mxu0 %v2496
    %5022 = vmatprep.subr.bf16.mxu0 %v2485
    %5023 = vmatpush1.bf16.msra.mxu0 %v2484
    %5024 = vmatprep.subr.bf16.mxu0 %v2473
    %5025 = vmatpush1.bf16.msra.mxu0 %v2472
    %5026 = vmatprep.subr.bf16.mxu0 %v2461
    %5027 = vmatpush1.bf16.msra.mxu0 %v2460
    %5028 = vmatprep.subr.bf16.mxu0 %v2449
    %5029 = vmatpush1.bf16.msra.mxu0 %v2448
    %5030 = vmatprep.subr.bf16.mxu0 %v2437
    %5031 = vmatpush1.bf16.msra.mxu0 %v2436
    %5032 = vmatprep.subr.bf16.mxu0 %v2617
    %5033 = vmatpush2.bf16.msra.mxu0 %v2616
    %5034 = vmatprep.subr.bf16.mxu0 %v2605
    %5035 = vmatpush2.bf16.msra.mxu0 %v2604
    %5036 = vmatprep.subr.bf16.mxu0 %v2593
    %5037 = vmatpush2.bf16.msra.mxu0 %v2592
    %5038 = vmatprep.subr.bf16.mxu0 %v2581
    %5039 = vmatpush2.bf16.msra.mxu0 %v2580
    %5040 = vmatprep.subr.bf16.mxu0 %v2569
    %5041 = vmatpush2.bf16.msra.mxu0 %v2568
    %5042 = vmatprep.subr.bf16.mxu0 %v2557
    %5043 = vmatpush2.bf16.msra.mxu0 %v2556
    %5044 = vmatprep.subr.bf16.mxu0 %v2545
    %5045 = vmatpush2.bf16.msra.mxu0 %v2544
    %5046 = vmatprep.subr.bf16.mxu0 %v2533
    %5047 = vmatpush2.bf16.msra.mxu0 %v2532
    %5048 = vmatprep.mubr.bf16.mxu0 %v5013
    %5049 = vmatmul.mubr.bf16.gmra.mxu0 %v5012
    %v5050 = vpop.f32.mrf.mxu0
    %v5051 = vadd.f32 0.0, %v5050
    %v5052 = vpop.f32.mrf.mxu0
    %v5053 = vadd.f32 0.0, %v5052
    %v5054 = vpop.f32.mrf.mxu0
    %v5055 = vpop.f32.mrf.mxu0
    %5056 = vdwg.mxu0
    %5057 = vmatprep.subr.bf16.mxu0 %v2713
    %5058 = vmatpush1.bf16.msra.mxu0 %v2712
    %5059 = vmatprep.subr.bf16.mxu0 %v2701
    %5060 = vmatpush1.bf16.msra.mxu0 %v2700
    %5061 = vmatprep.subr.bf16.mxu0 %v2689
    %5062 = vmatpush1.bf16.msra.mxu0 %v2688
    %5063 = vmatprep.subr.bf16.mxu0 %v2677
    %5064 = vmatpush1.bf16.msra.mxu0 %v2676
    %5065 = vmatprep.subr.bf16.mxu0 %v2665
    %5066 = vmatpush1.bf16.msra.mxu0 %v2664
    %5067 = vmatprep.subr.bf16.mxu0 %v2653
    %5068 = vmatpush1.bf16.msra.mxu0 %v2652
    %5069 = vmatprep.subr.bf16.mxu0 %v2641
    %5070 = vmatpush1.bf16.msra.mxu0 %v2640
    %5071 = vmatprep.subr.bf16.mxu0 %v2629
    %5072 = vmatpush1.bf16.msra.mxu0 %v2628
    %5073 = vmatprep.subr.bf16.mxu0 %v2809
    %5074 = vmatpush2.bf16.msra.mxu0 %v2808
    %5075 = vmatprep.subr.bf16.mxu0 %v2797
    %5076 = vmatpush2.bf16.msra.mxu0 %v2796
    %5077 = vmatprep.subr.bf16.mxu0 %v2785
    %5078 = vmatpush2.bf16.msra.mxu0 %v2784
    %5079 = vmatprep.subr.bf16.mxu0 %v2773
    %5080 = vmatpush2.bf16.msra.mxu0 %v2772
    %5081 = vmatprep.subr.bf16.mxu0 %v2761
    %5082 = vmatpush2.bf16.msra.mxu0 %v2760
    %5083 = vmatprep.subr.bf16.mxu0 %v2749
    %5084 = vmatpush2.bf16.msra.mxu0 %v2748
    %5085 = vmatprep.subr.bf16.mxu0 %v2737
    %5086 = vmatpush2.bf16.msra.mxu0 %v2736
    %5087 = vmatprep.subr.bf16.mxu0 %v2725
    %5088 = vmatpush2.bf16.msra.mxu0 %v2724
    %5089 = vmatprep.mubr.bf16.mxu0 %v5015
    %5090 = vmatmul.mubr.bf16.gmra.mxu0 %v5014
    %v5091 = vpop.f32.mrf.mxu0
    %v5092 = vadd.f32 %v5051, %v5091
    %v5093 = vpop.f32.mrf.mxu0
    %v5094 = vadd.f32 %v5053, %v5093
    %v5095 = vpop.f32.mrf.mxu0
    %v5096 = vpop.f32.mrf.mxu0
    %5097 = vdwg.mxu0
    %5098 = vmatprep.subr.bf16.mxu0 %v2523
    %5099 = vmatpush1.bf16.msra.mxu0 %v2522
    %5100 = vmatprep.subr.bf16.mxu0 %v2511
    %5101 = vmatpush1.bf16.msra.mxu0 %v2510
    %5102 = vmatprep.subr.bf16.mxu0 %v2499
    %5103 = vmatpush1.bf16.msra.mxu0 %v2498
    %5104 = vmatprep.subr.bf16.mxu0 %v2487
    %5105 = vmatpush1.bf16.msra.mxu0 %v2486
    %5106 = vmatprep.subr.bf16.mxu0 %v2475
    %5107 = vmatpush1.bf16.msra.mxu0 %v2474
    %5108 = vmatprep.subr.bf16.mxu0 %v2463
    %5109 = vmatpush1.bf16.msra.mxu0 %v2462
    %5110 = vmatprep.subr.bf16.mxu0 %v2451
    %5111 = vmatpush1.bf16.msra.mxu0 %v2450
    %5112 = vmatprep.subr.bf16.mxu0 %v2439
    %5113 = vmatpush1.bf16.msra.mxu0 %v2438
    %5114 = vmatprep.subr.bf16.mxu0 %v2619
    %5115 = vmatpush2.bf16.msra.mxu0 %v2618
    %5116 = vmatprep.subr.bf16.mxu0 %v2607
    %5117 = vmatpush2.bf16.msra.mxu0 %v2606
    %5118 = vmatprep.subr.bf16.mxu0 %v2595
    %5119 = vmatpush2.bf16.msra.mxu0 %v2594
    %5120 = vmatprep.subr.bf16.mxu0 %v2583
    %5121 = vmatpush2.bf16.msra.mxu0 %v2582
    %5122 = vmatprep.subr.bf16.mxu0 %v2571
    %5123 = vmatpush2.bf16.msra.mxu0 %v2570
    %5124 = vmatprep.subr.bf16.mxu0 %v2559
    %5125 = vmatpush2.bf16.msra.mxu0 %v2558
    %5126 = vmatprep.subr.bf16.mxu0 %v2547
    %5127 = vmatpush2.bf16.msra.mxu0 %v2546
    %5128 = vmatprep.subr.bf16.mxu0 %v2535
    %5129 = vmatpush2.bf16.msra.mxu0 %v2534
    %5130 = vmatprep.mubr.bf16.mxu0 %v5013
    %5131 = vmatmul.mubr.bf16.gmra.mxu0 %v5012
    %v5132 = vpop.f32.mrf.mxu0
    %v5133 = vadd.f32 0.0, %v5132
    %v5134 = vpop.f32.mrf.mxu0
    %v5135 = vadd.f32 0.0, %v5134
    %v5136 = vpop.f32.mrf.mxu0
    %v5137 = vpop.f32.mrf.mxu0
    %5138 = vdwg.mxu0
    %5139 = vmatprep.subr.bf16.mxu0 %v2715
    %5140 = vmatpush1.bf16.msra.mxu0 %v2714
    %5141 = vmatprep.subr.bf16.mxu0 %v2703
    %5142 = vmatpush1.bf16.msra.mxu0 %v2702
    %5143 = vmatprep.subr.bf16.mxu0 %v2691
    %5144 = vmatpush1.bf16.msra.mxu0 %v2690
    %5145 = vmatprep.subr.bf16.mxu0 %v2679
    %5146 = vmatpush1.bf16.msra.mxu0 %v2678
    %5147 = vmatprep.subr.bf16.mxu0 %v2667
    %5148 = vmatpush1.bf16.msra.mxu0 %v2666
    %5149 = vmatprep.subr.bf16.mxu0 %v2655
    %5150 = vmatpush1.bf16.msra.mxu0 %v2654
    %5151 = vmatprep.subr.bf16.mxu0 %v2643
    %5152 = vmatpush1.bf16.msra.mxu0 %v2642
    %5153 = vmatprep.subr.bf16.mxu0 %v2631
    %5154 = vmatpush1.bf16.msra.mxu0 %v2630
    %5155 = vmatprep.subr.bf16.mxu0 %v2811
    %5156 = vmatpush2.bf16.msra.mxu0 %v2810
    %5157 = vmatprep.subr.bf16.mxu0 %v2799
    %5158 = vmatpush2.bf16.msra.mxu0 %v2798
    %5159 = vmatprep.subr.bf16.mxu0 %v2787
    %5160 = vmatpush2.bf16.msra.mxu0 %v2786
    %5161 = vmatprep.subr.bf16.mxu0 %v2775
    %5162 = vmatpush2.bf16.msra.mxu0 %v2774
    %5163 = vmatprep.subr.bf16.mxu0 %v2763
    %5164 = vmatpush2.bf16.msra.mxu0 %v2762
    %5165 = vmatprep.subr.bf16.mxu0 %v2751
    %5166 = vmatpush2.bf16.msra.mxu0 %v2750
    %5167 = vmatprep.subr.bf16.mxu0 %v2739
    %5168 = vmatpush2.bf16.msra.mxu0 %v2738
    %5169 = vmatprep.subr.bf16.mxu0 %v2727
    %5170 = vmatpush2.bf16.msra.mxu0 %v2726
    %5171 = vmatprep.mubr.bf16.mxu0 %v5015
    %5172 = vmatmul.mubr.bf16.gmra.mxu0 %v5014
    %v5173 = vpop.f32.mrf.mxu0
    %v5174 = vadd.f32 %v5133, %v5173
    %v5175 = vpop.f32.mrf.mxu0
    %v5176 = vadd.f32 %v5135, %v5175
    %v5177 = vpop.f32.mrf.mxu0
    %v5178 = vpop.f32.mrf.mxu0
    %5179 = vdwg.mxu0
    %5180 = vmatprep.subr.bf16.mxu0 %v2525
    %5181 = vmatpush1.bf16.msra.mxu0 %v2524
    %5182 = vmatprep.subr.bf16.mxu0 %v2513
    %5183 = vmatpush1.bf16.msra.mxu0 %v2512
    %5184 = vmatprep.subr.bf16.mxu0 %v2501
    %5185 = vmatpush1.bf16.msra.mxu0 %v2500
    %5186 = vmatprep.subr.bf16.mxu0 %v2489
    %5187 = vmatpush1.bf16.msra.mxu0 %v2488
    %5188 = vmatprep.subr.bf16.mxu0 %v2477
    %5189 = vmatpush1.bf16.msra.mxu0 %v2476
    %5190 = vmatprep.subr.bf16.mxu0 %v2465
    %5191 = vmatpush1.bf16.msra.mxu0 %v2464
    %5192 = vmatprep.subr.bf16.mxu0 %v2453
    %5193 = vmatpush1.bf16.msra.mxu0 %v2452
    %5194 = vmatprep.subr.bf16.mxu0 %v2441
    %5195 = vmatpush1.bf16.msra.mxu0 %v2440
    %5196 = vmatprep.subr.bf16.mxu0 %v2621
    %5197 = vmatpush2.bf16.msra.mxu0 %v2620
    %5198 = vmatprep.subr.bf16.mxu0 %v2609
    %5199 = vmatpush2.bf16.msra.mxu0 %v2608
    %5200 = vmatprep.subr.bf16.mxu0 %v2597
    %5201 = vmatpush2.bf16.msra.mxu0 %v2596
    %5202 = vmatprep.subr.bf16.mxu0 %v2585
    %5203 = vmatpush2.bf16.msra.mxu0 %v2584
    %5204 = vmatprep.subr.bf16.mxu0 %v2573
    %5205 = vmatpush2.bf16.msra.mxu0 %v2572
    %5206 = vmatprep.subr.bf16.mxu0 %v2561
    %5207 = vmatpush2.bf16.msra.mxu0 %v2560
    %5208 = vmatprep.subr.bf16.mxu0 %v2549
    %5209 = vmatpush2.bf16.msra.mxu0 %v2548
    %5210 = vmatprep.subr.bf16.mxu0 %v2537
    %5211 = vmatpush2.bf16.msra.mxu0 %v2536
    %5212 = vmatprep.mubr.bf16.mxu0 %v5013
    %5213 = vmatmul.mubr.bf16.gmra.mxu0 %v5012
    %v5214 = vpop.f32.mrf.mxu0
    %v5215 = vadd.f32 0.0, %v5214
    %v5216 = vpop.f32.mrf.mxu0
    %v5217 = vadd.f32 0.0, %v5216
    %v5218 = vpop.f32.mrf.mxu0
    %v5219 = vpop.f32.mrf.mxu0
    %5220 = vdwg.mxu0
    %5221 = vmatprep.subr.bf16.mxu0 %v2717
    %5222 = vmatpush1.bf16.msra.mxu0 %v2716
    %5223 = vmatprep.subr.bf16.mxu0 %v2705
    %5224 = vmatpush1.bf16.msra.mxu0 %v2704
    %5225 = vmatprep.subr.bf16.mxu0 %v2693
    %5226 = vmatpush1.bf16.msra.mxu0 %v2692
    %5227 = vmatprep.subr.bf16.mxu0 %v2681
    %5228 = vmatpush1.bf16.msra.mxu0 %v2680
    %5229 = vmatprep.subr.bf16.mxu0 %v2669
    %5230 = vmatpush1.bf16.msra.mxu0 %v2668
    %5231 = vmatprep.subr.bf16.mxu0 %v2657
    %5232 = vmatpush1.bf16.msra.mxu0 %v2656
    %5233 = vmatprep.subr.bf16.mxu0 %v2645
    %5234 = vmatpush1.bf16.msra.mxu0 %v2644
    %5235 = vmatprep.subr.bf16.mxu0 %v2633
    %5236 = vmatpush1.bf16.msra.mxu0 %v2632
    %5237 = vmatprep.subr.bf16.mxu0 %v2813
    %5238 = vmatpush2.bf16.msra.mxu0 %v2812
    %5239 = vmatprep.subr.bf16.mxu0 %v2801
    %5240 = vmatpush2.bf16.msra.mxu0 %v2800
    %5241 = vmatprep.subr.bf16.mxu0 %v2789
    %5242 = vmatpush2.bf16.msra.mxu0 %v2788
    %5243 = vmatprep.subr.bf16.mxu0 %v2777
    %5244 = vmatpush2.bf16.msra.mxu0 %v2776
    %5245 = vmatprep.subr.bf16.mxu0 %v2765
    %5246 = vmatpush2.bf16.msra.mxu0 %v2764
    %5247 = vmatprep.subr.bf16.mxu0 %v2753
    %5248 = vmatpush2.bf16.msra.mxu0 %v2752
    %5249 = vmatprep.subr.bf16.mxu0 %v2741
    %5250 = vmatpush2.bf16.msra.mxu0 %v2740
    %5251 = vmatprep.subr.bf16.mxu0 %v2729
    %5252 = vmatpush2.bf16.msra.mxu0 %v2728
    %5253 = vmatprep.mubr.bf16.mxu0 %v5015
    %5254 = vmatmul.mubr.bf16.gmra.mxu0 %v5014
    %v5255 = vpop.f32.mrf.mxu0
    %v5256 = vadd.f32 %v5215, %v5255
    %v5257 = vpop.f32.mrf.mxu0
    %v5258 = vadd.f32 %v5217, %v5257
    %v5259 = vpop.f32.mrf.mxu0
    %v5260 = vpop.f32.mrf.mxu0
    %5261 = vdwg.mxu0
    %5262 = vmatprep.subr.bf16.mxu0 %v2527
    %5263 = vmatpush1.bf16.msra.mxu0 %v2526
    %5264 = vmatprep.subr.bf16.mxu0 %v2515
    %5265 = vmatpush1.bf16.msra.mxu0 %v2514
    %5266 = vmatprep.subr.bf16.mxu0 %v2503
    %5267 = vmatpush1.bf16.msra.mxu0 %v2502
    %5268 = vmatprep.subr.bf16.mxu0 %v2491
    %5269 = vmatpush1.bf16.msra.mxu0 %v2490
    %5270 = vmatprep.subr.bf16.mxu0 %v2479
    %5271 = vmatpush1.bf16.msra.mxu0 %v2478
    %5272 = vmatprep.subr.bf16.mxu0 %v2467
    %5273 = vmatpush1.bf16.msra.mxu0 %v2466
    %5274 = vmatprep.subr.bf16.mxu0 %v2455
    %5275 = vmatpush1.bf16.msra.mxu0 %v2454
    %5276 = vmatprep.subr.bf16.mxu0 %v2443
    %5277 = vmatpush1.bf16.msra.mxu0 %v2442
    %5278 = vmatprep.subr.bf16.mxu0 %v2623
    %5279 = vmatpush2.bf16.msra.mxu0 %v2622
    %5280 = vmatprep.subr.bf16.mxu0 %v2611
    %5281 = vmatpush2.bf16.msra.mxu0 %v2610
    %5282 = vmatprep.subr.bf16.mxu0 %v2599
    %5283 = vmatpush2.bf16.msra.mxu0 %v2598
    %5284 = vmatprep.subr.bf16.mxu0 %v2587
    %5285 = vmatpush2.bf16.msra.mxu0 %v2586
    %5286 = vmatprep.subr.bf16.mxu0 %v2575
    %5287 = vmatpush2.bf16.msra.mxu0 %v2574
    %5288 = vmatprep.subr.bf16.mxu0 %v2563
    %5289 = vmatpush2.bf16.msra.mxu0 %v2562
    %5290 = vmatprep.subr.bf16.mxu0 %v2551
    %5291 = vmatpush2.bf16.msra.mxu0 %v2550
    %5292 = vmatprep.subr.bf16.mxu0 %v2539
    %5293 = vmatpush2.bf16.msra.mxu0 %v2538
    %5294 = vmatprep.mubr.bf16.mxu0 %v5013
    %5295 = vmatmul.mubr.bf16.gmra.mxu0 %v5012
    %v5296 = vpop.f32.mrf.mxu0
    %v5297 = vadd.f32 0.0, %v5296
    %v5298 = vpop.f32.mrf.mxu0
    %v5299 = vadd.f32 0.0, %v5298
    %v5300 = vpop.f32.mrf.mxu0
    %v5301 = vpop.f32.mrf.mxu0
    %5302 = vdwg.mxu0
    %5303 = vmatprep.subr.bf16.mxu0 %v2719
    %5304 = vmatpush1.bf16.msra.mxu0 %v2718
    %5305 = vmatprep.subr.bf16.mxu0 %v2707
    %5306 = vmatpush1.bf16.msra.mxu0 %v2706
    %5307 = vmatprep.subr.bf16.mxu0 %v2695
    %5308 = vmatpush1.bf16.msra.mxu0 %v2694
    %5309 = vmatprep.subr.bf16.mxu0 %v2683
    %5310 = vmatpush1.bf16.msra.mxu0 %v2682
    %5311 = vmatprep.subr.bf16.mxu0 %v2671
    %5312 = vmatpush1.bf16.msra.mxu0 %v2670
    %5313 = vmatprep.subr.bf16.mxu0 %v2659
    %5314 = vmatpush1.bf16.msra.mxu0 %v2658
    %5315 = vmatprep.subr.bf16.mxu0 %v2647
    %5316 = vmatpush1.bf16.msra.mxu0 %v2646
    %5317 = vmatprep.subr.bf16.mxu0 %v2635
    %5318 = vmatpush1.bf16.msra.mxu0 %v2634
    %5319 = vmatprep.subr.bf16.mxu0 %v2815
    %5320 = vmatpush2.bf16.msra.mxu0 %v2814
    %5321 = vmatprep.subr.bf16.mxu0 %v2803
    %5322 = vmatpush2.bf16.msra.mxu0 %v2802
    %5323 = vmatprep.subr.bf16.mxu0 %v2791
    %5324 = vmatpush2.bf16.msra.mxu0 %v2790
    %5325 = vmatprep.subr.bf16.mxu0 %v2779
    %5326 = vmatpush2.bf16.msra.mxu0 %v2778
    %5327 = vmatprep.subr.bf16.mxu0 %v2767
    %5328 = vmatpush2.bf16.msra.mxu0 %v2766
    %5329 = vmatprep.subr.bf16.mxu0 %v2755
    %5330 = vmatpush2.bf16.msra.mxu0 %v2754
    %5331 = vmatprep.subr.bf16.mxu0 %v2743
    %5332 = vmatpush2.bf16.msra.mxu0 %v2742
    %5333 = vmatprep.subr.bf16.mxu0 %v2731
    %5334 = vmatpush2.bf16.msra.mxu0 %v2730
    %5335 = vmatprep.mubr.bf16.mxu0 %v5015
    %5336 = vmatmul.mubr.bf16.gmra.mxu0 %v5014
    %v5337 = vpop.f32.mrf.mxu0
    %v5338 = vadd.f32 %v5297, %v5337
    %v5339 = vpop.f32.mrf.mxu0
    %v5340 = vadd.f32 %v5299, %v5339
    %v5341 = vpop.f32.mrf.mxu0
    %v5342 = vpop.f32.mrf.mxu0
    %5343 = vdwg.mxu0
    %5344 = vmatprep.subr.bf16.mxu0 %v2529
    %5345 = vmatpush1.bf16.msra.mxu0 %v2528
    %5346 = vmatprep.subr.bf16.mxu0 %v2517
    %5347 = vmatpush1.bf16.msra.mxu0 %v2516
    %5348 = vmatprep.subr.bf16.mxu0 %v2505
    %5349 = vmatpush1.bf16.msra.mxu0 %v2504
    %5350 = vmatprep.subr.bf16.mxu0 %v2493
    %5351 = vmatpush1.bf16.msra.mxu0 %v2492
    %5352 = vmatprep.subr.bf16.mxu0 %v2481
    %5353 = vmatpush1.bf16.msra.mxu0 %v2480
    %5354 = vmatprep.subr.bf16.mxu0 %v2469
    %5355 = vmatpush1.bf16.msra.mxu0 %v2468
    %5356 = vmatprep.subr.bf16.mxu0 %v2457
    %5357 = vmatpush1.bf16.msra.mxu0 %v2456
    %5358 = vmatprep.subr.bf16.mxu0 %v2445
    %5359 = vmatpush1.bf16.msra.mxu0 %v2444
    %5360 = vmatprep.subr.bf16.mxu0 %v2625
    %5361 = vmatpush2.bf16.msra.mxu0 %v2624
    %5362 = vmatprep.subr.bf16.mxu0 %v2613
    %5363 = vmatpush2.bf16.msra.mxu0 %v2612
    %5364 = vmatprep.subr.bf16.mxu0 %v2601
    %5365 = vmatpush2.bf16.msra.mxu0 %v2600
    %5366 = vmatprep.subr.bf16.mxu0 %v2589
    %5367 = vmatpush2.bf16.msra.mxu0 %v2588
    %5368 = vmatprep.subr.bf16.mxu0 %v2577
    %5369 = vmatpush2.bf16.msra.mxu0 %v2576
    %5370 = vmatprep.subr.bf16.mxu0 %v2565
    %5371 = vmatpush2.bf16.msra.mxu0 %v2564
    %5372 = vmatprep.subr.bf16.mxu0 %v2553
    %5373 = vmatpush2.bf16.msra.mxu0 %v2552
    %5374 = vmatprep.subr.bf16.mxu0 %v2541
    %5375 = vmatpush2.bf16.msra.mxu0 %v2540
    %5376 = vmatprep.mubr.bf16.mxu0 %v5013
    %5377 = vmatmul.mubr.bf16.gmra.mxu0 %v5012
    %v5378 = vpop.f32.mrf.mxu0
    %v5379 = vadd.f32 0.0, %v5378
    %v5380 = vpop.f32.mrf.mxu0
    %v5381 = vadd.f32 0.0, %v5380
    %v5382 = vpop.f32.mrf.mxu0
    %v5383 = vpop.f32.mrf.mxu0
    %5384 = vdwg.mxu0
    %5385 = vmatprep.subr.bf16.mxu0 %v2721
    %5386 = vmatpush1.bf16.msra.mxu0 %v2720
    %5387 = vmatprep.subr.bf16.mxu0 %v2709
    %5388 = vmatpush1.bf16.msra.mxu0 %v2708
    %5389 = vmatprep.subr.bf16.mxu0 %v2697
    %5390 = vmatpush1.bf16.msra.mxu0 %v2696
    %5391 = vmatprep.subr.bf16.mxu0 %v2685
    %5392 = vmatpush1.bf16.msra.mxu0 %v2684
    %5393 = vmatprep.subr.bf16.mxu0 %v2673
    %5394 = vmatpush1.bf16.msra.mxu0 %v2672
    %5395 = vmatprep.subr.bf16.mxu0 %v2661
    %5396 = vmatpush1.bf16.msra.mxu0 %v2660
    %5397 = vmatprep.subr.bf16.mxu0 %v2649
    %5398 = vmatpush1.bf16.msra.mxu0 %v2648
    %5399 = vmatprep.subr.bf16.mxu0 %v2637
    %5400 = vmatpush1.bf16.msra.mxu0 %v2636
    %5401 = vmatprep.subr.bf16.mxu0 %v2817
    %5402 = vmatpush2.bf16.msra.mxu0 %v2816
    %5403 = vmatprep.subr.bf16.mxu0 %v2805
    %5404 = vmatpush2.bf16.msra.mxu0 %v2804
    %5405 = vmatprep.subr.bf16.mxu0 %v2793
    %5406 = vmatpush2.bf16.msra.mxu0 %v2792
    %5407 = vmatprep.subr.bf16.mxu0 %v2781
    %5408 = vmatpush2.bf16.msra.mxu0 %v2780
    %5409 = vmatprep.subr.bf16.mxu0 %v2769
    %5410 = vmatpush2.bf16.msra.mxu0 %v2768
    %5411 = vmatprep.subr.bf16.mxu0 %v2757
    %5412 = vmatpush2.bf16.msra.mxu0 %v2756
    %5413 = vmatprep.subr.bf16.mxu0 %v2745
    %5414 = vmatpush2.bf16.msra.mxu0 %v2744
    %5415 = vmatprep.subr.bf16.mxu0 %v2733
    %5416 = vmatpush2.bf16.msra.mxu0 %v2732
    %5417 = vmatprep.mubr.bf16.mxu0 %v5015
    %5418 = vmatmul.mubr.bf16.gmra.mxu0 %v5014
    %v5419 = vpop.f32.mrf.mxu0
    %v5420 = vadd.f32 %v5379, %v5419
    %v5421 = vpop.f32.mrf.mxu0
    %v5422 = vadd.f32 %v5381, %v5421
    %v5423 = vpop.f32.mrf.mxu0
    %v5424 = vpop.f32.mrf.mxu0
    %5425 = vdwg.mxu0
    %5426 = vmatprep.subr.bf16.mxu0 %v2531
    %5427 = vmatpush1.bf16.msra.mxu0 %v2530
    %5428 = vmatprep.subr.bf16.mxu0 %v2519
    %5429 = vmatpush1.bf16.msra.mxu0 %v2518
    %5430 = vmatprep.subr.bf16.mxu0 %v2507
    %5431 = vmatpush1.bf16.msra.mxu0 %v2506
    %5432 = vmatprep.subr.bf16.mxu0 %v2495
    %5433 = vmatpush1.bf16.msra.mxu0 %v2494
    %5434 = vmatprep.subr.bf16.mxu0 %v2483
    %5435 = vmatpush1.bf16.msra.mxu0 %v2482
    %5436 = vmatprep.subr.bf16.mxu0 %v2471
    %5437 = vmatpush1.bf16.msra.mxu0 %v2470
    %5438 = vmatprep.subr.bf16.mxu0 %v2459
    %5439 = vmatpush1.bf16.msra.mxu0 %v2458
    %5440 = vmatprep.subr.bf16.mxu0 %v2447
    %5441 = vmatpush1.bf16.msra.mxu0 %v2446
    %5442 = vmatprep.subr.bf16.mxu0 %v2627
    %5443 = vmatpush2.bf16.msra.mxu0 %v2626
    %5444 = vmatprep.subr.bf16.mxu0 %v2615
    %5445 = vmatpush2.bf16.msra.mxu0 %v2614
    %5446 = vmatprep.subr.bf16.mxu0 %v2603
    %5447 = vmatpush2.bf16.msra.mxu0 %v2602
    %5448 = vmatprep.subr.bf16.mxu0 %v2591
    %5449 = vmatpush2.bf16.msra.mxu0 %v2590
    %5450 = vmatprep.subr.bf16.mxu0 %v2579
    %5451 = vmatpush2.bf16.msra.mxu0 %v2578
    %5452 = vmatprep.subr.bf16.mxu0 %v2567
    %5453 = vmatpush2.bf16.msra.mxu0 %v2566
    %5454 = vmatprep.subr.bf16.mxu0 %v2555
    %5455 = vmatpush2.bf16.msra.mxu0 %v2554
    %5456 = vmatprep.subr.bf16.mxu0 %v2543
    %5457 = vmatpush2.bf16.msra.mxu0 %v2542
    %5458 = vmatprep.mubr.bf16.mxu0 %v5013
    %5459 = vmatmul.mubr.bf16.gmra.mxu0 %v5012
    %v5460 = vpop.f32.mrf.mxu0
    %v5461 = vadd.f32 0.0, %v5460
    %v5462 = vpop.f32.mrf.mxu0
    %v5463 = vadd.f32 0.0, %v5462
    %v5464 = vpop.f32.mrf.mxu0
    %v5465 = vpop.f32.mrf.mxu0
    %5466 = vdwg.mxu0
    %5467 = vmatprep.subr.bf16.mxu0 %v2723
    %5468 = vmatpush1.bf16.msra.mxu0 %v2722
    %5469 = vmatprep.subr.bf16.mxu0 %v2711
    %5470 = vmatpush1.bf16.msra.mxu0 %v2710
    %5471 = vmatprep.subr.bf16.mxu0 %v2699
    %5472 = vmatpush1.bf16.msra.mxu0 %v2698
    %5473 = vmatprep.subr.bf16.mxu0 %v2687
    %5474 = vmatpush1.bf16.msra.mxu0 %v2686
    %5475 = vmatprep.subr.bf16.mxu0 %v2675
    %5476 = vmatpush1.bf16.msra.mxu0 %v2674
    %5477 = vmatprep.subr.bf16.mxu0 %v2663
    %5478 = vmatpush1.bf16.msra.mxu0 %v2662
    %5479 = vmatprep.subr.bf16.mxu0 %v2651
    %5480 = vmatpush1.bf16.msra.mxu0 %v2650
    %5481 = vmatprep.subr.bf16.mxu0 %v2639
    %5482 = vmatpush1.bf16.msra.mxu0 %v2638
    %5483 = vmatprep.subr.bf16.mxu0 %v2819
    %5484 = vmatpush2.bf16.msra.mxu0 %v2818
    %5485 = vmatprep.subr.bf16.mxu0 %v2807
    %5486 = vmatpush2.bf16.msra.mxu0 %v2806
    %5487 = vmatprep.subr.bf16.mxu0 %v2795
    %5488 = vmatpush2.bf16.msra.mxu0 %v2794
    %5489 = vmatprep.subr.bf16.mxu0 %v2783
    %5490 = vmatpush2.bf16.msra.mxu0 %v2782
    %5491 = vmatprep.subr.bf16.mxu0 %v2771
    %5492 = vmatpush2.bf16.msra.mxu0 %v2770
    %5493 = vmatprep.subr.bf16.mxu0 %v2759
    %5494 = vmatpush2.bf16.msra.mxu0 %v2758
    %5495 = vmatprep.subr.bf16.mxu0 %v2747
    %5496 = vmatpush2.bf16.msra.mxu0 %v2746
    %5497 = vmatprep.subr.bf16.mxu0 %v2735
    %5498 = vmatpush2.bf16.msra.mxu0 %v2734
    %5499 = vmatprep.mubr.bf16.mxu0 %v5015
    %5500 = vmatmul.mubr.bf16.gmra.mxu0 %v5014
    %v5501 = vpop.f32.mrf.mxu0
    %v5502 = vadd.f32 %v5461, %v5501
    %v5503 = vpop.f32.mrf.mxu0
    %v5504 = vadd.f32 %v5463, %v5503
    %v5505 = vpop.f32.mrf.mxu0
    %v5506 = vpop.f32.mrf.mxu0
    %5507 = vdwg.mxu0
    %v5508 = vadd.f32 %v5000, %v5092
    %v5509 = vadd.f32 %v5001, %v5094
    %v5510 = vadd.f32 %v5002, %v5174
    %v5511 = vadd.f32 %v5003, %v5176
    %v5512 = vxor.u32 %v5508, 2147483648
    %v5513 = vxor.u32 %v5509, 2147483648
    %v5514 = vxor.u32 %v5510, 2147483648
    %v5515 = vxor.u32 %v5511, 2147483648
    %v5516 = vmul.f32 %v5512, 1.442695
    %v5517 = vpow.pop %v5516
    %v5518 = vmul.f32 %v5513, 1.442695
    %v5519 = vpow.pop %v5518
    %v5520 = vmul.f32 %v5514, 1.442695
    %v5521 = vpow.pop %v5520
    %v5522 = vmul.f32 %v5515, 1.442695
    %v5523 = vpow.pop %v5522
    %v5524 = vadd.f32 %v5517, 1.0
    %v5525 = vadd.f32 %v5519, 1.0
    %v5526 = vadd.f32 %v5521, 1.0
    %v5527 = vadd.f32 %v5523, 1.0
    %v5528 = vrcp.pop %v5524
    %v5529 = vmul.f32 1.0, %v5528
    %v5530 = vrcp.pop %v5525
    %v5531 = vmul.f32 1.0, %v5530
    %v5532 = vrcp.pop %v5526
    %v5533 = vmul.f32 1.0, %v5532
    %v5534 = vrcp.pop %v5527
    %v5535 = vmul.f32 1.0, %v5534
    %v5536 = vadd.f32 %v5004, %v5256
    %v5537 = vadd.f32 %v5005, %v5258
    %v5538 = vadd.f32 %v5006, %v5338
    %v5539 = vadd.f32 %v5007, %v5340
    %v5540 = vxor.u32 %v5536, 2147483648
    %v5541 = vxor.u32 %v5537, 2147483648
    %v5542 = vxor.u32 %v5538, 2147483648
    %v5543 = vxor.u32 %v5539, 2147483648
    %v5544 = vmul.f32 %v5540, 1.442695
    %v5545 = vpow.pop %v5544
    %v5546 = vmul.f32 %v5541, 1.442695
    %v5547 = vpow.pop %v5546
    %v5548 = vmul.f32 %v5542, 1.442695
    %v5549 = vpow.pop %v5548
    %v5550 = vmul.f32 %v5543, 1.442695
    %v5551 = vpow.pop %v5550
    %v5552 = vadd.f32 %v5545, 1.0
    %v5553 = vadd.f32 %v5547, 1.0
    %v5554 = vadd.f32 %v5549, 1.0
    %v5555 = vadd.f32 %v5551, 1.0
    %v5556 = vrcp.pop %v5552
    %v5557 = vmul.f32 1.0, %v5556
    %v5558 = vrcp.pop %v5553
    %v5559 = vmul.f32 1.0, %v5558
    %v5560 = vrcp.pop %v5554
    %v5561 = vmul.f32 1.0, %v5560
    %v5562 = vrcp.pop %v5555
    %v5563 = vmul.f32 1.0, %v5562
    %v5564 = vadd.f32 %v5420, %v3756
    %v5565 = vadd.f32 %v5422, %v3760
    %v5566 = vadd.f32 %v5502, %v3764
    %v5567 = vadd.f32 %v5504, %v3768
    %v5568 = vmul.f32 %v5529, %v5564
    %v5569 = vmul.f32 %v5531, %v5565
    %v5570 = vmul.f32 %v5533, %v5566
    %v5571 = vmul.f32 %v5535, %v5567
    %v5572 = vadd.f32 %v5008, %v5568
    %v5573 = vadd.f32 %v5009, %v5569
    %v5574 = vadd.f32 %v5010, %v5570
    %v5575 = vadd.f32 %v5011, %v5571
    %v5576 = vtanh.pop %v5572
    %v5577 = vtanh.pop %v5573
    %v5578 = vtanh.pop %v5574
    %v5579 = vtanh.pop %v5575
    %v5580 = vsub.f32 1.0, %v5557
    %v5581 = vsub.f32 1.0, %v5559
    %v5582 = vsub.f32 1.0, %v5561
    %v5583 = vsub.f32 1.0, %v5563
    %v5584 = vmul.f32 %v5580, %v5576
    %v5585 = vmul.f32 %v5581, %v5577
    %v5586 = vmul.f32 %v5582, %v5578
    %v5587 = vmul.f32 %v5583, %v5579
    %v5588 = vmul.f32 %v5557, %v4995
    %v5589 = vmul.f32 %v5559, %v4996
    %v5590 = vmul.f32 %v5561, %v4997
    %v5591 = vmul.f32 %v5563, %v4998
    %v5592 = vadd.f32 %v5584, %v5588
    %v5593 = vadd.f32 %v5585, %v5589
    %v5594 = vadd.f32 %v5586, %v5590
    %v5595 = vadd.f32 %v5587, %v5591
    %s5596 = scalar_lea.vmem [#allocation2], 384
    %v5597 = vld [vmem:[%s5596] sm:$0xff]
    %v5598 = vld [vmem:[%s5596 + $0x8] sm:$0xff]
    %v5599 = vld [vmem:[%s5596 + $0x10] sm:$0xff]
    %v5600 = vld [vmem:[%s5596 + $0x18] sm:$0xff]
    %v5601 = vld [vmem:[%s5596 + $0x20] sm:$0xff]
    %v5602 = vld [vmem:[%s5596 + $0x28] sm:$0xff]
    %v5603 = vld [vmem:[%s5596 + $0x30] sm:$0xff]
    %v5604 = vld [vmem:[%s5596 + $0x38] sm:$0xff]
    %v5605 = vld [vmem:[%s5596 + $0x40] sm:$0xff]
    %v5606 = vld [vmem:[%s5596 + $0x48] sm:$0xff]
    %v5607 = vld [vmem:[%s5596 + $0x50] sm:$0xff]
    %v5608 = vld [vmem:[%s5596 + $0x58] sm:$0xff]
    %v5609 = vpack.c.bf16 %v5592, %v5592
    %v5610 = vpack.c.bf16 %v5593, %v5593
    %v5611 = vpack.c.bf16 %v5594, %v5594
    %v5612 = vpack.c.bf16 %v5595, %v5595
    %5613 = vmatprep.subr.bf16.mxu0 %v2521
    %5614 = vmatpush1.bf16.msra.mxu0 %v2520
    %5615 = vmatprep.subr.bf16.mxu0 %v2509
    %5616 = vmatpush1.bf16.msra.mxu0 %v2508
    %5617 = vmatprep.subr.bf16.mxu0 %v2497
    %5618 = vmatpush1.bf16.msra.mxu0 %v2496
    %5619 = vmatprep.subr.bf16.mxu0 %v2485
    %5620 = vmatpush1.bf16.msra.mxu0 %v2484
    %5621 = vmatprep.subr.bf16.mxu0 %v2473
    %5622 = vmatpush1.bf16.msra.mxu0 %v2472
    %5623 = vmatprep.subr.bf16.mxu0 %v2461
    %5624 = vmatpush1.bf16.msra.mxu0 %v2460
    %5625 = vmatprep.subr.bf16.mxu0 %v2449
    %5626 = vmatpush1.bf16.msra.mxu0 %v2448
    %5627 = vmatprep.subr.bf16.mxu0 %v2437
    %5628 = vmatpush1.bf16.msra.mxu0 %v2436
    %5629 = vmatprep.subr.bf16.mxu0 %v2617
    %5630 = vmatpush2.bf16.msra.mxu0 %v2616
    %5631 = vmatprep.subr.bf16.mxu0 %v2605
    %5632 = vmatpush2.bf16.msra.mxu0 %v2604
    %5633 = vmatprep.subr.bf16.mxu0 %v2593
    %5634 = vmatpush2.bf16.msra.mxu0 %v2592
    %5635 = vmatprep.subr.bf16.mxu0 %v2581
    %5636 = vmatpush2.bf16.msra.mxu0 %v2580
    %5637 = vmatprep.subr.bf16.mxu0 %v2569
    %5638 = vmatpush2.bf16.msra.mxu0 %v2568
    %5639 = vmatprep.subr.bf16.mxu0 %v2557
    %5640 = vmatpush2.bf16.msra.mxu0 %v2556
    %5641 = vmatprep.subr.bf16.mxu0 %v2545
    %5642 = vmatpush2.bf16.msra.mxu0 %v2544
    %5643 = vmatprep.subr.bf16.mxu0 %v2533
    %5644 = vmatpush2.bf16.msra.mxu0 %v2532
    %5645 = vmatprep.mubr.bf16.mxu0 %v5610
    %5646 = vmatmul.mubr.bf16.gmra.mxu0 %v5609
    %v5647 = vpop.f32.mrf.mxu0
    %v5648 = vadd.f32 0.0, %v5647
    %v5649 = vpop.f32.mrf.mxu0
    %v5650 = vadd.f32 0.0, %v5649
    %v5651 = vpop.f32.mrf.mxu0
    %v5652 = vpop.f32.mrf.mxu0
    %5653 = vdwg.mxu0
    %5654 = vmatprep.subr.bf16.mxu0 %v2713
    %5655 = vmatpush1.bf16.msra.mxu0 %v2712
    %5656 = vmatprep.subr.bf16.mxu0 %v2701
    %5657 = vmatpush1.bf16.msra.mxu0 %v2700
    %5658 = vmatprep.subr.bf16.mxu0 %v2689
    %5659 = vmatpush1.bf16.msra.mxu0 %v2688
    %5660 = vmatprep.subr.bf16.mxu0 %v2677
    %5661 = vmatpush1.bf16.msra.mxu0 %v2676
    %5662 = vmatprep.subr.bf16.mxu0 %v2665
    %5663 = vmatpush1.bf16.msra.mxu0 %v2664
    %5664 = vmatprep.subr.bf16.mxu0 %v2653
    %5665 = vmatpush1.bf16.msra.mxu0 %v2652
    %5666 = vmatprep.subr.bf16.mxu0 %v2641
    %5667 = vmatpush1.bf16.msra.mxu0 %v2640
    %5668 = vmatprep.subr.bf16.mxu0 %v2629
    %5669 = vmatpush1.bf16.msra.mxu0 %v2628
    %5670 = vmatprep.subr.bf16.mxu0 %v2809
    %5671 = vmatpush2.bf16.msra.mxu0 %v2808
    %5672 = vmatprep.subr.bf16.mxu0 %v2797
    %5673 = vmatpush2.bf16.msra.mxu0 %v2796
    %5674 = vmatprep.subr.bf16.mxu0 %v2785
    %5675 = vmatpush2.bf16.msra.mxu0 %v2784
    %5676 = vmatprep.subr.bf16.mxu0 %v2773
    %5677 = vmatpush2.bf16.msra.mxu0 %v2772
    %5678 = vmatprep.subr.bf16.mxu0 %v2761
    %5679 = vmatpush2.bf16.msra.mxu0 %v2760
    %5680 = vmatprep.subr.bf16.mxu0 %v2749
    %5681 = vmatpush2.bf16.msra.mxu0 %v2748
    %5682 = vmatprep.subr.bf16.mxu0 %v2737
    %5683 = vmatpush2.bf16.msra.mxu0 %v2736
    %5684 = vmatprep.subr.bf16.mxu0 %v2725
    %5685 = vmatpush2.bf16.msra.mxu0 %v2724
    %5686 = vmatprep.mubr.bf16.mxu0 %v5612
    %5687 = vmatmul.mubr.bf16.gmra.mxu0 %v5611
    %v5688 = vpop.f32.mrf.mxu0
    %v5689 = vadd.f32 %v5648, %v5688
    %v5690 = vpop.f32.mrf.mxu0
    %v5691 = vadd.f32 %v5650, %v5690
    %v5692 = vpop.f32.mrf.mxu0
    %v5693 = vpop.f32.mrf.mxu0
    %5694 = vdwg.mxu0
    %5695 = vmatprep.subr.bf16.mxu0 %v2523
    %5696 = vmatpush1.bf16.msra.mxu0 %v2522
    %5697 = vmatprep.subr.bf16.mxu0 %v2511
    %5698 = vmatpush1.bf16.msra.mxu0 %v2510
    %5699 = vmatprep.subr.bf16.mxu0 %v2499
    %5700 = vmatpush1.bf16.msra.mxu0 %v2498
    %5701 = vmatprep.subr.bf16.mxu0 %v2487
    %5702 = vmatpush1.bf16.msra.mxu0 %v2486
    %5703 = vmatprep.subr.bf16.mxu0 %v2475
    %5704 = vmatpush1.bf16.msra.mxu0 %v2474
    %5705 = vmatprep.subr.bf16.mxu0 %v2463
    %5706 = vmatpush1.bf16.msra.mxu0 %v2462
    %5707 = vmatprep.subr.bf16.mxu0 %v2451
    %5708 = vmatpush1.bf16.msra.mxu0 %v2450
    %5709 = vmatprep.subr.bf16.mxu0 %v2439
    %5710 = vmatpush1.bf16.msra.mxu0 %v2438
    %5711 = vmatprep.subr.bf16.mxu0 %v2619
    %5712 = vmatpush2.bf16.msra.mxu0 %v2618
    %5713 = vmatprep.subr.bf16.mxu0 %v2607
    %5714 = vmatpush2.bf16.msra.mxu0 %v2606
    %5715 = vmatprep.subr.bf16.mxu0 %v2595
    %5716 = vmatpush2.bf16.msra.mxu0 %v2594
    %5717 = vmatprep.subr.bf16.mxu0 %v2583
    %5718 = vmatpush2.bf16.msra.mxu0 %v2582
    %5719 = vmatprep.subr.bf16.mxu0 %v2571
    %5720 = vmatpush2.bf16.msra.mxu0 %v2570
    %5721 = vmatprep.subr.bf16.mxu0 %v2559
    %5722 = vmatpush2.bf16.msra.mxu0 %v2558
    %5723 = vmatprep.subr.bf16.mxu0 %v2547
    %5724 = vmatpush2.bf16.msra.mxu0 %v2546
    %5725 = vmatprep.subr.bf16.mxu0 %v2535
    %5726 = vmatpush2.bf16.msra.mxu0 %v2534
    %5727 = vmatprep.mubr.bf16.mxu0 %v5610
    %5728 = vmatmul.mubr.bf16.gmra.mxu0 %v5609
    %v5729 = vpop.f32.mrf.mxu0
    %v5730 = vadd.f32 0.0, %v5729
    %v5731 = vpop.f32.mrf.mxu0
    %v5732 = vadd.f32 0.0, %v5731
    %v5733 = vpop.f32.mrf.mxu0
    %v5734 = vpop.f32.mrf.mxu0
    %5735 = vdwg.mxu0
    %5736 = vmatprep.subr.bf16.mxu0 %v2715
    %5737 = vmatpush1.bf16.msra.mxu0 %v2714
    %5738 = vmatprep.subr.bf16.mxu0 %v2703
    %5739 = vmatpush1.bf16.msra.mxu0 %v2702
    %5740 = vmatprep.subr.bf16.mxu0 %v2691
    %5741 = vmatpush1.bf16.msra.mxu0 %v2690
    %5742 = vmatprep.subr.bf16.mxu0 %v2679
    %5743 = vmatpush1.bf16.msra.mxu0 %v2678
    %5744 = vmatprep.subr.bf16.mxu0 %v2667
    %5745 = vmatpush1.bf16.msra.mxu0 %v2666
    %5746 = vmatprep.subr.bf16.mxu0 %v2655
    %5747 = vmatpush1.bf16.msra.mxu0 %v2654
    %5748 = vmatprep.subr.bf16.mxu0 %v2643
    %5749 = vmatpush1.bf16.msra.mxu0 %v2642
    %5750 = vmatprep.subr.bf16.mxu0 %v2631
    %5751 = vmatpush1.bf16.msra.mxu0 %v2630
    %5752 = vmatprep.subr.bf16.mxu0 %v2811
    %5753 = vmatpush2.bf16.msra.mxu0 %v2810
    %5754 = vmatprep.subr.bf16.mxu0 %v2799
    %5755 = vmatpush2.bf16.msra.mxu0 %v2798
    %5756 = vmatprep.subr.bf16.mxu0 %v2787
    %5757 = vmatpush2.bf16.msra.mxu0 %v2786
    %5758 = vmatprep.subr.bf16.mxu0 %v2775
    %5759 = vmatpush2.bf16.msra.mxu0 %v2774
    %5760 = vmatprep.subr.bf16.mxu0 %v2763
    %5761 = vmatpush2.bf16.msra.mxu0 %v2762
    %5762 = vmatprep.subr.bf16.mxu0 %v2751
    %5763 = vmatpush2.bf16.msra.mxu0 %v2750
    %5764 = vmatprep.subr.bf16.mxu0 %v2739
    %5765 = vmatpush2.bf16.msra.mxu0 %v2738
    %5766 = vmatprep.subr.bf16.mxu0 %v2727
    %5767 = vmatpush2.bf16.msra.mxu0 %v2726
    %5768 = vmatprep.mubr.bf16.mxu0 %v5612
    %5769 = vmatmul.mubr.bf16.gmra.mxu0 %v5611
    %v5770 = vpop.f32.mrf.mxu0
    %v5771 = vadd.f32 %v5730, %v5770
    %v5772 = vpop.f32.mrf.mxu0
    %v5773 = vadd.f32 %v5732, %v5772
    %v5774 = vpop.f32.mrf.mxu0
    %v5775 = vpop.f32.mrf.mxu0
    %5776 = vdwg.mxu0
    %5777 = vmatprep.subr.bf16.mxu0 %v2525
    %5778 = vmatpush1.bf16.msra.mxu0 %v2524
    %5779 = vmatprep.subr.bf16.mxu0 %v2513
    %5780 = vmatpush1.bf16.msra.mxu0 %v2512
    %5781 = vmatprep.subr.bf16.mxu0 %v2501
    %5782 = vmatpush1.bf16.msra.mxu0 %v2500
    %5783 = vmatprep.subr.bf16.mxu0 %v2489
    %5784 = vmatpush1.bf16.msra.mxu0 %v2488
    %5785 = vmatprep.subr.bf16.mxu0 %v2477
    %5786 = vmatpush1.bf16.msra.mxu0 %v2476
    %5787 = vmatprep.subr.bf16.mxu0 %v2465
    %5788 = vmatpush1.bf16.msra.mxu0 %v2464
    %5789 = vmatprep.subr.bf16.mxu0 %v2453
    %5790 = vmatpush1.bf16.msra.mxu0 %v2452
    %5791 = vmatprep.subr.bf16.mxu0 %v2441
    %5792 = vmatpush1.bf16.msra.mxu0 %v2440
    %5793 = vmatprep.subr.bf16.mxu0 %v2621
    %5794 = vmatpush2.bf16.msra.mxu0 %v2620
    %5795 = vmatprep.subr.bf16.mxu0 %v2609
    %5796 = vmatpush2.bf16.msra.mxu0 %v2608
    %5797 = vmatprep.subr.bf16.mxu0 %v2597
    %5798 = vmatpush2.bf16.msra.mxu0 %v2596
    %5799 = vmatprep.subr.bf16.mxu0 %v2585
    %5800 = vmatpush2.bf16.msra.mxu0 %v2584
    %5801 = vmatprep.subr.bf16.mxu0 %v2573
    %5802 = vmatpush2.bf16.msra.mxu0 %v2572
    %5803 = vmatprep.subr.bf16.mxu0 %v2561
    %5804 = vmatpush2.bf16.msra.mxu0 %v2560
    %5805 = vmatprep.subr.bf16.mxu0 %v2549
    %5806 = vmatpush2.bf16.msra.mxu0 %v2548
    %5807 = vmatprep.subr.bf16.mxu0 %v2537
    %5808 = vmatpush2.bf16.msra.mxu0 %v2536
    %5809 = vmatprep.mubr.bf16.mxu0 %v5610
    %5810 = vmatmul.mubr.bf16.gmra.mxu0 %v5609
    %v5811 = vpop.f32.mrf.mxu0
    %v5812 = vadd.f32 0.0, %v5811
    %v5813 = vpop.f32.mrf.mxu0
    %v5814 = vadd.f32 0.0, %v5813
    %v5815 = vpop.f32.mrf.mxu0
    %v5816 = vpop.f32.mrf.mxu0
    %5817 = vdwg.mxu0
    %5818 = vmatprep.subr.bf16.mxu0 %v2717
    %5819 = vmatpush1.bf16.msra.mxu0 %v2716
    %5820 = vmatprep.subr.bf16.mxu0 %v2705
    %5821 = vmatpush1.bf16.msra.mxu0 %v2704
    %5822 = vmatprep.subr.bf16.mxu0 %v2693
    %5823 = vmatpush1.bf16.msra.mxu0 %v2692
    %5824 = vmatprep.subr.bf16.mxu0 %v2681
    %5825 = vmatpush1.bf16.msra.mxu0 %v2680
    %5826 = vmatprep.subr.bf16.mxu0 %v2669
    %5827 = vmatpush1.bf16.msra.mxu0 %v2668
    %5828 = vmatprep.subr.bf16.mxu0 %v2657
    %5829 = vmatpush1.bf16.msra.mxu0 %v2656
    %5830 = vmatprep.subr.bf16.mxu0 %v2645
    %5831 = vmatpush1.bf16.msra.mxu0 %v2644
    %5832 = vmatprep.subr.bf16.mxu0 %v2633
    %5833 = vmatpush1.bf16.msra.mxu0 %v2632
    %5834 = vmatprep.subr.bf16.mxu0 %v2813
    %5835 = vmatpush2.bf16.msra.mxu0 %v2812
    %5836 = vmatprep.subr.bf16.mxu0 %v2801
    %5837 = vmatpush2.bf16.msra.mxu0 %v2800
    %5838 = vmatprep.subr.bf16.mxu0 %v2789
    %5839 = vmatpush2.bf16.msra.mxu0 %v2788
    %5840 = vmatprep.subr.bf16.mxu0 %v2777
    %5841 = vmatpush2.bf16.msra.mxu0 %v2776
    %5842 = vmatprep.subr.bf16.mxu0 %v2765
    %5843 = vmatpush2.bf16.msra.mxu0 %v2764
    %5844 = vmatprep.subr.bf16.mxu0 %v2753
    %5845 = vmatpush2.bf16.msra.mxu0 %v2752
    %5846 = vmatprep.subr.bf16.mxu0 %v2741
    %5847 = vmatpush2.bf16.msra.mxu0 %v2740
    %5848 = vmatprep.subr.bf16.mxu0 %v2729
    %5849 = vmatpush2.bf16.msra.mxu0 %v2728
    %5850 = vmatprep.mubr.bf16.mxu0 %v5612
    %5851 = vmatmul.mubr.bf16.gmra.mxu0 %v5611
    %v5852 = vpop.f32.mrf.mxu0
    %v5853 = vadd.f32 %v5812, %v5852
    %v5854 = vpop.f32.mrf.mxu0
    %v5855 = vadd.f32 %v5814, %v5854
    %v5856 = vpop.f32.mrf.mxu0
    %v5857 = vpop.f32.mrf.mxu0
    %5858 = vdwg.mxu0
    %5859 = vmatprep.subr.bf16.mxu0 %v2527
    %5860 = vmatpush1.bf16.msra.mxu0 %v2526
    %5861 = vmatprep.subr.bf16.mxu0 %v2515
    %5862 = vmatpush1.bf16.msra.mxu0 %v2514
    %5863 = vmatprep.subr.bf16.mxu0 %v2503
    %5864 = vmatpush1.bf16.msra.mxu0 %v2502
    %5865 = vmatprep.subr.bf16.mxu0 %v2491
    %5866 = vmatpush1.bf16.msra.mxu0 %v2490
    %5867 = vmatprep.subr.bf16.mxu0 %v2479
    %5868 = vmatpush1.bf16.msra.mxu0 %v2478
    %5869 = vmatprep.subr.bf16.mxu0 %v2467
    %5870 = vmatpush1.bf16.msra.mxu0 %v2466
    %5871 = vmatprep.subr.bf16.mxu0 %v2455
    %5872 = vmatpush1.bf16.msra.mxu0 %v2454
    %5873 = vmatprep.subr.bf16.mxu0 %v2443
    %5874 = vmatpush1.bf16.msra.mxu0 %v2442
    %5875 = vmatprep.subr.bf16.mxu0 %v2623
    %5876 = vmatpush2.bf16.msra.mxu0 %v2622
    %5877 = vmatprep.subr.bf16.mxu0 %v2611
    %5878 = vmatpush2.bf16.msra.mxu0 %v2610
    %5879 = vmatprep.subr.bf16.mxu0 %v2599
    %5880 = vmatpush2.bf16.msra.mxu0 %v2598
    %5881 = vmatprep.subr.bf16.mxu0 %v2587
    %5882 = vmatpush2.bf16.msra.mxu0 %v2586
    %5883 = vmatprep.subr.bf16.mxu0 %v2575
    %5884 = vmatpush2.bf16.msra.mxu0 %v2574
    %5885 = vmatprep.subr.bf16.mxu0 %v2563
    %5886 = vmatpush2.bf16.msra.mxu0 %v2562
    %5887 = vmatprep.subr.bf16.mxu0 %v2551
    %5888 = vmatpush2.bf16.msra.mxu0 %v2550
    %5889 = vmatprep.subr.bf16.mxu0 %v2539
    %5890 = vmatpush2.bf16.msra.mxu0 %v2538
    %5891 = vmatprep.mubr.bf16.mxu0 %v5610
    %5892 = vmatmul.mubr.bf16.gmra.mxu0 %v5609
    %v5893 = vpop.f32.mrf.mxu0
    %v5894 = vadd.f32 0.0, %v5893
    %v5895 = vpop.f32.mrf.mxu0
    %v5896 = vadd.f32 0.0, %v5895
    %v5897 = vpop.f32.mrf.mxu0
    %v5898 = vpop.f32.mrf.mxu0
    %5899 = vdwg.mxu0
    %5900 = vmatprep.subr.bf16.mxu0 %v2719
    %5901 = vmatpush1.bf16.msra.mxu0 %v2718
    %5902 = vmatprep.subr.bf16.mxu0 %v2707
    %5903 = vmatpush1.bf16.msra.mxu0 %v2706
    %5904 = vmatprep.subr.bf16.mxu0 %v2695
    %5905 = vmatpush1.bf16.msra.mxu0 %v2694
    %5906 = vmatprep.subr.bf16.mxu0 %v2683
    %5907 = vmatpush1.bf16.msra.mxu0 %v2682
    %5908 = vmatprep.subr.bf16.mxu0 %v2671
    %5909 = vmatpush1.bf16.msra.mxu0 %v2670
    %5910 = vmatprep.subr.bf16.mxu0 %v2659
    %5911 = vmatpush1.bf16.msra.mxu0 %v2658
    %5912 = vmatprep.subr.bf16.mxu0 %v2647
    %5913 = vmatpush1.bf16.msra.mxu0 %v2646
    %5914 = vmatprep.subr.bf16.mxu0 %v2635
    %5915 = vmatpush1.bf16.msra.mxu0 %v2634
    %5916 = vmatprep.subr.bf16.mxu0 %v2815
    %5917 = vmatpush2.bf16.msra.mxu0 %v2814
    %5918 = vmatprep.subr.bf16.mxu0 %v2803
    %5919 = vmatpush2.bf16.msra.mxu0 %v2802
    %5920 = vmatprep.subr.bf16.mxu0 %v2791
    %5921 = vmatpush2.bf16.msra.mxu0 %v2790
    %5922 = vmatprep.subr.bf16.mxu0 %v2779
    %5923 = vmatpush2.bf16.msra.mxu0 %v2778
    %5924 = vmatprep.subr.bf16.mxu0 %v2767
    %5925 = vmatpush2.bf16.msra.mxu0 %v2766
    %5926 = vmatprep.subr.bf16.mxu0 %v2755
    %5927 = vmatpush2.bf16.msra.mxu0 %v2754
    %5928 = vmatprep.subr.bf16.mxu0 %v2743
    %5929 = vmatpush2.bf16.msra.mxu0 %v2742
    %5930 = vmatprep.subr.bf16.mxu0 %v2731
    %5931 = vmatpush2.bf16.msra.mxu0 %v2730
    %5932 = vmatprep.mubr.bf16.mxu0 %v5612
    %5933 = vmatmul.mubr.bf16.gmra.mxu0 %v5611
    %v5934 = vpop.f32.mrf.mxu0
    %v5935 = vadd.f32 %v5894, %v5934
    %v5936 = vpop.f32.mrf.mxu0
    %v5937 = vadd.f32 %v5896, %v5936
    %v5938 = vpop.f32.mrf.mxu0
    %v5939 = vpop.f32.mrf.mxu0
    %5940 = vdwg.mxu0
    %5941 = vmatprep.subr.bf16.mxu0 %v2529
    %5942 = vmatpush1.bf16.msra.mxu0 %v2528
    %5943 = vmatprep.subr.bf16.mxu0 %v2517
    %5944 = vmatpush1.bf16.msra.mxu0 %v2516
    %5945 = vmatprep.subr.bf16.mxu0 %v2505
    %5946 = vmatpush1.bf16.msra.mxu0 %v2504
    %5947 = vmatprep.subr.bf16.mxu0 %v2493
    %5948 = vmatpush1.bf16.msra.mxu0 %v2492
    %5949 = vmatprep.subr.bf16.mxu0 %v2481
    %5950 = vmatpush1.bf16.msra.mxu0 %v2480
    %5951 = vmatprep.subr.bf16.mxu0 %v2469
    %5952 = vmatpush1.bf16.msra.mxu0 %v2468
    %5953 = vmatprep.subr.bf16.mxu0 %v2457
    %5954 = vmatpush1.bf16.msra.mxu0 %v2456
    %5955 = vmatprep.subr.bf16.mxu0 %v2445
    %5956 = vmatpush1.bf16.msra.mxu0 %v2444
    %5957 = vmatprep.subr.bf16.mxu0 %v2625
    %5958 = vmatpush2.bf16.msra.mxu0 %v2624
    %5959 = vmatprep.subr.bf16.mxu0 %v2613
    %5960 = vmatpush2.bf16.msra.mxu0 %v2612
    %5961 = vmatprep.subr.bf16.mxu0 %v2601
    %5962 = vmatpush2.bf16.msra.mxu0 %v2600
    %5963 = vmatprep.subr.bf16.mxu0 %v2589
    %5964 = vmatpush2.bf16.msra.mxu0 %v2588
    %5965 = vmatprep.subr.bf16.mxu0 %v2577
    %5966 = vmatpush2.bf16.msra.mxu0 %v2576
    %5967 = vmatprep.subr.bf16.mxu0 %v2565
    %5968 = vmatpush2.bf16.msra.mxu0 %v2564
    %5969 = vmatprep.subr.bf16.mxu0 %v2553
    %5970 = vmatpush2.bf16.msra.mxu0 %v2552
    %5971 = vmatprep.subr.bf16.mxu0 %v2541
    %5972 = vmatpush2.bf16.msra.mxu0 %v2540
    %5973 = vmatprep.mubr.bf16.mxu0 %v5610
    %5974 = vmatmul.mubr.bf16.gmra.mxu0 %v5609
    %v5975 = vpop.f32.mrf.mxu0
    %v5976 = vadd.f32 0.0, %v5975
    %v5977 = vpop.f32.mrf.mxu0
    %v5978 = vadd.f32 0.0, %v5977
    %v5979 = vpop.f32.mrf.mxu0
    %v5980 = vpop.f32.mrf.mxu0
    %5981 = vdwg.mxu0
    %5982 = vmatprep.subr.bf16.mxu0 %v2721
    %5983 = vmatpush1.bf16.msra.mxu0 %v2720
    %5984 = vmatprep.subr.bf16.mxu0 %v2709
    %5985 = vmatpush1.bf16.msra.mxu0 %v2708
    %5986 = vmatprep.subr.bf16.mxu0 %v2697
    %5987 = vmatpush1.bf16.msra.mxu0 %v2696
    %5988 = vmatprep.subr.bf16.mxu0 %v2685
    %5989 = vmatpush1.bf16.msra.mxu0 %v2684
    %5990 = vmatprep.subr.bf16.mxu0 %v2673
    %5991 = vmatpush1.bf16.msra.mxu0 %v2672
    %5992 = vmatprep.subr.bf16.mxu0 %v2661
    %5993 = vmatpush1.bf16.msra.mxu0 %v2660
    %5994 = vmatprep.subr.bf16.mxu0 %v2649
    %5995 = vmatpush1.bf16.msra.mxu0 %v2648
    %5996 = vmatprep.subr.bf16.mxu0 %v2637
    %5997 = vmatpush1.bf16.msra.mxu0 %v2636
    %5998 = vmatprep.subr.bf16.mxu0 %v2817
    %5999 = vmatpush2.bf16.msra.mxu0 %v2816
    %6000 = vmatprep.subr.bf16.mxu0 %v2805
    %6001 = vmatpush2.bf16.msra.mxu0 %v2804
    %6002 = vmatprep.subr.bf16.mxu0 %v2793
    %6003 = vmatpush2.bf16.msra.mxu0 %v2792
    %6004 = vmatprep.subr.bf16.mxu0 %v2781
    %6005 = vmatpush2.bf16.msra.mxu0 %v2780
    %6006 = vmatprep.subr.bf16.mxu0 %v2769
    %6007 = vmatpush2.bf16.msra.mxu0 %v2768
    %6008 = vmatprep.subr.bf16.mxu0 %v2757
    %6009 = vmatpush2.bf16.msra.mxu0 %v2756
    %6010 = vmatprep.subr.bf16.mxu0 %v2745
    %6011 = vmatpush2.bf16.msra.mxu0 %v2744
    %6012 = vmatprep.subr.bf16.mxu0 %v2733
    %6013 = vmatpush2.bf16.msra.mxu0 %v2732
    %6014 = vmatprep.mubr.bf16.mxu0 %v5612
    %6015 = vmatmul.mubr.bf16.gmra.mxu0 %v5611
    %v6016 = vpop.f32.mrf.mxu0
    %v6017 = vadd.f32 %v5976, %v6016
    %v6018 = vpop.f32.mrf.mxu0
    %v6019 = vadd.f32 %v5978, %v6018
    %v6020 = vpop.f32.mrf.mxu0
    %v6021 = vpop.f32.mrf.mxu0
    %6022 = vdwg.mxu0
    %6023 = vmatprep.subr.bf16.mxu0 %v2531
    %6024 = vmatpush1.bf16.msra.mxu0 %v2530
    %6025 = vmatprep.subr.bf16.mxu0 %v2519
    %6026 = vmatpush1.bf16.msra.mxu0 %v2518
    %6027 = vmatprep.subr.bf16.mxu0 %v2507
    %6028 = vmatpush1.bf16.msra.mxu0 %v2506
    %6029 = vmatprep.subr.bf16.mxu0 %v2495
    %6030 = vmatpush1.bf16.msra.mxu0 %v2494
    %6031 = vmatprep.subr.bf16.mxu0 %v2483
    %6032 = vmatpush1.bf16.msra.mxu0 %v2482
    %6033 = vmatprep.subr.bf16.mxu0 %v2471
    %6034 = vmatpush1.bf16.msra.mxu0 %v2470
    %6035 = vmatprep.subr.bf16.mxu0 %v2459
    %6036 = vmatpush1.bf16.msra.mxu0 %v2458
    %6037 = vmatprep.subr.bf16.mxu0 %v2447
    %6038 = vmatpush1.bf16.msra.mxu0 %v2446
    %6039 = vmatprep.subr.bf16.mxu0 %v2627
    %6040 = vmatpush2.bf16.msra.mxu0 %v2626
    %6041 = vmatprep.subr.bf16.mxu0 %v2615
    %6042 = vmatpush2.bf16.msra.mxu0 %v2614
    %6043 = vmatprep.subr.bf16.mxu0 %v2603
    %6044 = vmatpush2.bf16.msra.mxu0 %v2602
    %6045 = vmatprep.subr.bf16.mxu0 %v2591
    %6046 = vmatpush2.bf16.msra.mxu0 %v2590
    %6047 = vmatprep.subr.bf16.mxu0 %v2579
    %6048 = vmatpush2.bf16.msra.mxu0 %v2578
    %6049 = vmatprep.subr.bf16.mxu0 %v2567
    %6050 = vmatpush2.bf16.msra.mxu0 %v2566
    %6051 = vmatprep.subr.bf16.mxu0 %v2555
    %6052 = vmatpush2.bf16.msra.mxu0 %v2554
    %6053 = vmatprep.subr.bf16.mxu0 %v2543
    %6054 = vmatpush2.bf16.msra.mxu0 %v2542
    %6055 = vmatprep.mubr.bf16.mxu0 %v5610
    %6056 = vmatmul.mubr.bf16.gmra.mxu0 %v5609
    %v6057 = vpop.f32.mrf.mxu0
    %v6058 = vadd.f32 0.0, %v6057
    %v6059 = vpop.f32.mrf.mxu0
    %v6060 = vadd.f32 0.0, %v6059
    %v6061 = vpop.f32.mrf.mxu0
    %v6062 = vpop.f32.mrf.mxu0
    %6063 = vdwg.mxu0
    %6064 = vmatprep.subr.bf16.mxu0 %v2723
    %6065 = vmatpush1.bf16.msra.mxu0 %v2722
    %6066 = vmatprep.subr.bf16.mxu0 %v2711
    %6067 = vmatpush1.bf16.msra.mxu0 %v2710
    %6068 = vmatprep.subr.bf16.mxu0 %v2699
    %6069 = vmatpush1.bf16.msra.mxu0 %v2698
    %6070 = vmatprep.subr.bf16.mxu0 %v2687
    %6071 = vmatpush1.bf16.msra.mxu0 %v2686
    %6072 = vmatprep.subr.bf16.mxu0 %v2675
    %6073 = vmatpush1.bf16.msra.mxu0 %v2674
    %6074 = vmatprep.subr.bf16.mxu0 %v2663
    %6075 = vmatpush1.bf16.msra.mxu0 %v2662
    %6076 = vmatprep.subr.bf16.mxu0 %v2651
    %6077 = vmatpush1.bf16.msra.mxu0 %v2650
    %6078 = vmatprep.subr.bf16.mxu0 %v2639
    %6079 = vmatpush1.bf16.msra.mxu0 %v2638
    %6080 = vmatprep.subr.bf16.mxu0 %v2819
    %6081 = vmatpush2.bf16.msra.mxu0 %v2818
    %6082 = vmatprep.subr.bf16.mxu0 %v2807
    %6083 = vmatpush2.bf16.msra.mxu0 %v2806
    %6084 = vmatprep.subr.bf16.mxu0 %v2795
    %6085 = vmatpush2.bf16.msra.mxu0 %v2794
    %6086 = vmatprep.subr.bf16.mxu0 %v2783
    %6087 = vmatpush2.bf16.msra.mxu0 %v2782
    %6088 = vmatprep.subr.bf16.mxu0 %v2771
    %6089 = vmatpush2.bf16.msra.mxu0 %v2770
    %6090 = vmatprep.subr.bf16.mxu0 %v2759
    %6091 = vmatpush2.bf16.msra.mxu0 %v2758
    %6092 = vmatprep.subr.bf16.mxu0 %v2747
    %6093 = vmatpush2.bf16.msra.mxu0 %v2746
    %6094 = vmatprep.subr.bf16.mxu0 %v2735
    %6095 = vmatpush2.bf16.msra.mxu0 %v2734
    %6096 = vmatprep.mubr.bf16.mxu0 %v5612
    %6097 = vmatmul.mubr.bf16.gmra.mxu0 %v5611
    %v6098 = vpop.f32.mrf.mxu0
    %v6099 = vadd.f32 %v6058, %v6098
    %v6100 = vpop.f32.mrf.mxu0
    %v6101 = vadd.f32 %v6060, %v6100
    %v6102 = vpop.f32.mrf.mxu0
    %v6103 = vpop.f32.mrf.mxu0
    %6104 = vdwg.mxu0
    %v6105 = vadd.f32 %v5597, %v5689
    %v6106 = vadd.f32 %v5598, %v5691
    %v6107 = vadd.f32 %v5599, %v5771
    %v6108 = vadd.f32 %v5600, %v5773
    %v6109 = vxor.u32 %v6105, 2147483648
    %v6110 = vxor.u32 %v6106, 2147483648
    %v6111 = vxor.u32 %v6107, 2147483648
    %v6112 = vxor.u32 %v6108, 2147483648
    %v6113 = vmul.f32 %v6109, 1.442695
    %v6114 = vpow.pop %v6113
    %v6115 = vmul.f32 %v6110, 1.442695
    %v6116 = vpow.pop %v6115
    %v6117 = vmul.f32 %v6111, 1.442695
    %v6118 = vpow.pop %v6117
    %v6119 = vmul.f32 %v6112, 1.442695
    %v6120 = vpow.pop %v6119
    %v6121 = vadd.f32 %v6114, 1.0
    %v6122 = vadd.f32 %v6116, 1.0
    %v6123 = vadd.f32 %v6118, 1.0
    %v6124 = vadd.f32 %v6120, 1.0
    %v6125 = vrcp.pop %v6121
    %v6126 = vmul.f32 1.0, %v6125
    %v6127 = vrcp.pop %v6122
    %v6128 = vmul.f32 1.0, %v6127
    %v6129 = vrcp.pop %v6123
    %v6130 = vmul.f32 1.0, %v6129
    %v6131 = vrcp.pop %v6124
    %v6132 = vmul.f32 1.0, %v6131
    %v6133 = vadd.f32 %v5601, %v5853
    %v6134 = vadd.f32 %v5602, %v5855
    %v6135 = vadd.f32 %v5603, %v5935
    %v6136 = vadd.f32 %v5604, %v5937
    %v6137 = vxor.u32 %v6133, 2147483648
    %v6138 = vxor.u32 %v6134, 2147483648
    %v6139 = vxor.u32 %v6135, 2147483648
    %v6140 = vxor.u32 %v6136, 2147483648
    %v6141 = vmul.f32 %v6137, 1.442695
    %v6142 = vpow.pop %v6141
    %v6143 = vmul.f32 %v6138, 1.442695
    %v6144 = vpow.pop %v6143
    %v6145 = vmul.f32 %v6139, 1.442695
    %v6146 = vpow.pop %v6145
    %v6147 = vmul.f32 %v6140, 1.442695
    %v6148 = vpow.pop %v6147
    %v6149 = vadd.f32 %v6142, 1.0
    %v6150 = vadd.f32 %v6144, 1.0
    %v6151 = vadd.f32 %v6146, 1.0
    %v6152 = vadd.f32 %v6148, 1.0
    %v6153 = vrcp.pop %v6149
    %v6154 = vmul.f32 1.0, %v6153
    %v6155 = vrcp.pop %v6150
    %v6156 = vmul.f32 1.0, %v6155
    %v6157 = vrcp.pop %v6151
    %v6158 = vmul.f32 1.0, %v6157
    %v6159 = vrcp.pop %v6152
    %v6160 = vmul.f32 1.0, %v6159
    %v6161 = vadd.f32 %v6017, %v3756
    %v6162 = vadd.f32 %v6019, %v3760
    %v6163 = vadd.f32 %v6099, %v3764
    %v6164 = vadd.f32 %v6101, %v3768
    %v6165 = vmul.f32 %v6126, %v6161
    %v6166 = vmul.f32 %v6128, %v6162
    %v6167 = vmul.f32 %v6130, %v6163
    %v6168 = vmul.f32 %v6132, %v6164
    %v6169 = vadd.f32 %v5605, %v6165
    %v6170 = vadd.f32 %v5606, %v6166
    %v6171 = vadd.f32 %v5607, %v6167
    %v6172 = vadd.f32 %v5608, %v6168
    %v6173 = vtanh.pop %v6169
    %v6174 = vtanh.pop %v6170
    %v6175 = vtanh.pop %v6171
    %v6176 = vtanh.pop %v6172
    %v6177 = vsub.f32 1.0, %v6154
    %v6178 = vsub.f32 1.0, %v6156
    %v6179 = vsub.f32 1.0, %v6158
    %v6180 = vsub.f32 1.0, %v6160
    %v6181 = vmul.f32 %v6177, %v6173
    %v6182 = vmul.f32 %v6178, %v6174
    %v6183 = vmul.f32 %v6179, %v6175
    %v6184 = vmul.f32 %v6180, %v6176
    %v6185 = vmul.f32 %v6154, %v5592
    %v6186 = vmul.f32 %v6156, %v5593
    %v6187 = vmul.f32 %v6158, %v5594
    %v6188 = vmul.f32 %v6160, %v5595
    %v6189 = vadd.f32 %v6181, %v6185
    %v6190 = vadd.f32 %v6182, %v6186
    %v6191 = vadd.f32 %v6183, %v6187
    %v6192 = vadd.f32 %v6184, %v6188
    %s6193 = scalar_lea.vmem [#allocation2], 480
    %v6194 = vld [vmem:[%s6193] sm:$0xff]
    %v6195 = vld [vmem:[%s6193 + $0x8] sm:$0xff]
    %v6196 = vld [vmem:[%s6193 + $0x10] sm:$0xff]
    %v6197 = vld [vmem:[%s6193 + $0x18] sm:$0xff]
    %v6198 = vld [vmem:[%s6193 + $0x20] sm:$0xff]
    %v6199 = vld [vmem:[%s6193 + $0x28] sm:$0xff]
    %v6200 = vld [vmem:[%s6193 + $0x30] sm:$0xff]
    %v6201 = vld [vmem:[%s6193 + $0x38] sm:$0xff]
    %v6202 = vld [vmem:[%s6193 + $0x40] sm:$0xff]
    %v6203 = vld [vmem:[%s6193 + $0x48] sm:$0xff]
    %v6204 = vld [vmem:[%s6193 + $0x50] sm:$0xff]
    %v6205 = vld [vmem:[%s6193 + $0x58] sm:$0xff]
    %v6206 = vpack.c.bf16 %v6189, %v6189
    %v6207 = vpack.c.bf16 %v6190, %v6190
    %v6208 = vpack.c.bf16 %v6191, %v6191
    %v6209 = vpack.c.bf16 %v6192, %v6192
    %6210 = vmatprep.subr.bf16.mxu0 %v2521
    %6211 = vmatpush1.bf16.msra.mxu0 %v2520
    %6212 = vmatprep.subr.bf16.mxu0 %v2509
    %6213 = vmatpush1.bf16.msra.mxu0 %v2508
    %6214 = vmatprep.subr.bf16.mxu0 %v2497
    %6215 = vmatpush1.bf16.msra.mxu0 %v2496
    %6216 = vmatprep.subr.bf16.mxu0 %v2485
    %6217 = vmatpush1.bf16.msra.mxu0 %v2484
    %6218 = vmatprep.subr.bf16.mxu0 %v2473
    %6219 = vmatpush1.bf16.msra.mxu0 %v2472
    %6220 = vmatprep.subr.bf16.mxu0 %v2461
    %6221 = vmatpush1.bf16.msra.mxu0 %v2460
    %6222 = vmatprep.subr.bf16.mxu0 %v2449
    %6223 = vmatpush1.bf16.msra.mxu0 %v2448
    %6224 = vmatprep.subr.bf16.mxu0 %v2437
    %6225 = vmatpush1.bf16.msra.mxu0 %v2436
    %6226 = vmatprep.subr.bf16.mxu0 %v2617
    %6227 = vmatpush2.bf16.msra.mxu0 %v2616
    %6228 = vmatprep.subr.bf16.mxu0 %v2605
    %6229 = vmatpush2.bf16.msra.mxu0 %v2604
    %6230 = vmatprep.subr.bf16.mxu0 %v2593
    %6231 = vmatpush2.bf16.msra.mxu0 %v2592
    %6232 = vmatprep.subr.bf16.mxu0 %v2581
    %6233 = vmatpush2.bf16.msra.mxu0 %v2580
    %6234 = vmatprep.subr.bf16.mxu0 %v2569
    %6235 = vmatpush2.bf16.msra.mxu0 %v2568
    %6236 = vmatprep.subr.bf16.mxu0 %v2557
    %6237 = vmatpush2.bf16.msra.mxu0 %v2556
    %6238 = vmatprep.subr.bf16.mxu0 %v2545
    %6239 = vmatpush2.bf16.msra.mxu0 %v2544
    %6240 = vmatprep.subr.bf16.mxu0 %v2533
    %6241 = vmatpush2.bf16.msra.mxu0 %v2532
    %6242 = vmatprep.mubr.bf16.mxu0 %v6207
    %6243 = vmatmul.mubr.bf16.gmra.mxu0 %v6206
    %v6244 = vpop.f32.mrf.mxu0
    %v6245 = vadd.f32 0.0, %v6244
    %v6246 = vpop.f32.mrf.mxu0
    %v6247 = vadd.f32 0.0, %v6246
    %v6248 = vpop.f32.mrf.mxu0
    %v6249 = vpop.f32.mrf.mxu0
    %6250 = vdwg.mxu0
    %6251 = vmatprep.subr.bf16.mxu0 %v2713
    %6252 = vmatpush1.bf16.msra.mxu0 %v2712
    %6253 = vmatprep.subr.bf16.mxu0 %v2701
    %6254 = vmatpush1.bf16.msra.mxu0 %v2700
    %6255 = vmatprep.subr.bf16.mxu0 %v2689
    %6256 = vmatpush1.bf16.msra.mxu0 %v2688
    %6257 = vmatprep.subr.bf16.mxu0 %v2677
    %6258 = vmatpush1.bf16.msra.mxu0 %v2676
    %6259 = vmatprep.subr.bf16.mxu0 %v2665
    %6260 = vmatpush1.bf16.msra.mxu0 %v2664
    %6261 = vmatprep.subr.bf16.mxu0 %v2653
    %6262 = vmatpush1.bf16.msra.mxu0 %v2652
    %6263 = vmatprep.subr.bf16.mxu0 %v2641
    %6264 = vmatpush1.bf16.msra.mxu0 %v2640
    %6265 = vmatprep.subr.bf16.mxu0 %v2629
    %6266 = vmatpush1.bf16.msra.mxu0 %v2628
    %6267 = vmatprep.subr.bf16.mxu0 %v2809
    %6268 = vmatpush2.bf16.msra.mxu0 %v2808
    %6269 = vmatprep.subr.bf16.mxu0 %v2797
    %6270 = vmatpush2.bf16.msra.mxu0 %v2796
    %6271 = vmatprep.subr.bf16.mxu0 %v2785
    %6272 = vmatpush2.bf16.msra.mxu0 %v2784
    %6273 = vmatprep.subr.bf16.mxu0 %v2773
    %6274 = vmatpush2.bf16.msra.mxu0 %v2772
    %6275 = vmatprep.subr.bf16.mxu0 %v2761
    %6276 = vmatpush2.bf16.msra.mxu0 %v2760
    %6277 = vmatprep.subr.bf16.mxu0 %v2749
    %6278 = vmatpush2.bf16.msra.mxu0 %v2748
    %6279 = vmatprep.subr.bf16.mxu0 %v2737
    %6280 = vmatpush2.bf16.msra.mxu0 %v2736
    %6281 = vmatprep.subr.bf16.mxu0 %v2725
    %6282 = vmatpush2.bf16.msra.mxu0 %v2724
    %6283 = vmatprep.mubr.bf16.mxu0 %v6209
    %6284 = vmatmul.mubr.bf16.gmra.mxu0 %v6208
    %v6285 = vpop.f32.mrf.mxu0
    %v6286 = vadd.f32 %v6245, %v6285
    %v6287 = vpop.f32.mrf.mxu0
    %v6288 = vadd.f32 %v6247, %v6287
    %v6289 = vpop.f32.mrf.mxu0
    %v6290 = vpop.f32.mrf.mxu0
    %6291 = vdwg.mxu0
    %6292 = vmatprep.subr.bf16.mxu0 %v2523
    %6293 = vmatpush1.bf16.msra.mxu0 %v2522
    %6294 = vmatprep.subr.bf16.mxu0 %v2511
    %6295 = vmatpush1.bf16.msra.mxu0 %v2510
    %6296 = vmatprep.subr.bf16.mxu0 %v2499
    %6297 = vmatpush1.bf16.msra.mxu0 %v2498
    %6298 = vmatprep.subr.bf16.mxu0 %v2487
    %6299 = vmatpush1.bf16.msra.mxu0 %v2486
    %6300 = vmatprep.subr.bf16.mxu0 %v2475
    %6301 = vmatpush1.bf16.msra.mxu0 %v2474
    %6302 = vmatprep.subr.bf16.mxu0 %v2463
    %6303 = vmatpush1.bf16.msra.mxu0 %v2462
    %6304 = vmatprep.subr.bf16.mxu0 %v2451
    %6305 = vmatpush1.bf16.msra.mxu0 %v2450
    %6306 = vmatprep.subr.bf16.mxu0 %v2439
    %6307 = vmatpush1.bf16.msra.mxu0 %v2438
    %6308 = vmatprep.subr.bf16.mxu0 %v2619
    %6309 = vmatpush2.bf16.msra.mxu0 %v2618
    %6310 = vmatprep.subr.bf16.mxu0 %v2607
    %6311 = vmatpush2.bf16.msra.mxu0 %v2606
    %6312 = vmatprep.subr.bf16.mxu0 %v2595
    %6313 = vmatpush2.bf16.msra.mxu0 %v2594
    %6314 = vmatprep.subr.bf16.mxu0 %v2583
    %6315 = vmatpush2.bf16.msra.mxu0 %v2582
    %6316 = vmatprep.subr.bf16.mxu0 %v2571
    %6317 = vmatpush2.bf16.msra.mxu0 %v2570
    %6318 = vmatprep.subr.bf16.mxu0 %v2559
    %6319 = vmatpush2.bf16.msra.mxu0 %v2558
    %6320 = vmatprep.subr.bf16.mxu0 %v2547
    %6321 = vmatpush2.bf16.msra.mxu0 %v2546
    %6322 = vmatprep.subr.bf16.mxu0 %v2535
    %6323 = vmatpush2.bf16.msra.mxu0 %v2534
    %6324 = vmatprep.mubr.bf16.mxu0 %v6207
    %6325 = vmatmul.mubr.bf16.gmra.mxu0 %v6206
    %v6326 = vpop.f32.mrf.mxu0
    %v6327 = vadd.f32 0.0, %v6326
    %v6328 = vpop.f32.mrf.mxu0
    %v6329 = vadd.f32 0.0, %v6328
    %v6330 = vpop.f32.mrf.mxu0
    %v6331 = vpop.f32.mrf.mxu0
    %6332 = vdwg.mxu0
    %6333 = vmatprep.subr.bf16.mxu0 %v2715
    %6334 = vmatpush1.bf16.msra.mxu0 %v2714
    %6335 = vmatprep.subr.bf16.mxu0 %v2703
    %6336 = vmatpush1.bf16.msra.mxu0 %v2702
    %6337 = vmatprep.subr.bf16.mxu0 %v2691
    %6338 = vmatpush1.bf16.msra.mxu0 %v2690
    %6339 = vmatprep.subr.bf16.mxu0 %v2679
    %6340 = vmatpush1.bf16.msra.mxu0 %v2678
    %6341 = vmatprep.subr.bf16.mxu0 %v2667
    %6342 = vmatpush1.bf16.msra.mxu0 %v2666
    %6343 = vmatprep.subr.bf16.mxu0 %v2655
    %6344 = vmatpush1.bf16.msra.mxu0 %v2654
    %6345 = vmatprep.subr.bf16.mxu0 %v2643
    %6346 = vmatpush1.bf16.msra.mxu0 %v2642
    %6347 = vmatprep.subr.bf16.mxu0 %v2631
    %6348 = vmatpush1.bf16.msra.mxu0 %v2630
    %6349 = vmatprep.subr.bf16.mxu0 %v2811
    %6350 = vmatpush2.bf16.msra.mxu0 %v2810
    %6351 = vmatprep.subr.bf16.mxu0 %v2799
    %6352 = vmatpush2.bf16.msra.mxu0 %v2798
    %6353 = vmatprep.subr.bf16.mxu0 %v2787
    %6354 = vmatpush2.bf16.msra.mxu0 %v2786
    %6355 = vmatprep.subr.bf16.mxu0 %v2775
    %6356 = vmatpush2.bf16.msra.mxu0 %v2774
    %6357 = vmatprep.subr.bf16.mxu0 %v2763
    %6358 = vmatpush2.bf16.msra.mxu0 %v2762
    %6359 = vmatprep.subr.bf16.mxu0 %v2751
    %6360 = vmatpush2.bf16.msra.mxu0 %v2750
    %6361 = vmatprep.subr.bf16.mxu0 %v2739
    %6362 = vmatpush2.bf16.msra.mxu0 %v2738
    %6363 = vmatprep.subr.bf16.mxu0 %v2727
    %6364 = vmatpush2.bf16.msra.mxu0 %v2726
    %6365 = vmatprep.mubr.bf16.mxu0 %v6209
    %6366 = vmatmul.mubr.bf16.gmra.mxu0 %v6208
    %v6367 = vpop.f32.mrf.mxu0
    %v6368 = vadd.f32 %v6327, %v6367
    %v6369 = vpop.f32.mrf.mxu0
    %v6370 = vadd.f32 %v6329, %v6369
    %v6371 = vpop.f32.mrf.mxu0
    %v6372 = vpop.f32.mrf.mxu0
    %6373 = vdwg.mxu0
    %6374 = vmatprep.subr.bf16.mxu0 %v2525
    %6375 = vmatpush1.bf16.msra.mxu0 %v2524
    %6376 = vmatprep.subr.bf16.mxu0 %v2513
    %6377 = vmatpush1.bf16.msra.mxu0 %v2512
    %6378 = vmatprep.subr.bf16.mxu0 %v2501
    %6379 = vmatpush1.bf16.msra.mxu0 %v2500
    %6380 = vmatprep.subr.bf16.mxu0 %v2489
    %6381 = vmatpush1.bf16.msra.mxu0 %v2488
    %6382 = vmatprep.subr.bf16.mxu0 %v2477
    %6383 = vmatpush1.bf16.msra.mxu0 %v2476
    %6384 = vmatprep.subr.bf16.mxu0 %v2465
    %6385 = vmatpush1.bf16.msra.mxu0 %v2464
    %6386 = vmatprep.subr.bf16.mxu0 %v2453
    %6387 = vmatpush1.bf16.msra.mxu0 %v2452
    %6388 = vmatprep.subr.bf16.mxu0 %v2441
    %6389 = vmatpush1.bf16.msra.mxu0 %v2440
    %6390 = vmatprep.subr.bf16.mxu0 %v2621
    %6391 = vmatpush2.bf16.msra.mxu0 %v2620
    %6392 = vmatprep.subr.bf16.mxu0 %v2609
    %6393 = vmatpush2.bf16.msra.mxu0 %v2608
    %6394 = vmatprep.subr.bf16.mxu0 %v2597
    %6395 = vmatpush2.bf16.msra.mxu0 %v2596
    %6396 = vmatprep.subr.bf16.mxu0 %v2585
    %6397 = vmatpush2.bf16.msra.mxu0 %v2584
    %6398 = vmatprep.subr.bf16.mxu0 %v2573
    %6399 = vmatpush2.bf16.msra.mxu0 %v2572
    %6400 = vmatprep.subr.bf16.mxu0 %v2561
    %6401 = vmatpush2.bf16.msra.mxu0 %v2560
    %6402 = vmatprep.subr.bf16.mxu0 %v2549
    %6403 = vmatpush2.bf16.msra.mxu0 %v2548
    %6404 = vmatprep.subr.bf16.mxu0 %v2537
    %6405 = vmatpush2.bf16.msra.mxu0 %v2536
    %6406 = vmatprep.mubr.bf16.mxu0 %v6207
    %6407 = vmatmul.mubr.bf16.gmra.mxu0 %v6206
    %v6408 = vpop.f32.mrf.mxu0
    %v6409 = vadd.f32 0.0, %v6408
    %v6410 = vpop.f32.mrf.mxu0
    %v6411 = vadd.f32 0.0, %v6410
    %v6412 = vpop.f32.mrf.mxu0
    %v6413 = vpop.f32.mrf.mxu0
    %6414 = vdwg.mxu0
    %6415 = vmatprep.subr.bf16.mxu0 %v2717
    %6416 = vmatpush1.bf16.msra.mxu0 %v2716
    %6417 = vmatprep.subr.bf16.mxu0 %v2705
    %6418 = vmatpush1.bf16.msra.mxu0 %v2704
    %6419 = vmatprep.subr.bf16.mxu0 %v2693
    %6420 = vmatpush1.bf16.msra.mxu0 %v2692
    %6421 = vmatprep.subr.bf16.mxu0 %v2681
    %6422 = vmatpush1.bf16.msra.mxu0 %v2680
    %6423 = vmatprep.subr.bf16.mxu0 %v2669
    %6424 = vmatpush1.bf16.msra.mxu0 %v2668
    %6425 = vmatprep.subr.bf16.mxu0 %v2657
    %6426 = vmatpush1.bf16.msra.mxu0 %v2656
    %6427 = vmatprep.subr.bf16.mxu0 %v2645
    %6428 = vmatpush1.bf16.msra.mxu0 %v2644
    %6429 = vmatprep.subr.bf16.mxu0 %v2633
    %6430 = vmatpush1.bf16.msra.mxu0 %v2632
    %6431 = vmatprep.subr.bf16.mxu0 %v2813
    %6432 = vmatpush2.bf16.msra.mxu0 %v2812
    %6433 = vmatprep.subr.bf16.mxu0 %v2801
    %6434 = vmatpush2.bf16.msra.mxu0 %v2800
    %6435 = vmatprep.subr.bf16.mxu0 %v2789
    %6436 = vmatpush2.bf16.msra.mxu0 %v2788
    %6437 = vmatprep.subr.bf16.mxu0 %v2777
    %6438 = vmatpush2.bf16.msra.mxu0 %v2776
    %6439 = vmatprep.subr.bf16.mxu0 %v2765
    %6440 = vmatpush2.bf16.msra.mxu0 %v2764
    %6441 = vmatprep.subr.bf16.mxu0 %v2753
    %6442 = vmatpush2.bf16.msra.mxu0 %v2752
    %6443 = vmatprep.subr.bf16.mxu0 %v2741
    %6444 = vmatpush2.bf16.msra.mxu0 %v2740
    %6445 = vmatprep.subr.bf16.mxu0 %v2729
    %6446 = vmatpush2.bf16.msra.mxu0 %v2728
    %6447 = vmatprep.mubr.bf16.mxu0 %v6209
    %6448 = vmatmul.mubr.bf16.gmra.mxu0 %v6208
    %v6449 = vpop.f32.mrf.mxu0
    %v6450 = vadd.f32 %v6409, %v6449
    %v6451 = vpop.f32.mrf.mxu0
    %v6452 = vadd.f32 %v6411, %v6451
    %v6453 = vpop.f32.mrf.mxu0
    %v6454 = vpop.f32.mrf.mxu0
    %6455 = vdwg.mxu0
    %6456 = vmatprep.subr.bf16.mxu0 %v2527
    %6457 = vmatpush1.bf16.msra.mxu0 %v2526
    %6458 = vmatprep.subr.bf16.mxu0 %v2515
    %6459 = vmatpush1.bf16.msra.mxu0 %v2514
    %6460 = vmatprep.subr.bf16.mxu0 %v2503
    %6461 = vmatpush1.bf16.msra.mxu0 %v2502
    %6462 = vmatprep.subr.bf16.mxu0 %v2491
    %6463 = vmatpush1.bf16.msra.mxu0 %v2490
    %6464 = vmatprep.subr.bf16.mxu0 %v2479
    %6465 = vmatpush1.bf16.msra.mxu0 %v2478
    %6466 = vmatprep.subr.bf16.mxu0 %v2467
    %6467 = vmatpush1.bf16.msra.mxu0 %v2466
    %6468 = vmatprep.subr.bf16.mxu0 %v2455
    %6469 = vmatpush1.bf16.msra.mxu0 %v2454
    %6470 = vmatprep.subr.bf16.mxu0 %v2443
    %6471 = vmatpush1.bf16.msra.mxu0 %v2442
    %6472 = vmatprep.subr.bf16.mxu0 %v2623
    %6473 = vmatpush2.bf16.msra.mxu0 %v2622
    %6474 = vmatprep.subr.bf16.mxu0 %v2611
    %6475 = vmatpush2.bf16.msra.mxu0 %v2610
    %6476 = vmatprep.subr.bf16.mxu0 %v2599
    %6477 = vmatpush2.bf16.msra.mxu0 %v2598
    %6478 = vmatprep.subr.bf16.mxu0 %v2587
    %6479 = vmatpush2.bf16.msra.mxu0 %v2586
    %6480 = vmatprep.subr.bf16.mxu0 %v2575
    %6481 = vmatpush2.bf16.msra.mxu0 %v2574
    %6482 = vmatprep.subr.bf16.mxu0 %v2563
    %6483 = vmatpush2.bf16.msra.mxu0 %v2562
    %6484 = vmatprep.subr.bf16.mxu0 %v2551
    %6485 = vmatpush2.bf16.msra.mxu0 %v2550
    %6486 = vmatprep.subr.bf16.mxu0 %v2539
    %6487 = vmatpush2.bf16.msra.mxu0 %v2538
    %6488 = vmatprep.mubr.bf16.mxu0 %v6207
    %6489 = vmatmul.mubr.bf16.gmra.mxu0 %v6206
    %v6490 = vpop.f32.mrf.mxu0
    %v6491 = vadd.f32 0.0, %v6490
    %v6492 = vpop.f32.mrf.mxu0
    %v6493 = vadd.f32 0.0, %v6492
    %v6494 = vpop.f32.mrf.mxu0
    %v6495 = vpop.f32.mrf.mxu0
    %6496 = vdwg.mxu0
    %6497 = vmatprep.subr.bf16.mxu0 %v2719
    %6498 = vmatpush1.bf16.msra.mxu0 %v2718
    %6499 = vmatprep.subr.bf16.mxu0 %v2707
    %6500 = vmatpush1.bf16.msra.mxu0 %v2706
    %6501 = vmatprep.subr.bf16.mxu0 %v2695
    %6502 = vmatpush1.bf16.msra.mxu0 %v2694
    %6503 = vmatprep.subr.bf16.mxu0 %v2683
    %6504 = vmatpush1.bf16.msra.mxu0 %v2682
    %6505 = vmatprep.subr.bf16.mxu0 %v2671
    %6506 = vmatpush1.bf16.msra.mxu0 %v2670
    %6507 = vmatprep.subr.bf16.mxu0 %v2659
    %6508 = vmatpush1.bf16.msra.mxu0 %v2658
    %6509 = vmatprep.subr.bf16.mxu0 %v2647
    %6510 = vmatpush1.bf16.msra.mxu0 %v2646
    %6511 = vmatprep.subr.bf16.mxu0 %v2635
    %6512 = vmatpush1.bf16.msra.mxu0 %v2634
    %6513 = vmatprep.subr.bf16.mxu0 %v2815
    %6514 = vmatpush2.bf16.msra.mxu0 %v2814
    %6515 = vmatprep.subr.bf16.mxu0 %v2803
    %6516 = vmatpush2.bf16.msra.mxu0 %v2802
    %6517 = vmatprep.subr.bf16.mxu0 %v2791
    %6518 = vmatpush2.bf16.msra.mxu0 %v2790
    %6519 = vmatprep.subr.bf16.mxu0 %v2779
    %6520 = vmatpush2.bf16.msra.mxu0 %v2778
    %6521 = vmatprep.subr.bf16.mxu0 %v2767
    %6522 = vmatpush2.bf16.msra.mxu0 %v2766
    %6523 = vmatprep.subr.bf16.mxu0 %v2755
    %6524 = vmatpush2.bf16.msra.mxu0 %v2754
    %6525 = vmatprep.subr.bf16.mxu0 %v2743
    %6526 = vmatpush2.bf16.msra.mxu0 %v2742
    %6527 = vmatprep.subr.bf16.mxu0 %v2731
    %6528 = vmatpush2.bf16.msra.mxu0 %v2730
    %6529 = vmatprep.mubr.bf16.mxu0 %v6209
    %6530 = vmatmul.mubr.bf16.gmra.mxu0 %v6208
    %v6531 = vpop.f32.mrf.mxu0
    %v6532 = vadd.f32 %v6491, %v6531
    %v6533 = vpop.f32.mrf.mxu0
    %v6534 = vadd.f32 %v6493, %v6533
    %v6535 = vpop.f32.mrf.mxu0
    %v6536 = vpop.f32.mrf.mxu0
    %6537 = vdwg.mxu0
    %6538 = vmatprep.subr.bf16.mxu0 %v2529
    %6539 = vmatpush1.bf16.msra.mxu0 %v2528
    %6540 = vmatprep.subr.bf16.mxu0 %v2517
    %6541 = vmatpush1.bf16.msra.mxu0 %v2516
    %6542 = vmatprep.subr.bf16.mxu0 %v2505
    %6543 = vmatpush1.bf16.msra.mxu0 %v2504
    %6544 = vmatprep.subr.bf16.mxu0 %v2493
    %6545 = vmatpush1.bf16.msra.mxu0 %v2492
    %6546 = vmatprep.subr.bf16.mxu0 %v2481
    %6547 = vmatpush1.bf16.msra.mxu0 %v2480
    %6548 = vmatprep.subr.bf16.mxu0 %v2469
    %6549 = vmatpush1.bf16.msra.mxu0 %v2468
    %6550 = vmatprep.subr.bf16.mxu0 %v2457
    %6551 = vmatpush1.bf16.msra.mxu0 %v2456
    %6552 = vmatprep.subr.bf16.mxu0 %v2445
    %6553 = vmatpush1.bf16.msra.mxu0 %v2444
    %6554 = vmatprep.subr.bf16.mxu0 %v2625
    %6555 = vmatpush2.bf16.msra.mxu0 %v2624
    %6556 = vmatprep.subr.bf16.mxu0 %v2613
    %6557 = vmatpush2.bf16.msra.mxu0 %v2612
    %6558 = vmatprep.subr.bf16.mxu0 %v2601
    %6559 = vmatpush2.bf16.msra.mxu0 %v2600
    %6560 = vmatprep.subr.bf16.mxu0 %v2589
    %6561 = vmatpush2.bf16.msra.mxu0 %v2588
    %6562 = vmatprep.subr.bf16.mxu0 %v2577
    %6563 = vmatpush2.bf16.msra.mxu0 %v2576
    %6564 = vmatprep.subr.bf16.mxu0 %v2565
    %6565 = vmatpush2.bf16.msra.mxu0 %v2564
    %6566 = vmatprep.subr.bf16.mxu0 %v2553
    %6567 = vmatpush2.bf16.msra.mxu0 %v2552
    %6568 = vmatprep.subr.bf16.mxu0 %v2541
    %6569 = vmatpush2.bf16.msra.mxu0 %v2540
    %6570 = vmatprep.mubr.bf16.mxu0 %v6207
    %6571 = vmatmul.mubr.bf16.gmra.mxu0 %v6206
    %v6572 = vpop.f32.mrf.mxu0
    %v6573 = vadd.f32 0.0, %v6572
    %v6574 = vpop.f32.mrf.mxu0
    %v6575 = vadd.f32 0.0, %v6574
    %v6576 = vpop.f32.mrf.mxu0
    %v6577 = vpop.f32.mrf.mxu0
    %6578 = vdwg.mxu0
    %6579 = vmatprep.subr.bf16.mxu0 %v2721
    %6580 = vmatpush1.bf16.msra.mxu0 %v2720
    %6581 = vmatprep.subr.bf16.mxu0 %v2709
    %6582 = vmatpush1.bf16.msra.mxu0 %v2708
    %6583 = vmatprep.subr.bf16.mxu0 %v2697
    %6584 = vmatpush1.bf16.msra.mxu0 %v2696
    %6585 = vmatprep.subr.bf16.mxu0 %v2685
    %6586 = vmatpush1.bf16.msra.mxu0 %v2684
    %6587 = vmatprep.subr.bf16.mxu0 %v2673
    %6588 = vmatpush1.bf16.msra.mxu0 %v2672
    %6589 = vmatprep.subr.bf16.mxu0 %v2661
    %6590 = vmatpush1.bf16.msra.mxu0 %v2660
    %6591 = vmatprep.subr.bf16.mxu0 %v2649
    %6592 = vmatpush1.bf16.msra.mxu0 %v2648
    %6593 = vmatprep.subr.bf16.mxu0 %v2637
    %6594 = vmatpush1.bf16.msra.mxu0 %v2636
    %6595 = vmatprep.subr.bf16.mxu0 %v2817
    %6596 = vmatpush2.bf16.msra.mxu0 %v2816
    %6597 = vmatprep.subr.bf16.mxu0 %v2805
    %6598 = vmatpush2.bf16.msra.mxu0 %v2804
    %6599 = vmatprep.subr.bf16.mxu0 %v2793
    %6600 = vmatpush2.bf16.msra.mxu0 %v2792
    %6601 = vmatprep.subr.bf16.mxu0 %v2781
    %6602 = vmatpush2.bf16.msra.mxu0 %v2780
    %6603 = vmatprep.subr.bf16.mxu0 %v2769
    %6604 = vmatpush2.bf16.msra.mxu0 %v2768
    %6605 = vmatprep.subr.bf16.mxu0 %v2757
    %6606 = vmatpush2.bf16.msra.mxu0 %v2756
    %6607 = vmatprep.subr.bf16.mxu0 %v2745
    %6608 = vmatpush2.bf16.msra.mxu0 %v2744
    %6609 = vmatprep.subr.bf16.mxu0 %v2733
    %6610 = vmatpush2.bf16.msra.mxu0 %v2732
    %6611 = vmatprep.mubr.bf16.mxu0 %v6209
    %6612 = vmatmul.mubr.bf16.gmra.mxu0 %v6208
    %v6613 = vpop.f32.mrf.mxu0
    %v6614 = vadd.f32 %v6573, %v6613
    %v6615 = vpop.f32.mrf.mxu0
    %v6616 = vadd.f32 %v6575, %v6615
    %v6617 = vpop.f32.mrf.mxu0
    %v6618 = vpop.f32.mrf.mxu0
    %6619 = vdwg.mxu0
    %6620 = vmatprep.subr.bf16.mxu0 %v2531
    %6621 = vmatpush1.bf16.msra.mxu0 %v2530
    %6622 = vmatprep.subr.bf16.mxu0 %v2519
    %6623 = vmatpush1.bf16.msra.mxu0 %v2518
    %6624 = vmatprep.subr.bf16.mxu0 %v2507
    %6625 = vmatpush1.bf16.msra.mxu0 %v2506
    %6626 = vmatprep.subr.bf16.mxu0 %v2495
    %6627 = vmatpush1.bf16.msra.mxu0 %v2494
    %6628 = vmatprep.subr.bf16.mxu0 %v2483
    %6629 = vmatpush1.bf16.msra.mxu0 %v2482
    %6630 = vmatprep.subr.bf16.mxu0 %v2471
    %6631 = vmatpush1.bf16.msra.mxu0 %v2470
    %6632 = vmatprep.subr.bf16.mxu0 %v2459
    %6633 = vmatpush1.bf16.msra.mxu0 %v2458
    %6634 = vmatprep.subr.bf16.mxu0 %v2447
    %6635 = vmatpush1.bf16.msra.mxu0 %v2446
    %6636 = vmatprep.subr.bf16.mxu0 %v2627
    %6637 = vmatpush2.bf16.msra.mxu0 %v2626
    %6638 = vmatprep.subr.bf16.mxu0 %v2615
    %6639 = vmatpush2.bf16.msra.mxu0 %v2614
    %6640 = vmatprep.subr.bf16.mxu0 %v2603
    %6641 = vmatpush2.bf16.msra.mxu0 %v2602
    %6642 = vmatprep.subr.bf16.mxu0 %v2591
    %6643 = vmatpush2.bf16.msra.mxu0 %v2590
    %6644 = vmatprep.subr.bf16.mxu0 %v2579
    %6645 = vmatpush2.bf16.msra.mxu0 %v2578
    %6646 = vmatprep.subr.bf16.mxu0 %v2567
    %6647 = vmatpush2.bf16.msra.mxu0 %v2566
    %6648 = vmatprep.subr.bf16.mxu0 %v2555
    %6649 = vmatpush2.bf16.msra.mxu0 %v2554
    %6650 = vmatprep.subr.bf16.mxu0 %v2543
    %6651 = vmatpush2.bf16.msra.mxu0 %v2542
    %6652 = vmatprep.mubr.bf16.mxu0 %v6207
    %6653 = vmatmul.mubr.bf16.gmra.mxu0 %v6206
    %v6654 = vpop.f32.mrf.mxu0
    %v6655 = vadd.f32 0.0, %v6654
    %v6656 = vpop.f32.mrf.mxu0
    %v6657 = vadd.f32 0.0, %v6656
    %v6658 = vpop.f32.mrf.mxu0
    %v6659 = vpop.f32.mrf.mxu0
    %6660 = vdwg.mxu0
    %6661 = vmatprep.subr.bf16.mxu0 %v2723
    %6662 = vmatpush1.bf16.msra.mxu0 %v2722
    %6663 = vmatprep.subr.bf16.mxu0 %v2711
    %6664 = vmatpush1.bf16.msra.mxu0 %v2710
    %6665 = vmatprep.subr.bf16.mxu0 %v2699
    %6666 = vmatpush1.bf16.msra.mxu0 %v2698
    %6667 = vmatprep.subr.bf16.mxu0 %v2687
    %6668 = vmatpush1.bf16.msra.mxu0 %v2686
    %6669 = vmatprep.subr.bf16.mxu0 %v2675
    %6670 = vmatpush1.bf16.msra.mxu0 %v2674
    %6671 = vmatprep.subr.bf16.mxu0 %v2663
    %6672 = vmatpush1.bf16.msra.mxu0 %v2662
    %6673 = vmatprep.subr.bf16.mxu0 %v2651
    %6674 = vmatpush1.bf16.msra.mxu0 %v2650
    %6675 = vmatprep.subr.bf16.mxu0 %v2639
    %6676 = vmatpush1.bf16.msra.mxu0 %v2638
    %6677 = vmatprep.subr.bf16.mxu0 %v2819
    %6678 = vmatpush2.bf16.msra.mxu0 %v2818
    %6679 = vmatprep.subr.bf16.mxu0 %v2807
    %6680 = vmatpush2.bf16.msra.mxu0 %v2806
    %6681 = vmatprep.subr.bf16.mxu0 %v2795
    %6682 = vmatpush2.bf16.msra.mxu0 %v2794
    %6683 = vmatprep.subr.bf16.mxu0 %v2783
    %6684 = vmatpush2.bf16.msra.mxu0 %v2782
    %6685 = vmatprep.subr.bf16.mxu0 %v2771
    %6686 = vmatpush2.bf16.msra.mxu0 %v2770
    %6687 = vmatprep.subr.bf16.mxu0 %v2759
    %6688 = vmatpush2.bf16.msra.mxu0 %v2758
    %6689 = vmatprep.subr.bf16.mxu0 %v2747
    %6690 = vmatpush2.bf16.msra.mxu0 %v2746
    %6691 = vmatprep.subr.bf16.mxu0 %v2735
    %6692 = vmatpush2.bf16.msra.mxu0 %v2734
    %6693 = vmatprep.mubr.bf16.mxu0 %v6209
    %6694 = vmatmul.mubr.bf16.gmra.mxu0 %v6208
    %v6695 = vpop.f32.mrf.mxu0
    %v6696 = vadd.f32 %v6655, %v6695
    %v6697 = vpop.f32.mrf.mxu0
    %v6698 = vadd.f32 %v6657, %v6697
    %v6699 = vpop.f32.mrf.mxu0
    %v6700 = vpop.f32.mrf.mxu0
    %6701 = vdwg.mxu0
    %v6702 = vadd.f32 %v6194, %v6286
    %v6703 = vadd.f32 %v6195, %v6288
    %v6704 = vadd.f32 %v6196, %v6368
    %v6705 = vadd.f32 %v6197, %v6370
    %v6706 = vxor.u32 %v6702, 2147483648
    %v6707 = vxor.u32 %v6703, 2147483648
    %v6708 = vxor.u32 %v6704, 2147483648
    %v6709 = vxor.u32 %v6705, 2147483648
    %v6710 = vmul.f32 %v6706, 1.442695
    %v6711 = vpow.pop %v6710
    %v6712 = vmul.f32 %v6707, 1.442695
    %v6713 = vpow.pop %v6712
    %v6714 = vmul.f32 %v6708, 1.442695
    %v6715 = vpow.pop %v6714
    %v6716 = vmul.f32 %v6709, 1.442695
    %v6717 = vpow.pop %v6716
    %v6718 = vadd.f32 %v6711, 1.0
    %v6719 = vadd.f32 %v6713, 1.0
    %v6720 = vadd.f32 %v6715, 1.0
    %v6721 = vadd.f32 %v6717, 1.0
    %v6722 = vrcp.pop %v6718
    %v6723 = vmul.f32 1.0, %v6722
    %v6724 = vrcp.pop %v6719
    %v6725 = vmul.f32 1.0, %v6724
    %v6726 = vrcp.pop %v6720
    %v6727 = vmul.f32 1.0, %v6726
    %v6728 = vrcp.pop %v6721
    %v6729 = vmul.f32 1.0, %v6728
    %v6730 = vadd.f32 %v6198, %v6450
    %v6731 = vadd.f32 %v6199, %v6452
    %v6732 = vadd.f32 %v6200, %v6532
    %v6733 = vadd.f32 %v6201, %v6534
    %v6734 = vxor.u32 %v6730, 2147483648
    %v6735 = vxor.u32 %v6731, 2147483648
    %v6736 = vxor.u32 %v6732, 2147483648
    %v6737 = vxor.u32 %v6733, 2147483648
    %v6738 = vmul.f32 %v6734, 1.442695
    %v6739 = vpow.pop %v6738
    %v6740 = vmul.f32 %v6735, 1.442695
    %v6741 = vpow.pop %v6740
    %v6742 = vmul.f32 %v6736, 1.442695
    %v6743 = vpow.pop %v6742
    %v6744 = vmul.f32 %v6737, 1.442695
    %v6745 = vpow.pop %v6744
    %v6746 = vadd.f32 %v6739, 1.0
    %v6747 = vadd.f32 %v6741, 1.0
    %v6748 = vadd.f32 %v6743, 1.0
    %v6749 = vadd.f32 %v6745, 1.0
    %v6750 = vrcp.pop %v6746
    %v6751 = vmul.f32 1.0, %v6750
    %v6752 = vrcp.pop %v6747
    %v6753 = vmul.f32 1.0, %v6752
    %v6754 = vrcp.pop %v6748
    %v6755 = vmul.f32 1.0, %v6754
    %v6756 = vrcp.pop %v6749
    %v6757 = vmul.f32 1.0, %v6756
    %v6758 = vadd.f32 %v6614, %v3756
    %v6759 = vadd.f32 %v6616, %v3760
    %v6760 = vadd.f32 %v6696, %v3764
    %v6761 = vadd.f32 %v6698, %v3768
    %v6762 = vmul.f32 %v6723, %v6758
    %v6763 = vmul.f32 %v6725, %v6759
    %v6764 = vmul.f32 %v6727, %v6760
    %v6765 = vmul.f32 %v6729, %v6761
    %v6766 = vadd.f32 %v6202, %v6762
    %v6767 = vadd.f32 %v6203, %v6763
    %v6768 = vadd.f32 %v6204, %v6764
    %v6769 = vadd.f32 %v6205, %v6765
    %v6770 = vtanh.pop %v6766
    %v6771 = vtanh.pop %v6767
    %v6772 = vtanh.pop %v6768
    %v6773 = vtanh.pop %v6769
    %v6774 = vsub.f32 1.0, %v6751
    %v6775 = vsub.f32 1.0, %v6753
    %v6776 = vsub.f32 1.0, %v6755
    %v6777 = vsub.f32 1.0, %v6757
    %v6778 = vmul.f32 %v6774, %v6770
    %v6779 = vmul.f32 %v6775, %v6771
    %v6780 = vmul.f32 %v6776, %v6772
    %v6781 = vmul.f32 %v6777, %v6773
    %v6782 = vmul.f32 %v6751, %v6189
    %v6783 = vmul.f32 %v6753, %v6190
    %v6784 = vmul.f32 %v6755, %v6191
    %v6785 = vmul.f32 %v6757, %v6192
    %v6786 = vadd.f32 %v6778, %v6782
    %v6787 = vadd.f32 %v6779, %v6783
    %v6788 = vadd.f32 %v6780, %v6784
    %v6789 = vadd.f32 %v6781, %v6785
    %s6790 = scalar_lea.vmem [#allocation2], 576
    %v6791 = vld [vmem:[%s6790] sm:$0xff]
    %v6792 = vld [vmem:[%s6790 + $0x8] sm:$0xff]
    %v6793 = vld [vmem:[%s6790 + $0x10] sm:$0xff]
    %v6794 = vld [vmem:[%s6790 + $0x18] sm:$0xff]
    %v6795 = vld [vmem:[%s6790 + $0x20] sm:$0xff]
    %v6796 = vld [vmem:[%s6790 + $0x28] sm:$0xff]
    %v6797 = vld [vmem:[%s6790 + $0x30] sm:$0xff]
    %v6798 = vld [vmem:[%s6790 + $0x38] sm:$0xff]
    %v6799 = vld [vmem:[%s6790 + $0x40] sm:$0xff]
    %v6800 = vld [vmem:[%s6790 + $0x48] sm:$0xff]
    %v6801 = vld [vmem:[%s6790 + $0x50] sm:$0xff]
    %v6802 = vld [vmem:[%s6790 + $0x58] sm:$0xff]
    %v6803 = vpack.c.bf16 %v6786, %v6786
    %v6804 = vpack.c.bf16 %v6787, %v6787
    %v6805 = vpack.c.bf16 %v6788, %v6788
    %v6806 = vpack.c.bf16 %v6789, %v6789
    %6807 = vmatprep.subr.bf16.mxu0 %v2521
    %6808 = vmatpush1.bf16.msra.mxu0 %v2520
    %6809 = vmatprep.subr.bf16.mxu0 %v2509
    %6810 = vmatpush1.bf16.msra.mxu0 %v2508
    %6811 = vmatprep.subr.bf16.mxu0 %v2497
    %6812 = vmatpush1.bf16.msra.mxu0 %v2496
    %6813 = vmatprep.subr.bf16.mxu0 %v2485
    %6814 = vmatpush1.bf16.msra.mxu0 %v2484
    %6815 = vmatprep.subr.bf16.mxu0 %v2473
    %6816 = vmatpush1.bf16.msra.mxu0 %v2472
    %6817 = vmatprep.subr.bf16.mxu0 %v2461
    %6818 = vmatpush1.bf16.msra.mxu0 %v2460
    %6819 = vmatprep.subr.bf16.mxu0 %v2449
    %6820 = vmatpush1.bf16.msra.mxu0 %v2448
    %6821 = vmatprep.subr.bf16.mxu0 %v2437
    %6822 = vmatpush1.bf16.msra.mxu0 %v2436
    %6823 = vmatprep.subr.bf16.mxu0 %v2617
    %6824 = vmatpush2.bf16.msra.mxu0 %v2616
    %6825 = vmatprep.subr.bf16.mxu0 %v2605
    %6826 = vmatpush2.bf16.msra.mxu0 %v2604
    %6827 = vmatprep.subr.bf16.mxu0 %v2593
    %6828 = vmatpush2.bf16.msra.mxu0 %v2592
    %6829 = vmatprep.subr.bf16.mxu0 %v2581
    %6830 = vmatpush2.bf16.msra.mxu0 %v2580
    %6831 = vmatprep.subr.bf16.mxu0 %v2569
    %6832 = vmatpush2.bf16.msra.mxu0 %v2568
    %6833 = vmatprep.subr.bf16.mxu0 %v2557
    %6834 = vmatpush2.bf16.msra.mxu0 %v2556
    %6835 = vmatprep.subr.bf16.mxu0 %v2545
    %6836 = vmatpush2.bf16.msra.mxu0 %v2544
    %6837 = vmatprep.subr.bf16.mxu0 %v2533
    %6838 = vmatpush2.bf16.msra.mxu0 %v2532
    %6839 = vmatprep.mubr.bf16.mxu0 %v6804
    %6840 = vmatmul.mubr.bf16.gmra.mxu0 %v6803
    %v6841 = vpop.f32.mrf.mxu0
    %v6842 = vadd.f32 0.0, %v6841
    %v6843 = vpop.f32.mrf.mxu0
    %v6844 = vadd.f32 0.0, %v6843
    %v6845 = vpop.f32.mrf.mxu0
    %v6846 = vpop.f32.mrf.mxu0
    %6847 = vdwg.mxu0
    %6848 = vmatprep.subr.bf16.mxu0 %v2713
    %6849 = vmatpush1.bf16.msra.mxu0 %v2712
    %6850 = vmatprep.subr.bf16.mxu0 %v2701
    %6851 = vmatpush1.bf16.msra.mxu0 %v2700
    %6852 = vmatprep.subr.bf16.mxu0 %v2689
    %6853 = vmatpush1.bf16.msra.mxu0 %v2688
    %6854 = vmatprep.subr.bf16.mxu0 %v2677
    %6855 = vmatpush1.bf16.msra.mxu0 %v2676
    %6856 = vmatprep.subr.bf16.mxu0 %v2665
    %6857 = vmatpush1.bf16.msra.mxu0 %v2664
    %6858 = vmatprep.subr.bf16.mxu0 %v2653
    %6859 = vmatpush1.bf16.msra.mxu0 %v2652
    %6860 = vmatprep.subr.bf16.mxu0 %v2641
    %6861 = vmatpush1.bf16.msra.mxu0 %v2640
    %6862 = vmatprep.subr.bf16.mxu0 %v2629
    %6863 = vmatpush1.bf16.msra.mxu0 %v2628
    %6864 = vmatprep.subr.bf16.mxu0 %v2809
    %6865 = vmatpush2.bf16.msra.mxu0 %v2808
    %6866 = vmatprep.subr.bf16.mxu0 %v2797
    %6867 = vmatpush2.bf16.msra.mxu0 %v2796
    %6868 = vmatprep.subr.bf16.mxu0 %v2785
    %6869 = vmatpush2.bf16.msra.mxu0 %v2784
    %6870 = vmatprep.subr.bf16.mxu0 %v2773
    %6871 = vmatpush2.bf16.msra.mxu0 %v2772
    %6872 = vmatprep.subr.bf16.mxu0 %v2761
    %6873 = vmatpush2.bf16.msra.mxu0 %v2760
    %6874 = vmatprep.subr.bf16.mxu0 %v2749
    %6875 = vmatpush2.bf16.msra.mxu0 %v2748
    %6876 = vmatprep.subr.bf16.mxu0 %v2737
    %6877 = vmatpush2.bf16.msra.mxu0 %v2736
    %6878 = vmatprep.subr.bf16.mxu0 %v2725
    %6879 = vmatpush2.bf16.msra.mxu0 %v2724
    %6880 = vmatprep.mubr.bf16.mxu0 %v6806
    %6881 = vmatmul.mubr.bf16.gmra.mxu0 %v6805
    %v6882 = vpop.f32.mrf.mxu0
    %v6883 = vadd.f32 %v6842, %v6882
    %v6884 = vpop.f32.mrf.mxu0
    %v6885 = vadd.f32 %v6844, %v6884
    %v6886 = vpop.f32.mrf.mxu0
    %v6887 = vpop.f32.mrf.mxu0
    %6888 = vdwg.mxu0
    %6889 = vmatprep.subr.bf16.mxu0 %v2523
    %6890 = vmatpush1.bf16.msra.mxu0 %v2522
    %6891 = vmatprep.subr.bf16.mxu0 %v2511
    %6892 = vmatpush1.bf16.msra.mxu0 %v2510
    %6893 = vmatprep.subr.bf16.mxu0 %v2499
    %6894 = vmatpush1.bf16.msra.mxu0 %v2498
    %6895 = vmatprep.subr.bf16.mxu0 %v2487
    %6896 = vmatpush1.bf16.msra.mxu0 %v2486
    %6897 = vmatprep.subr.bf16.mxu0 %v2475
    %6898 = vmatpush1.bf16.msra.mxu0 %v2474
    %6899 = vmatprep.subr.bf16.mxu0 %v2463
    %6900 = vmatpush1.bf16.msra.mxu0 %v2462
    %6901 = vmatprep.subr.bf16.mxu0 %v2451
    %6902 = vmatpush1.bf16.msra.mxu0 %v2450
    %6903 = vmatprep.subr.bf16.mxu0 %v2439
    %6904 = vmatpush1.bf16.msra.mxu0 %v2438
    %6905 = vmatprep.subr.bf16.mxu0 %v2619
    %6906 = vmatpush2.bf16.msra.mxu0 %v2618
    %6907 = vmatprep.subr.bf16.mxu0 %v2607
    %6908 = vmatpush2.bf16.msra.mxu0 %v2606
    %6909 = vmatprep.subr.bf16.mxu0 %v2595
    %6910 = vmatpush2.bf16.msra.mxu0 %v2594
    %6911 = vmatprep.subr.bf16.mxu0 %v2583
    %6912 = vmatpush2.bf16.msra.mxu0 %v2582
    %6913 = vmatprep.subr.bf16.mxu0 %v2571
    %6914 = vmatpush2.bf16.msra.mxu0 %v2570
    %6915 = vmatprep.subr.bf16.mxu0 %v2559
    %6916 = vmatpush2.bf16.msra.mxu0 %v2558
    %6917 = vmatprep.subr.bf16.mxu0 %v2547
    %6918 = vmatpush2.bf16.msra.mxu0 %v2546
    %6919 = vmatprep.subr.bf16.mxu0 %v2535
    %6920 = vmatpush2.bf16.msra.mxu0 %v2534
    %6921 = vmatprep.mubr.bf16.mxu0 %v6804
    %6922 = vmatmul.mubr.bf16.gmra.mxu0 %v6803
    %v6923 = vpop.f32.mrf.mxu0
    %v6924 = vadd.f32 0.0, %v6923
    %v6925 = vpop.f32.mrf.mxu0
    %v6926 = vadd.f32 0.0, %v6925
    %v6927 = vpop.f32.mrf.mxu0
    %v6928 = vpop.f32.mrf.mxu0
    %6929 = vdwg.mxu0
    %6930 = vmatprep.subr.bf16.mxu0 %v2715
    %6931 = vmatpush1.bf16.msra.mxu0 %v2714
    %6932 = vmatprep.subr.bf16.mxu0 %v2703
    %6933 = vmatpush1.bf16.msra.mxu0 %v2702
    %6934 = vmatprep.subr.bf16.mxu0 %v2691
    %6935 = vmatpush1.bf16.msra.mxu0 %v2690
    %6936 = vmatprep.subr.bf16.mxu0 %v2679
    %6937 = vmatpush1.bf16.msra.mxu0 %v2678
    %6938 = vmatprep.subr.bf16.mxu0 %v2667
    %6939 = vmatpush1.bf16.msra.mxu0 %v2666
    %6940 = vmatprep.subr.bf16.mxu0 %v2655
    %6941 = vmatpush1.bf16.msra.mxu0 %v2654
    %6942 = vmatprep.subr.bf16.mxu0 %v2643
    %6943 = vmatpush1.bf16.msra.mxu0 %v2642
    %6944 = vmatprep.subr.bf16.mxu0 %v2631
    %6945 = vmatpush1.bf16.msra.mxu0 %v2630
    %6946 = vmatprep.subr.bf16.mxu0 %v2811
    %6947 = vmatpush2.bf16.msra.mxu0 %v2810
    %6948 = vmatprep.subr.bf16.mxu0 %v2799
    %6949 = vmatpush2.bf16.msra.mxu0 %v2798
    %6950 = vmatprep.subr.bf16.mxu0 %v2787
    %6951 = vmatpush2.bf16.msra.mxu0 %v2786
    %6952 = vmatprep.subr.bf16.mxu0 %v2775
    %6953 = vmatpush2.bf16.msra.mxu0 %v2774
    %6954 = vmatprep.subr.bf16.mxu0 %v2763
    %6955 = vmatpush2.bf16.msra.mxu0 %v2762
    %6956 = vmatprep.subr.bf16.mxu0 %v2751
    %6957 = vmatpush2.bf16.msra.mxu0 %v2750
    %6958 = vmatprep.subr.bf16.mxu0 %v2739
    %6959 = vmatpush2.bf16.msra.mxu0 %v2738
    %6960 = vmatprep.subr.bf16.mxu0 %v2727
    %6961 = vmatpush2.bf16.msra.mxu0 %v2726
    %6962 = vmatprep.mubr.bf16.mxu0 %v6806
    %6963 = vmatmul.mubr.bf16.gmra.mxu0 %v6805
    %v6964 = vpop.f32.mrf.mxu0
    %v6965 = vadd.f32 %v6924, %v6964
    %v6966 = vpop.f32.mrf.mxu0
    %v6967 = vadd.f32 %v6926, %v6966
    %v6968 = vpop.f32.mrf.mxu0
    %v6969 = vpop.f32.mrf.mxu0
    %6970 = vdwg.mxu0
    %6971 = vmatprep.subr.bf16.mxu0 %v2525
    %6972 = vmatpush1.bf16.msra.mxu0 %v2524
    %6973 = vmatprep.subr.bf16.mxu0 %v2513
    %6974 = vmatpush1.bf16.msra.mxu0 %v2512
    %6975 = vmatprep.subr.bf16.mxu0 %v2501
    %6976 = vmatpush1.bf16.msra.mxu0 %v2500
    %6977 = vmatprep.subr.bf16.mxu0 %v2489
    %6978 = vmatpush1.bf16.msra.mxu0 %v2488
    %6979 = vmatprep.subr.bf16.mxu0 %v2477
    %6980 = vmatpush1.bf16.msra.mxu0 %v2476
    %6981 = vmatprep.subr.bf16.mxu0 %v2465
    %6982 = vmatpush1.bf16.msra.mxu0 %v2464
    %6983 = vmatprep.subr.bf16.mxu0 %v2453
    %6984 = vmatpush1.bf16.msra.mxu0 %v2452
    %6985 = vmatprep.subr.bf16.mxu0 %v2441
    %6986 = vmatpush1.bf16.msra.mxu0 %v2440
    %6987 = vmatprep.subr.bf16.mxu0 %v2621
    %6988 = vmatpush2.bf16.msra.mxu0 %v2620
    %6989 = vmatprep.subr.bf16.mxu0 %v2609
    %6990 = vmatpush2.bf16.msra.mxu0 %v2608
    %6991 = vmatprep.subr.bf16.mxu0 %v2597
    %6992 = vmatpush2.bf16.msra.mxu0 %v2596
    %6993 = vmatprep.subr.bf16.mxu0 %v2585
    %6994 = vmatpush2.bf16.msra.mxu0 %v2584
    %6995 = vmatprep.subr.bf16.mxu0 %v2573
    %6996 = vmatpush2.bf16.msra.mxu0 %v2572
    %6997 = vmatprep.subr.bf16.mxu0 %v2561
    %6998 = vmatpush2.bf16.msra.mxu0 %v2560
    %6999 = vmatprep.subr.bf16.mxu0 %v2549
    %7000 = vmatpush2.bf16.msra.mxu0 %v2548
    %7001 = vmatprep.subr.bf16.mxu0 %v2537
    %7002 = vmatpush2.bf16.msra.mxu0 %v2536
    %7003 = vmatprep.mubr.bf16.mxu0 %v6804
    %7004 = vmatmul.mubr.bf16.gmra.mxu0 %v6803
    %v7005 = vpop.f32.mrf.mxu0
    %v7006 = vadd.f32 0.0, %v7005
    %v7007 = vpop.f32.mrf.mxu0
    %v7008 = vadd.f32 0.0, %v7007
    %v7009 = vpop.f32.mrf.mxu0
    %v7010 = vpop.f32.mrf.mxu0
    %7011 = vdwg.mxu0
    %7012 = vmatprep.subr.bf16.mxu0 %v2717
    %7013 = vmatpush1.bf16.msra.mxu0 %v2716
    %7014 = vmatprep.subr.bf16.mxu0 %v2705
    %7015 = vmatpush1.bf16.msra.mxu0 %v2704
    %7016 = vmatprep.subr.bf16.mxu0 %v2693
    %7017 = vmatpush1.bf16.msra.mxu0 %v2692
    %7018 = vmatprep.subr.bf16.mxu0 %v2681
    %7019 = vmatpush1.bf16.msra.mxu0 %v2680
    %7020 = vmatprep.subr.bf16.mxu0 %v2669
    %7021 = vmatpush1.bf16.msra.mxu0 %v2668
    %7022 = vmatprep.subr.bf16.mxu0 %v2657
    %7023 = vmatpush1.bf16.msra.mxu0 %v2656
    %7024 = vmatprep.subr.bf16.mxu0 %v2645
    %7025 = vmatpush1.bf16.msra.mxu0 %v2644
    %7026 = vmatprep.subr.bf16.mxu0 %v2633
    %7027 = vmatpush1.bf16.msra.mxu0 %v2632
    %7028 = vmatprep.subr.bf16.mxu0 %v2813
    %7029 = vmatpush2.bf16.msra.mxu0 %v2812
    %7030 = vmatprep.subr.bf16.mxu0 %v2801
    %7031 = vmatpush2.bf16.msra.mxu0 %v2800
    %7032 = vmatprep.subr.bf16.mxu0 %v2789
    %7033 = vmatpush2.bf16.msra.mxu0 %v2788
    %7034 = vmatprep.subr.bf16.mxu0 %v2777
    %7035 = vmatpush2.bf16.msra.mxu0 %v2776
    %7036 = vmatprep.subr.bf16.mxu0 %v2765
    %7037 = vmatpush2.bf16.msra.mxu0 %v2764
    %7038 = vmatprep.subr.bf16.mxu0 %v2753
    %7039 = vmatpush2.bf16.msra.mxu0 %v2752
    %7040 = vmatprep.subr.bf16.mxu0 %v2741
    %7041 = vmatpush2.bf16.msra.mxu0 %v2740
    %7042 = vmatprep.subr.bf16.mxu0 %v2729
    %7043 = vmatpush2.bf16.msra.mxu0 %v2728
    %7044 = vmatprep.mubr.bf16.mxu0 %v6806
    %7045 = vmatmul.mubr.bf16.gmra.mxu0 %v6805
    %v7046 = vpop.f32.mrf.mxu0
    %v7047 = vadd.f32 %v7006, %v7046
    %v7048 = vpop.f32.mrf.mxu0
    %v7049 = vadd.f32 %v7008, %v7048
    %v7050 = vpop.f32.mrf.mxu0
    %v7051 = vpop.f32.mrf.mxu0
    %7052 = vdwg.mxu0
    %7053 = vmatprep.subr.bf16.mxu0 %v2527
    %7054 = vmatpush1.bf16.msra.mxu0 %v2526
    %7055 = vmatprep.subr.bf16.mxu0 %v2515
    %7056 = vmatpush1.bf16.msra.mxu0 %v2514
    %7057 = vmatprep.subr.bf16.mxu0 %v2503
    %7058 = vmatpush1.bf16.msra.mxu0 %v2502
    %7059 = vmatprep.subr.bf16.mxu0 %v2491
    %7060 = vmatpush1.bf16.msra.mxu0 %v2490
    %7061 = vmatprep.subr.bf16.mxu0 %v2479
    %7062 = vmatpush1.bf16.msra.mxu0 %v2478
    %7063 = vmatprep.subr.bf16.mxu0 %v2467
    %7064 = vmatpush1.bf16.msra.mxu0 %v2466
    %7065 = vmatprep.subr.bf16.mxu0 %v2455
    %7066 = vmatpush1.bf16.msra.mxu0 %v2454
    %7067 = vmatprep.subr.bf16.mxu0 %v2443
    %7068 = vmatpush1.bf16.msra.mxu0 %v2442
    %7069 = vmatprep.subr.bf16.mxu0 %v2623
    %7070 = vmatpush2.bf16.msra.mxu0 %v2622
    %7071 = vmatprep.subr.bf16.mxu0 %v2611
    %7072 = vmatpush2.bf16.msra.mxu0 %v2610
    %7073 = vmatprep.subr.bf16.mxu0 %v2599
    %7074 = vmatpush2.bf16.msra.mxu0 %v2598
    %7075 = vmatprep.subr.bf16.mxu0 %v2587
    %7076 = vmatpush2.bf16.msra.mxu0 %v2586
    %7077 = vmatprep.subr.bf16.mxu0 %v2575
    %7078 = vmatpush2.bf16.msra.mxu0 %v2574
    %7079 = vmatprep.subr.bf16.mxu0 %v2563
    %7080 = vmatpush2.bf16.msra.mxu0 %v2562
    %7081 = vmatprep.subr.bf16.mxu0 %v2551
    %7082 = vmatpush2.bf16.msra.mxu0 %v2550
    %7083 = vmatprep.subr.bf16.mxu0 %v2539
    %7084 = vmatpush2.bf16.msra.mxu0 %v2538
    %7085 = vmatprep.mubr.bf16.mxu0 %v6804
    %7086 = vmatmul.mubr.bf16.gmra.mxu0 %v6803
    %v7087 = vpop.f32.mrf.mxu0
    %v7088 = vadd.f32 0.0, %v7087
    %v7089 = vpop.f32.mrf.mxu0
    %v7090 = vadd.f32 0.0, %v7089
    %v7091 = vpop.f32.mrf.mxu0
    %v7092 = vpop.f32.mrf.mxu0
    %7093 = vdwg.mxu0
    %7094 = vmatprep.subr.bf16.mxu0 %v2719
    %7095 = vmatpush1.bf16.msra.mxu0 %v2718
    %7096 = vmatprep.subr.bf16.mxu0 %v2707
    %7097 = vmatpush1.bf16.msra.mxu0 %v2706
    %7098 = vmatprep.subr.bf16.mxu0 %v2695
    %7099 = vmatpush1.bf16.msra.mxu0 %v2694
    %7100 = vmatprep.subr.bf16.mxu0 %v2683
    %7101 = vmatpush1.bf16.msra.mxu0 %v2682
    %7102 = vmatprep.subr.bf16.mxu0 %v2671
    %7103 = vmatpush1.bf16.msra.mxu0 %v2670
    %7104 = vmatprep.subr.bf16.mxu0 %v2659
    %7105 = vmatpush1.bf16.msra.mxu0 %v2658
    %7106 = vmatprep.subr.bf16.mxu0 %v2647
    %7107 = vmatpush1.bf16.msra.mxu0 %v2646
    %7108 = vmatprep.subr.bf16.mxu0 %v2635
    %7109 = vmatpush1.bf16.msra.mxu0 %v2634
    %7110 = vmatprep.subr.bf16.mxu0 %v2815
    %7111 = vmatpush2.bf16.msra.mxu0 %v2814
    %7112 = vmatprep.subr.bf16.mxu0 %v2803
    %7113 = vmatpush2.bf16.msra.mxu0 %v2802
    %7114 = vmatprep.subr.bf16.mxu0 %v2791
    %7115 = vmatpush2.bf16.msra.mxu0 %v2790
    %7116 = vmatprep.subr.bf16.mxu0 %v2779
    %7117 = vmatpush2.bf16.msra.mxu0 %v2778
    %7118 = vmatprep.subr.bf16.mxu0 %v2767
    %7119 = vmatpush2.bf16.msra.mxu0 %v2766
    %7120 = vmatprep.subr.bf16.mxu0 %v2755
    %7121 = vmatpush2.bf16.msra.mxu0 %v2754
    %7122 = vmatprep.subr.bf16.mxu0 %v2743
    %7123 = vmatpush2.bf16.msra.mxu0 %v2742
    %7124 = vmatprep.subr.bf16.mxu0 %v2731
    %7125 = vmatpush2.bf16.msra.mxu0 %v2730
    %7126 = vmatprep.mubr.bf16.mxu0 %v6806
    %7127 = vmatmul.mubr.bf16.gmra.mxu0 %v6805
    %v7128 = vpop.f32.mrf.mxu0
    %v7129 = vadd.f32 %v7088, %v7128
    %v7130 = vpop.f32.mrf.mxu0
    %v7131 = vadd.f32 %v7090, %v7130
    %v7132 = vpop.f32.mrf.mxu0
    %v7133 = vpop.f32.mrf.mxu0
    %7134 = vdwg.mxu0
    %7135 = vmatprep.subr.bf16.mxu0 %v2529
    %7136 = vmatpush1.bf16.msra.mxu0 %v2528
    %7137 = vmatprep.subr.bf16.mxu0 %v2517
    %7138 = vmatpush1.bf16.msra.mxu0 %v2516
    %7139 = vmatprep.subr.bf16.mxu0 %v2505
    %7140 = vmatpush1.bf16.msra.mxu0 %v2504
    %7141 = vmatprep.subr.bf16.mxu0 %v2493
    %7142 = vmatpush1.bf16.msra.mxu0 %v2492
    %7143 = vmatprep.subr.bf16.mxu0 %v2481
    %7144 = vmatpush1.bf16.msra.mxu0 %v2480
    %7145 = vmatprep.subr.bf16.mxu0 %v2469
    %7146 = vmatpush1.bf16.msra.mxu0 %v2468
    %7147 = vmatprep.subr.bf16.mxu0 %v2457
    %7148 = vmatpush1.bf16.msra.mxu0 %v2456
    %7149 = vmatprep.subr.bf16.mxu0 %v2445
    %7150 = vmatpush1.bf16.msra.mxu0 %v2444
    %7151 = vmatprep.subr.bf16.mxu0 %v2625
    %7152 = vmatpush2.bf16.msra.mxu0 %v2624
    %7153 = vmatprep.subr.bf16.mxu0 %v2613
    %7154 = vmatpush2.bf16.msra.mxu0 %v2612
    %7155 = vmatprep.subr.bf16.mxu0 %v2601
    %7156 = vmatpush2.bf16.msra.mxu0 %v2600
    %7157 = vmatprep.subr.bf16.mxu0 %v2589
    %7158 = vmatpush2.bf16.msra.mxu0 %v2588
    %7159 = vmatprep.subr.bf16.mxu0 %v2577
    %7160 = vmatpush2.bf16.msra.mxu0 %v2576
    %7161 = vmatprep.subr.bf16.mxu0 %v2565
    %7162 = vmatpush2.bf16.msra.mxu0 %v2564
    %7163 = vmatprep.subr.bf16.mxu0 %v2553
    %7164 = vmatpush2.bf16.msra.mxu0 %v2552
    %7165 = vmatprep.subr.bf16.mxu0 %v2541
    %7166 = vmatpush2.bf16.msra.mxu0 %v2540
    %7167 = vmatprep.mubr.bf16.mxu0 %v6804
    %7168 = vmatmul.mubr.bf16.gmra.mxu0 %v6803
    %v7169 = vpop.f32.mrf.mxu0
    %v7170 = vadd.f32 0.0, %v7169
    %v7171 = vpop.f32.mrf.mxu0
    %v7172 = vadd.f32 0.0, %v7171
    %v7173 = vpop.f32.mrf.mxu0
    %v7174 = vpop.f32.mrf.mxu0
    %7175 = vdwg.mxu0
    %7176 = vmatprep.subr.bf16.mxu0 %v2721
    %7177 = vmatpush1.bf16.msra.mxu0 %v2720
    %7178 = vmatprep.subr.bf16.mxu0 %v2709
    %7179 = vmatpush1.bf16.msra.mxu0 %v2708
    %7180 = vmatprep.subr.bf16.mxu0 %v2697
    %7181 = vmatpush1.bf16.msra.mxu0 %v2696
    %7182 = vmatprep.subr.bf16.mxu0 %v2685
    %7183 = vmatpush1.bf16.msra.mxu0 %v2684
    %7184 = vmatprep.subr.bf16.mxu0 %v2673
    %7185 = vmatpush1.bf16.msra.mxu0 %v2672
    %7186 = vmatprep.subr.bf16.mxu0 %v2661
    %7187 = vmatpush1.bf16.msra.mxu0 %v2660
    %7188 = vmatprep.subr.bf16.mxu0 %v2649
    %7189 = vmatpush1.bf16.msra.mxu0 %v2648
    %7190 = vmatprep.subr.bf16.mxu0 %v2637
    %7191 = vmatpush1.bf16.msra.mxu0 %v2636
    %7192 = vmatprep.subr.bf16.mxu0 %v2817
    %7193 = vmatpush2.bf16.msra.mxu0 %v2816
    %7194 = vmatprep.subr.bf16.mxu0 %v2805
    %7195 = vmatpush2.bf16.msra.mxu0 %v2804
    %7196 = vmatprep.subr.bf16.mxu0 %v2793
    %7197 = vmatpush2.bf16.msra.mxu0 %v2792
    %7198 = vmatprep.subr.bf16.mxu0 %v2781
    %7199 = vmatpush2.bf16.msra.mxu0 %v2780
    %7200 = vmatprep.subr.bf16.mxu0 %v2769
    %7201 = vmatpush2.bf16.msra.mxu0 %v2768
    %7202 = vmatprep.subr.bf16.mxu0 %v2757
    %7203 = vmatpush2.bf16.msra.mxu0 %v2756
    %7204 = vmatprep.subr.bf16.mxu0 %v2745
    %7205 = vmatpush2.bf16.msra.mxu0 %v2744
    %7206 = vmatprep.subr.bf16.mxu0 %v2733
    %7207 = vmatpush2.bf16.msra.mxu0 %v2732
    %7208 = vmatprep.mubr.bf16.mxu0 %v6806
    %7209 = vmatmul.mubr.bf16.gmra.mxu0 %v6805
    %v7210 = vpop.f32.mrf.mxu0
    %v7211 = vadd.f32 %v7170, %v7210
    %v7212 = vpop.f32.mrf.mxu0
    %v7213 = vadd.f32 %v7172, %v7212
    %v7214 = vpop.f32.mrf.mxu0
    %v7215 = vpop.f32.mrf.mxu0
    %7216 = vdwg.mxu0
    %7217 = vmatprep.subr.bf16.mxu0 %v2531
    %7218 = vmatpush1.bf16.msra.mxu0 %v2530
    %7219 = vmatprep.subr.bf16.mxu0 %v2519
    %7220 = vmatpush1.bf16.msra.mxu0 %v2518
    %7221 = vmatprep.subr.bf16.mxu0 %v2507
    %7222 = vmatpush1.bf16.msra.mxu0 %v2506
    %7223 = vmatprep.subr.bf16.mxu0 %v2495
    %7224 = vmatpush1.bf16.msra.mxu0 %v2494
    %7225 = vmatprep.subr.bf16.mxu0 %v2483
    %7226 = vmatpush1.bf16.msra.mxu0 %v2482
    %7227 = vmatprep.subr.bf16.mxu0 %v2471
    %7228 = vmatpush1.bf16.msra.mxu0 %v2470
    %7229 = vmatprep.subr.bf16.mxu0 %v2459
    %7230 = vmatpush1.bf16.msra.mxu0 %v2458
    %7231 = vmatprep.subr.bf16.mxu0 %v2447
    %7232 = vmatpush1.bf16.msra.mxu0 %v2446
    %7233 = vmatprep.subr.bf16.mxu0 %v2627
    %7234 = vmatpush2.bf16.msra.mxu0 %v2626
    %7235 = vmatprep.subr.bf16.mxu0 %v2615
    %7236 = vmatpush2.bf16.msra.mxu0 %v2614
    %7237 = vmatprep.subr.bf16.mxu0 %v2603
    %7238 = vmatpush2.bf16.msra.mxu0 %v2602
    %7239 = vmatprep.subr.bf16.mxu0 %v2591
    %7240 = vmatpush2.bf16.msra.mxu0 %v2590
    %7241 = vmatprep.subr.bf16.mxu0 %v2579
    %7242 = vmatpush2.bf16.msra.mxu0 %v2578
    %7243 = vmatprep.subr.bf16.mxu0 %v2567
    %7244 = vmatpush2.bf16.msra.mxu0 %v2566
    %7245 = vmatprep.subr.bf16.mxu0 %v2555
    %7246 = vmatpush2.bf16.msra.mxu0 %v2554
    %7247 = vmatprep.subr.bf16.mxu0 %v2543
    %7248 = vmatpush2.bf16.msra.mxu0 %v2542
    %7249 = vmatprep.mubr.bf16.mxu0 %v6804
    %7250 = vmatmul.mubr.bf16.gmra.mxu0 %v6803
    %v7251 = vpop.f32.mrf.mxu0
    %v7252 = vadd.f32 0.0, %v7251
    %v7253 = vpop.f32.mrf.mxu0
    %v7254 = vadd.f32 0.0, %v7253
    %v7255 = vpop.f32.mrf.mxu0
    %v7256 = vpop.f32.mrf.mxu0
    %7257 = vdwg.mxu0
    %7258 = vmatprep.subr.bf16.mxu0 %v2723
    %7259 = vmatpush1.bf16.msra.mxu0 %v2722
    %7260 = vmatprep.subr.bf16.mxu0 %v2711
    %7261 = vmatpush1.bf16.msra.mxu0 %v2710
    %7262 = vmatprep.subr.bf16.mxu0 %v2699
    %7263 = vmatpush1.bf16.msra.mxu0 %v2698
    %7264 = vmatprep.subr.bf16.mxu0 %v2687
    %7265 = vmatpush1.bf16.msra.mxu0 %v2686
    %7266 = vmatprep.subr.bf16.mxu0 %v2675
    %7267 = vmatpush1.bf16.msra.mxu0 %v2674
    %7268 = vmatprep.subr.bf16.mxu0 %v2663
    %7269 = vmatpush1.bf16.msra.mxu0 %v2662
    %7270 = vmatprep.subr.bf16.mxu0 %v2651
    %7271 = vmatpush1.bf16.msra.mxu0 %v2650
    %7272 = vmatprep.subr.bf16.mxu0 %v2639
    %7273 = vmatpush1.bf16.msra.mxu0 %v2638
    %7274 = vmatprep.subr.bf16.mxu0 %v2819
    %7275 = vmatpush2.bf16.msra.mxu0 %v2818
    %7276 = vmatprep.subr.bf16.mxu0 %v2807
    %7277 = vmatpush2.bf16.msra.mxu0 %v2806
    %7278 = vmatprep.subr.bf16.mxu0 %v2795
    %7279 = vmatpush2.bf16.msra.mxu0 %v2794
    %7280 = vmatprep.subr.bf16.mxu0 %v2783
    %7281 = vmatpush2.bf16.msra.mxu0 %v2782
    %7282 = vmatprep.subr.bf16.mxu0 %v2771
    %7283 = vmatpush2.bf16.msra.mxu0 %v2770
    %7284 = vmatprep.subr.bf16.mxu0 %v2759
    %7285 = vmatpush2.bf16.msra.mxu0 %v2758
    %7286 = vmatprep.subr.bf16.mxu0 %v2747
    %7287 = vmatpush2.bf16.msra.mxu0 %v2746
    %7288 = vmatprep.subr.bf16.mxu0 %v2735
    %7289 = vmatpush2.bf16.msra.mxu0 %v2734
    %7290 = vmatprep.mubr.bf16.mxu0 %v6806
    %7291 = vmatmul.mubr.bf16.gmra.mxu0 %v6805
    %v7292 = vpop.f32.mrf.mxu0
    %v7293 = vadd.f32 %v7252, %v7292
    %v7294 = vpop.f32.mrf.mxu0
    %v7295 = vadd.f32 %v7254, %v7294
    %v7296 = vpop.f32.mrf.mxu0
    %v7297 = vpop.f32.mrf.mxu0
    %7298 = vdwg.mxu0
    %v7299 = vadd.f32 %v6791, %v6883
    %v7300 = vadd.f32 %v6792, %v6885
    %v7301 = vadd.f32 %v6793, %v6965
    %v7302 = vadd.f32 %v6794, %v6967
    %v7303 = vxor.u32 %v7299, 2147483648
    %v7304 = vxor.u32 %v7300, 2147483648
    %v7305 = vxor.u32 %v7301, 2147483648
    %v7306 = vxor.u32 %v7302, 2147483648
    %v7307 = vmul.f32 %v7303, 1.442695
    %v7308 = vpow.pop %v7307
    %v7309 = vmul.f32 %v7304, 1.442695
    %v7310 = vpow.pop %v7309
    %v7311 = vmul.f32 %v7305, 1.442695
    %v7312 = vpow.pop %v7311
    %v7313 = vmul.f32 %v7306, 1.442695
    %v7314 = vpow.pop %v7313
    %v7315 = vadd.f32 %v7308, 1.0
    %v7316 = vadd.f32 %v7310, 1.0
    %v7317 = vadd.f32 %v7312, 1.0
    %v7318 = vadd.f32 %v7314, 1.0
    %v7319 = vrcp.pop %v7315
    %v7320 = vmul.f32 1.0, %v7319
    %v7321 = vrcp.pop %v7316
    %v7322 = vmul.f32 1.0, %v7321
    %v7323 = vrcp.pop %v7317
    %v7324 = vmul.f32 1.0, %v7323
    %v7325 = vrcp.pop %v7318
    %v7326 = vmul.f32 1.0, %v7325
    %v7327 = vadd.f32 %v6795, %v7047
    %v7328 = vadd.f32 %v6796, %v7049
    %v7329 = vadd.f32 %v6797, %v7129
    %v7330 = vadd.f32 %v6798, %v7131
    %v7331 = vxor.u32 %v7327, 2147483648
    %v7332 = vxor.u32 %v7328, 2147483648
    %v7333 = vxor.u32 %v7329, 2147483648
    %v7334 = vxor.u32 %v7330, 2147483648
    %v7335 = vmul.f32 %v7331, 1.442695
    %v7336 = vpow.pop %v7335
    %v7337 = vmul.f32 %v7332, 1.442695
    %v7338 = vpow.pop %v7337
    %v7339 = vmul.f32 %v7333, 1.442695
    %v7340 = vpow.pop %v7339
    %v7341 = vmul.f32 %v7334, 1.442695
    %v7342 = vpow.pop %v7341
    %v7343 = vadd.f32 %v7336, 1.0
    %v7344 = vadd.f32 %v7338, 1.0
    %v7345 = vadd.f32 %v7340, 1.0
    %v7346 = vadd.f32 %v7342, 1.0
    %v7347 = vrcp.pop %v7343
    %v7348 = vmul.f32 1.0, %v7347
    %v7349 = vrcp.pop %v7344
    %v7350 = vmul.f32 1.0, %v7349
    %v7351 = vrcp.pop %v7345
    %v7352 = vmul.f32 1.0, %v7351
    %v7353 = vrcp.pop %v7346
    %v7354 = vmul.f32 1.0, %v7353
    %v7355 = vadd.f32 %v7211, %v3756
    %v7356 = vadd.f32 %v7213, %v3760
    %v7357 = vadd.f32 %v7293, %v3764
    %v7358 = vadd.f32 %v7295, %v3768
    %v7359 = vmul.f32 %v7320, %v7355
    %v7360 = vmul.f32 %v7322, %v7356
    %v7361 = vmul.f32 %v7324, %v7357
    %v7362 = vmul.f32 %v7326, %v7358
    %v7363 = vadd.f32 %v6799, %v7359
    %v7364 = vadd.f32 %v6800, %v7360
    %v7365 = vadd.f32 %v6801, %v7361
    %v7366 = vadd.f32 %v6802, %v7362
    %v7367 = vtanh.pop %v7363
    %v7368 = vtanh.pop %v7364
    %v7369 = vtanh.pop %v7365
    %v7370 = vtanh.pop %v7366
    %v7371 = vsub.f32 1.0, %v7348
    %v7372 = vsub.f32 1.0, %v7350
    %v7373 = vsub.f32 1.0, %v7352
    %v7374 = vsub.f32 1.0, %v7354
    %v7375 = vmul.f32 %v7371, %v7367
    %v7376 = vmul.f32 %v7372, %v7368
    %v7377 = vmul.f32 %v7373, %v7369
    %v7378 = vmul.f32 %v7374, %v7370
    %v7379 = vmul.f32 %v7348, %v6786
    %v7380 = vmul.f32 %v7350, %v6787
    %v7381 = vmul.f32 %v7352, %v6788
    %v7382 = vmul.f32 %v7354, %v6789
    %v7383 = vadd.f32 %v7375, %v7379
    %v7384 = vadd.f32 %v7376, %v7380
    %v7385 = vadd.f32 %v7377, %v7381
    %v7386 = vadd.f32 %v7378, %v7382
    %s7387 = scalar_lea.vmem [#allocation2], 672
    %v7388 = vld [vmem:[%s7387] sm:$0xff]
    %v7389 = vld [vmem:[%s7387 + $0x8] sm:$0xff]
    %v7390 = vld [vmem:[%s7387 + $0x10] sm:$0xff]
    %v7391 = vld [vmem:[%s7387 + $0x18] sm:$0xff]
    %v7392 = vld [vmem:[%s7387 + $0x20] sm:$0xff]
    %v7393 = vld [vmem:[%s7387 + $0x28] sm:$0xff]
    %v7394 = vld [vmem:[%s7387 + $0x30] sm:$0xff]
    %v7395 = vld [vmem:[%s7387 + $0x38] sm:$0xff]
    %v7396 = vld [vmem:[%s7387 + $0x40] sm:$0xff]
    %v7397 = vld [vmem:[%s7387 + $0x48] sm:$0xff]
    %v7398 = vld [vmem:[%s7387 + $0x50] sm:$0xff]
    %v7399 = vld [vmem:[%s7387 + $0x58] sm:$0xff]
    %v7400 = vpack.c.bf16 %v7383, %v7383
    %v7401 = vpack.c.bf16 %v7384, %v7384
    %v7402 = vpack.c.bf16 %v7385, %v7385
    %v7403 = vpack.c.bf16 %v7386, %v7386
    %7404 = vmatprep.subr.bf16.mxu0 %v2521
    %7405 = vmatpush1.bf16.msra.mxu0 %v2520
    %7406 = vmatprep.subr.bf16.mxu0 %v2509
    %7407 = vmatpush1.bf16.msra.mxu0 %v2508
    %7408 = vmatprep.subr.bf16.mxu0 %v2497
    %7409 = vmatpush1.bf16.msra.mxu0 %v2496
    %7410 = vmatprep.subr.bf16.mxu0 %v2485
    %7411 = vmatpush1.bf16.msra.mxu0 %v2484
    %7412 = vmatprep.subr.bf16.mxu0 %v2473
    %7413 = vmatpush1.bf16.msra.mxu0 %v2472
    %7414 = vmatprep.subr.bf16.mxu0 %v2461
    %7415 = vmatpush1.bf16.msra.mxu0 %v2460
    %7416 = vmatprep.subr.bf16.mxu0 %v2449
    %7417 = vmatpush1.bf16.msra.mxu0 %v2448
    %7418 = vmatprep.subr.bf16.mxu0 %v2437
    %7419 = vmatpush1.bf16.msra.mxu0 %v2436
    %7420 = vmatprep.subr.bf16.mxu0 %v2617
    %7421 = vmatpush2.bf16.msra.mxu0 %v2616
    %7422 = vmatprep.subr.bf16.mxu0 %v2605
    %7423 = vmatpush2.bf16.msra.mxu0 %v2604
    %7424 = vmatprep.subr.bf16.mxu0 %v2593
    %7425 = vmatpush2.bf16.msra.mxu0 %v2592
    %7426 = vmatprep.subr.bf16.mxu0 %v2581
    %7427 = vmatpush2.bf16.msra.mxu0 %v2580
    %7428 = vmatprep.subr.bf16.mxu0 %v2569
    %7429 = vmatpush2.bf16.msra.mxu0 %v2568
    %7430 = vmatprep.subr.bf16.mxu0 %v2557
    %7431 = vmatpush2.bf16.msra.mxu0 %v2556
    %7432 = vmatprep.subr.bf16.mxu0 %v2545
    %7433 = vmatpush2.bf16.msra.mxu0 %v2544
    %7434 = vmatprep.subr.bf16.mxu0 %v2533
    %7435 = vmatpush2.bf16.msra.mxu0 %v2532
    %7436 = vmatprep.mubr.bf16.mxu0 %v7401
    %7437 = vmatmul.mubr.bf16.gmra.mxu0 %v7400
    %v7438 = vpop.f32.mrf.mxu0
    %v7439 = vadd.f32 0.0, %v7438
    %v7440 = vpop.f32.mrf.mxu0
    %v7441 = vadd.f32 0.0, %v7440
    %v7442 = vpop.f32.mrf.mxu0
    %v7443 = vpop.f32.mrf.mxu0
    %7444 = vdwg.mxu0
    %7445 = vmatprep.subr.bf16.mxu0 %v2713
    %7446 = vmatpush1.bf16.msra.mxu0 %v2712
    %7447 = vmatprep.subr.bf16.mxu0 %v2701
    %7448 = vmatpush1.bf16.msra.mxu0 %v2700
    %7449 = vmatprep.subr.bf16.mxu0 %v2689
    %7450 = vmatpush1.bf16.msra.mxu0 %v2688
    %7451 = vmatprep.subr.bf16.mxu0 %v2677
    %7452 = vmatpush1.bf16.msra.mxu0 %v2676
    %7453 = vmatprep.subr.bf16.mxu0 %v2665
    %7454 = vmatpush1.bf16.msra.mxu0 %v2664
    %7455 = vmatprep.subr.bf16.mxu0 %v2653
    %7456 = vmatpush1.bf16.msra.mxu0 %v2652
    %7457 = vmatprep.subr.bf16.mxu0 %v2641
    %7458 = vmatpush1.bf16.msra.mxu0 %v2640
    %7459 = vmatprep.subr.bf16.mxu0 %v2629
    %7460 = vmatpush1.bf16.msra.mxu0 %v2628
    %7461 = vmatprep.subr.bf16.mxu0 %v2809
    %7462 = vmatpush2.bf16.msra.mxu0 %v2808
    %7463 = vmatprep.subr.bf16.mxu0 %v2797
    %7464 = vmatpush2.bf16.msra.mxu0 %v2796
    %7465 = vmatprep.subr.bf16.mxu0 %v2785
    %7466 = vmatpush2.bf16.msra.mxu0 %v2784
    %7467 = vmatprep.subr.bf16.mxu0 %v2773
    %7468 = vmatpush2.bf16.msra.mxu0 %v2772
    %7469 = vmatprep.subr.bf16.mxu0 %v2761
    %7470 = vmatpush2.bf16.msra.mxu0 %v2760
    %7471 = vmatprep.subr.bf16.mxu0 %v2749
    %7472 = vmatpush2.bf16.msra.mxu0 %v2748
    %7473 = vmatprep.subr.bf16.mxu0 %v2737
    %7474 = vmatpush2.bf16.msra.mxu0 %v2736
    %7475 = vmatprep.subr.bf16.mxu0 %v2725
    %7476 = vmatpush2.bf16.msra.mxu0 %v2724
    %7477 = vmatprep.mubr.bf16.mxu0 %v7403
    %7478 = vmatmul.mubr.bf16.gmra.mxu0 %v7402
    %v7479 = vpop.f32.mrf.mxu0
    %v7480 = vadd.f32 %v7439, %v7479
    %v7481 = vpop.f32.mrf.mxu0
    %v7482 = vadd.f32 %v7441, %v7481
    %v7483 = vpop.f32.mrf.mxu0
    %v7484 = vpop.f32.mrf.mxu0
    %7485 = vdwg.mxu0
    %7486 = vmatprep.subr.bf16.mxu0 %v2523
    %7487 = vmatpush1.bf16.msra.mxu0 %v2522
    %7488 = vmatprep.subr.bf16.mxu0 %v2511
    %7489 = vmatpush1.bf16.msra.mxu0 %v2510
    %7490 = vmatprep.subr.bf16.mxu0 %v2499
    %7491 = vmatpush1.bf16.msra.mxu0 %v2498
    %7492 = vmatprep.subr.bf16.mxu0 %v2487
    %7493 = vmatpush1.bf16.msra.mxu0 %v2486
    %7494 = vmatprep.subr.bf16.mxu0 %v2475
    %7495 = vmatpush1.bf16.msra.mxu0 %v2474
    %7496 = vmatprep.subr.bf16.mxu0 %v2463
    %7497 = vmatpush1.bf16.msra.mxu0 %v2462
    %7498 = vmatprep.subr.bf16.mxu0 %v2451
    %7499 = vmatpush1.bf16.msra.mxu0 %v2450
    %7500 = vmatprep.subr.bf16.mxu0 %v2439
    %7501 = vmatpush1.bf16.msra.mxu0 %v2438
    %7502 = vmatprep.subr.bf16.mxu0 %v2619
    %7503 = vmatpush2.bf16.msra.mxu0 %v2618
    %7504 = vmatprep.subr.bf16.mxu0 %v2607
    %7505 = vmatpush2.bf16.msra.mxu0 %v2606
    %7506 = vmatprep.subr.bf16.mxu0 %v2595
    %7507 = vmatpush2.bf16.msra.mxu0 %v2594
    %7508 = vmatprep.subr.bf16.mxu0 %v2583
    %7509 = vmatpush2.bf16.msra.mxu0 %v2582
    %7510 = vmatprep.subr.bf16.mxu0 %v2571
    %7511 = vmatpush2.bf16.msra.mxu0 %v2570
    %7512 = vmatprep.subr.bf16.mxu0 %v2559
    %7513 = vmatpush2.bf16.msra.mxu0 %v2558
    %7514 = vmatprep.subr.bf16.mxu0 %v2547
    %7515 = vmatpush2.bf16.msra.mxu0 %v2546
    %7516 = vmatprep.subr.bf16.mxu0 %v2535
    %7517 = vmatpush2.bf16.msra.mxu0 %v2534
    %7518 = vmatprep.mubr.bf16.mxu0 %v7401
    %7519 = vmatmul.mubr.bf16.gmra.mxu0 %v7400
    %v7520 = vpop.f32.mrf.mxu0
    %v7521 = vadd.f32 0.0, %v7520
    %v7522 = vpop.f32.mrf.mxu0
    %v7523 = vadd.f32 0.0, %v7522
    %v7524 = vpop.f32.mrf.mxu0
    %v7525 = vpop.f32.mrf.mxu0
    %7526 = vdwg.mxu0
    %7527 = vmatprep.subr.bf16.mxu0 %v2715
    %7528 = vmatpush1.bf16.msra.mxu0 %v2714
    %7529 = vmatprep.subr.bf16.mxu0 %v2703
    %7530 = vmatpush1.bf16.msra.mxu0 %v2702
    %7531 = vmatprep.subr.bf16.mxu0 %v2691
    %7532 = vmatpush1.bf16.msra.mxu0 %v2690
    %7533 = vmatprep.subr.bf16.mxu0 %v2679
    %7534 = vmatpush1.bf16.msra.mxu0 %v2678
    %7535 = vmatprep.subr.bf16.mxu0 %v2667
    %7536 = vmatpush1.bf16.msra.mxu0 %v2666
    %7537 = vmatprep.subr.bf16.mxu0 %v2655
    %7538 = vmatpush1.bf16.msra.mxu0 %v2654
    %7539 = vmatprep.subr.bf16.mxu0 %v2643
    %7540 = vmatpush1.bf16.msra.mxu0 %v2642
    %7541 = vmatprep.subr.bf16.mxu0 %v2631
    %7542 = vmatpush1.bf16.msra.mxu0 %v2630
    %7543 = vmatprep.subr.bf16.mxu0 %v2811
    %7544 = vmatpush2.bf16.msra.mxu0 %v2810
    %7545 = vmatprep.subr.bf16.mxu0 %v2799
    %7546 = vmatpush2.bf16.msra.mxu0 %v2798
    %7547 = vmatprep.subr.bf16.mxu0 %v2787
    %7548 = vmatpush2.bf16.msra.mxu0 %v2786
    %7549 = vmatprep.subr.bf16.mxu0 %v2775
    %7550 = vmatpush2.bf16.msra.mxu0 %v2774
    %7551 = vmatprep.subr.bf16.mxu0 %v2763
    %7552 = vmatpush2.bf16.msra.mxu0 %v2762
    %7553 = vmatprep.subr.bf16.mxu0 %v2751
    %7554 = vmatpush2.bf16.msra.mxu0 %v2750
    %7555 = vmatprep.subr.bf16.mxu0 %v2739
    %7556 = vmatpush2.bf16.msra.mxu0 %v2738
    %7557 = vmatprep.subr.bf16.mxu0 %v2727
    %7558 = vmatpush2.bf16.msra.mxu0 %v2726
    %7559 = vmatprep.mubr.bf16.mxu0 %v7403
    %7560 = vmatmul.mubr.bf16.gmra.mxu0 %v7402
    %v7561 = vpop.f32.mrf.mxu0
    %v7562 = vadd.f32 %v7521, %v7561
    %v7563 = vpop.f32.mrf.mxu0
    %v7564 = vadd.f32 %v7523, %v7563
    %v7565 = vpop.f32.mrf.mxu0
    %v7566 = vpop.f32.mrf.mxu0
    %7567 = vdwg.mxu0
    %7568 = vmatprep.subr.bf16.mxu0 %v2525
    %7569 = vmatpush1.bf16.msra.mxu0 %v2524
    %7570 = vmatprep.subr.bf16.mxu0 %v2513
    %7571 = vmatpush1.bf16.msra.mxu0 %v2512
    %7572 = vmatprep.subr.bf16.mxu0 %v2501
    %7573 = vmatpush1.bf16.msra.mxu0 %v2500
    %7574 = vmatprep.subr.bf16.mxu0 %v2489
    %7575 = vmatpush1.bf16.msra.mxu0 %v2488
    %7576 = vmatprep.subr.bf16.mxu0 %v2477
    %7577 = vmatpush1.bf16.msra.mxu0 %v2476
    %7578 = vmatprep.subr.bf16.mxu0 %v2465
    %7579 = vmatpush1.bf16.msra.mxu0 %v2464
    %7580 = vmatprep.subr.bf16.mxu0 %v2453
    %7581 = vmatpush1.bf16.msra.mxu0 %v2452
    %7582 = vmatprep.subr.bf16.mxu0 %v2441
    %7583 = vmatpush1.bf16.msra.mxu0 %v2440
    %7584 = vmatprep.subr.bf16.mxu0 %v2621
    %7585 = vmatpush2.bf16.msra.mxu0 %v2620
    %7586 = vmatprep.subr.bf16.mxu0 %v2609
    %7587 = vmatpush2.bf16.msra.mxu0 %v2608
    %7588 = vmatprep.subr.bf16.mxu0 %v2597
    %7589 = vmatpush2.bf16.msra.mxu0 %v2596
    %7590 = vmatprep.subr.bf16.mxu0 %v2585
    %7591 = vmatpush2.bf16.msra.mxu0 %v2584
    %7592 = vmatprep.subr.bf16.mxu0 %v2573
    %7593 = vmatpush2.bf16.msra.mxu0 %v2572
    %7594 = vmatprep.subr.bf16.mxu0 %v2561
    %7595 = vmatpush2.bf16.msra.mxu0 %v2560
    %7596 = vmatprep.subr.bf16.mxu0 %v2549
    %7597 = vmatpush2.bf16.msra.mxu0 %v2548
    %7598 = vmatprep.subr.bf16.mxu0 %v2537
    %7599 = vmatpush2.bf16.msra.mxu0 %v2536
    %7600 = vmatprep.mubr.bf16.mxu0 %v7401
    %7601 = vmatmul.mubr.bf16.gmra.mxu0 %v7400
    %v7602 = vpop.f32.mrf.mxu0
    %v7603 = vadd.f32 0.0, %v7602
    %v7604 = vpop.f32.mrf.mxu0
    %v7605 = vadd.f32 0.0, %v7604
    %v7606 = vpop.f32.mrf.mxu0
    %v7607 = vpop.f32.mrf.mxu0
    %7608 = vdwg.mxu0
    %7609 = vmatprep.subr.bf16.mxu0 %v2717
    %7610 = vmatpush1.bf16.msra.mxu0 %v2716
    %7611 = vmatprep.subr.bf16.mxu0 %v2705
    %7612 = vmatpush1.bf16.msra.mxu0 %v2704
    %7613 = vmatprep.subr.bf16.mxu0 %v2693
    %7614 = vmatpush1.bf16.msra.mxu0 %v2692
    %7615 = vmatprep.subr.bf16.mxu0 %v2681
    %7616 = vmatpush1.bf16.msra.mxu0 %v2680
    %7617 = vmatprep.subr.bf16.mxu0 %v2669
    %7618 = vmatpush1.bf16.msra.mxu0 %v2668
    %7619 = vmatprep.subr.bf16.mxu0 %v2657
    %7620 = vmatpush1.bf16.msra.mxu0 %v2656
    %7621 = vmatprep.subr.bf16.mxu0 %v2645
    %7622 = vmatpush1.bf16.msra.mxu0 %v2644
    %7623 = vmatprep.subr.bf16.mxu0 %v2633
    %7624 = vmatpush1.bf16.msra.mxu0 %v2632
    %7625 = vmatprep.subr.bf16.mxu0 %v2813
    %7626 = vmatpush2.bf16.msra.mxu0 %v2812
    %7627 = vmatprep.subr.bf16.mxu0 %v2801
    %7628 = vmatpush2.bf16.msra.mxu0 %v2800
    %7629 = vmatprep.subr.bf16.mxu0 %v2789
    %7630 = vmatpush2.bf16.msra.mxu0 %v2788
    %7631 = vmatprep.subr.bf16.mxu0 %v2777
    %7632 = vmatpush2.bf16.msra.mxu0 %v2776
    %7633 = vmatprep.subr.bf16.mxu0 %v2765
    %7634 = vmatpush2.bf16.msra.mxu0 %v2764
    %7635 = vmatprep.subr.bf16.mxu0 %v2753
    %7636 = vmatpush2.bf16.msra.mxu0 %v2752
    %7637 = vmatprep.subr.bf16.mxu0 %v2741
    %7638 = vmatpush2.bf16.msra.mxu0 %v2740
    %7639 = vmatprep.subr.bf16.mxu0 %v2729
    %7640 = vmatpush2.bf16.msra.mxu0 %v2728
    %7641 = vmatprep.mubr.bf16.mxu0 %v7403
    %7642 = vmatmul.mubr.bf16.gmra.mxu0 %v7402
    %v7643 = vpop.f32.mrf.mxu0
    %v7644 = vadd.f32 %v7603, %v7643
    %v7645 = vpop.f32.mrf.mxu0
    %v7646 = vadd.f32 %v7605, %v7645
    %v7647 = vpop.f32.mrf.mxu0
    %v7648 = vpop.f32.mrf.mxu0
    %7649 = vdwg.mxu0
    %7650 = vmatprep.subr.bf16.mxu0 %v2527
    %7651 = vmatpush1.bf16.msra.mxu0 %v2526
    %7652 = vmatprep.subr.bf16.mxu0 %v2515
    %7653 = vmatpush1.bf16.msra.mxu0 %v2514
    %7654 = vmatprep.subr.bf16.mxu0 %v2503
    %7655 = vmatpush1.bf16.msra.mxu0 %v2502
    %7656 = vmatprep.subr.bf16.mxu0 %v2491
    %7657 = vmatpush1.bf16.msra.mxu0 %v2490
    %7658 = vmatprep.subr.bf16.mxu0 %v2479
    %7659 = vmatpush1.bf16.msra.mxu0 %v2478
    %7660 = vmatprep.subr.bf16.mxu0 %v2467
    %7661 = vmatpush1.bf16.msra.mxu0 %v2466
    %7662 = vmatprep.subr.bf16.mxu0 %v2455
    %7663 = vmatpush1.bf16.msra.mxu0 %v2454
    %7664 = vmatprep.subr.bf16.mxu0 %v2443
    %7665 = vmatpush1.bf16.msra.mxu0 %v2442
    %7666 = vmatprep.subr.bf16.mxu0 %v2623
    %7667 = vmatpush2.bf16.msra.mxu0 %v2622
    %7668 = vmatprep.subr.bf16.mxu0 %v2611
    %7669 = vmatpush2.bf16.msra.mxu0 %v2610
    %7670 = vmatprep.subr.bf16.mxu0 %v2599
    %7671 = vmatpush2.bf16.msra.mxu0 %v2598
    %7672 = vmatprep.subr.bf16.mxu0 %v2587
    %7673 = vmatpush2.bf16.msra.mxu0 %v2586
    %7674 = vmatprep.subr.bf16.mxu0 %v2575
    %7675 = vmatpush2.bf16.msra.mxu0 %v2574
    %7676 = vmatprep.subr.bf16.mxu0 %v2563
    %7677 = vmatpush2.bf16.msra.mxu0 %v2562
    %7678 = vmatprep.subr.bf16.mxu0 %v2551
    %7679 = vmatpush2.bf16.msra.mxu0 %v2550
    %7680 = vmatprep.subr.bf16.mxu0 %v2539
    %7681 = vmatpush2.bf16.msra.mxu0 %v2538
    %7682 = vmatprep.mubr.bf16.mxu0 %v7401
    %7683 = vmatmul.mubr.bf16.gmra.mxu0 %v7400
    %v7684 = vpop.f32.mrf.mxu0
    %v7685 = vadd.f32 0.0, %v7684
    %v7686 = vpop.f32.mrf.mxu0
    %v7687 = vadd.f32 0.0, %v7686
    %v7688 = vpop.f32.mrf.mxu0
    %v7689 = vpop.f32.mrf.mxu0
    %7690 = vdwg.mxu0
    %7691 = vmatprep.subr.bf16.mxu0 %v2719
    %7692 = vmatpush1.bf16.msra.mxu0 %v2718
    %7693 = vmatprep.subr.bf16.mxu0 %v2707
    %7694 = vmatpush1.bf16.msra.mxu0 %v2706
    %7695 = vmatprep.subr.bf16.mxu0 %v2695
    %7696 = vmatpush1.bf16.msra.mxu0 %v2694
    %7697 = vmatprep.subr.bf16.mxu0 %v2683
    %7698 = vmatpush1.bf16.msra.mxu0 %v2682
    %7699 = vmatprep.subr.bf16.mxu0 %v2671
    %7700 = vmatpush1.bf16.msra.mxu0 %v2670
    %7701 = vmatprep.subr.bf16.mxu0 %v2659
    %7702 = vmatpush1.bf16.msra.mxu0 %v2658
    %7703 = vmatprep.subr.bf16.mxu0 %v2647
    %7704 = vmatpush1.bf16.msra.mxu0 %v2646
    %7705 = vmatprep.subr.bf16.mxu0 %v2635
    %7706 = vmatpush1.bf16.msra.mxu0 %v2634
    %7707 = vmatprep.subr.bf16.mxu0 %v2815
    %7708 = vmatpush2.bf16.msra.mxu0 %v2814
    %7709 = vmatprep.subr.bf16.mxu0 %v2803
    %7710 = vmatpush2.bf16.msra.mxu0 %v2802
    %7711 = vmatprep.subr.bf16.mxu0 %v2791
    %7712 = vmatpush2.bf16.msra.mxu0 %v2790
    %7713 = vmatprep.subr.bf16.mxu0 %v2779
    %7714 = vmatpush2.bf16.msra.mxu0 %v2778
    %7715 = vmatprep.subr.bf16.mxu0 %v2767
    %7716 = vmatpush2.bf16.msra.mxu0 %v2766
    %7717 = vmatprep.subr.bf16.mxu0 %v2755
    %7718 = vmatpush2.bf16.msra.mxu0 %v2754
    %7719 = vmatprep.subr.bf16.mxu0 %v2743
    %7720 = vmatpush2.bf16.msra.mxu0 %v2742
    %7721 = vmatprep.subr.bf16.mxu0 %v2731
    %7722 = vmatpush2.bf16.msra.mxu0 %v2730
    %7723 = vmatprep.mubr.bf16.mxu0 %v7403
    %7724 = vmatmul.mubr.bf16.gmra.mxu0 %v7402
    %v7725 = vpop.f32.mrf.mxu0
    %v7726 = vadd.f32 %v7685, %v7725
    %v7727 = vpop.f32.mrf.mxu0
    %v7728 = vadd.f32 %v7687, %v7727
    %v7729 = vpop.f32.mrf.mxu0
    %v7730 = vpop.f32.mrf.mxu0
    %7731 = vdwg.mxu0
    %7732 = vmatprep.subr.bf16.mxu0 %v2529
    %7733 = vmatpush1.bf16.msra.mxu0 %v2528
    %7734 = vmatprep.subr.bf16.mxu0 %v2517
    %7735 = vmatpush1.bf16.msra.mxu0 %v2516
    %7736 = vmatprep.subr.bf16.mxu0 %v2505
    %7737 = vmatpush1.bf16.msra.mxu0 %v2504
    %7738 = vmatprep.subr.bf16.mxu0 %v2493
    %7739 = vmatpush1.bf16.msra.mxu0 %v2492
    %7740 = vmatprep.subr.bf16.mxu0 %v2481
    %7741 = vmatpush1.bf16.msra.mxu0 %v2480
    %7742 = vmatprep.subr.bf16.mxu0 %v2469
    %7743 = vmatpush1.bf16.msra.mxu0 %v2468
    %7744 = vmatprep.subr.bf16.mxu0 %v2457
    %7745 = vmatpush1.bf16.msra.mxu0 %v2456
    %7746 = vmatprep.subr.bf16.mxu0 %v2445
    %7747 = vmatpush1.bf16.msra.mxu0 %v2444
    %7748 = vmatprep.subr.bf16.mxu0 %v2625
    %7749 = vmatpush2.bf16.msra.mxu0 %v2624
    %7750 = vmatprep.subr.bf16.mxu0 %v2613
    %7751 = vmatpush2.bf16.msra.mxu0 %v2612
    %7752 = vmatprep.subr.bf16.mxu0 %v2601
    %7753 = vmatpush2.bf16.msra.mxu0 %v2600
    %7754 = vmatprep.subr.bf16.mxu0 %v2589
    %7755 = vmatpush2.bf16.msra.mxu0 %v2588
    %7756 = vmatprep.subr.bf16.mxu0 %v2577
    %7757 = vmatpush2.bf16.msra.mxu0 %v2576
    %7758 = vmatprep.subr.bf16.mxu0 %v2565
    %7759 = vmatpush2.bf16.msra.mxu0 %v2564
    %7760 = vmatprep.subr.bf16.mxu0 %v2553
    %7761 = vmatpush2.bf16.msra.mxu0 %v2552
    %7762 = vmatprep.subr.bf16.mxu0 %v2541
    %7763 = vmatpush2.bf16.msra.mxu0 %v2540
    %7764 = vmatprep.mubr.bf16.mxu0 %v7401
    %7765 = vmatmul.mubr.bf16.gmra.mxu0 %v7400
    %v7766 = vpop.f32.mrf.mxu0
    %v7767 = vadd.f32 0.0, %v7766
    %v7768 = vpop.f32.mrf.mxu0
    %v7769 = vadd.f32 0.0, %v7768
    %v7770 = vpop.f32.mrf.mxu0
    %v7771 = vpop.f32.mrf.mxu0
    %7772 = vdwg.mxu0
    %7773 = vmatprep.subr.bf16.mxu0 %v2721
    %7774 = vmatpush1.bf16.msra.mxu0 %v2720
    %7775 = vmatprep.subr.bf16.mxu0 %v2709
    %7776 = vmatpush1.bf16.msra.mxu0 %v2708
    %7777 = vmatprep.subr.bf16.mxu0 %v2697
    %7778 = vmatpush1.bf16.msra.mxu0 %v2696
    %7779 = vmatprep.subr.bf16.mxu0 %v2685
    %7780 = vmatpush1.bf16.msra.mxu0 %v2684
    %7781 = vmatprep.subr.bf16.mxu0 %v2673
    %7782 = vmatpush1.bf16.msra.mxu0 %v2672
    %7783 = vmatprep.subr.bf16.mxu0 %v2661
    %7784 = vmatpush1.bf16.msra.mxu0 %v2660
    %7785 = vmatprep.subr.bf16.mxu0 %v2649
    %7786 = vmatpush1.bf16.msra.mxu0 %v2648
    %7787 = vmatprep.subr.bf16.mxu0 %v2637
    %7788 = vmatpush1.bf16.msra.mxu0 %v2636
    %7789 = vmatprep.subr.bf16.mxu0 %v2817
    %7790 = vmatpush2.bf16.msra.mxu0 %v2816
    %7791 = vmatprep.subr.bf16.mxu0 %v2805
    %7792 = vmatpush2.bf16.msra.mxu0 %v2804
    %7793 = vmatprep.subr.bf16.mxu0 %v2793
    %7794 = vmatpush2.bf16.msra.mxu0 %v2792
    %7795 = vmatprep.subr.bf16.mxu0 %v2781
    %7796 = vmatpush2.bf16.msra.mxu0 %v2780
    %7797 = vmatprep.subr.bf16.mxu0 %v2769
    %7798 = vmatpush2.bf16.msra.mxu0 %v2768
    %7799 = vmatprep.subr.bf16.mxu0 %v2757
    %7800 = vmatpush2.bf16.msra.mxu0 %v2756
    %7801 = vmatprep.subr.bf16.mxu0 %v2745
    %7802 = vmatpush2.bf16.msra.mxu0 %v2744
    %7803 = vmatprep.subr.bf16.mxu0 %v2733
    %7804 = vmatpush2.bf16.msra.mxu0 %v2732
    %7805 = vmatprep.mubr.bf16.mxu0 %v7403
    %7806 = vmatmul.mubr.bf16.gmra.mxu0 %v7402
    %v7807 = vpop.f32.mrf.mxu0
    %v7808 = vadd.f32 %v7767, %v7807
    %v7809 = vpop.f32.mrf.mxu0
    %v7810 = vadd.f32 %v7769, %v7809
    %v7811 = vpop.f32.mrf.mxu0
    %v7812 = vpop.f32.mrf.mxu0
    %7813 = vdwg.mxu0
    %7814 = vmatprep.subr.bf16.mxu0 %v2531
    %7815 = vmatpush1.bf16.msra.mxu0 %v2530
    %7816 = vmatprep.subr.bf16.mxu0 %v2519
    %7817 = vmatpush1.bf16.msra.mxu0 %v2518
    %7818 = vmatprep.subr.bf16.mxu0 %v2507
    %7819 = vmatpush1.bf16.msra.mxu0 %v2506
    %7820 = vmatprep.subr.bf16.mxu0 %v2495
    %7821 = vmatpush1.bf16.msra.mxu0 %v2494
    %7822 = vmatprep.subr.bf16.mxu0 %v2483
    %7823 = vmatpush1.bf16.msra.mxu0 %v2482
    %7824 = vmatprep.subr.bf16.mxu0 %v2471
    %7825 = vmatpush1.bf16.msra.mxu0 %v2470
    %7826 = vmatprep.subr.bf16.mxu0 %v2459
    %7827 = vmatpush1.bf16.msra.mxu0 %v2458
    %7828 = vmatprep.subr.bf16.mxu0 %v2447
    %7829 = vmatpush1.bf16.msra.mxu0 %v2446
    %7830 = vmatprep.subr.bf16.mxu0 %v2627
    %7831 = vmatpush2.bf16.msra.mxu0 %v2626
    %7832 = vmatprep.subr.bf16.mxu0 %v2615
    %7833 = vmatpush2.bf16.msra.mxu0 %v2614
    %7834 = vmatprep.subr.bf16.mxu0 %v2603
    %7835 = vmatpush2.bf16.msra.mxu0 %v2602
    %7836 = vmatprep.subr.bf16.mxu0 %v2591
    %7837 = vmatpush2.bf16.msra.mxu0 %v2590
    %7838 = vmatprep.subr.bf16.mxu0 %v2579
    %7839 = vmatpush2.bf16.msra.mxu0 %v2578
    %7840 = vmatprep.subr.bf16.mxu0 %v2567
    %7841 = vmatpush2.bf16.msra.mxu0 %v2566
    %7842 = vmatprep.subr.bf16.mxu0 %v2555
    %7843 = vmatpush2.bf16.msra.mxu0 %v2554
    %7844 = vmatprep.subr.bf16.mxu0 %v2543
    %7845 = vmatpush2.bf16.msra.mxu0 %v2542
    %7846 = vmatprep.mubr.bf16.mxu0 %v7401
    %7847 = vmatmul.mubr.bf16.gmra.mxu0 %v7400
    %v7848 = vpop.f32.mrf.mxu0
    %v7849 = vadd.f32 0.0, %v7848
    %v7850 = vpop.f32.mrf.mxu0
    %v7851 = vadd.f32 0.0, %v7850
    %v7852 = vpop.f32.mrf.mxu0
    %v7853 = vpop.f32.mrf.mxu0
    %7854 = vdwg.mxu0
    %7855 = vmatprep.subr.bf16.mxu0 %v2723
    %7856 = vmatpush1.bf16.msra.mxu0 %v2722
    %7857 = vmatprep.subr.bf16.mxu0 %v2711
    %7858 = vmatpush1.bf16.msra.mxu0 %v2710
    %7859 = vmatprep.subr.bf16.mxu0 %v2699
    %7860 = vmatpush1.bf16.msra.mxu0 %v2698
    %7861 = vmatprep.subr.bf16.mxu0 %v2687
    %7862 = vmatpush1.bf16.msra.mxu0 %v2686
    %7863 = vmatprep.subr.bf16.mxu0 %v2675
    %7864 = vmatpush1.bf16.msra.mxu0 %v2674
    %7865 = vmatprep.subr.bf16.mxu0 %v2663
    %7866 = vmatpush1.bf16.msra.mxu0 %v2662
    %7867 = vmatprep.subr.bf16.mxu0 %v2651
    %7868 = vmatpush1.bf16.msra.mxu0 %v2650
    %7869 = vmatprep.subr.bf16.mxu0 %v2639
    %7870 = vmatpush1.bf16.msra.mxu0 %v2638
    %7871 = vmatprep.subr.bf16.mxu0 %v2819
    %7872 = vmatpush2.bf16.msra.mxu0 %v2818
    %7873 = vmatprep.subr.bf16.mxu0 %v2807
    %7874 = vmatpush2.bf16.msra.mxu0 %v2806
    %7875 = vmatprep.subr.bf16.mxu0 %v2795
    %7876 = vmatpush2.bf16.msra.mxu0 %v2794
    %7877 = vmatprep.subr.bf16.mxu0 %v2783
    %7878 = vmatpush2.bf16.msra.mxu0 %v2782
    %7879 = vmatprep.subr.bf16.mxu0 %v2771
    %7880 = vmatpush2.bf16.msra.mxu0 %v2770
    %7881 = vmatprep.subr.bf16.mxu0 %v2759
    %7882 = vmatpush2.bf16.msra.mxu0 %v2758
    %7883 = vmatprep.subr.bf16.mxu0 %v2747
    %7884 = vmatpush2.bf16.msra.mxu0 %v2746
    %7885 = vmatprep.subr.bf16.mxu0 %v2735
    %7886 = vmatpush2.bf16.msra.mxu0 %v2734
    %7887 = vmatprep.mubr.bf16.mxu0 %v7403
    %7888 = vmatmul.mubr.bf16.gmra.mxu0 %v7402
    %v7889 = vpop.f32.mrf.mxu0
    %v7890 = vadd.f32 %v7849, %v7889
    %v7891 = vpop.f32.mrf.mxu0
    %v7892 = vadd.f32 %v7851, %v7891
    %v7893 = vpop.f32.mrf.mxu0
    %v7894 = vpop.f32.mrf.mxu0
    %7895 = vdwg.mxu0
    %v7896 = vadd.f32 %v7388, %v7480
    %v7897 = vadd.f32 %v7389, %v7482
    %v7898 = vadd.f32 %v7390, %v7562
    %v7899 = vadd.f32 %v7391, %v7564
    %v7900 = vxor.u32 %v7896, 2147483648
    %v7901 = vxor.u32 %v7897, 2147483648
    %v7902 = vxor.u32 %v7898, 2147483648
    %v7903 = vxor.u32 %v7899, 2147483648
    %v7904 = vmul.f32 %v7900, 1.442695
    %v7905 = vpow.pop %v7904
    %v7906 = vmul.f32 %v7901, 1.442695
    %v7907 = vpow.pop %v7906
    %v7908 = vmul.f32 %v7902, 1.442695
    %v7909 = vpow.pop %v7908
    %v7910 = vmul.f32 %v7903, 1.442695
    %v7911 = vpow.pop %v7910
    %v7912 = vadd.f32 %v7905, 1.0
    %v7913 = vadd.f32 %v7907, 1.0
    %v7914 = vadd.f32 %v7909, 1.0
    %v7915 = vadd.f32 %v7911, 1.0
    %v7916 = vrcp.pop %v7912
    %v7917 = vmul.f32 1.0, %v7916
    %v7918 = vrcp.pop %v7913
    %v7919 = vmul.f32 1.0, %v7918
    %v7920 = vrcp.pop %v7914
    %v7921 = vmul.f32 1.0, %v7920
    %v7922 = vrcp.pop %v7915
    %v7923 = vmul.f32 1.0, %v7922
    %v7924 = vadd.f32 %v7392, %v7644
    %v7925 = vadd.f32 %v7393, %v7646
    %v7926 = vadd.f32 %v7394, %v7726
    %v7927 = vadd.f32 %v7395, %v7728
    %v7928 = vxor.u32 %v7924, 2147483648
    %v7929 = vxor.u32 %v7925, 2147483648
    %v7930 = vxor.u32 %v7926, 2147483648
    %v7931 = vxor.u32 %v7927, 2147483648
    %v7932 = vmul.f32 %v7928, 1.442695
    %v7933 = vpow.pop %v7932
    %v7934 = vmul.f32 %v7929, 1.442695
    %v7935 = vpow.pop %v7934
    %v7936 = vmul.f32 %v7930, 1.442695
    %v7937 = vpow.pop %v7936
    %v7938 = vmul.f32 %v7931, 1.442695
    %v7939 = vpow.pop %v7938
    %v7940 = vadd.f32 %v7933, 1.0
    %v7941 = vadd.f32 %v7935, 1.0
    %v7942 = vadd.f32 %v7937, 1.0
    %v7943 = vadd.f32 %v7939, 1.0
    %v7944 = vrcp.pop %v7940
    %v7945 = vmul.f32 1.0, %v7944
    %v7946 = vrcp.pop %v7941
    %v7947 = vmul.f32 1.0, %v7946
    %v7948 = vrcp.pop %v7942
    %v7949 = vmul.f32 1.0, %v7948
    %v7950 = vrcp.pop %v7943
    %v7951 = vmul.f32 1.0, %v7950
    %v7952 = vadd.f32 %v7808, %v3756
    %v7953 = vadd.f32 %v7810, %v3760
    %v7954 = vadd.f32 %v7890, %v3764
    %v7955 = vadd.f32 %v7892, %v3768
    %v7956 = vmul.f32 %v7917, %v7952
    %v7957 = vmul.f32 %v7919, %v7953
    %v7958 = vmul.f32 %v7921, %v7954
    %v7959 = vmul.f32 %v7923, %v7955
    %v7960 = vadd.f32 %v7396, %v7956
    %v7961 = vadd.f32 %v7397, %v7957
    %v7962 = vadd.f32 %v7398, %v7958
    %v7963 = vadd.f32 %v7399, %v7959
    %v7964 = vtanh.pop %v7960
    %v7965 = vtanh.pop %v7961
    %v7966 = vtanh.pop %v7962
    %v7967 = vtanh.pop %v7963
    %v7968 = vsub.f32 1.0, %v7945
    %v7969 = vsub.f32 1.0, %v7947
    %v7970 = vsub.f32 1.0, %v7949
    %v7971 = vsub.f32 1.0, %v7951
    %v7972 = vmul.f32 %v7968, %v7964
    %v7973 = vmul.f32 %v7969, %v7965
    %v7974 = vmul.f32 %v7970, %v7966
    %v7975 = vmul.f32 %v7971, %v7967
    %v7976 = vmul.f32 %v7945, %v7383
    %v7977 = vmul.f32 %v7947, %v7384
    %v7978 = vmul.f32 %v7949, %v7385
    %v7979 = vmul.f32 %v7951, %v7386
    %v7980 = vadd.f32 %v7972, %v7976
    %v7981 = vadd.f32 %v7973, %v7977
    %v7982 = vadd.f32 %v7974, %v7978
    %v7983 = vadd.f32 %v7975, %v7979
    %v7984 = vpack.c.bf16 %v7980, %v7980
    %v7985 = vpack.c.bf16 %v7981, %v7981
    %v7986 = vpack.c.bf16 %v7982, %v7982
    %v7987 = vpack.c.bf16 %v7983, %v7983
    %v7988 = vld [vmem:[#allocation11] sm:$0xf]
    %v7989 = vld [vmem:[#allocation11 + $0x4] sm:$0xf]
    %v7990 = vld [vmem:[#allocation11 + $0x8] sm:$0xf]
    %v7991 = vld [vmem:[#allocation11 + $0xc] sm:$0xf]
    %v7992 = vld [vmem:[#allocation11 + $0x10] sm:$0xf]
    %v7993 = vld [vmem:[#allocation11 + $0x14] sm:$0xf]
    %v7994 = vld [vmem:[#allocation11 + $0x18] sm:$0xf]
    %v7995 = vld [vmem:[#allocation11 + $0x1c] sm:$0xf]
    %v7996 = vld [vmem:[#allocation11 + $0x20] sm:$0xf]
    %v7997 = vld [vmem:[#allocation11 + $0x24] sm:$0xf]
    %v7998 = vld [vmem:[#allocation11 + $0x28] sm:$0xf]
    %v7999 = vld [vmem:[#allocation11 + $0x2c] sm:$0xf]
    %v8000 = vld [vmem:[#allocation11 + $0x30] sm:$0xf]
    %v8001 = vld [vmem:[#allocation11 + $0x34] sm:$0xf]
    %v8002 = vld [vmem:[#allocation11 + $0x38] sm:$0xf]
    %v8003 = vld [vmem:[#allocation11 + $0x3c] sm:$0xf]
    %v8004 = vld [vmem:[#allocation11 + $0x40] sm:$0xf]
    %v8005 = vld [vmem:[#allocation11 + $0x44] sm:$0xf]
    %v8006 = vld [vmem:[#allocation11 + $0x48] sm:$0xf]
    %v8007 = vld [vmem:[#allocation11 + $0x4c] sm:$0xf]
    %v8008 = vld [vmem:[#allocation11 + $0x50] sm:$0xf]
    %v8009 = vld [vmem:[#allocation11 + $0x54] sm:$0xf]
    %v8010 = vld [vmem:[#allocation11 + $0x58] sm:$0xf]
    %v8011 = vld [vmem:[#allocation11 + $0x5c] sm:$0xf]
    %v8012 = vld [vmem:[#allocation11 + $0x60] sm:$0xf]
    %v8013 = vld [vmem:[#allocation11 + $0x64] sm:$0xf]
    %v8014 = vld [vmem:[#allocation11 + $0x68] sm:$0xf]
    %v8015 = vld [vmem:[#allocation11 + $0x6c] sm:$0xf]
    %v8016 = vld [vmem:[#allocation11 + $0x70] sm:$0xf]
    %v8017 = vld [vmem:[#allocation11 + $0x74] sm:$0xf]
    %v8018 = vld [vmem:[#allocation11 + $0x78] sm:$0xf]
    %v8019 = vld [vmem:[#allocation11 + $0x7c] sm:$0xf]
    %v8020 = vld [vmem:[#allocation11 + $0x80] sm:$0xf]
    %v8021 = vld [vmem:[#allocation11 + $0x84] sm:$0xf]
    %v8022 = vld [vmem:[#allocation11 + $0x88] sm:$0xf]
    %v8023 = vld [vmem:[#allocation11 + $0x8c] sm:$0xf]
    %v8024 = vld [vmem:[#allocation11 + $0x90] sm:$0xf]
    %v8025 = vld [vmem:[#allocation11 + $0x94] sm:$0xf]
    %v8026 = vld [vmem:[#allocation11 + $0x98] sm:$0xf]
    %v8027 = vld [vmem:[#allocation11 + $0x9c] sm:$0xf]
    %v8028 = vld [vmem:[#allocation11 + $0xa0] sm:$0xf]
    %v8029 = vld [vmem:[#allocation11 + $0xa4] sm:$0xf]
    %v8030 = vld [vmem:[#allocation11 + $0xa8] sm:$0xf]
    %v8031 = vld [vmem:[#allocation11 + $0xac] sm:$0xf]
    %v8032 = vld [vmem:[#allocation11 + $0xb0] sm:$0xf]
    %v8033 = vld [vmem:[#allocation11 + $0xb4] sm:$0xf]
    %v8034 = vld [vmem:[#allocation11 + $0xb8] sm:$0xf]
    %v8035 = vld [vmem:[#allocation11 + $0xbc] sm:$0xf]
    %v8036 = vld [vmem:[#allocation11 + $0xc0] sm:$0xf]
    %v8037 = vld [vmem:[#allocation11 + $0xc4] sm:$0xf]
    %v8038 = vld [vmem:[#allocation11 + $0xc8] sm:$0xf]
    %v8039 = vld [vmem:[#allocation11 + $0xcc] sm:$0xf]
    %v8040 = vld [vmem:[#allocation11 + $0xd0] sm:$0xf]
    %v8041 = vld [vmem:[#allocation11 + $0xd4] sm:$0xf]
    %v8042 = vld [vmem:[#allocation11 + $0xd8] sm:$0xf]
    %v8043 = vld [vmem:[#allocation11 + $0xdc] sm:$0xf]
    %v8044 = vld [vmem:[#allocation11 + $0xe0] sm:$0xf]
    %v8045 = vld [vmem:[#allocation11 + $0xe4] sm:$0xf]
    %v8046 = vld [vmem:[#allocation11 + $0xe8] sm:$0xf]
    %v8047 = vld [vmem:[#allocation11 + $0xec] sm:$0xf]
    %v8048 = vld [vmem:[#allocation11 + $0xf0] sm:$0xf]
    %v8049 = vld [vmem:[#allocation11 + $0xf4] sm:$0xf]
    %v8050 = vld [vmem:[#allocation11 + $0xf8] sm:$0xf]
    %v8051 = vld [vmem:[#allocation11 + $0xfc] sm:$0xf]
    %v8052 = vld [vmem:[#allocation12] sm:$0x1]
    %v8054 = vlaneseq
    %v8055 = vshrl.u32 %v8054, 7
    %v8056 = vsub.s32 0, %v8055
    %v8057 = vrot.slane %v8052, %v8056
    %v8123 = vunpack.c.l.b16 %v7988
    %v8124 = vunpack.c.l.b16 %v7989
    %v8125 = vunpack.c.l.b16 %v7990
    %v8126 = vunpack.c.l.b16 %v7991
    %v8127 = vunpack.c.l.b16 %v7992
    %v8128 = vunpack.c.l.b16 %v7993
    %v8129 = vunpack.c.l.b16 %v7994
    %v8130 = vunpack.c.l.b16 %v7995
    %v8131 = vunpack.c.l.b16 %v7996
    %v8132 = vunpack.c.l.b16 %v7997
    %v8133 = vunpack.c.l.b16 %v7998
    %v8134 = vunpack.c.l.b16 %v7999
    %v8135 = vunpack.c.l.b16 %v8000
    %v8136 = vunpack.c.l.b16 %v8001
    %v8137 = vunpack.c.l.b16 %v8002
    %v8138 = vunpack.c.l.b16 %v8003
    %v8139 = vunpack.c.l.b16 %v8004
    %v8140 = vunpack.c.l.b16 %v8005
    %v8141 = vunpack.c.l.b16 %v8006
    %v8142 = vunpack.c.l.b16 %v8007
    %v8143 = vunpack.c.l.b16 %v8008
    %v8144 = vunpack.c.l.b16 %v8009
    %v8145 = vunpack.c.l.b16 %v8010
    %v8146 = vunpack.c.l.b16 %v8011
    %v8147 = vunpack.c.l.b16 %v8012
    %v8148 = vunpack.c.l.b16 %v8013
    %v8149 = vunpack.c.l.b16 %v8014
    %v8150 = vunpack.c.l.b16 %v8015
    %v8151 = vunpack.c.l.b16 %v8016
    %v8152 = vunpack.c.l.b16 %v8017
    %v8153 = vunpack.c.l.b16 %v8018
    %v8154 = vunpack.c.l.b16 %v8019
    %v8155 = vunpack.c.l.b16 %v8020
    %v8156 = vunpack.c.l.b16 %v8021
    %v8157 = vunpack.c.l.b16 %v8022
    %v8158 = vunpack.c.l.b16 %v8023
    %v8159 = vunpack.c.l.b16 %v8024
    %v8160 = vunpack.c.l.b16 %v8025
    %v8161 = vunpack.c.l.b16 %v8026
    %v8162 = vunpack.c.l.b16 %v8027
    %v8163 = vunpack.c.l.b16 %v8028
    %v8164 = vunpack.c.l.b16 %v8029
    %v8165 = vunpack.c.l.b16 %v8030
    %v8166 = vunpack.c.l.b16 %v8031
    %v8167 = vunpack.c.l.b16 %v8032
    %v8168 = vunpack.c.l.b16 %v8033
    %v8169 = vunpack.c.l.b16 %v8034
    %v8170 = vunpack.c.l.b16 %v8035
    %v8171 = vunpack.c.l.b16 %v8036
    %v8172 = vunpack.c.l.b16 %v8037
    %v8173 = vunpack.c.l.b16 %v8038
    %v8174 = vunpack.c.l.b16 %v8039
    %v8175 = vunpack.c.l.b16 %v8040
    %v8176 = vunpack.c.l.b16 %v8041
    %v8177 = vunpack.c.l.b16 %v8042
    %v8178 = vunpack.c.l.b16 %v8043
    %v8179 = vunpack.c.l.b16 %v8044
    %v8180 = vunpack.c.l.b16 %v8045
    %v8181 = vunpack.c.l.b16 %v8046
    %v8182 = vunpack.c.l.b16 %v8047
    %v8183 = vunpack.c.l.b16 %v8048
    %v8184 = vunpack.c.l.b16 %v8049
    %v8185 = vunpack.c.l.b16 %v8050
    %v8186 = vunpack.c.l.b16 %v8051
    %v8187 = vpack.c.b16 %v8124, %v8123
    %v8188 = vpack.c.b16 %v8126, %v8125
    %v8189 = vpack.c.b16 %v8128, %v8127
    %v8190 = vpack.c.b16 %v8130, %v8129
    %v8191 = vpack.c.b16 %v8132, %v8131
    %v8192 = vpack.c.b16 %v8134, %v8133
    %v8193 = vpack.c.b16 %v8136, %v8135
    %v8194 = vpack.c.b16 %v8138, %v8137
    %v8195 = vpack.c.b16 %v8140, %v8139
    %v8196 = vpack.c.b16 %v8142, %v8141
    %v8197 = vpack.c.b16 %v8144, %v8143
    %v8198 = vpack.c.b16 %v8146, %v8145
    %v8199 = vpack.c.b16 %v8148, %v8147
    %v8200 = vpack.c.b16 %v8150, %v8149
    %v8201 = vpack.c.b16 %v8152, %v8151
    %v8202 = vpack.c.b16 %v8154, %v8153
    %v8203 = vpack.c.b16 %v8156, %v8155
    %v8204 = vpack.c.b16 %v8158, %v8157
    %v8205 = vpack.c.b16 %v8160, %v8159
    %v8206 = vpack.c.b16 %v8162, %v8161
    %v8207 = vpack.c.b16 %v8164, %v8163
    %v8208 = vpack.c.b16 %v8166, %v8165
    %v8209 = vpack.c.b16 %v8168, %v8167
    %v8210 = vpack.c.b16 %v8170, %v8169
    %v8211 = vpack.c.b16 %v8172, %v8171
    %v8212 = vpack.c.b16 %v8174, %v8173
    %v8213 = vpack.c.b16 %v8176, %v8175
    %v8214 = vpack.c.b16 %v8178, %v8177
    %v8215 = vpack.c.b16 %v8180, %v8179
    %v8216 = vpack.c.b16 %v8182, %v8181
    %v8217 = vpack.c.b16 %v8184, %v8183
    %v8218 = vpack.c.b16 %v8186, %v8185
    %8251 = vmatprep.subr.bf16.mxu0 0
    %8252 = vmatpush1.bf16.msra.mxu0 %v8194
    %8253 = vmatprep.subr.bf16.mxu0 0
    %8254 = vmatpush1.bf16.msra.mxu0 %v8193
    %8255 = vmatprep.subr.bf16.mxu0 0
    %8256 = vmatpush1.bf16.msra.mxu0 %v8192
    %8257 = vmatprep.subr.bf16.mxu0 0
    %8258 = vmatpush1.bf16.msra.mxu0 %v8191
    %8259 = vmatprep.subr.bf16.mxu0 0
    %8260 = vmatpush1.bf16.msra.mxu0 %v8190
    %8261 = vmatprep.subr.bf16.mxu0 0
    %8262 = vmatpush1.bf16.msra.mxu0 %v8189
    %8263 = vmatprep.subr.bf16.mxu0 0
    %8264 = vmatpush1.bf16.msra.mxu0 %v8188
    %8265 = vmatprep.subr.bf16.mxu0 0
    %8266 = vmatpush1.bf16.msra.mxu0 %v8187
    %8267 = vmatprep.subr.bf16.mxu0 0
    %8268 = vmatpush2.bf16.msra.mxu0 %v8202
    %8269 = vmatprep.subr.bf16.mxu0 0
    %8270 = vmatpush2.bf16.msra.mxu0 %v8201
    %8271 = vmatprep.subr.bf16.mxu0 0
    %8272 = vmatpush2.bf16.msra.mxu0 %v8200
    %8273 = vmatprep.subr.bf16.mxu0 0
    %8274 = vmatpush2.bf16.msra.mxu0 %v8199
    %8275 = vmatprep.subr.bf16.mxu0 0
    %8276 = vmatpush2.bf16.msra.mxu0 %v8198
    %8277 = vmatprep.subr.bf16.mxu0 0
    %8278 = vmatpush2.bf16.msra.mxu0 %v8197
    %8279 = vmatprep.subr.bf16.mxu0 0
    %8280 = vmatpush2.bf16.msra.mxu0 %v8196
    %8281 = vmatprep.subr.bf16.mxu0 0
    %8282 = vmatpush2.bf16.msra.mxu0 %v8195
    %8283 = vmatprep.mubr.bf16.mxu0 %v7985
    %8284 = vmatmul.mubr.bf16.gmra.mxu0 %v7984
    %v8285 = vpop.f32.mrf.mxu0
    %v8286 = vadd.f32 %v8057, %v8285
    %v8287 = vpop.f32.mrf.mxu0
    %v8288 = vpop.f32.mrf.mxu0
    %v8289 = vpop.f32.mrf.mxu0
    %8290 = vdwg.mxu0
    %8291 = vmatprep.subr.bf16.mxu0 0
    %8292 = vmatpush1.bf16.msra.mxu0 %v8210
    %8293 = vmatprep.subr.bf16.mxu0 0
    %8294 = vmatpush1.bf16.msra.mxu0 %v8209
    %8295 = vmatprep.subr.bf16.mxu0 0
    %8296 = vmatpush1.bf16.msra.mxu0 %v8208
    %8297 = vmatprep.subr.bf16.mxu0 0
    %8298 = vmatpush1.bf16.msra.mxu0 %v8207
    %8299 = vmatprep.subr.bf16.mxu0 0
    %8300 = vmatpush1.bf16.msra.mxu0 %v8206
    %8301 = vmatprep.subr.bf16.mxu0 0
    %8302 = vmatpush1.bf16.msra.mxu0 %v8205
    %8303 = vmatprep.subr.bf16.mxu0 0
    %8304 = vmatpush1.bf16.msra.mxu0 %v8204
    %8305 = vmatprep.subr.bf16.mxu0 0
    %8306 = vmatpush1.bf16.msra.mxu0 %v8203
    %8307 = vmatprep.subr.bf16.mxu0 0
    %8308 = vmatpush2.bf16.msra.mxu0 %v8218
    %8309 = vmatprep.subr.bf16.mxu0 0
    %8310 = vmatpush2.bf16.msra.mxu0 %v8217
    %8311 = vmatprep.subr.bf16.mxu0 0
    %8312 = vmatpush2.bf16.msra.mxu0 %v8216
    %8313 = vmatprep.subr.bf16.mxu0 0
    %8314 = vmatpush2.bf16.msra.mxu0 %v8215
    %8315 = vmatprep.subr.bf16.mxu0 0
    %8316 = vmatpush2.bf16.msra.mxu0 %v8214
    %8317 = vmatprep.subr.bf16.mxu0 0
    %8318 = vmatpush2.bf16.msra.mxu0 %v8213
    %8319 = vmatprep.subr.bf16.mxu0 0
    %8320 = vmatpush2.bf16.msra.mxu0 %v8212
    %8321 = vmatprep.subr.bf16.mxu0 0
    %8322 = vmatpush2.bf16.msra.mxu0 %v8211
    %8323 = vmatprep.mubr.bf16.mxu0 %v7987
    %8324 = vmatmul.mubr.bf16.gmra.mxu0 %v7986
    %v8325 = vpop.f32.mrf.mxu0
    %v8326 = vadd.f32 %v8286, %v8325
    %v8327 = vpop.f32.mrf.mxu0
    %v8328 = vpop.f32.mrf.mxu0
    %v8329 = vpop.f32.mrf.mxu0
    %8330 = vdwg.mxu0
    %v8331 = vxor.u32 %v8326, 2147483648
    %v8332 = vmul.f32 %v8331, 1.442695
    %v8333 = vpow.pop %v8332
    %v8334 = vadd.f32 %v8333, 1.0
    %v8335 = vrcp.pop %v8334
    %v8336 = vmul.f32 1.0, %v8335
    %8337 = vst [vmem:[#allocation14] sm:$0xff] %v8336
    // Predicated region
    $region54: #{tpu_custom_call.1} parent=1 // pred_check
      _
    $region55: #{tpu_custom_call.1} parent=1 // pred_check_branch
      %8339 = sbr.rel (0) target = $region57
    $region56: #{tpu_custom_call.1} parent=1 // pred_region
      %s8341 = ssub.s32 128, 128
      %8342 = vsyncadd [#allocation5], %s8341
      %s8344 = sshll.u32 [#allocation14], 4
      %s8345 = int_to_ptr.vmem [resolvable:$true] %s8344
      %8347 = dma.vmem_to_hbm [thread:$0]  %s8345, 128, %s7, [#allocation5]
    $region57: #{tpu_custom_call.1} parent=1 // pred_fallthru
      _
    // Predicated region
    $region58: #{tpu_custom_call.1} parent=1 // pred_check
      _
    $region59: #{tpu_custom_call.1} parent=1 // pred_check_branch
      %8349 = sbr.rel (0) target = $region61
    $region60: #{tpu_custom_call.1} parent=1 // pred_region
      %8350 = dma.done [#allocation5], 128
    $region61: #{tpu_custom_call.1} parent=1 // pred_fallthru
      _
    %8351 = vsyncpa [#allocation4], 1
    %8352 = vsyncpa [#allocation7], 1
    %8353 = vsyncpa [#allocation10], 1
    %8354 = vsyncpa [#allocation13], 1
    %8355 = vsyncpa [#allocation5], 1

</llo_original>
